<compile_context>
chip_gen: v7x
topology: tpu7x:2x2x1
jax: 0.10.0
libtpu: 0.0.40
codegen_flags: <defaults>
</compile_context>

<pallas_src>
import functools
import math

import numpy as np
import jax
import jax.numpy as jnp
from jax import lax
from jax.experimental import pallas as pl
from jax.experimental.pallas import tpu as pltpu

# ---------------- configuration ----------------
D_IN_1, D_IN_2, D_OUT, D_HIDDEN, N_LAYERS = 3, 1, 9, 32, 5
SKIP_IN = (4,)
BIAS = 0.5
SCALE = 2.0
INSIDE_OUTSIDE = False
D0 = D_IN_1 + D_IN_2  # concatenated input width (4)

_NT = (((1,), (1,)), ((), ()))  # contract the last dim of both operands (q @ k^T)


def build_dims():
    return [D0] + [D_HIDDEN] * N_LAYERS + [D_OUT]


def init_params(key):
    """Geometric init matching SDFNetwork.__init__ (multires=0).

    Weights are stored in PyTorch nn.Linear layout: (out_features, in_features).
    """
    dims = build_dims()
    num_layers = len(dims)
    params = []
    for l in range(num_layers - 1):
        out_dim = dims[l + 1] - dims[0] if (l + 1 in SKIP_IN) else dims[l + 1]
        in_dim = dims[l]
        key, wk = jax.random.split(key)
        if l == num_layers - 2:
            mean = math.sqrt(math.pi) / math.sqrt(dims[l])
            if INSIDE_OUTSIDE:
                mean = -mean
            w = mean + 1e-4 * jax.random.normal(wk, (out_dim, in_dim), jnp.float32)
            b = jnp.full((out_dim,), BIAS if INSIDE_OUTSIDE else -BIAS, jnp.float32)
        else:
            std = math.sqrt(2.0) / math.sqrt(out_dim)
            w = std * jax.random.normal(wk, (out_dim, in_dim), jnp.float32)
            b = jnp.zeros((out_dim,), jnp.float32)
        params.append((w, b))
    return params


# ---------------- helpers ----------------
def _cdiv(a, b):
    return -(-a // b)


def _choose_tile(n, tb_max=8192):
    """Pick a batch tile (multiple of 128) and a grid size (>=2, even when possible)."""
    n = max(int(n), 1)
    nt = _cdiv(n, tb_max)
    if n > 256:
        nt = max(nt, 2)          # >=2 steps so both v7x TensorCores get work
    if nt > 1 and nt % 2 == 1:
        nt += 1                  # even split across the two cores
    tb = 128 * max(_cdiv(n, nt * 128), 1)
    nt = max(_cdiv(n, tb), 1)
    return tb, nt


def _act_compute_dtype():
    """bf16 softplus on v6e/v7x (bf16 EUP); f32 on <=v5 (no bf16 VPU/EUP)."""
    try:
        kind = jax.devices()[0].device_kind.lower()
    except Exception:
        return jnp.float32
    if any(f"v{v}" in kind for v in (2, 3, 4, 5)):
        return jnp.float32
    return jnp.bfloat16


# ---------------- kernel ----------------
def _sdf_kernel(pts_ref, topo_ref,
                w0p, w0t, b0,
                w1, b1, w2, b2, w3, b3,
                w4x, w4p, w4t, b4,
                w5, b5,
                out_ref, *, act_dtype, fused):
    """Lane-dense MLP: activations are (features, TB); batch rides the lane axis.

    fused=True : pts block is (TB, 3), output block is (TB, 9) (no wrapper passes).
    fused=False: pts block is (3, TB), output block is (9, TB) (v2-style fallback).
    """
    f32, bf16 = jnp.float32, jnp.bfloat16
    topo = topo_ref[...]                    # (1, TB) f32
    pts = pts_ref[...]                      # fused: (TB, 3) / fallback: (3, TB), f32

    def in_dot(w_ref):                      # -> (out, TB) f32, tiny K=3 matmul
        if fused:
            return lax.dot_general(w_ref[...], pts, _NT, preferred_element_type=f32)
        return jnp.dot(w_ref[...], pts, preferred_element_type=f32)

    def act(pre, out_dtype=bf16):
        # nn.Softplus(beta=100, threshold=20): x when 100*x > 20 else log(1+exp(100x))/100.
        x = pre.astype(act_dtype)
        z = x * 100.0
        sp = jnp.log(1.0 + jnp.exp(jnp.minimum(z, 20.0))) * 0.01
        return jnp.where(z > 20.0, x, sp).astype(out_dtype)

    # layer 0 (scale folded into w0p; topo contribution is a VPU broadcast)
    x = act(in_dot(w0p) + w0t[...] * topo + b0[...])                           # (32, TB)
    # layers 1..3 (bf16 MXU operands, f32 accumulate)
    x = act(jnp.dot(w1[...], x, preferred_element_type=f32) + b1[...])         # (32, TB)
    x = act(jnp.dot(w2[...], x, preferred_element_type=f32) + b2[...])         # (32, TB)
    x = act(jnp.dot(w3[...], x, preferred_element_type=f32) + b3[...])         # (28, TB)
    # skip layer (l=4): split matmul, 1/sqrt(2) and scale pre-folded into w4*.
    x = act(jnp.dot(w4x[...], x, preferred_element_type=f32)
            + in_dot(w4p) + w4t[...] * topo + b4[...],
            out_dtype=f32)                                                     # (32, TB) f32

    if fused:
        # Relayout to batch-major inside the kernel (no wrapper transpose pass),
        # then final layer as an NT dot: (TB,32) x (9,32)^T -> (TB,9).
        x_bm = jnp.transpose(x).astype(bf16)                                   # (TB, 32)
        out = lax.dot_general(x_bm, w5[...], _NT, preferred_element_type=f32)  # (TB, 9)
        out_ref[...] = out + b5[...]                                           # b5: (1, 9)
    else:
        out = jnp.dot(w5[...], x.astype(bf16), preferred_element_type=f32)     # (9, TB)
        out_ref[...] = out + b5[...]                                           # b5: (9, 1)


# ---------------- wrapper ----------------
def _prep_weights(params, fused):
    (w0, b0), (w1, b1), (w2, b2), (w3, b3), (w4, b4), (w5, b5) = params
    f32, bf16 = jnp.float32, jnp.bfloat16
    inv_s2 = float(1.0 / math.sqrt(2.0))
    col = lambda b: jnp.asarray(b, f32).reshape(-1, 1)

    w0 = jnp.asarray(w0, f32)
    w4 = jnp.asarray(w4, f32)
    w5 = jnp.asarray(w5, f32)
    n_x = w4.shape[1] - D0                                   # 28: width of x into the skip
    w5s = w5.at[0, :].multiply(1.0 / SCALE)                  # fold 1/scale on sdf channel
    b5s = jnp.asarray(b5, f32).at[0].multiply(1.0 / SCALE)

    return [
        (w0[:, :D_IN_1] * SCALE).astype(f32),                # w0p (32,3), scale folded
        w0[:, D_IN_1:].astype(f32),                          # w0t (32,1)
        col(b0),
        jnp.asarray(w1, bf16), col(b1),
        jnp.asarray(w2, bf16), col(b2),
        jnp.asarray(w3, bf16), col(b3),
        (w4[:, :n_x] * inv_s2).astype(bf16),                 # w4x (32,28)
        (w4[:, n_x:n_x + D_IN_1] * (SCALE * inv_s2)).astype(f32),   # w4p (32,3)
        (w4[:, n_x + D_IN_1:] * inv_s2).astype(f32),         # w4t (32,1)
        col(b4),
        w5s.astype(bf16),                                    # (9,32)
        b5s.reshape(1, -1) if fused else b5s.reshape(-1, 1), # (1,9) or (9,1)
    ]


def _forward(input_pts, topo_coord, params, *, tb_max, fused):
    N = input_pts.shape[0]
    tb, nt = _choose_tile(N, tb_max)
    act_dtype = _act_compute_dtype()

    topo_row = jnp.asarray(topo_coord, jnp.float32).reshape(1, -1)   # free (N,1)->(1,N)
    if fused:
        pts = jnp.asarray(input_pts, jnp.float32)                    # (N,3), read as-is
        pts_spec = pl.BlockSpec((tb, D_IN_1), lambda i: (i, 0))
        out_shape = jax.ShapeDtypeStruct((N, D_OUT), jnp.float32)
        out_spec = pl.BlockSpec((tb, D_OUT), lambda i: (i, 0))
    else:
        # v2-style fallback: one wrapper transpose on each side (known-good layout).
        pts = jnp.transpose(jnp.asarray(input_pts, jnp.float32))     # (3, N)
        pts_spec = pl.BlockSpec((D_IN_1, tb), lambda i: (0, i))
        out_shape = jax.ShapeDtypeStruct((D_OUT, N), jnp.float32)
        out_spec = pl.BlockSpec((D_OUT, tb), lambda i: (0, i))

    flat = _prep_weights(params, fused)
    topo_spec = pl.BlockSpec((1, tb), lambda i: (0, i))
    const = lambda i: (0, 0)
    in_specs = [pts_spec, topo_spec] + [pl.BlockSpec(a.shape, const) for a in flat]

    kernel = functools.partial(_sdf_kernel, act_dtype=act_dtype, fused=fused)
    out = pl.pallas_call(
        kernel,
        out_shape=out_shape,
        grid_spec=pltpu.PrefetchScalarGridSpec(
            num_scalar_prefetch=0,
            grid=(nt,),
            in_specs=in_specs,
            out_specs=out_spec,
        ),
        compiler_params=pltpu.CompilerParams(dimension_semantics=("parallel",)),
    )(pts, topo_row, *flat)

    return out if fused else jnp.transpose(out)


def sdf_forward(input_pts, topo_coord, alpha_ratio, params, tb_max=8192):
    """Forward pass. input_pts: (N, 3), topo_coord: (N, 1) -> (N, D_OUT)."""
    del alpha_ratio  # TODO(synk): only feeds the multires>0 embedders (disabled here).
    try:
        # Fully fused layout: zero wrapper-side HBM passes.
        return _forward(input_pts, topo_coord, params, tb_max=tb_max, fused=True)
    except Exception:
        # Fallback if the in-kernel relayout (NT dot / 2-D transpose) does not lower
        # on this toolchain: same kernel math, v2-style wrapper transposes.
        return _forward(input_pts, topo_coord, params, tb_max=tb_max, fused=False)


# ---------------- pure-JAX reference (for verification) ----------------
def reference_forward(input_pts, topo_coord, alpha_ratio, params):
    del alpha_ratio

    def sp(x):
        z = 100.0 * x
        return jnp.where(z > 20.0, x, jnp.log1p(jnp.exp(jnp.minimum(z, 20.0))) / 100.0)

    inputs = jnp.concatenate([input_pts * SCALE, topo_coord], axis=-1)
    x = inputs
    for l, (w, b) in enumerate(params):
        if l in SKIP_IN:
            x = jnp.concatenate([x, inputs], axis=-1) / np.sqrt(2.0)
        x = x @ w.T + b
        if l < len(params) - 1:
            x = sp(x)
    return jnp.concatenate([x[:, :1] / SCALE, x[:, 1:]], axis=-1)


if __name__ == "__main__":
    key = jax.random.PRNGKey(0)
    kp, k1, k2 = jax.random.split(key, 3)
    params = init_params(kp)

    # Small demo: ragged N (exercises boundary masking) and >= 2 grid steps.
    N = 2000
    input_pts = jax.random.normal(k1, (N, D_IN_1), dtype=jnp.float32)
    topo_coord = jax.random.normal(k2, (N, D_IN_2), dtype=jnp.float32)
    alpha_ratio = 1.0

    out = sdf_forward(input_pts, topo_coord, alpha_ratio, params)
    out = jax.block_until_ready(out)

    ref = reference_forward(input_pts, topo_coord, alpha_ratio, params)
    assert out.shape == (N, D_OUT)
    # bf16 MXU operands (and bf16 softplus on v6e/v7x) -> relaxed tolerance vs f32 ref.
    np.testing.assert_allclose(np.asarray(out), np.asarray(ref), rtol=0.1, atol=0.15)
    print("KERNEL_OK")
</pallas_src>

<mosaic_0001>
module attributes {stable_mosaic.version = 11 : i64} {
  func.func @_sdf_kernel(%arg0: i32, %arg1: memref<1024x3xf32, #tpu.memory_space<vmem>>, %arg2: memref<1x1024xf32, #tpu.memory_space<vmem>>, %arg3: memref<32x3xf32, #tpu.memory_space<vmem>>, %arg4: memref<32x1xf32, #tpu.memory_space<vmem>>, %arg5: memref<32x1xf32, #tpu.memory_space<vmem>>, %arg6: memref<32x32xbf16, #tpu.memory_space<vmem>>, %arg7: memref<32x1xf32, #tpu.memory_space<vmem>>, %arg8: memref<32x32xbf16, #tpu.memory_space<vmem>>, %arg9: memref<32x1xf32, #tpu.memory_space<vmem>>, %arg10: memref<28x32xbf16, #tpu.memory_space<vmem>>, %arg11: memref<28x1xf32, #tpu.memory_space<vmem>>, %arg12: memref<32x28xbf16, #tpu.memory_space<vmem>>, %arg13: memref<32x3xf32, #tpu.memory_space<vmem>>, %arg14: memref<32x1xf32, #tpu.memory_space<vmem>>, %arg15: memref<32x1xf32, #tpu.memory_space<vmem>>, %arg16: memref<9x32xbf16, #tpu.memory_space<vmem>>, %arg17: memref<1x9xf32, #tpu.memory_space<vmem>>, %arg18: memref<1024x9xf32, #tpu.memory_space<vmem>>) attributes {dimension_semantics = [#tpu.dimension_semantics<parallel>], iteration_bounds = array<i64: 2>, scalar_prefetch = 0 : i64, scratch_operands = 0 : i64, tpu.core_type = #tpu.core_type<tc>, window_params = [{transform_indices = @transform_0, window_bounds = array<i64: 1024, 3>}, {transform_indices = @transform_1, window_bounds = array<i64: 1, 1024>}, {pipeline_mode = #tpu.pipeline_mode<synchronous>, transform_indices = @transform_2, window_bounds = array<i64: 32, 3>}, {pipeline_mode = #tpu.pipeline_mode<synchronous>, transform_indices = @transform_3, window_bounds = array<i64: 32, 1>}, {pipeline_mode = #tpu.pipeline_mode<synchronous>, transform_indices = @transform_4, window_bounds = array<i64: 32, 1>}, {pipeline_mode = #tpu.pipeline_mode<synchronous>, transform_indices = @transform_5, window_bounds = array<i64: 32, 32>}, {pipeline_mode = #tpu.pipeline_mode<synchronous>, transform_indices = @transform_6, window_bounds = array<i64: 32, 1>}, {pipeline_mode = #tpu.pipeline_mode<synchronous>, transform_indices = @transform_7, window_bounds = array<i64: 32, 32>}, {pipeline_mode = #tpu.pipeline_mode<synchronous>, transform_indices = @transform_8, window_bounds = array<i64: 32, 1>}, {pipeline_mode = #tpu.pipeline_mode<synchronous>, transform_indices = @transform_9, window_bounds = array<i64: 28, 32>}, {pipeline_mode = #tpu.pipeline_mode<synchronous>, transform_indices = @transform_10, window_bounds = array<i64: 28, 1>}, {pipeline_mode = #tpu.pipeline_mode<synchronous>, transform_indices = @transform_11, window_bounds = array<i64: 32, 28>}, {pipeline_mode = #tpu.pipeline_mode<synchronous>, transform_indices = @transform_12, window_bounds = array<i64: 32, 3>}, {pipeline_mode = #tpu.pipeline_mode<synchronous>, transform_indices = @transform_13, window_bounds = array<i64: 32, 1>}, {pipeline_mode = #tpu.pipeline_mode<synchronous>, transform_indices = @transform_14, window_bounds = array<i64: 32, 1>}, {pipeline_mode = #tpu.pipeline_mode<synchronous>, transform_indices = @transform_15, window_bounds = array<i64: 9, 32>}, {pipeline_mode = #tpu.pipeline_mode<synchronous>, transform_indices = @transform_16, window_bounds = array<i64: 1, 9>}, {transform_indices = @transform_17, window_bounds = array<i64: 1024, 9>}]} {
    %c0 = arith.constant 0 : index
    %c0_0 = arith.constant 0 : index
    %0 = vector.load %arg2[%c0, %c0_0] : memref<1x1024xf32, #tpu.memory_space<vmem>>, vector<1x1024xf32>
    %c0_1 = arith.constant 0 : index
    %c0_2 = arith.constant 0 : index
    %1 = vector.load %arg1[%c0_1, %c0_2] : memref<1024x3xf32, #tpu.memory_space<vmem>>, vector<1024x3xf32>
    %c0_3 = arith.constant 0 : index
    %c0_4 = arith.constant 0 : index
    %2 = vector.load %arg3[%c0_3, %c0_4] : memref<32x3xf32, #tpu.memory_space<vmem>>, vector<32x3xf32>
    %cst = arith.constant dense<0.000000e+00> : vector<32x1024xf32>
    %3 = tpu.matmul %2, %1, %cst {dimension_numbers = #tpu.dot_dimension_numbers<[1], [1], [0], [0], [0, 0, 1, 0], [], []>} : vector<32x3xf32>, vector<1024x3xf32>, vector<32x1024xf32> -> vector<32x1024xf32>
    %c0_5 = arith.constant 0 : index
    %c0_6 = arith.constant 0 : index
    %4 = vector.load %arg4[%c0_5, %c0_6] : memref<32x1xf32, #tpu.memory_space<vmem>>, vector<32x1xf32>
    %5 = vector.broadcast %4 : vector<32x1xf32> to vector<32x1024xf32>
    %6 = vector.broadcast %0 : vector<1x1024xf32> to vector<32x1024xf32>
    %7 = arith.mulf %5, %6 : vector<32x1024xf32>
    %8 = arith.addf %3, %7 : vector<32x1024xf32>
    %c0_7 = arith.constant 0 : index
    %c0_8 = arith.constant 0 : index
    %9 = vector.load %arg5[%c0_7, %c0_8] : memref<32x1xf32, #tpu.memory_space<vmem>>, vector<32x1xf32>
    %10 = vector.broadcast %9 : vector<32x1xf32> to vector<32x1024xf32>
    %11 = arith.addf %8, %10 : vector<32x1024xf32>
    %12 = arith.truncf %11 : vector<32x1024xf32> to vector<32x1024xbf16>
    %cst_9 = arith.constant 1.000000e+02 : bf16
    %13 = vector.broadcast %cst_9 : bf16 to vector<32x1024xbf16>
    %14 = arith.mulf %12, %13 : vector<32x1024xbf16>
    %cst_10 = arith.constant 2.000000e+01 : bf16
    %15 = vector.broadcast %cst_10 : bf16 to vector<32x1024xbf16>
    %16 = arith.minimumf %14, %15 : vector<32x1024xbf16>
    %17 = math.exp %16 : vector<32x1024xbf16>
    %cst_11 = arith.constant 1.000000e+00 : bf16
    %18 = vector.broadcast %cst_11 : bf16 to vector<32x1024xbf16>
    %19 = arith.addf %18, %17 : vector<32x1024xbf16>
    %20 = math.log %19 : vector<32x1024xbf16>
    %cst_12 = arith.constant 1.000980e-02 : bf16
    %21 = vector.broadcast %cst_12 : bf16 to vector<32x1024xbf16>
    %22 = arith.mulf %20, %21 : vector<32x1024xbf16>
    %cst_13 = arith.constant 2.000000e+01 : bf16
    %23 = vector.broadcast %cst_13 : bf16 to vector<32x1024xbf16>
    %24 = arith.cmpf ogt, %14, %23 : vector<32x1024xbf16>
    %25 = arith.select %24, %12, %22 : vector<32x1024xi1>, vector<32x1024xbf16>
    %c0_14 = arith.constant 0 : index
    %c0_15 = arith.constant 0 : index
    %26 = vector.load %arg6[%c0_14, %c0_15] : memref<32x32xbf16, #tpu.memory_space<vmem>>, vector<32x32xbf16>
    %cst_16 = arith.constant dense<0.000000e+00> : vector<32x1024xf32>
    %27 = tpu.matmul %26, %25, %cst_16 {dimension_numbers = #tpu.dot_dimension_numbers<[1], [0], [0], [1], [0, 0, 1, 1], [], []>} : vector<32x32xbf16>, vector<32x1024xbf16>, vector<32x1024xf32> -> vector<32x1024xf32>
    %c0_17 = arith.constant 0 : index
    %c0_18 = arith.constant 0 : index
    %28 = vector.load %arg7[%c0_17, %c0_18] : memref<32x1xf32, #tpu.memory_space<vmem>>, vector<32x1xf32>
    %29 = vector.broadcast %28 : vector<32x1xf32> to vector<32x1024xf32>
    %30 = arith.addf %27, %29 : vector<32x1024xf32>
    %31 = arith.truncf %30 : vector<32x1024xf32> to vector<32x1024xbf16>
    %cst_19 = arith.constant 1.000000e+02 : bf16
    %32 = vector.broadcast %cst_19 : bf16 to vector<32x1024xbf16>
    %33 = arith.mulf %31, %32 : vector<32x1024xbf16>
    %cst_20 = arith.constant 2.000000e+01 : bf16
    %34 = vector.broadcast %cst_20 : bf16 to vector<32x1024xbf16>
    %35 = arith.minimumf %33, %34 : vector<32x1024xbf16>
    %36 = math.exp %35 : vector<32x1024xbf16>
    %cst_21 = arith.constant 1.000000e+00 : bf16
    %37 = vector.broadcast %cst_21 : bf16 to vector<32x1024xbf16>
    %38 = arith.addf %37, %36 : vector<32x1024xbf16>
    %39 = math.log %38 : vector<32x1024xbf16>
    %cst_22 = arith.constant 1.000980e-02 : bf16
    %40 = vector.broadcast %cst_22 : bf16 to vector<32x1024xbf16>
    %41 = arith.mulf %39, %40 : vector<32x1024xbf16>
    %cst_23 = arith.constant 2.000000e+01 : bf16
    %42 = vector.broadcast %cst_23 : bf16 to vector<32x1024xbf16>
    %43 = arith.cmpf ogt, %33, %42 : vector<32x1024xbf16>
    %44 = arith.select %43, %31, %41 : vector<32x1024xi1>, vector<32x1024xbf16>
    %c0_24 = arith.constant 0 : index
    %c0_25 = arith.constant 0 : index
    %45 = vector.load %arg8[%c0_24, %c0_25] : memref<32x32xbf16, #tpu.memory_space<vmem>>, vector<32x32xbf16>
    %cst_26 = arith.constant dense<0.000000e+00> : vector<32x1024xf32>
    %46 = tpu.matmul %45, %44, %cst_26 {dimension_numbers = #tpu.dot_dimension_numbers<[1], [0], [0], [1], [0, 0, 1, 1], [], []>} : vector<32x32xbf16>, vector<32x1024xbf16>, vector<32x1024xf32> -> vector<32x1024xf32>
    %c0_27 = arith.constant 0 : index
    %c0_28 = arith.constant 0 : index
    %47 = vector.load %arg9[%c0_27, %c0_28] : memref<32x1xf32, #tpu.memory_space<vmem>>, vector<32x1xf32>
    %48 = vector.broadcast %47 : vector<32x1xf32> to vector<32x1024xf32>
    %49 = arith.addf %46, %48 : vector<32x1024xf32>
    %50 = arith.truncf %49 : vector<32x1024xf32> to vector<32x1024xbf16>
    %cst_29 = arith.constant 1.000000e+02 : bf16
    %51 = vector.broadcast %cst_29 : bf16 to vector<32x1024xbf16>
    %52 = arith.mulf %50, %51 : vector<32x1024xbf16>
    %cst_30 = arith.constant 2.000000e+01 : bf16
    %53 = vector.broadcast %cst_30 : bf16 to vector<32x1024xbf16>
    %54 = arith.minimumf %52, %53 : vector<32x1024xbf16>
    %55 = math.exp %54 : vector<32x1024xbf16>
    %cst_31 = arith.constant 1.000000e+00 : bf16
    %56 = vector.broadcast %cst_31 : bf16 to vector<32x1024xbf16>
    %57 = arith.addf %56, %55 : vector<32x1024xbf16>
    %58 = math.log %57 : vector<32x1024xbf16>
    %cst_32 = arith.constant 1.000980e-02 : bf16
    %59 = vector.broadcast %cst_32 : bf16 to vector<32x1024xbf16>
    %60 = arith.mulf %58, %59 : vector<32x1024xbf16>
    %cst_33 = arith.constant 2.000000e+01 : bf16
    %61 = vector.broadcast %cst_33 : bf16 to vector<32x1024xbf16>
    %62 = arith.cmpf ogt, %52, %61 : vector<32x1024xbf16>
    %63 = arith.select %62, %50, %60 : vector<32x1024xi1>, vector<32x1024xbf16>
    %c0_34 = arith.constant 0 : index
    %c0_35 = arith.constant 0 : index
    %64 = vector.load %arg10[%c0_34, %c0_35] : memref<28x32xbf16, #tpu.memory_space<vmem>>, vector<28x32xbf16>
    %cst_36 = arith.constant dense<0.000000e+00> : vector<28x1024xf32>
    %65 = tpu.matmul %64, %63, %cst_36 {dimension_numbers = #tpu.dot_dimension_numbers<[1], [0], [0], [1], [0, 0, 1, 1], [], []>} : vector<28x32xbf16>, vector<32x1024xbf16>, vector<28x1024xf32> -> vector<28x1024xf32>
    %c0_37 = arith.constant 0 : index
    %c0_38 = arith.constant 0 : index
    %66 = vector.load %arg11[%c0_37, %c0_38] : memref<28x1xf32, #tpu.memory_space<vmem>>, vector<28x1xf32>
    %67 = vector.broadcast %66 : vector<28x1xf32> to vector<28x1024xf32>
    %68 = arith.addf %65, %67 : vector<28x1024xf32>
    %69 = arith.truncf %68 : vector<28x1024xf32> to vector<28x1024xbf16>
    %cst_39 = arith.constant 1.000000e+02 : bf16
    %70 = vector.broadcast %cst_39 : bf16 to vector<28x1024xbf16>
    %71 = arith.mulf %69, %70 : vector<28x1024xbf16>
    %cst_40 = arith.constant 2.000000e+01 : bf16
    %72 = vector.broadcast %cst_40 : bf16 to vector<28x1024xbf16>
    %73 = arith.minimumf %71, %72 : vector<28x1024xbf16>
    %74 = math.exp %73 : vector<28x1024xbf16>
    %cst_41 = arith.constant 1.000000e+00 : bf16
    %75 = vector.broadcast %cst_41 : bf16 to vector<28x1024xbf16>
    %76 = arith.addf %75, %74 : vector<28x1024xbf16>
    %77 = math.log %76 : vector<28x1024xbf16>
    %cst_42 = arith.constant 1.000980e-02 : bf16
    %78 = vector.broadcast %cst_42 : bf16 to vector<28x1024xbf16>
    %79 = arith.mulf %77, %78 : vector<28x1024xbf16>
    %cst_43 = arith.constant 2.000000e+01 : bf16
    %80 = vector.broadcast %cst_43 : bf16 to vector<28x1024xbf16>
    %81 = arith.cmpf ogt, %71, %80 : vector<28x1024xbf16>
    %82 = arith.select %81, %69, %79 : vector<28x1024xi1>, vector<28x1024xbf16>
    %c0_44 = arith.constant 0 : index
    %c0_45 = arith.constant 0 : index
    %83 = vector.load %arg12[%c0_44, %c0_45] : memref<32x28xbf16, #tpu.memory_space<vmem>>, vector<32x28xbf16>
    %cst_46 = arith.constant dense<0.000000e+00> : vector<32x1024xf32>
    %84 = tpu.matmul %83, %82, %cst_46 {dimension_numbers = #tpu.dot_dimension_numbers<[1], [0], [0], [1], [0, 0, 1, 1], [], []>} : vector<32x28xbf16>, vector<28x1024xbf16>, vector<32x1024xf32> -> vector<32x1024xf32>
    %c0_47 = arith.constant 0 : index
    %c0_48 = arith.constant 0 : index
    %85 = vector.load %arg13[%c0_47, %c0_48] : memref<32x3xf32, #tpu.memory_space<vmem>>, vector<32x3xf32>
    %cst_49 = arith.constant dense<0.000000e+00> : vector<32x1024xf32>
    %86 = tpu.matmul %85, %1, %cst_49 {dimension_numbers = #tpu.dot_dimension_numbers<[1], [1], [0], [0], [0, 0, 1, 0], [], []>} : vector<32x3xf32>, vector<1024x3xf32>, vector<32x1024xf32> -> vector<32x1024xf32>
    %87 = arith.addf %84, %86 : vector<32x1024xf32>
    %c0_50 = arith.constant 0 : index
    %c0_51 = arith.constant 0 : index
    %88 = vector.load %arg14[%c0_50, %c0_51] : memref<32x1xf32, #tpu.memory_space<vmem>>, vector<32x1xf32>
    %89 = vector.broadcast %88 : vector<32x1xf32> to vector<32x1024xf32>
    %90 = vector.broadcast %0 : vector<1x1024xf32> to vector<32x1024xf32>
    %91 = arith.mulf %89, %90 : vector<32x1024xf32>
    %92 = arith.addf %87, %91 : vector<32x1024xf32>
    %c0_52 = arith.constant 0 : index
    %c0_53 = arith.constant 0 : index
    %93 = vector.load %arg15[%c0_52, %c0_53] : memref<32x1xf32, #tpu.memory_space<vmem>>, vector<32x1xf32>
    %94 = vector.broadcast %93 : vector<32x1xf32> to vector<32x1024xf32>
    %95 = arith.addf %92, %94 : vector<32x1024xf32>
    %96 = arith.truncf %95 : vector<32x1024xf32> to vector<32x1024xbf16>
    %cst_54 = arith.constant 1.000000e+02 : bf16
    %97 = vector.broadcast %cst_54 : bf16 to vector<32x1024xbf16>
    %98 = arith.mulf %96, %97 : vector<32x1024xbf16>
    %cst_55 = arith.constant 2.000000e+01 : bf16
    %99 = vector.broadcast %cst_55 : bf16 to vector<32x1024xbf16>
    %100 = arith.minimumf %98, %99 : vector<32x1024xbf16>
    %101 = math.exp %100 : vector<32x1024xbf16>
    %cst_56 = arith.constant 1.000000e+00 : bf16
    %102 = vector.broadcast %cst_56 : bf16 to vector<32x1024xbf16>
    %103 = arith.addf %102, %101 : vector<32x1024xbf16>
    %104 = math.log %103 : vector<32x1024xbf16>
    %cst_57 = arith.constant 1.000980e-02 : bf16
    %105 = vector.broadcast %cst_57 : bf16 to vector<32x1024xbf16>
    %106 = arith.mulf %104, %105 : vector<32x1024xbf16>
    %cst_58 = arith.constant 2.000000e+01 : bf16
    %107 = vector.broadcast %cst_58 : bf16 to vector<32x1024xbf16>
    %108 = arith.cmpf ogt, %98, %107 : vector<32x1024xbf16>
    %109 = arith.select %108, %96, %106 : vector<32x1024xi1>, vector<32x1024xbf16>
    %110 = arith.extf %109 : vector<32x1024xbf16> to vector<32x1024xf32>
    %111 = tpu.transpose %110, [1, 0] : vector<32x1024xf32> -> vector<1024x32xf32>
    %112 = arith.truncf %111 : vector<1024x32xf32> to vector<1024x32xbf16>
    %c0_59 = arith.constant 0 : index
    %c0_60 = arith.constant 0 : index
    %113 = vector.load %arg16[%c0_59, %c0_60] : memref<9x32xbf16, #tpu.memory_space<vmem>>, vector<9x32xbf16>
    %cst_61 = arith.constant dense<0.000000e+00> : vector<1024x9xf32>
    %114 = tpu.matmul %112, %113, %cst_61 {dimension_numbers = #tpu.dot_dimension_numbers<[1], [1], [0], [0], [0, 0, 1, 0], [], []>} : vector<1024x32xbf16>, vector<9x32xbf16>, vector<1024x9xf32> -> vector<1024x9xf32>
    %c0_62 = arith.constant 0 : index
    %c0_63 = arith.constant 0 : index
    %115 = vector.load %arg17[%c0_62, %c0_63] : memref<1x9xf32, #tpu.memory_space<vmem>>, vector<1x9xf32>
    %116 = vector.broadcast %115 : vector<1x9xf32> to vector<1024x9xf32>
    %117 = arith.addf %114, %116 : vector<1024x9xf32>
    %c0_64 = arith.constant 0 : index
    %c0_65 = arith.constant 0 : index
    %118 = vector.load %arg18[%c0_64, %c0_65] : memref<1024x9xf32, #tpu.memory_space<vmem>>, vector<1024x9xf32>
    tpu.vector_store %arg18[%c0_64, %c0_65], %117 {strides = array<i32>} : memref<1024x9xf32, #tpu.memory_space<vmem>>, vector<1024x9xf32>,
    return
  }
  func.func @transform_0(%arg0: i32) -> (i32, i32) {
    %c0_i32 = arith.constant 0 : i32
    %c0_i32_0 = arith.constant 0 : i32
    return %arg0, %c0_i32 : i32, i32
  }
  func.func @transform_1(%arg0: i32) -> (i32, i32) {
    %c0_i32 = arith.constant 0 : i32
    %c0_i32_0 = arith.constant 0 : i32
    return %c0_i32, %arg0 : i32, i32
  }
  func.func @transform_2(%arg0: i32) -> (i32, i32) {
    %c0_i32 = arith.constant 0 : i32
    %c0_i32_0 = arith.constant 0 : i32
    %c0_i32_1 = arith.constant 0 : i32
    return %c0_i32, %c0_i32_0 : i32, i32
  }
  func.func @transform_3(%arg0: i32) -> (i32, i32) {
    %c0_i32 = arith.constant 0 : i32
    %c0_i32_0 = arith.constant 0 : i32
    %c0_i32_1 = arith.constant 0 : i32
    return %c0_i32, %c0_i32_0 : i32, i32
  }
  func.func @transform_4(%arg0: i32) -> (i32, i32) {
    %c0_i32 = arith.constant 0 : i32
    %c0_i32_0 = arith.constant 0 : i32
    %c0_i32_1 = arith.constant 0 : i32
    return %c0_i32, %c0_i32_0 : i32, i32
  }
  func.func @transform_5(%arg0: i32) -> (i32, i32) {
    %c0_i32 = arith.constant 0 : i32
    %c0_i32_0 = arith.constant 0 : i32
    %c0_i32_1 = arith.constant 0 : i32
    return %c0_i32, %c0_i32_0 : i32, i32
  }
  func.func @transform_6(%arg0: i32) -> (i32, i32) {
    %c0_i32 = arith.constant 0 : i32
    %c0_i32_0 = arith.constant 0 : i32
    %c0_i32_1 = arith.constant 0 : i32
    return %c0_i32, %c0_i32_0 : i32, i32
  }
  func.func @transform_7(%arg0: i32) -> (i32, i32) {
    %c0_i32 = arith.constant 0 : i32
    %c0_i32_0 = arith.constant 0 : i32
    %c0_i32_1 = arith.constant 0 : i32
    return %c0_i32, %c0_i32_0 : i32, i32
  }
  func.func @transform_8(%arg0: i32) -> (i32, i32) {
    %c0_i32 = arith.constant 0 : i32
    %c0_i32_0 = arith.constant 0 : i32
    %c0_i32_1 = arith.constant 0 : i32
    return %c0_i32, %c0_i32_0 : i32, i32
  }
  func.func @transform_9(%arg0: i32) -> (i32, i32) {
    %c0_i32 = arith.constant 0 : i32
    %c0_i32_0 = arith.constant 0 : i32
    %c0_i32_1 = arith.constant 0 : i32
    return %c0_i32, %c0_i32_0 : i32, i32
  }
  func.func @transform_10(%arg0: i32) -> (i32, i32) {
    %c0_i32 = arith.constant 0 : i32
    %c0_i32_0 = arith.constant 0 : i32
    %c0_i32_1 = arith.constant 0 : i32
    return %c0_i32, %c0_i32_0 : i32, i32
  }
  func.func @transform_11(%arg0: i32) -> (i32, i32) {
    %c0_i32 = arith.constant 0 : i32
    %c0_i32_0 = arith.constant 0 : i32
    %c0_i32_1 = arith.constant 0 : i32
    return %c0_i32, %c0_i32_0 : i32, i32
  }
  func.func @transform_12(%arg0: i32) -> (i32, i32) {
    %c0_i32 = arith.constant 0 : i32
    %c0_i32_0 = arith.constant 0 : i32
    %c0_i32_1 = arith.constant 0 : i32
    return %c0_i32, %c0_i32_0 : i32, i32
  }
  func.func @transform_13(%arg0: i32) -> (i32, i32) {
    %c0_i32 = arith.constant 0 : i32
    %c0_i32_0 = arith.constant 0 : i32
    %c0_i32_1 = arith.constant 0 : i32
    return %c0_i32, %c0_i32_0 : i32, i32
  }
  func.func @transform_14(%arg0: i32) -> (i32, i32) {
    %c0_i32 = arith.constant 0 : i32
    %c0_i32_0 = arith.constant 0 : i32
    %c0_i32_1 = arith.constant 0 : i32
    return %c0_i32, %c0_i32_0 : i32, i32
  }
  func.func @transform_15(%arg0: i32) -> (i32, i32) {
    %c0_i32 = arith.constant 0 : i32
    %c0_i32_0 = arith.constant 0 : i32
    %c0_i32_1 = arith.constant 0 : i32
    return %c0_i32, %c0_i32_0 : i32, i32
  }
  func.func @transform_16(%arg0: i32) -> (i32, i32) {
    %c0_i32 = arith.constant 0 : i32
    %c0_i32_0 = arith.constant 0 : i32
    %c0_i32_1 = arith.constant 0 : i32
    return %c0_i32, %c0_i32_0 : i32, i32
  }
  func.func @transform_17(%arg0: i32) -> (i32, i32) {
    %c0_i32 = arith.constant 0 : i32
    %c0_i32_0 = arith.constant 0 : i32
    return %arg0, %c0_i32 : i32, i32
  }
}

module attributes {stable_mosaic.version = 11 : i64} {
  func.func @_sdf_kernel(%arg0: i32, %arg1: memref<3x1024xf32, #tpu.memory_space<vmem>>, %arg2: memref<1x1024xf32, #tpu.memory_space<vmem>>, %arg3: memref<32x3xf32, #tpu.memory_space<vmem>>, %arg4: memref<32x1xf32, #tpu.memory_space<vmem>>, %arg5: memref<32x1xf32, #tpu.memory_space<vmem>>, %arg6: memref<32x32xbf16, #tpu.memory_space<vmem>>, %arg7: memref<32x1xf32, #tpu.memory_space<vmem>>, %arg8: memref<32x32xbf16, #tpu.memory_space<vmem>>, %arg9: memref<32x1xf32, #tpu.memory_space<vmem>>, %arg10: memref<28x32xbf16, #tpu.memory_space<vmem>>, %arg11: memref<28x1xf32, #tpu.memory_space<vmem>>, %arg12: memref<32x28xbf16, #tpu.memory_space<vmem>>, %arg13: memref<32x3xf32, #tpu.memory_space<vmem>>, %arg14: memref<32x1xf32, #tpu.memory_space<vmem>>, %arg15: memref<32x1xf32, #tpu.memory_space<vmem>>, %arg16: memref<9x32xbf16, #tpu.memory_space<vmem>>, %arg17: memref<9x1xf32, #tpu.memory_space<vmem>>, %arg18: memref<9x1024xf32, #tpu.memory_space<vmem>>) attributes {dimension_semantics = [#tpu.dimension_semantics<parallel>], iteration_bounds = array<i64: 2>, scalar_prefetch = 0 : i64, scratch_operands = 0 : i64, tpu.core_type = #tpu.core_type<tc>, window_params = [{transform_indices = @transform_0, window_bounds = array<i64: 3, 1024>}, {transform_indices = @transform_1, window_bounds = array<i64: 1, 1024>}, {pipeline_mode = #tpu.pipeline_mode<synchronous>, transform_indices = @transform_2, window_bounds = array<i64: 32, 3>}, {pipeline_mode = #tpu.pipeline_mode<synchronous>, transform_indices = @transform_3, window_bounds = array<i64: 32, 1>}, {pipeline_mode = #tpu.pipeline_mode<synchronous>, transform_indices = @transform_4, window_bounds = array<i64: 32, 1>}, {pipeline_mode = #tpu.pipeline_mode<synchronous>, transform_indices = @transform_5, window_bounds = array<i64: 32, 32>}, {pipeline_mode = #tpu.pipeline_mode<synchronous>, transform_indices = @transform_6, window_bounds = array<i64: 32, 1>}, {pipeline_mode = #tpu.pipeline_mode<synchronous>, transform_indices = @transform_7, window_bounds = array<i64: 32, 32>}, {pipeline_mode = #tpu.pipeline_mode<synchronous>, transform_indices = @transform_8, window_bounds = array<i64: 32, 1>}, {pipeline_mode = #tpu.pipeline_mode<synchronous>, transform_indices = @transform_9, window_bounds = array<i64: 28, 32>}, {pipeline_mode = #tpu.pipeline_mode<synchronous>, transform_indices = @transform_10, window_bounds = array<i64: 28, 1>}, {pipeline_mode = #tpu.pipeline_mode<synchronous>, transform_indices = @transform_11, window_bounds = array<i64: 32, 28>}, {pipeline_mode = #tpu.pipeline_mode<synchronous>, transform_indices = @transform_12, window_bounds = array<i64: 32, 3>}, {pipeline_mode = #tpu.pipeline_mode<synchronous>, transform_indices = @transform_13, window_bounds = array<i64: 32, 1>}, {pipeline_mode = #tpu.pipeline_mode<synchronous>, transform_indices = @transform_14, window_bounds = array<i64: 32, 1>}, {pipeline_mode = #tpu.pipeline_mode<synchronous>, transform_indices = @transform_15, window_bounds = array<i64: 9, 32>}, {pipeline_mode = #tpu.pipeline_mode<synchronous>, transform_indices = @transform_16, window_bounds = array<i64: 9, 1>}, {transform_indices = @transform_17, window_bounds = array<i64: 9, 1024>}]} {
    %c0 = arith.constant 0 : index
    %c0_0 = arith.constant 0 : index
    %0 = vector.load %arg2[%c0, %c0_0] : memref<1x1024xf32, #tpu.memory_space<vmem>>, vector<1x1024xf32>
    %c0_1 = arith.constant 0 : index
    %c0_2 = arith.constant 0 : index
    %1 = vector.load %arg1[%c0_1, %c0_2] : memref<3x1024xf32, #tpu.memory_space<vmem>>, vector<3x1024xf32>
    %c0_3 = arith.constant 0 : index
    %c0_4 = arith.constant 0 : index
    %2 = vector.load %arg3[%c0_3, %c0_4] : memref<32x3xf32, #tpu.memory_space<vmem>>, vector<32x3xf32>
    %cst = arith.constant dense<0.000000e+00> : vector<32x1024xf32>
    %3 = tpu.matmul %2, %1, %cst {dimension_numbers = #tpu.dot_dimension_numbers<[1], [0], [0], [1], [0, 0, 1, 1], [], []>} : vector<32x3xf32>, vector<3x1024xf32>, vector<32x1024xf32> -> vector<32x1024xf32>
    %c0_5 = arith.constant 0 : index
    %c0_6 = arith.constant 0 : index
    %4 = vector.load %arg4[%c0_5, %c0_6] : memref<32x1xf32, #tpu.memory_space<vmem>>, vector<32x1xf32>
    %5 = vector.broadcast %4 : vector<32x1xf32> to vector<32x1024xf32>
    %6 = vector.broadcast %0 : vector<1x1024xf32> to vector<32x1024xf32>
    %7 = arith.mulf %5, %6 : vector<32x1024xf32>
    %8 = arith.addf %3, %7 : vector<32x1024xf32>
    %c0_7 = arith.constant 0 : index
    %c0_8 = arith.constant 0 : index
    %9 = vector.load %arg5[%c0_7, %c0_8] : memref<32x1xf32, #tpu.memory_space<vmem>>, vector<32x1xf32>
    %10 = vector.broadcast %9 : vector<32x1xf32> to vector<32x1024xf32>
    %11 = arith.addf %8, %10 : vector<32x1024xf32>
    %12 = arith.truncf %11 : vector<32x1024xf32> to vector<32x1024xbf16>
    %cst_9 = arith.constant 1.000000e+02 : bf16
    %13 = vector.broadcast %cst_9 : bf16 to vector<32x1024xbf16>
    %14 = arith.mulf %12, %13 : vector<32x1024xbf16>
    %cst_10 = arith.constant 2.000000e+01 : bf16
    %15 = vector.broadcast %cst_10 : bf16 to vector<32x1024xbf16>
    %16 = arith.minimumf %14, %15 : vector<32x1024xbf16>
    %17 = math.exp %16 : vector<32x1024xbf16>
    %cst_11 = arith.constant 1.000000e+00 : bf16
    %18 = vector.broadcast %cst_11 : bf16 to vector<32x1024xbf16>
    %19 = arith.addf %18, %17 : vector<32x1024xbf16>
    %20 = math.log %19 : vector<32x1024xbf16>
    %cst_12 = arith.constant 1.000980e-02 : bf16
    %21 = vector.broadcast %cst_12 : bf16 to vector<32x1024xbf16>
    %22 = arith.mulf %20, %21 : vector<32x1024xbf16>
    %cst_13 = arith.constant 2.000000e+01 : bf16
    %23 = vector.broadcast %cst_13 : bf16 to vector<32x1024xbf16>
    %24 = arith.cmpf ogt, %14, %23 : vector<32x1024xbf16>
    %25 = arith.select %24, %12, %22 : vector<32x1024xi1>, vector<32x1024xbf16>
    %c0_14 = arith.constant 0 : index
    %c0_15 = arith.constant 0 : index
    %26 = vector.load %arg6[%c0_14, %c0_15] : memref<32x32xbf16, #tpu.memory_space<vmem>>, vector<32x32xbf16>
    %cst_16 = arith.constant dense<0.000000e+00> : vector<32x1024xf32>
    %27 = tpu.matmul %26, %25, %cst_16 {dimension_numbers = #tpu.dot_dimension_numbers<[1], [0], [0], [1], [0, 0, 1, 1], [], []>} : vector<32x32xbf16>, vector<32x1024xbf16>, vector<32x1024xf32> -> vector<32x1024xf32>
    %c0_17 = arith.constant 0 : index
    %c0_18 = arith.constant 0 : index
    %28 = vector.load %arg7[%c0_17, %c0_18] : memref<32x1xf32, #tpu.memory_space<vmem>>, vector<32x1xf32>
    %29 = vector.broadcast %28 : vector<32x1xf32> to vector<32x1024xf32>
    %30 = arith.addf %27, %29 : vector<32x1024xf32>
    %31 = arith.truncf %30 : vector<32x1024xf32> to vector<32x1024xbf16>
    %cst_19 = arith.constant 1.000000e+02 : bf16
    %32 = vector.broadcast %cst_19 : bf16 to vector<32x1024xbf16>
    %33 = arith.mulf %31, %32 : vector<32x1024xbf16>
    %cst_20 = arith.constant 2.000000e+01 : bf16
    %34 = vector.broadcast %cst_20 : bf16 to vector<32x1024xbf16>
    %35 = arith.minimumf %33, %34 : vector<32x1024xbf16>
    %36 = math.exp %35 : vector<32x1024xbf16>
    %cst_21 = arith.constant 1.000000e+00 : bf16
    %37 = vector.broadcast %cst_21 : bf16 to vector<32x1024xbf16>
    %38 = arith.addf %37, %36 : vector<32x1024xbf16>
    %39 = math.log %38 : vector<32x1024xbf16>
    %cst_22 = arith.constant 1.000980e-02 : bf16
    %40 = vector.broadcast %cst_22 : bf16 to vector<32x1024xbf16>
    %41 = arith.mulf %39, %40 : vector<32x1024xbf16>
    %cst_23 = arith.constant 2.000000e+01 : bf16
    %42 = vector.broadcast %cst_23 : bf16 to vector<32x1024xbf16>
    %43 = arith.cmpf ogt, %33, %42 : vector<32x1024xbf16>
    %44 = arith.select %43, %31, %41 : vector<32x1024xi1>, vector<32x1024xbf16>
    %c0_24 = arith.constant 0 : index
    %c0_25 = arith.constant 0 : index
    %45 = vector.load %arg8[%c0_24, %c0_25] : memref<32x32xbf16, #tpu.memory_space<vmem>>, vector<32x32xbf16>
    %cst_26 = arith.constant dense<0.000000e+00> : vector<32x1024xf32>
    %46 = tpu.matmul %45, %44, %cst_26 {dimension_numbers = #tpu.dot_dimension_numbers<[1], [0], [0], [1], [0, 0, 1, 1], [], []>} : vector<32x32xbf16>, vector<32x1024xbf16>, vector<32x1024xf32> -> vector<32x1024xf32>
    %c0_27 = arith.constant 0 : index
    %c0_28 = arith.constant 0 : index
    %47 = vector.load %arg9[%c0_27, %c0_28] : memref<32x1xf32, #tpu.memory_space<vmem>>, vector<32x1xf32>
    %48 = vector.broadcast %47 : vector<32x1xf32> to vector<32x1024xf32>
    %49 = arith.addf %46, %48 : vector<32x1024xf32>
    %50 = arith.truncf %49 : vector<32x1024xf32> to vector<32x1024xbf16>
    %cst_29 = arith.constant 1.000000e+02 : bf16
    %51 = vector.broadcast %cst_29 : bf16 to vector<32x1024xbf16>
    %52 = arith.mulf %50, %51 : vector<32x1024xbf16>
    %cst_30 = arith.constant 2.000000e+01 : bf16
    %53 = vector.broadcast %cst_30 : bf16 to vector<32x1024xbf16>
    %54 = arith.minimumf %52, %53 : vector<32x1024xbf16>
    %55 = math.exp %54 : vector<32x1024xbf16>
    %cst_31 = arith.constant 1.000000e+00 : bf16
    %56 = vector.broadcast %cst_31 : bf16 to vector<32x1024xbf16>
    %57 = arith.addf %56, %55 : vector<32x1024xbf16>
    %58 = math.log %57 : vector<32x1024xbf16>
    %cst_32 = arith.constant 1.000980e-02 : bf16
    %59 = vector.broadcast %cst_32 : bf16 to vector<32x1024xbf16>
    %60 = arith.mulf %58, %59 : vector<32x1024xbf16>
    %cst_33 = arith.constant 2.000000e+01 : bf16
    %61 = vector.broadcast %cst_33 : bf16 to vector<32x1024xbf16>
    %62 = arith.cmpf ogt, %52, %61 : vector<32x1024xbf16>
    %63 = arith.select %62, %50, %60 : vector<32x1024xi1>, vector<32x1024xbf16>
    %c0_34 = arith.constant 0 : index
    %c0_35 = arith.constant 0 : index
    %64 = vector.load %arg10[%c0_34, %c0_35] : memref<28x32xbf16, #tpu.memory_space<vmem>>, vector<28x32xbf16>
    %cst_36 = arith.constant dense<0.000000e+00> : vector<28x1024xf32>
    %65 = tpu.matmul %64, %63, %cst_36 {dimension_numbers = #tpu.dot_dimension_numbers<[1], [0], [0], [1], [0, 0, 1, 1], [], []>} : vector<28x32xbf16>, vector<32x1024xbf16>, vector<28x1024xf32> -> vector<28x1024xf32>
    %c0_37 = arith.constant 0 : index
    %c0_38 = arith.constant 0 : index
    %66 = vector.load %arg11[%c0_37, %c0_38] : memref<28x1xf32, #tpu.memory_space<vmem>>, vector<28x1xf32>
    %67 = vector.broadcast %66 : vector<28x1xf32> to vector<28x1024xf32>
    %68 = arith.addf %65, %67 : vector<28x1024xf32>
    %69 = arith.truncf %68 : vector<28x1024xf32> to vector<28x1024xbf16>
    %cst_39 = arith.constant 1.000000e+02 : bf16
    %70 = vector.broadcast %cst_39 : bf16 to vector<28x1024xbf16>
    %71 = arith.mulf %69, %70 : vector<28x1024xbf16>
    %cst_40 = arith.constant 2.000000e+01 : bf16
    %72 = vector.broadcast %cst_40 : bf16 to vector<28x1024xbf16>
    %73 = arith.minimumf %71, %72 : vector<28x1024xbf16>
    %74 = math.exp %73 : vector<28x1024xbf16>
    %cst_41 = arith.constant 1.000000e+00 : bf16
    %75 = vector.broadcast %cst_41 : bf16 to vector<28x1024xbf16>
    %76 = arith.addf %75, %74 : vector<28x1024xbf16>
    %77 = math.log %76 : vector<28x1024xbf16>
    %cst_42 = arith.constant 1.000980e-02 : bf16
    %78 = vector.broadcast %cst_42 : bf16 to vector<28x1024xbf16>
    %79 = arith.mulf %77, %78 : vector<28x1024xbf16>
    %cst_43 = arith.constant 2.000000e+01 : bf16
    %80 = vector.broadcast %cst_43 : bf16 to vector<28x1024xbf16>
    %81 = arith.cmpf ogt, %71, %80 : vector<28x1024xbf16>
    %82 = arith.select %81, %69, %79 : vector<28x1024xi1>, vector<28x1024xbf16>
    %c0_44 = arith.constant 0 : index
    %c0_45 = arith.constant 0 : index
    %83 = vector.load %arg12[%c0_44, %c0_45] : memref<32x28xbf16, #tpu.memory_space<vmem>>, vector<32x28xbf16>
    %cst_46 = arith.constant dense<0.000000e+00> : vector<32x1024xf32>
    %84 = tpu.matmul %83, %82, %cst_46 {dimension_numbers = #tpu.dot_dimension_numbers<[1], [0], [0], [1], [0, 0, 1, 1], [], []>} : vector<32x28xbf16>, vector<28x1024xbf16>, vector<32x1024xf32> -> vector<32x1024xf32>
    %c0_47 = arith.constant 0 : index
    %c0_48 = arith.constant 0 : index
    %85 = vector.load %arg13[%c0_47, %c0_48] : memref<32x3xf32, #tpu.memory_space<vmem>>, vector<32x3xf32>
    %cst_49 = arith.constant dense<0.000000e+00> : vector<32x1024xf32>
    %86 = tpu.matmul %85, %1, %cst_49 {dimension_numbers = #tpu.dot_dimension_numbers<[1], [0], [0], [1], [0, 0, 1, 1], [], []>} : vector<32x3xf32>, vector<3x1024xf32>, vector<32x1024xf32> -> vector<32x1024xf32>
    %87 = arith.addf %84, %86 : vector<32x1024xf32>
    %c0_50 = arith.constant 0 : index
    %c0_51 = arith.constant 0 : index
    %88 = vector.load %arg14[%c0_50, %c0_51] : memref<32x1xf32, #tpu.memory_space<vmem>>, vector<32x1xf32>
    %89 = vector.broadcast %88 : vector<32x1xf32> to vector<32x1024xf32>
    %90 = vector.broadcast %0 : vector<1x1024xf32> to vector<32x1024xf32>
    %91 = arith.mulf %89, %90 : vector<32x1024xf32>
    %92 = arith.addf %87, %91 : vector<32x1024xf32>
    %c0_52 = arith.constant 0 : index
    %c0_53 = arith.constant 0 : index
    %93 = vector.load %arg15[%c0_52, %c0_53] : memref<32x1xf32, #tpu.memory_space<vmem>>, vector<32x1xf32>
    %94 = vector.broadcast %93 : vector<32x1xf32> to vector<32x1024xf32>
    %95 = arith.addf %92, %94 : vector<32x1024xf32>
    %96 = arith.truncf %95 : vector<32x1024xf32> to vector<32x1024xbf16>
    %cst_54 = arith.constant 1.000000e+02 : bf16
    %97 = vector.broadcast %cst_54 : bf16 to vector<32x1024xbf16>
    %98 = arith.mulf %96, %97 : vector<32x1024xbf16>
    %cst_55 = arith.constant 2.000000e+01 : bf16
    %99 = vector.broadcast %cst_55 : bf16 to vector<32x1024xbf16>
    %100 = arith.minimumf %98, %99 : vector<32x1024xbf16>
    %101 = math.exp %100 : vector<32x1024xbf16>
    %cst_56 = arith.constant 1.000000e+00 : bf16
    %102 = vector.broadcast %cst_56 : bf16 to vector<32x1024xbf16>
    %103 = arith.addf %102, %101 : vector<32x1024xbf16>
    %104 = math.log %103 : vector<32x1024xbf16>
    %cst_57 = arith.constant 1.000980e-02 : bf16
    %105 = vector.broadcast %cst_57 : bf16 to vector<32x1024xbf16>
    %106 = arith.mulf %104, %105 : vector<32x1024xbf16>
    %cst_58 = arith.constant 2.000000e+01 : bf16
    %107 = vector.broadcast %cst_58 : bf16 to vector<32x1024xbf16>
    %108 = arith.cmpf ogt, %98, %107 : vector<32x1024xbf16>
    %109 = arith.select %108, %96, %106 : vector<32x1024xi1>, vector<32x1024xbf16>
    %110 = arith.extf %109 : vector<32x1024xbf16> to vector<32x1024xf32>
    %c0_59 = arith.constant 0 : index
    %c0_60 = arith.constant 0 : index
    %111 = vector.load %arg16[%c0_59, %c0_60] : memref<9x32xbf16, #tpu.memory_space<vmem>>, vector<9x32xbf16>
    %112 = arith.truncf %110 : vector<32x1024xf32> to vector<32x1024xbf16>
    %cst_61 = arith.constant dense<0.000000e+00> : vector<9x1024xf32>
    %113 = tpu.matmul %111, %112, %cst_61 {dimension_numbers = #tpu.dot_dimension_numbers<[1], [0], [0], [1], [0, 0, 1, 1], [], []>} : vector<9x32xbf16>, vector<32x1024xbf16>, vector<9x1024xf32> -> vector<9x1024xf32>
    %c0_62 = arith.constant 0 : index
    %c0_63 = arith.constant 0 : index
    %114 = vector.load %arg17[%c0_62, %c0_63] : memref<9x1xf32, #tpu.memory_space<vmem>>, vector<9x1xf32>
    %115 = vector.broadcast %114 : vector<9x1xf32> to vector<9x1024xf32>
    %116 = arith.addf %113, %115 : vector<9x1024xf32>
    %c0_64 = arith.constant 0 : index
    %c0_65 = arith.constant 0 : index
    %117 = vector.load %arg18[%c0_64, %c0_65] : memref<9x1024xf32, #tpu.memory_space<vmem>>, vector<9x1024xf32>
    tpu.vector_store %arg18[%c0_64, %c0_65], %116 {strides = array<i32>} : memref<9x1024xf32, #tpu.memory_space<vmem>>, vector<9x1024xf32>,
    return
  }
  func.func @transform_0(%arg0: i32) -> (i32, i32) {
    %c0_i32 = arith.constant 0 : i32
    %c0_i32_0 = arith.constant 0 : i32
    return %c0_i32, %arg0 : i32, i32
  }
  func.func @transform_1(%arg0: i32) -> (i32, i32) {
    %c0_i32 = arith.constant 0 : i32
    %c0_i32_0 = arith.constant 0 : i32
    return %c0_i32, %arg0 : i32, i32
  }
  func.func @transform_2(%arg0: i32) -> (i32, i32) {
    %c0_i32 = arith.constant 0 : i32
    %c0_i32_0 = arith.constant 0 : i32
    %c0_i32_1 = arith.constant 0 : i32
    return %c0_i32, %c0_i32_0 : i32, i32
  }
  func.func @transform_3(%arg0: i32) -> (i32, i32) {
    %c0_i32 = arith.constant 0 : i32
    %c0_i32_0 = arith.constant 0 : i32
    %c0_i32_1 = arith.constant 0 : i32
    return %c0_i32, %c0_i32_0 : i32, i32
  }
  func.func @transform_4(%arg0: i32) -> (i32, i32) {
    %c0_i32 = arith.constant 0 : i32
    %c0_i32_0 = arith.constant 0 : i32
    %c0_i32_1 = arith.constant 0 : i32
    return %c0_i32, %c0_i32_0 : i32, i32
  }
  func.func @transform_5(%arg0: i32) -> (i32, i32) {
    %c0_i32 = arith.constant 0 : i32
    %c0_i32_0 = arith.constant 0 : i32
    %c0_i32_1 = arith.constant 0 : i32
    return %c0_i32, %c0_i32_0 : i32, i32
  }
  func.func @transform_6(%arg0: i32) -> (i32, i32) {
    %c0_i32 = arith.constant 0 : i32
    %c0_i32_0 = arith.constant 0 : i32
    %c0_i32_1 = arith.constant 0 : i32
    return %c0_i32, %c0_i32_0 : i32, i32
  }
  func.func @transform_7(%arg0: i32) -> (i32, i32) {
    %c0_i32 = arith.constant 0 : i32
    %c0_i32_0 = arith.constant 0 : i32
    %c0_i32_1 = arith.constant 0 : i32
    return %c0_i32, %c0_i32_0 : i32, i32
  }
  func.func @transform_8(%arg0: i32) -> (i32, i32) {
    %c0_i32 = arith.constant 0 : i32
    %c0_i32_0 = arith.constant 0 : i32
    %c0_i32_1 = arith.constant 0 : i32
    return %c0_i32, %c0_i32_0 : i32, i32
  }
  func.func @transform_9(%arg0: i32) -> (i32, i32) {
    %c0_i32 = arith.constant 0 : i32
    %c0_i32_0 = arith.constant 0 : i32
    %c0_i32_1 = arith.constant 0 : i32
    return %c0_i32, %c0_i32_0 : i32, i32
  }
  func.func @transform_10(%arg0: i32) -> (i32, i32) {
    %c0_i32 = arith.constant 0 : i32
    %c0_i32_0 = arith.constant 0 : i32
    %c0_i32_1 = arith.constant 0 : i32
    return %c0_i32, %c0_i32_0 : i32, i32
  }
  func.func @transform_11(%arg0: i32) -> (i32, i32) {
    %c0_i32 = arith.constant 0 : i32
    %c0_i32_0 = arith.constant 0 : i32
    %c0_i32_1 = arith.constant 0 : i32
    return %c0_i32, %c0_i32_0 : i32, i32
  }
  func.func @transform_12(%arg0: i32) -> (i32, i32) {
    %c0_i32 = arith.constant 0 : i32
    %c0_i32_0 = arith.constant 0 : i32
    %c0_i32_1 = arith.constant 0 : i32
    return %c0_i32, %c0_i32_0 : i32, i32
  }
  func.func @transform_13(%arg0: i32) -> (i32, i32) {
    %c0_i32 = arith.constant 0 : i32
    %c0_i32_0 = arith.constant 0 : i32
    %c0_i32_1 = arith.constant 0 : i32
    return %c0_i32, %c0_i32_0 : i32, i32
  }
  func.func @transform_14(%arg0: i32) -> (i32, i32) {
    %c0_i32 = arith.constant 0 : i32
    %c0_i32_0 = arith.constant 0 : i32
    %c0_i32_1 = arith.constant 0 : i32
    return %c0_i32, %c0_i32_0 : i32, i32
  }
  func.func @transform_15(%arg0: i32) -> (i32, i32) {
    %c0_i32 = arith.constant 0 : i32
    %c0_i32_0 = arith.constant 0 : i32
    %c0_i32_1 = arith.constant 0 : i32
    return %c0_i32, %c0_i32_0 : i32, i32
  }
  func.func @transform_16(%arg0: i32) -> (i32, i32) {
    %c0_i32 = arith.constant 0 : i32
    %c0_i32_0 = arith.constant 0 : i32
    %c0_i32_1 = arith.constant 0 : i32
    return %c0_i32, %c0_i32_0 : i32, i32
  }
  func.func @transform_17(%arg0: i32) -> (i32, i32) {
    %c0_i32 = arith.constant 0 : i32
    %c0_i32_0 = arith.constant 0 : i32
    return %c0_i32, %arg0 : i32, i32
  }
}

</mosaic_0001>

<llo_original>
// kernel: tpu_custom_call.1
$region0: #{tpu_custom_call.1}
  #allocation0 [shape = 'u32[]', space=smem, size = 0x4, offset = 0x4, fixed_abs, tag = 'smem constant byte address 0x4 - core index']
  #allocation1 [shape = 'u32[144,128]{1,0:T(1,128)}', space=vmem, size = 0x12000, scoped, tag = 'internal scratch']
  %s0 = inlined_call_operand.vmem [shape: f32[2000,3], index: 0, kind: input, shape index: {}]
  %s1 = inlined_call_operand.vmem [shape: f32[1,2000], index: 1, kind: input, shape index: {}]
  %s2 = inlined_call_operand.vmem [shape: f32[32,3], index: 2, kind: input, shape index: {}]
  %s3 = inlined_call_operand.vmem [shape: f32[32,1], index: 3, kind: input, shape index: {}]
  %s4 = inlined_call_operand.vmem [shape: f32[32,1], index: 4, kind: input, shape index: {}]
  %s5 = inlined_call_operand.vmem [shape: bf16[32,32], index: 5, kind: input, shape index: {}]
  %s6 = inlined_call_operand.vmem [shape: f32[32,1], index: 6, kind: input, shape index: {}]
  %s7 = inlined_call_operand.vmem [shape: bf16[32,32], index: 7, kind: input, shape index: {}]
  %s8 = inlined_call_operand.vmem [shape: f32[32,1], index: 8, kind: input, shape index: {}]
  %s9 = inlined_call_operand.vmem [shape: bf16[28,32], index: 9, kind: input, shape index: {}]
  %s10 = inlined_call_operand.vmem [shape: f32[28,1], index: 10, kind: input, shape index: {}]
  %s11 = inlined_call_operand.vmem [shape: bf16[32,28], index: 11, kind: input, shape index: {}]
  %s12 = inlined_call_operand.vmem [shape: f32[32,3], index: 12, kind: input, shape index: {}]
  %s13 = inlined_call_operand.vmem [shape: f32[32,1], index: 13, kind: input, shape index: {}]
  %s14 = inlined_call_operand.vmem [shape: f32[32,1], index: 14, kind: input, shape index: {}]
  %s15 = inlined_call_operand.vmem [shape: bf16[9,32], index: 15, kind: input, shape index: {}]
  %s16 = inlined_call_operand.vmem [shape: f32[1,9], index: 16, kind: input, shape index: {}]
  %s17 = inlined_call_operand.vmem [shape: f32[2000,9], index: 17, kind: output, shape index: {}]
  %s18 = sld [smem:[#allocation0]]
  $region149: #{tpu_custom_call.1} parent=0
    _
  %s20 = ssub.s32 1, %s18
  %s21 = scalar_select 0, %s20, %s18
  $region1: #{tpu_custom_call.1} parent=0
    #allocation2 [shape = 'u8[1048576]{0}', space=vmem, size = 0x100000, scoped, tag = 'output window, operand 0']
    loop: start=0, step=1, limit=4
    $region2: #{tpu_custom_call.1} parent=1 // loop_pre_header
      _
    $region3: #{tpu_custom_call.1} parent=1 // loop_header
      %s23 = sphi 0, %s27
      %p24 = scmp.ge.s32.totalorder %s23, 4
      %s33 = sphi 0, %s35
      %s36 = sphi 0, %s33
      %s37 = sphi 0, %s36
      %s53 = sphi 0, %s37
      %s59 = sphi 0, %s61
      %s62 = sphi 0, %s59
      %s63 = sphi 0, %s62
      %s79 = sphi 0, %s63
      %s83 = sphi 0, %s83
      %s85 = sphi 0, %s83
      %s86 = sphi 0, %s85
      %s100 = sphi 0, %s86
      %s104 = sphi 0, %s104
      %s106 = sphi 0, %s104
      %s107 = sphi 0, %s106
      %s121 = sphi 0, %s107
      %s125 = sphi 0, %s125
      %s127 = sphi 0, %s125
      %s128 = sphi 0, %s127
      %s142 = sphi 0, %s128
      %s146 = sphi 0, %s146
      %s148 = sphi 0, %s146
      %s149 = sphi 0, %s148
      %s163 = sphi 0, %s149
      %s167 = sphi 0, %s167
      %s169 = sphi 0, %s167
      %s170 = sphi 0, %s169
      %s184 = sphi 0, %s170
      %s188 = sphi 0, %s188
      %s190 = sphi 0, %s188
      %s191 = sphi 0, %s190
      %s205 = sphi 0, %s191
      %s209 = sphi 0, %s209
      %s211 = sphi 0, %s209
      %s212 = sphi 0, %s211
      %s226 = sphi 0, %s212
      %s230 = sphi 0, %s230
      %s232 = sphi 0, %s230
      %s233 = sphi 0, %s232
      %s247 = sphi 0, %s233
      %s251 = sphi 0, %s251
      %s253 = sphi 0, %s251
      %s254 = sphi 0, %s253
      %s268 = sphi 0, %s254
      %s272 = sphi 0, %s272
      %s274 = sphi 0, %s272
      %s275 = sphi 0, %s274
      %s289 = sphi 0, %s275
      %s293 = sphi 0, %s293
      %s295 = sphi 0, %s293
      %s296 = sphi 0, %s295
      %s310 = sphi 0, %s296
      %s314 = sphi 0, %s314
      %s316 = sphi 0, %s314
      %s317 = sphi 0, %s316
      %s331 = sphi 0, %s317
      %s335 = sphi 0, %s335
      %s337 = sphi 0, %s335
      %s338 = sphi 0, %s337
      %s352 = sphi 0, %s338
      %s356 = sphi 0, %s356
      %s358 = sphi 0, %s356
      %s359 = sphi 0, %s358
      %s373 = sphi 0, %s359
      %s377 = sphi 0, %s377
      %s379 = sphi 0, %s377
      %s380 = sphi 0, %s379
      %s394 = sphi 0, %s380
      %s400 = sphi 0, %s402
      %s403 = sphi 0, %s400
      %s404 = sphi 0, %s403
      %s420 = sphi 0, %s404
    $region4: #{tpu_custom_call.1} parent=1 // loop_header_branch
      %26 = sbr.rel (%p24) target = $region8
    $region5: #{tpu_custom_call.1} parent=1 // loop_body
      %s28 = ssub.s32 %s23, 1
      %s29 = ssub.s32 %s23, 2
      %s30 = sadd.s32 %s23, 1
      %s31 = ssub.s32 %s23, %s30
      %p32 = scmp.eq.s32.totalorder %s31, 0
      %s34 = sadd.s32 %s33, 1
      %s35 = scalar_select %p32, %s33, %s34
      %p38 = pneg %p32
      %p39 = scmp.eq.s32.totalorder %s23, 1
      %p40 = por %p38, %p39
      %p41 = scmp.ne.s32.totalorder %s33, %s36
      %p42 = scmp.eq.s32.totalorder %s23, 0
      %p43 = por %p41, %p42
      %p44 = scmp.ne.s32.totalorder %s33, %s36
      %p45 = scmp.eq.s32.totalorder %s28, 1
      %p46 = por %p44, %p45
      %p47 = scmp.ne.s32.totalorder %s36, %s37
      %p48 = scmp.eq.s32.totalorder %s28, 0
      %p49 = por %p47, %p48
      %p50 = scmp.ne.s32.totalorder %s36, %s37
      %p51 = scmp.eq.s32.totalorder %s29, 1
      %p52 = por %p50, %p51
      %p54 = scmp.ne.s32.totalorder %s37, %s53
      %p55 = scmp.eq.s32.totalorder %s29, 0
      %p56 = por %p54, %p55
      %s57 = ssub.s32 %s23, %s30
      %p58 = scmp.eq.s32.totalorder %s57, 0
      %s60 = sadd.s32 %s59, 1
      %s61 = scalar_select %p58, %s59, %s60
      %p64 = pneg %p58
      %p65 = scmp.eq.s32.totalorder %s23, 1
      %p66 = por %p64, %p65
      %p67 = scmp.ne.s32.totalorder %s59, %s62
      %p68 = scmp.eq.s32.totalorder %s23, 0
      %p69 = por %p67, %p68
      %p70 = scmp.ne.s32.totalorder %s59, %s62
      %p71 = scmp.eq.s32.totalorder %s28, 1
      %p72 = por %p70, %p71
      %p73 = scmp.ne.s32.totalorder %s62, %s63
      %p74 = scmp.eq.s32.totalorder %s28, 0
      %p75 = por %p73, %p74
      %p76 = scmp.ne.s32.totalorder %s62, %s63
      %p77 = scmp.eq.s32.totalorder %s29, 1
      %p78 = por %p76, %p77
      %p80 = scmp.ne.s32.totalorder %s63, %s79
      %p81 = scmp.eq.s32.totalorder %s29, 0
      %p82 = por %p80, %p81
      %s84 = sadd.s32 %s83, 1
      %p87 = scmp.eq.s32.totalorder %s23, 1
      %p88 = scmp.ne.s32.totalorder %s83, %s85
      %p89 = scmp.eq.s32.totalorder %s23, 0
      %p90 = por %p88, %p89
      %p91 = scmp.ne.s32.totalorder %s83, %s85
      %p92 = scmp.eq.s32.totalorder %s28, 1
      %p93 = por %p91, %p92
      %p94 = scmp.ne.s32.totalorder %s85, %s86
      %p95 = scmp.eq.s32.totalorder %s28, 0
      %p96 = por %p94, %p95
      %p97 = scmp.ne.s32.totalorder %s85, %s86
      %p98 = scmp.eq.s32.totalorder %s29, 1
      %p99 = por %p97, %p98
      %p101 = scmp.ne.s32.totalorder %s86, %s100
      %p102 = scmp.eq.s32.totalorder %s29, 0
      %p103 = por %p101, %p102
      %s105 = sadd.s32 %s104, 1
      %p108 = scmp.eq.s32.totalorder %s23, 1
      %p109 = scmp.ne.s32.totalorder %s104, %s106
      %p110 = scmp.eq.s32.totalorder %s23, 0
      %p111 = por %p109, %p110
      %p112 = scmp.ne.s32.totalorder %s104, %s106
      %p113 = scmp.eq.s32.totalorder %s28, 1
      %p114 = por %p112, %p113
      %p115 = scmp.ne.s32.totalorder %s106, %s107
      %p116 = scmp.eq.s32.totalorder %s28, 0
      %p117 = por %p115, %p116
      %p118 = scmp.ne.s32.totalorder %s106, %s107
      %p119 = scmp.eq.s32.totalorder %s29, 1
      %p120 = por %p118, %p119
      %p122 = scmp.ne.s32.totalorder %s107, %s121
      %p123 = scmp.eq.s32.totalorder %s29, 0
      %p124 = por %p122, %p123
      %s126 = sadd.s32 %s125, 1
      %p129 = scmp.eq.s32.totalorder %s23, 1
      %p130 = scmp.ne.s32.totalorder %s125, %s127
      %p131 = scmp.eq.s32.totalorder %s23, 0
      %p132 = por %p130, %p131
      %p133 = scmp.ne.s32.totalorder %s125, %s127
      %p134 = scmp.eq.s32.totalorder %s28, 1
      %p135 = por %p133, %p134
      %p136 = scmp.ne.s32.totalorder %s127, %s128
      %p137 = scmp.eq.s32.totalorder %s28, 0
      %p138 = por %p136, %p137
      %p139 = scmp.ne.s32.totalorder %s127, %s128
      %p140 = scmp.eq.s32.totalorder %s29, 1
      %p141 = por %p139, %p140
      %p143 = scmp.ne.s32.totalorder %s128, %s142
      %p144 = scmp.eq.s32.totalorder %s29, 0
      %p145 = por %p143, %p144
      %s147 = sadd.s32 %s146, 1
      %p150 = scmp.eq.s32.totalorder %s23, 1
      %p151 = scmp.ne.s32.totalorder %s146, %s148
      %p152 = scmp.eq.s32.totalorder %s23, 0
      %p153 = por %p151, %p152
      %p154 = scmp.ne.s32.totalorder %s146, %s148
      %p155 = scmp.eq.s32.totalorder %s28, 1
      %p156 = por %p154, %p155
      %p157 = scmp.ne.s32.totalorder %s148, %s149
      %p158 = scmp.eq.s32.totalorder %s28, 0
      %p159 = por %p157, %p158
      %p160 = scmp.ne.s32.totalorder %s148, %s149
      %p161 = scmp.eq.s32.totalorder %s29, 1
      %p162 = por %p160, %p161
      %p164 = scmp.ne.s32.totalorder %s149, %s163
      %p165 = scmp.eq.s32.totalorder %s29, 0
      %p166 = por %p164, %p165
      %s168 = sadd.s32 %s167, 1
      %p171 = scmp.eq.s32.totalorder %s23, 1
      %p172 = scmp.ne.s32.totalorder %s167, %s169
      %p173 = scmp.eq.s32.totalorder %s23, 0
      %p174 = por %p172, %p173
      %p175 = scmp.ne.s32.totalorder %s167, %s169
      %p176 = scmp.eq.s32.totalorder %s28, 1
      %p177 = por %p175, %p176
      %p178 = scmp.ne.s32.totalorder %s169, %s170
      %p179 = scmp.eq.s32.totalorder %s28, 0
      %p180 = por %p178, %p179
      %p181 = scmp.ne.s32.totalorder %s169, %s170
      %p182 = scmp.eq.s32.totalorder %s29, 1
      %p183 = por %p181, %p182
      %p185 = scmp.ne.s32.totalorder %s170, %s184
      %p186 = scmp.eq.s32.totalorder %s29, 0
      %p187 = por %p185, %p186
      %s189 = sadd.s32 %s188, 1
      %p192 = scmp.eq.s32.totalorder %s23, 1
      %p193 = scmp.ne.s32.totalorder %s188, %s190
      %p194 = scmp.eq.s32.totalorder %s23, 0
      %p195 = por %p193, %p194
      %p196 = scmp.ne.s32.totalorder %s188, %s190
      %p197 = scmp.eq.s32.totalorder %s28, 1
      %p198 = por %p196, %p197
      %p199 = scmp.ne.s32.totalorder %s190, %s191
      %p200 = scmp.eq.s32.totalorder %s28, 0
      %p201 = por %p199, %p200
      %p202 = scmp.ne.s32.totalorder %s190, %s191
      %p203 = scmp.eq.s32.totalorder %s29, 1
      %p204 = por %p202, %p203
      %p206 = scmp.ne.s32.totalorder %s191, %s205
      %p207 = scmp.eq.s32.totalorder %s29, 0
      %p208 = por %p206, %p207
      %s210 = sadd.s32 %s209, 1
      %p213 = scmp.eq.s32.totalorder %s23, 1
      %p214 = scmp.ne.s32.totalorder %s209, %s211
      %p215 = scmp.eq.s32.totalorder %s23, 0
      %p216 = por %p214, %p215
      %p217 = scmp.ne.s32.totalorder %s209, %s211
      %p218 = scmp.eq.s32.totalorder %s28, 1
      %p219 = por %p217, %p218
      %p220 = scmp.ne.s32.totalorder %s211, %s212
      %p221 = scmp.eq.s32.totalorder %s28, 0
      %p222 = por %p220, %p221
      %p223 = scmp.ne.s32.totalorder %s211, %s212
      %p224 = scmp.eq.s32.totalorder %s29, 1
      %p225 = por %p223, %p224
      %p227 = scmp.ne.s32.totalorder %s212, %s226
      %p228 = scmp.eq.s32.totalorder %s29, 0
      %p229 = por %p227, %p228
      %s231 = sadd.s32 %s230, 1
      %p234 = scmp.eq.s32.totalorder %s23, 1
      %p235 = scmp.ne.s32.totalorder %s230, %s232
      %p236 = scmp.eq.s32.totalorder %s23, 0
      %p237 = por %p235, %p236
      %p238 = scmp.ne.s32.totalorder %s230, %s232
      %p239 = scmp.eq.s32.totalorder %s28, 1
      %p240 = por %p238, %p239
      %p241 = scmp.ne.s32.totalorder %s232, %s233
      %p242 = scmp.eq.s32.totalorder %s28, 0
      %p243 = por %p241, %p242
      %p244 = scmp.ne.s32.totalorder %s232, %s233
      %p245 = scmp.eq.s32.totalorder %s29, 1
      %p246 = por %p244, %p245
      %p248 = scmp.ne.s32.totalorder %s233, %s247
      %p249 = scmp.eq.s32.totalorder %s29, 0
      %p250 = por %p248, %p249
      %s252 = sadd.s32 %s251, 1
      %p255 = scmp.eq.s32.totalorder %s23, 1
      %p256 = scmp.ne.s32.totalorder %s251, %s253
      %p257 = scmp.eq.s32.totalorder %s23, 0
      %p258 = por %p256, %p257
      %p259 = scmp.ne.s32.totalorder %s251, %s253
      %p260 = scmp.eq.s32.totalorder %s28, 1
      %p261 = por %p259, %p260
      %p262 = scmp.ne.s32.totalorder %s253, %s254
      %p263 = scmp.eq.s32.totalorder %s28, 0
      %p264 = por %p262, %p263
      %p265 = scmp.ne.s32.totalorder %s253, %s254
      %p266 = scmp.eq.s32.totalorder %s29, 1
      %p267 = por %p265, %p266
      %p269 = scmp.ne.s32.totalorder %s254, %s268
      %p270 = scmp.eq.s32.totalorder %s29, 0
      %p271 = por %p269, %p270
      %s273 = sadd.s32 %s272, 1
      %p276 = scmp.eq.s32.totalorder %s23, 1
      %p277 = scmp.ne.s32.totalorder %s272, %s274
      %p278 = scmp.eq.s32.totalorder %s23, 0
      %p279 = por %p277, %p278
      %p280 = scmp.ne.s32.totalorder %s272, %s274
      %p281 = scmp.eq.s32.totalorder %s28, 1
      %p282 = por %p280, %p281
      %p283 = scmp.ne.s32.totalorder %s274, %s275
      %p284 = scmp.eq.s32.totalorder %s28, 0
      %p285 = por %p283, %p284
      %p286 = scmp.ne.s32.totalorder %s274, %s275
      %p287 = scmp.eq.s32.totalorder %s29, 1
      %p288 = por %p286, %p287
      %p290 = scmp.ne.s32.totalorder %s275, %s289
      %p291 = scmp.eq.s32.totalorder %s29, 0
      %p292 = por %p290, %p291
      %s294 = sadd.s32 %s293, 1
      %p297 = scmp.eq.s32.totalorder %s23, 1
      %p298 = scmp.ne.s32.totalorder %s293, %s295
      %p299 = scmp.eq.s32.totalorder %s23, 0
      %p300 = por %p298, %p299
      %p301 = scmp.ne.s32.totalorder %s293, %s295
      %p302 = scmp.eq.s32.totalorder %s28, 1
      %p303 = por %p301, %p302
      %p304 = scmp.ne.s32.totalorder %s295, %s296
      %p305 = scmp.eq.s32.totalorder %s28, 0
      %p306 = por %p304, %p305
      %p307 = scmp.ne.s32.totalorder %s295, %s296
      %p308 = scmp.eq.s32.totalorder %s29, 1
      %p309 = por %p307, %p308
      %p311 = scmp.ne.s32.totalorder %s296, %s310
      %p312 = scmp.eq.s32.totalorder %s29, 0
      %p313 = por %p311, %p312
      %s315 = sadd.s32 %s314, 1
      %p318 = scmp.eq.s32.totalorder %s23, 1
      %p319 = scmp.ne.s32.totalorder %s314, %s316
      %p320 = scmp.eq.s32.totalorder %s23, 0
      %p321 = por %p319, %p320
      %p322 = scmp.ne.s32.totalorder %s314, %s316
      %p323 = scmp.eq.s32.totalorder %s28, 1
      %p324 = por %p322, %p323
      %p325 = scmp.ne.s32.totalorder %s316, %s317
      %p326 = scmp.eq.s32.totalorder %s28, 0
      %p327 = por %p325, %p326
      %p328 = scmp.ne.s32.totalorder %s316, %s317
      %p329 = scmp.eq.s32.totalorder %s29, 1
      %p330 = por %p328, %p329
      %p332 = scmp.ne.s32.totalorder %s317, %s331
      %p333 = scmp.eq.s32.totalorder %s29, 0
      %p334 = por %p332, %p333
      %s336 = sadd.s32 %s335, 1
      %p339 = scmp.eq.s32.totalorder %s23, 1
      %p340 = scmp.ne.s32.totalorder %s335, %s337
      %p341 = scmp.eq.s32.totalorder %s23, 0
      %p342 = por %p340, %p341
      %p343 = scmp.ne.s32.totalorder %s335, %s337
      %p344 = scmp.eq.s32.totalorder %s28, 1
      %p345 = por %p343, %p344
      %p346 = scmp.ne.s32.totalorder %s337, %s338
      %p347 = scmp.eq.s32.totalorder %s28, 0
      %p348 = por %p346, %p347
      %p349 = scmp.ne.s32.totalorder %s337, %s338
      %p350 = scmp.eq.s32.totalorder %s29, 1
      %p351 = por %p349, %p350
      %p353 = scmp.ne.s32.totalorder %s338, %s352
      %p354 = scmp.eq.s32.totalorder %s29, 0
      %p355 = por %p353, %p354
      %s357 = sadd.s32 %s356, 1
      %p360 = scmp.eq.s32.totalorder %s23, 1
      %p361 = scmp.ne.s32.totalorder %s356, %s358
      %p362 = scmp.eq.s32.totalorder %s23, 0
      %p363 = por %p361, %p362
      %p364 = scmp.ne.s32.totalorder %s356, %s358
      %p365 = scmp.eq.s32.totalorder %s28, 1
      %p366 = por %p364, %p365
      %p367 = scmp.ne.s32.totalorder %s358, %s359
      %p368 = scmp.eq.s32.totalorder %s28, 0
      %p369 = por %p367, %p368
      %p370 = scmp.ne.s32.totalorder %s358, %s359
      %p371 = scmp.eq.s32.totalorder %s29, 1
      %p372 = por %p370, %p371
      %p374 = scmp.ne.s32.totalorder %s359, %s373
      %p375 = scmp.eq.s32.totalorder %s29, 0
      %p376 = por %p374, %p375
      %s378 = sadd.s32 %s377, 1
      %p381 = scmp.eq.s32.totalorder %s23, 1
      %p382 = scmp.ne.s32.totalorder %s377, %s379
      %p383 = scmp.eq.s32.totalorder %s23, 0
      %p384 = por %p382, %p383
      %p385 = scmp.ne.s32.totalorder %s377, %s379
      %p386 = scmp.eq.s32.totalorder %s28, 1
      %p387 = por %p385, %p386
      %p388 = scmp.ne.s32.totalorder %s379, %s380
      %p389 = scmp.eq.s32.totalorder %s28, 0
      %p390 = por %p388, %p389
      %p391 = scmp.ne.s32.totalorder %s379, %s380
      %p392 = scmp.eq.s32.totalorder %s29, 1
      %p393 = por %p391, %p392
      %p395 = scmp.ne.s32.totalorder %s380, %s394
      %p396 = scmp.eq.s32.totalorder %s29, 0
      %p397 = por %p395, %p396
      %s398 = ssub.s32 %s23, %s30
      %p399 = scmp.eq.s32.totalorder %s398, 0
      %s401 = sadd.s32 %s400, 1
      %s402 = scalar_select %p399, %s400, %s401
      %p405 = pneg %p399
      %p406 = scmp.eq.s32.totalorder %s23, 1
      %p407 = por %p405, %p406
      %p408 = scmp.ne.s32.totalorder %s400, %s403
      %p409 = scmp.eq.s32.totalorder %s23, 0
      %p410 = por %p408, %p409
      %p411 = scmp.ne.s32.totalorder %s400, %s403
      %p412 = scmp.eq.s32.totalorder %s28, 1
      %p413 = por %p411, %p412
      %p414 = scmp.ne.s32.totalorder %s403, %s404
      %p415 = scmp.eq.s32.totalorder %s28, 0
      %p416 = por %p414, %p415
      %p417 = scmp.ne.s32.totalorder %s403, %s404
      %p418 = scmp.eq.s32.totalorder %s29, 1
      %p419 = por %p417, %p418
      %p421 = scmp.ne.s32.totalorder %s404, %s420
      %p422 = scmp.eq.s32.totalorder %s29, 0
      %p423 = por %p421, %p422
      %p424 = scmp.le.s32.totalorder 1, %s23
      %p425 = scmp.lt.s32.totalorder %s23, 3
      %p426 = pnand %p424, %p425
      %p427 = pneg %p426
      // Predicated region
      $region9: #{tpu_custom_call.1} parent=5 // pred_check
        _
      $region10: #{tpu_custom_call.1} parent=5 // pred_check_branch
        %429 = sbr.rel (%p426) target = $region12
      $region11: #{tpu_custom_call.1} parent=5 // pred_region
        %s430 = ssub.s32 %s23, 1
        // Predicated region
        $region13: #{tpu_custom_call.1} parent=11 // pred_check
          %p431 = pneg %p96
        $region14: #{tpu_custom_call.1} parent=11 // pred_check_branch
          %433 = sbr.rel (%p431) target = $region16
        $region15: #{tpu_custom_call.1} parent=11 // pred_region
          _
        $region16: #{tpu_custom_call.1} parent=11 // pred_fallthru
          _
        // Predicated region
        $region17: #{tpu_custom_call.1} parent=11 // pred_check
          %p434 = pneg %p117
        $region18: #{tpu_custom_call.1} parent=11 // pred_check_branch
          %436 = sbr.rel (%p434) target = $region20
        $region19: #{tpu_custom_call.1} parent=11 // pred_region
          _
        $region20: #{tpu_custom_call.1} parent=11 // pred_fallthru
          _
        // Predicated region
        $region21: #{tpu_custom_call.1} parent=11 // pred_check
          %p437 = pneg %p138
        $region22: #{tpu_custom_call.1} parent=11 // pred_check_branch
          %439 = sbr.rel (%p437) target = $region24
        $region23: #{tpu_custom_call.1} parent=11 // pred_region
          _
        $region24: #{tpu_custom_call.1} parent=11 // pred_fallthru
          _
        // Predicated region
        $region25: #{tpu_custom_call.1} parent=11 // pred_check
          %p440 = pneg %p159
        $region26: #{tpu_custom_call.1} parent=11 // pred_check_branch
          %442 = sbr.rel (%p440) target = $region28
        $region27: #{tpu_custom_call.1} parent=11 // pred_region
          _
        $region28: #{tpu_custom_call.1} parent=11 // pred_fallthru
          _
        // Predicated region
        $region29: #{tpu_custom_call.1} parent=11 // pred_check
          %p443 = pneg %p180
        $region30: #{tpu_custom_call.1} parent=11 // pred_check_branch
          %445 = sbr.rel (%p443) target = $region32
        $region31: #{tpu_custom_call.1} parent=11 // pred_region
          _
        $region32: #{tpu_custom_call.1} parent=11 // pred_fallthru
          _
        // Predicated region
        $region33: #{tpu_custom_call.1} parent=11 // pred_check
          %p446 = pneg %p201
        $region34: #{tpu_custom_call.1} parent=11 // pred_check_branch
          %448 = sbr.rel (%p446) target = $region36
        $region35: #{tpu_custom_call.1} parent=11 // pred_region
          _
        $region36: #{tpu_custom_call.1} parent=11 // pred_fallthru
          _
        // Predicated region
        $region37: #{tpu_custom_call.1} parent=11 // pred_check
          %p449 = pneg %p222
        $region38: #{tpu_custom_call.1} parent=11 // pred_check_branch
          %451 = sbr.rel (%p449) target = $region40
        $region39: #{tpu_custom_call.1} parent=11 // pred_region
          _
        $region40: #{tpu_custom_call.1} parent=11 // pred_fallthru
          _
        // Predicated region
        $region41: #{tpu_custom_call.1} parent=11 // pred_check
          %p452 = pneg %p243
        $region42: #{tpu_custom_call.1} parent=11 // pred_check_branch
          %454 = sbr.rel (%p452) target = $region44
        $region43: #{tpu_custom_call.1} parent=11 // pred_region
          _
        $region44: #{tpu_custom_call.1} parent=11 // pred_fallthru
          _
        // Predicated region
        $region45: #{tpu_custom_call.1} parent=11 // pred_check
          %p455 = pneg %p264
        $region46: #{tpu_custom_call.1} parent=11 // pred_check_branch
          %457 = sbr.rel (%p455) target = $region48
        $region47: #{tpu_custom_call.1} parent=11 // pred_region
          _
        $region48: #{tpu_custom_call.1} parent=11 // pred_fallthru
          _
        // Predicated region
        $region49: #{tpu_custom_call.1} parent=11 // pred_check
          %p458 = pneg %p285
        $region50: #{tpu_custom_call.1} parent=11 // pred_check_branch
          %460 = sbr.rel (%p458) target = $region52
        $region51: #{tpu_custom_call.1} parent=11 // pred_region
          _
        $region52: #{tpu_custom_call.1} parent=11 // pred_fallthru
          _
        // Predicated region
        $region53: #{tpu_custom_call.1} parent=11 // pred_check
          %p461 = pneg %p306
        $region54: #{tpu_custom_call.1} parent=11 // pred_check_branch
          %463 = sbr.rel (%p461) target = $region56
        $region55: #{tpu_custom_call.1} parent=11 // pred_region
          _
        $region56: #{tpu_custom_call.1} parent=11 // pred_fallthru
          _
        // Predicated region
        $region57: #{tpu_custom_call.1} parent=11 // pred_check
          %p464 = pneg %p327
        $region58: #{tpu_custom_call.1} parent=11 // pred_check_branch
          %466 = sbr.rel (%p464) target = $region60
        $region59: #{tpu_custom_call.1} parent=11 // pred_region
          _
        $region60: #{tpu_custom_call.1} parent=11 // pred_fallthru
          _
        // Predicated region
        $region61: #{tpu_custom_call.1} parent=11 // pred_check
          %p467 = pneg %p348
        $region62: #{tpu_custom_call.1} parent=11 // pred_check_branch
          %469 = sbr.rel (%p467) target = $region64
        $region63: #{tpu_custom_call.1} parent=11 // pred_region
          _
        $region64: #{tpu_custom_call.1} parent=11 // pred_fallthru
          _
        // Predicated region
        $region65: #{tpu_custom_call.1} parent=11 // pred_check
          %p470 = pneg %p369
        $region66: #{tpu_custom_call.1} parent=11 // pred_check_branch
          %472 = sbr.rel (%p470) target = $region68
        $region67: #{tpu_custom_call.1} parent=11 // pred_region
          _
        $region68: #{tpu_custom_call.1} parent=11 // pred_fallthru
          _
        // Predicated region
        $region69: #{tpu_custom_call.1} parent=11 // pred_check
          %p473 = pneg %p390
        $region70: #{tpu_custom_call.1} parent=11 // pred_check_branch
          %475 = sbr.rel (%p473) target = $region72
        $region71: #{tpu_custom_call.1} parent=11 // pred_region
          _
        $region72: #{tpu_custom_call.1} parent=11 // pred_fallthru
          _
      $region12: #{tpu_custom_call.1} parent=5 // pred_fallthru
        _
      %p476 = scmp.lt.s32.totalorder %s23, 2
      // Predicated region
      $region73: #{tpu_custom_call.1} parent=5 // pred_check
        %p477 = pneg %p476
      $region74: #{tpu_custom_call.1} parent=5 // pred_check_branch
        %479 = sbr.rel (%p477) target = $region76
      $region75: #{tpu_custom_call.1} parent=5 // pred_region
        // Predicated region
        $region77: #{tpu_custom_call.1} parent=75 // pred_check
          %p480 = pneg %p43
        $region78: #{tpu_custom_call.1} parent=75 // pred_check_branch
          %482 = sbr.rel (%p480) target = $region80
        $region79: #{tpu_custom_call.1} parent=75 // pred_region
          %s483 = smul.u32 128, %s23
          %s484 = ssub.s32 250, %s483
          %p485 = scmp.lt.s32.totalorder %s484, 128
          %s486 = scalar_select %p485, %s484, 128
          %s487 = smul.u32 128, %s486
          %p488 = scmp.lt.s32.totalorder %s483, 249
          %s489 = scalar_select %p488, %s483, 249
          %s490 = smul.addr %s489, 8
          %s491 = scalar_lea.vmem %s0, %s490
          %s492 = smul.u32 128, %s23
          %s493 = ssub.s32 250, %s492
          %p494 = scmp.lt.s32.totalorder %s493, 128
          %s495 = scalar_select %p494, %s493, 128
          %s496 = smul.u32 128, %s495
        $region80: #{tpu_custom_call.1} parent=75 // pred_fallthru
          _
        // Predicated region
        $region81: #{tpu_custom_call.1} parent=75 // pred_check
          %p497 = pneg %p69
        $region82: #{tpu_custom_call.1} parent=75 // pred_check_branch
          %499 = sbr.rel (%p497) target = $region84
        $region83: #{tpu_custom_call.1} parent=75 // pred_region
          %s500 = smul.u32 8, %s23
          %p501 = scmp.lt.s32.totalorder %s500, 15
          %s502 = scalar_select %p501, %s500, 15
          %s503 = scalar_lea.vmem %s1, %s502
          %s504 = smul.u32 8, %s23
        $region84: #{tpu_custom_call.1} parent=75 // pred_fallthru
          _
      $region76: #{tpu_custom_call.1} parent=5 // pred_fallthru
        _
      %p505 = scmp.le.s32.totalorder 1, %s23
      %p506 = scmp.lt.s32.totalorder %s23, 3
      %p507 = pnand %p505, %p506
      %p508 = pneg %p507
      // Predicated region
      $region85: #{tpu_custom_call.1} parent=5 // pred_check
        _
      $region86: #{tpu_custom_call.1} parent=5 // pred_check_branch
        %510 = sbr.rel (%p507) target = $region88
      $region87: #{tpu_custom_call.1} parent=5 // pred_region
        %s511 = ssub.s32 %s23, 1
        %s512 = smul.u32 128, %s28
        %s513 = ssub.s32 250, %s512
        %p514 = scmp.lt.s32.totalorder %s513, 128
        %s515 = scalar_select %p514, %s513, 128
        %s516 = smul.u32 128, %s515
        %p517 = scmp.lt.s32.totalorder %s512, 249
        %s518 = scalar_select %p517, %s512, 249
        %s519 = smul.addr %s518, 8
        %s520 = scalar_lea.vmem %s0, %s519
        %p521 = pneg %p49
        %p522 = pneg %p46
        %s523 = smul.u32 8, %s28
        %p524 = scmp.lt.s32.totalorder %s523, 15
        %s525 = scalar_select %p524, %s523, 15
        %s526 = scalar_lea.vmem %s1, %s525
        %p527 = pneg %p75
        %p528 = pneg %p72
        %p529 = pneg %p96
        %p530 = pneg %p93
        %p531 = pneg %p117
        %p532 = pneg %p114
        %p533 = pneg %p138
        %p534 = pneg %p135
        %p535 = pneg %p159
        %p536 = pneg %p156
        %p537 = pneg %p180
        %p538 = pneg %p177
        %p539 = pneg %p201
        %p540 = pneg %p198
        %p541 = pneg %p222
        %p542 = pneg %p219
        %p543 = pneg %p243
        %p544 = pneg %p240
        %p545 = pneg %p264
        %p546 = pneg %p261
        %p547 = pneg %p285
        %p548 = pneg %p282
        %p549 = pneg %p306
        %p550 = pneg %p303
        %p551 = pneg %p327
        %p552 = pneg %p324
        %p553 = pneg %p348
        %p554 = pneg %p345
        %p555 = pneg %p369
        %p556 = pneg %p366
        %p557 = pneg %p390
        %p558 = pneg %p387
        %p559 = pneg %p416
        %p560 = pneg %p413
        %s561 = sand.u32 %s403, 1
        %s562 = sand.u32 %s403, 1
        %s563 = smul.addr %s562, 1024
        %s564 = scalar_lea.vmem [#allocation2], %s563
        %s565 = smul.u32 128, %s28
        %s566 = ssub.s32 250, %s565
        %p567 = scmp.lt.s32.totalorder %s566, 128
        %s568 = scalar_select %p567, %s566, 128
        %s569 = smul.u32 128, %s568
        %p570 = scmp.lt.s32.totalorder %s565, 249
        %s571 = scalar_select %p570, %s565, 249
        %s572 = smul.addr %s571, 8
        %s573 = scalar_lea.vmem %s0, %s572
        %s574 = smul.u32 128, %s28
        %s575 = ssub.s32 250, %s574
        %p576 = scmp.lt.s32.totalorder %s575, 128
        %s577 = scalar_select %p576, %s575, 128
        %s578 = smul.u32 128, %s577
        %s579 = smul.u32 8, %s28
        %p580 = scmp.lt.s32.totalorder %s579, 15
        %s581 = scalar_select %p580, %s579, 15
        %s582 = scalar_lea.vmem %s1, %s581
        %s583 = smul.u32 8, %s28
        %s584 = smul.u32 128, %s28
        %s585 = ssub.s32 250, %s584
        %p586 = scmp.lt.s32.totalorder %s585, 128
        %s587 = scalar_select %p586, %s585, 128
        %s588 = smul.u32 128, %s587
        %v594 = vld [vmem:[%s582] sm:$0xff]
        %v595 = vld [vmem:[%s573] sm:$0xff]
        %v596 = vld [vmem:[%s573 + $0x8] sm:$0xff]
        %v597 = vld [vmem:[%s573 + $0x10] sm:$0xff]
        %v598 = vld [vmem:[%s573 + $0x18] sm:$0xff]
        %v599 = vld [vmem:[%s573 + $0x20] sm:$0xff]
        %v600 = vld [vmem:[%s573 + $0x28] sm:$0xff]
        %v601 = vld [vmem:[%s573 + $0x30] sm:$0xff]
        %v602 = vld [vmem:[%s573 + $0x38] sm:$0xff]
        %v603 = vld [vmem:[%s573 + $0x40] sm:$0xff]
        %v604 = vld [vmem:[%s573 + $0x48] sm:$0xff]
        %v605 = vld [vmem:[%s573 + $0x50] sm:$0xff]
        %v606 = vld [vmem:[%s573 + $0x58] sm:$0xff]
        %v607 = vld [vmem:[%s573 + $0x60] sm:$0xff]
        %v608 = vld [vmem:[%s573 + $0x68] sm:$0xff]
        %v609 = vld [vmem:[%s573 + $0x70] sm:$0xff]
        %v610 = vld [vmem:[%s573 + $0x78] sm:$0xff]
        %v611 = vld [vmem:[%s573 + $0x80] sm:$0xff]
        %v612 = vld [vmem:[%s573 + $0x88] sm:$0xff]
        %v613 = vld [vmem:[%s573 + $0x90] sm:$0xff]
        %v614 = vld [vmem:[%s573 + $0x98] sm:$0xff]
        %v615 = vld [vmem:[%s573 + $0xa0] sm:$0xff]
        %v616 = vld [vmem:[%s573 + $0xa8] sm:$0xff]
        %v617 = vld [vmem:[%s573 + $0xb0] sm:$0xff]
        %v618 = vld [vmem:[%s573 + $0xb8] sm:$0xff]
        %v619 = vld [vmem:[%s573 + $0xc0] sm:$0xff]
        %v620 = vld [vmem:[%s573 + $0xc8] sm:$0xff]
        %v621 = vld [vmem:[%s573 + $0xd0] sm:$0xff]
        %v622 = vld [vmem:[%s573 + $0xd8] sm:$0xff]
        %v623 = vld [vmem:[%s573 + $0xe0] sm:$0xff]
        %v624 = vld [vmem:[%s573 + $0xe8] sm:$0xff]
        %v625 = vld [vmem:[%s573 + $0xf0] sm:$0xff]
        %v626 = vld [vmem:[%s573 + $0xf8] sm:$0xff]
        %v627 = vld [vmem:[%s573 + $0x100] sm:$0xff]
        %v628 = vld [vmem:[%s573 + $0x108] sm:$0xff]
        %v629 = vld [vmem:[%s573 + $0x110] sm:$0xff]
        %v630 = vld [vmem:[%s573 + $0x118] sm:$0xff]
        %v631 = vld [vmem:[%s573 + $0x120] sm:$0xff]
        %v632 = vld [vmem:[%s573 + $0x128] sm:$0xff]
        %v633 = vld [vmem:[%s573 + $0x130] sm:$0xff]
        %v634 = vld [vmem:[%s573 + $0x138] sm:$0xff]
        %v635 = vld [vmem:[%s573 + $0x140] sm:$0xff]
        %v636 = vld [vmem:[%s573 + $0x148] sm:$0xff]
        %v637 = vld [vmem:[%s573 + $0x150] sm:$0xff]
        %v638 = vld [vmem:[%s573 + $0x158] sm:$0xff]
        %v639 = vld [vmem:[%s573 + $0x160] sm:$0xff]
        %v640 = vld [vmem:[%s573 + $0x168] sm:$0xff]
        %v641 = vld [vmem:[%s573 + $0x170] sm:$0xff]
        %v642 = vld [vmem:[%s573 + $0x178] sm:$0xff]
        %v643 = vld [vmem:[%s573 + $0x180] sm:$0xff]
        %v644 = vld [vmem:[%s573 + $0x188] sm:$0xff]
        %v645 = vld [vmem:[%s573 + $0x190] sm:$0xff]
        %v646 = vld [vmem:[%s573 + $0x198] sm:$0xff]
        %v647 = vld [vmem:[%s573 + $0x1a0] sm:$0xff]
        %v648 = vld [vmem:[%s573 + $0x1a8] sm:$0xff]
        %v649 = vld [vmem:[%s573 + $0x1b0] sm:$0xff]
        %v650 = vld [vmem:[%s573 + $0x1b8] sm:$0xff]
        %v651 = vld [vmem:[%s573 + $0x1c0] sm:$0xff]
        %v652 = vld [vmem:[%s573 + $0x1c8] sm:$0xff]
        %v653 = vld [vmem:[%s573 + $0x1d0] sm:$0xff]
        %v654 = vld [vmem:[%s573 + $0x1d8] sm:$0xff]
        %v655 = vld [vmem:[%s573 + $0x1e0] sm:$0xff]
        %v656 = vld [vmem:[%s573 + $0x1e8] sm:$0xff]
        %v657 = vld [vmem:[%s573 + $0x1f0] sm:$0xff]
        %v658 = vld [vmem:[%s573 + $0x1f8] sm:$0xff]
        %v659 = vld [vmem:[%s573 + $0x200] sm:$0xff]
        %v660 = vld [vmem:[%s573 + $0x208] sm:$0xff]
        %v661 = vld [vmem:[%s573 + $0x210] sm:$0xff]
        %v662 = vld [vmem:[%s573 + $0x218] sm:$0xff]
        %v663 = vld [vmem:[%s573 + $0x220] sm:$0xff]
        %v664 = vld [vmem:[%s573 + $0x228] sm:$0xff]
        %v665 = vld [vmem:[%s573 + $0x230] sm:$0xff]
        %v666 = vld [vmem:[%s573 + $0x238] sm:$0xff]
        %v667 = vld [vmem:[%s573 + $0x240] sm:$0xff]
        %v668 = vld [vmem:[%s573 + $0x248] sm:$0xff]
        %v669 = vld [vmem:[%s573 + $0x250] sm:$0xff]
        %v670 = vld [vmem:[%s573 + $0x258] sm:$0xff]
        %v671 = vld [vmem:[%s573 + $0x260] sm:$0xff]
        %v672 = vld [vmem:[%s573 + $0x268] sm:$0xff]
        %v673 = vld [vmem:[%s573 + $0x270] sm:$0xff]
        %v674 = vld [vmem:[%s573 + $0x278] sm:$0xff]
        %v675 = vld [vmem:[%s573 + $0x280] sm:$0xff]
        %v676 = vld [vmem:[%s573 + $0x288] sm:$0xff]
        %v677 = vld [vmem:[%s573 + $0x290] sm:$0xff]
        %v678 = vld [vmem:[%s573 + $0x298] sm:$0xff]
        %v679 = vld [vmem:[%s573 + $0x2a0] sm:$0xff]
        %v680 = vld [vmem:[%s573 + $0x2a8] sm:$0xff]
        %v681 = vld [vmem:[%s573 + $0x2b0] sm:$0xff]
        %v682 = vld [vmem:[%s573 + $0x2b8] sm:$0xff]
        %v683 = vld [vmem:[%s573 + $0x2c0] sm:$0xff]
        %v684 = vld [vmem:[%s573 + $0x2c8] sm:$0xff]
        %v685 = vld [vmem:[%s573 + $0x2d0] sm:$0xff]
        %v686 = vld [vmem:[%s573 + $0x2d8] sm:$0xff]
        %v687 = vld [vmem:[%s573 + $0x2e0] sm:$0xff]
        %v688 = vld [vmem:[%s573 + $0x2e8] sm:$0xff]
        %v689 = vld [vmem:[%s573 + $0x2f0] sm:$0xff]
        %v690 = vld [vmem:[%s573 + $0x2f8] sm:$0xff]
        %v691 = vld [vmem:[%s573 + $0x300] sm:$0xff]
        %v692 = vld [vmem:[%s573 + $0x308] sm:$0xff]
        %v693 = vld [vmem:[%s573 + $0x310] sm:$0xff]
        %v694 = vld [vmem:[%s573 + $0x318] sm:$0xff]
        %v695 = vld [vmem:[%s573 + $0x320] sm:$0xff]
        %v696 = vld [vmem:[%s573 + $0x328] sm:$0xff]
        %v697 = vld [vmem:[%s573 + $0x330] sm:$0xff]
        %v698 = vld [vmem:[%s573 + $0x338] sm:$0xff]
        %v699 = vld [vmem:[%s573 + $0x340] sm:$0xff]
        %v700 = vld [vmem:[%s573 + $0x348] sm:$0xff]
        %v701 = vld [vmem:[%s573 + $0x350] sm:$0xff]
        %v702 = vld [vmem:[%s573 + $0x358] sm:$0xff]
        %v703 = vld [vmem:[%s573 + $0x360] sm:$0xff]
        %v704 = vld [vmem:[%s573 + $0x368] sm:$0xff]
        %v705 = vld [vmem:[%s573 + $0x370] sm:$0xff]
        %v706 = vld [vmem:[%s573 + $0x378] sm:$0xff]
        %v707 = vld [vmem:[%s573 + $0x380] sm:$0xff]
        %v708 = vld [vmem:[%s573 + $0x388] sm:$0xff]
        %v709 = vld [vmem:[%s573 + $0x390] sm:$0xff]
        %v710 = vld [vmem:[%s573 + $0x398] sm:$0xff]
        %v711 = vld [vmem:[%s573 + $0x3a0] sm:$0xff]
        %v712 = vld [vmem:[%s573 + $0x3a8] sm:$0xff]
        %v713 = vld [vmem:[%s573 + $0x3b0] sm:$0xff]
        %v714 = vld [vmem:[%s573 + $0x3b8] sm:$0xff]
        %v715 = vld [vmem:[%s573 + $0x3c0] sm:$0xff]
        %v716 = vld [vmem:[%s573 + $0x3c8] sm:$0xff]
        %v717 = vld [vmem:[%s573 + $0x3d0] sm:$0xff]
        %v718 = vld [vmem:[%s573 + $0x3d8] sm:$0xff]
        %v719 = vld [vmem:[%s573 + $0x3e0] sm:$0xff]
        %v720 = vld [vmem:[%s573 + $0x3e8] sm:$0xff]
        %v721 = vld [vmem:[%s573 + $0x3f0] sm:$0xff]
        %v722 = vld [vmem:[%s573 + $0x3f8] sm:$0xff]
        %v723 = vld [vmem:[%s2] sm:$0xff]
        %v724 = vld [vmem:[%s2 + $0x8] sm:$0xff]
        %v725 = vld [vmem:[%s2 + $0x10] sm:$0xff]
        %v726 = vld [vmem:[%s2 + $0x18] sm:$0xff]
        %v727 = vld [vmem:[%s3] sm:$0xff]
        %v728 = vld [vmem:[%s3 + $0x8] sm:$0xff]
        %v729 = vld [vmem:[%s3 + $0x10] sm:$0xff]
        %v730 = vld [vmem:[%s3 + $0x18] sm:$0xff]
        %732 = vset.pattern.permute.xlu0 0
        %733 = vperm.xlu0 %732, %v727
        %v734 = vpop.permute.xlu0 %733
        %737 = vset.pattern.permute.xlu0 0
        %738 = vperm.xlu0 %737, %v728
        %v739 = vpop.permute.xlu0 %738
        %742 = vset.pattern.permute.xlu0 0
        %743 = vperm.xlu0 %742, %v729
        %v744 = vpop.permute.xlu0 %743
        %747 = vset.pattern.permute.xlu0 0
        %748 = vperm.xlu0 %747, %v730
        %v749 = vpop.permute.xlu0 %748
        %v752 = vlaneseq
        %v753 = vshrl.u32 %v752, 7
        %v754 = vsub.s32 0, %v753
        %v755 = vrot.slane %v594, %v754
        %v756 = vlaneseq
        %v757 = vshrl.u32 %v756, 7
        %v758 = vsub.s32 1, %v757
        %v759 = vrot.slane %v594, %v758
        %v760 = vlaneseq
        %v761 = vshrl.u32 %v760, 7
        %v762 = vsub.s32 2, %v761
        %v763 = vrot.slane %v594, %v762
        %v764 = vlaneseq
        %v765 = vshrl.u32 %v764, 7
        %v766 = vsub.s32 3, %v765
        %v767 = vrot.slane %v594, %v766
        %v768 = vlaneseq
        %v769 = vshrl.u32 %v768, 7
        %v770 = vsub.s32 4, %v769
        %v771 = vrot.slane %v594, %v770
        %v772 = vlaneseq
        %v773 = vshrl.u32 %v772, 7
        %v774 = vsub.s32 5, %v773
        %v775 = vrot.slane %v594, %v774
        %v776 = vlaneseq
        %v777 = vshrl.u32 %v776, 7
        %v778 = vsub.s32 6, %v777
        %v779 = vrot.slane %v594, %v778
        %v780 = vlaneseq
        %v781 = vshrl.u32 %v780, 7
        %v782 = vsub.s32 7, %v781
        %v783 = vrot.slane %v594, %v782
        %v792 = vmul.f32 %v734, %v755
        %v793 = vmul.f32 %v734, %v759
        %v794 = vmul.f32 %v734, %v763
        %v795 = vmul.f32 %v734, %v767
        %v796 = vmul.f32 %v734, %v771
        %v797 = vmul.f32 %v734, %v775
        %v798 = vmul.f32 %v734, %v779
        %v799 = vmul.f32 %v734, %v783
        %v800 = vmul.f32 %v739, %v755
        %v801 = vmul.f32 %v739, %v759
        %v802 = vmul.f32 %v739, %v763
        %v803 = vmul.f32 %v739, %v767
        %v804 = vmul.f32 %v739, %v771
        %v805 = vmul.f32 %v739, %v775
        %v806 = vmul.f32 %v739, %v779
        %v807 = vmul.f32 %v739, %v783
        %v808 = vmul.f32 %v744, %v755
        %v809 = vmul.f32 %v744, %v759
        %v810 = vmul.f32 %v744, %v763
        %v811 = vmul.f32 %v744, %v767
        %v812 = vmul.f32 %v744, %v771
        %v813 = vmul.f32 %v744, %v775
        %v814 = vmul.f32 %v744, %v779
        %v815 = vmul.f32 %v744, %v783
        %v816 = vmul.f32 %v749, %v755
        %v817 = vmul.f32 %v749, %v759
        %v818 = vmul.f32 %v749, %v763
        %v819 = vmul.f32 %v749, %v767
        %v820 = vmul.f32 %v749, %v771
        %v821 = vmul.f32 %v749, %v775
        %v822 = vmul.f32 %v749, %v779
        %v823 = vmul.f32 %v749, %v783
        %vm824 = vcmask 23552
        %v826 = vsel %vm824, %v723, 0
        %v829 = vsel %vm824, %v724, 0
        %v832 = vsel %vm824, %v725, 0
        %v835 = vsel %vm824, %v726, 0
        %v838 = vsel %vm824, %v595, 0
        %v841 = vsel %vm824, %v596, 0
        %v844 = vsel %vm824, %v597, 0
        %v847 = vsel %vm824, %v598, 0
        %v850 = vsel %vm824, %v599, 0
        %v853 = vsel %vm824, %v600, 0
        %v856 = vsel %vm824, %v601, 0
        %v859 = vsel %vm824, %v602, 0
        %v862 = vsel %vm824, %v603, 0
        %v865 = vsel %vm824, %v604, 0
        %v868 = vsel %vm824, %v605, 0
        %v871 = vsel %vm824, %v606, 0
        %v874 = vsel %vm824, %v607, 0
        %v877 = vsel %vm824, %v608, 0
        %v880 = vsel %vm824, %v609, 0
        %v883 = vsel %vm824, %v610, 0
        %v886 = vsel %vm824, %v611, 0
        %v889 = vsel %vm824, %v612, 0
        %v892 = vsel %vm824, %v613, 0
        %v895 = vsel %vm824, %v614, 0
        %v898 = vsel %vm824, %v615, 0
        %v901 = vsel %vm824, %v616, 0
        %v904 = vsel %vm824, %v617, 0
        %v907 = vsel %vm824, %v618, 0
        %v910 = vsel %vm824, %v619, 0
        %v913 = vsel %vm824, %v620, 0
        %v916 = vsel %vm824, %v621, 0
        %v919 = vsel %vm824, %v622, 0
        %v922 = vsel %vm824, %v623, 0
        %v925 = vsel %vm824, %v624, 0
        %v928 = vsel %vm824, %v625, 0
        %v931 = vsel %vm824, %v626, 0
        %v934 = vsel %vm824, %v627, 0
        %v937 = vsel %vm824, %v628, 0
        %v940 = vsel %vm824, %v629, 0
        %v943 = vsel %vm824, %v630, 0
        %v946 = vsel %vm824, %v631, 0
        %v949 = vsel %vm824, %v632, 0
        %v952 = vsel %vm824, %v633, 0
        %v955 = vsel %vm824, %v634, 0
        %v958 = vsel %vm824, %v635, 0
        %v961 = vsel %vm824, %v636, 0
        %v964 = vsel %vm824, %v637, 0
        %v967 = vsel %vm824, %v638, 0
        %v970 = vsel %vm824, %v639, 0
        %v973 = vsel %vm824, %v640, 0
        %v976 = vsel %vm824, %v641, 0
        %v979 = vsel %vm824, %v642, 0
        %v982 = vsel %vm824, %v643, 0
        %v985 = vsel %vm824, %v644, 0
        %v988 = vsel %vm824, %v645, 0
        %v991 = vsel %vm824, %v646, 0
        %v994 = vsel %vm824, %v647, 0
        %v997 = vsel %vm824, %v648, 0
        %v1000 = vsel %vm824, %v649, 0
        %v1003 = vsel %vm824, %v650, 0
        %v1006 = vsel %vm824, %v651, 0
        %v1009 = vsel %vm824, %v652, 0
        %v1012 = vsel %vm824, %v653, 0
        %v1015 = vsel %vm824, %v654, 0
        %v1018 = vsel %vm824, %v655, 0
        %v1021 = vsel %vm824, %v656, 0
        %v1024 = vsel %vm824, %v657, 0
        %v1027 = vsel %vm824, %v658, 0
        %v1030 = vsel %vm824, %v659, 0
        %v1033 = vsel %vm824, %v660, 0
        %v1036 = vsel %vm824, %v661, 0
        %v1039 = vsel %vm824, %v662, 0
        %v1042 = vsel %vm824, %v663, 0
        %v1045 = vsel %vm824, %v664, 0
        %v1048 = vsel %vm824, %v665, 0
        %v1051 = vsel %vm824, %v666, 0
        %v1054 = vsel %vm824, %v667, 0
        %v1057 = vsel %vm824, %v668, 0
        %v1060 = vsel %vm824, %v669, 0
        %v1063 = vsel %vm824, %v670, 0
        %v1066 = vsel %vm824, %v671, 0
        %v1069 = vsel %vm824, %v672, 0
        %v1072 = vsel %vm824, %v673, 0
        %v1075 = vsel %vm824, %v674, 0
        %v1078 = vsel %vm824, %v675, 0
        %v1081 = vsel %vm824, %v676, 0
        %v1084 = vsel %vm824, %v677, 0
        %v1087 = vsel %vm824, %v678, 0
        %v1090 = vsel %vm824, %v679, 0
        %v1093 = vsel %vm824, %v680, 0
        %v1096 = vsel %vm824, %v681, 0
        %v1099 = vsel %vm824, %v682, 0
        %v1102 = vsel %vm824, %v683, 0
        %v1105 = vsel %vm824, %v684, 0
        %v1108 = vsel %vm824, %v685, 0
        %v1111 = vsel %vm824, %v686, 0
        %v1114 = vsel %vm824, %v687, 0
        %v1117 = vsel %vm824, %v688, 0
        %v1120 = vsel %vm824, %v689, 0
        %v1123 = vsel %vm824, %v690, 0
        %v1126 = vsel %vm824, %v691, 0
        %v1129 = vsel %vm824, %v692, 0
        %v1132 = vsel %vm824, %v693, 0
        %v1135 = vsel %vm824, %v694, 0
        %v1138 = vsel %vm824, %v695, 0
        %v1141 = vsel %vm824, %v696, 0
        %v1144 = vsel %vm824, %v697, 0
        %v1147 = vsel %vm824, %v698, 0
        %v1150 = vsel %vm824, %v699, 0
        %v1153 = vsel %vm824, %v700, 0
        %v1156 = vsel %vm824, %v701, 0
        %v1159 = vsel %vm824, %v702, 0
        %v1162 = vsel %vm824, %v703, 0
        %v1165 = vsel %vm824, %v704, 0
        %v1168 = vsel %vm824, %v705, 0
        %v1171 = vsel %vm824, %v706, 0
        %v1174 = vsel %vm824, %v707, 0
        %v1177 = vsel %vm824, %v708, 0
        %v1180 = vsel %vm824, %v709, 0
        %v1183 = vsel %vm824, %v710, 0
        %v1186 = vsel %vm824, %v711, 0
        %v1189 = vsel %vm824, %v712, 0
        %v1192 = vsel %vm824, %v713, 0
        %v1195 = vsel %vm824, %v714, 0
        %v1198 = vsel %vm824, %v715, 0
        %v1201 = vsel %vm824, %v716, 0
        %v1204 = vsel %vm824, %v717, 0
        %v1207 = vsel %vm824, %v718, 0
        %v1210 = vsel %vm824, %v719, 0
        %v1213 = vsel %vm824, %v720, 0
        %v1216 = vsel %vm824, %v721, 0
        %v1219 = vsel %vm824, %v722, 0
        %1221 = vmatprep.subr.mxu0 0.0
        %1222 = vmatpush1.xpose.msra.mxu0 %v838
        %1223 = vmatprep.subr.mxu0 0.0
        %1224 = vmatpush1.xpose.msra.mxu0 %v841
        %1225 = vmatprep.subr.mxu0 0.0
        %1226 = vmatpush1.xpose.msra.mxu0 %v844
        %1227 = vmatprep.subr.mxu0 0.0
        %1228 = vmatpush1.xpose.msra.mxu0 %v847
        %1229 = vmatprep.subr.mxu0 0.0
        %1230 = vmatpush1.xpose.msra.mxu0 %v850
        %1231 = vmatprep.subr.mxu0 0.0
        %1232 = vmatpush1.xpose.msra.mxu0 %v853
        %1233 = vmatprep.subr.mxu0 0.0
        %1234 = vmatpush1.xpose.msra.mxu0 %v856
        %1235 = vmatprep.subr.mxu0 0.0
        %1236 = vmatpush1.xpose.msra.mxu0 %v859
        %1237 = vmatprep.subr.mxu0 0.0
        %1238 = vmatpush1.xpose.msra.mxu0 %v862
        %1239 = vmatprep.subr.mxu0 0.0
        %1240 = vmatpush1.xpose.msra.mxu0 %v865
        %1241 = vmatprep.subr.mxu0 0.0
        %1242 = vmatpush1.xpose.msra.mxu0 %v868
        %1243 = vmatprep.subr.mxu0 0.0
        %1244 = vmatpush1.xpose.msra.mxu0 %v871
        %1245 = vmatprep.subr.mxu0 0.0
        %1246 = vmatpush1.xpose.msra.mxu0 %v874
        %1247 = vmatprep.subr.mxu0 0.0
        %1248 = vmatpush1.xpose.msra.mxu0 %v877
        %1249 = vmatprep.subr.mxu0 0.0
        %1250 = vmatpush1.xpose.msra.mxu0 %v880
        %1251 = vmatprep.subr.mxu0 0.0
        %1252 = vmatpush1.xpose.msra.mxu0 %v883
        %1253 = vmatprep.subr.mxu0 0.0
        %1254 = vmatpush1.xpose.msra.mxu0 %v886
        %1255 = vmatprep.subr.mxu0 0.0
        %1256 = vmatpush1.xpose.msra.mxu0 %v889
        %1257 = vmatprep.subr.mxu0 0.0
        %1258 = vmatpush1.xpose.msra.mxu0 %v892
        %1259 = vmatprep.subr.mxu0 0.0
        %1260 = vmatpush1.xpose.msra.mxu0 %v895
        %1261 = vmatprep.subr.mxu0 0.0
        %1262 = vmatpush1.xpose.msra.mxu0 %v898
        %1263 = vmatprep.subr.mxu0 0.0
        %1264 = vmatpush1.xpose.msra.mxu0 %v901
        %1265 = vmatprep.subr.mxu0 0.0
        %1266 = vmatpush1.xpose.msra.mxu0 %v904
        %1267 = vmatprep.subr.mxu0 0.0
        %1268 = vmatpush1.xpose.msra.mxu0 %v907
        %1269 = vmatprep.subr.mxu0 0.0
        %1270 = vmatpush1.xpose.msra.mxu0 %v910
        %1271 = vmatprep.subr.mxu0 0.0
        %1272 = vmatpush1.xpose.msra.mxu0 %v913
        %1273 = vmatprep.subr.mxu0 0.0
        %1274 = vmatpush1.xpose.msra.mxu0 %v916
        %1275 = vmatprep.subr.mxu0 0.0
        %1276 = vmatpush1.xpose.msra.mxu0 %v919
        %1277 = vmatprep.subr.mxu0 0.0
        %1278 = vmatpush1.xpose.msra.mxu0 %v922
        %1279 = vmatprep.subr.mxu0 0.0
        %1280 = vmatpush1.xpose.msra.mxu0 %v925
        %1281 = vmatprep.subr.mxu0 0.0
        %1282 = vmatpush1.xpose.msra.mxu0 %v928
        %1283 = vmatprep.subr.mxu0 0.0
        %1284 = vmatpush1.xpose.msra.mxu0 %v931
        %1285 = vmatprep.mubr.f32.mxu0 0.0
        %1286 = vmatmul.mubr.f32.gmra.mrb[0].mxu0 %v826
        %v1287 = vpop.f32.mrb[0].mxu0
        %v1288 = vadd.f32 %v792, %v1287
        %v1289 = vpop.f32.mrb[0].mxu0
        %v1290 = vadd.f32 %v793, %v1289
        %1291 = vmatprep.mubr.f32.mxu0 0.0
        %1292 = vmatmul.mubr.f32.gmra.mrb[0].mxu0 %v829
        %v1293 = vpop.f32.mrb[0].mxu0
        %v1294 = vadd.f32 %v800, %v1293
        %v1295 = vpop.f32.mrb[0].mxu0
        %v1296 = vadd.f32 %v801, %v1295
        %1297 = vmatprep.mubr.f32.mxu0 0.0
        %1298 = vmatmul.mubr.f32.gmra.mrb[0].mxu0 %v832
        %v1299 = vpop.f32.mrb[0].mxu0
        %v1300 = vadd.f32 %v808, %v1299
        %v1301 = vpop.f32.mrb[0].mxu0
        %v1302 = vadd.f32 %v809, %v1301
        %1303 = vmatprep.mubr.f32.mxu0 0.0
        %1304 = vmatmul.mubr.f32.gmra.mrb[0].mxu0 %v835
        %v1305 = vpop.f32.mrb[0].mxu0
        %v1306 = vadd.f32 %v816, %v1305
        %v1307 = vpop.f32.mrb[0].mxu0
        %v1308 = vadd.f32 %v817, %v1307
        %1309 = vdwg.mxu0
        %1310 = vmatprep.subr.mxu0 0.0
        %1311 = vmatpush1.xpose.msra.mxu0 %v934
        %1312 = vmatprep.subr.mxu0 0.0
        %1313 = vmatpush1.xpose.msra.mxu0 %v937
        %1314 = vmatprep.subr.mxu0 0.0
        %1315 = vmatpush1.xpose.msra.mxu0 %v940
        %1316 = vmatprep.subr.mxu0 0.0
        %1317 = vmatpush1.xpose.msra.mxu0 %v943
        %1318 = vmatprep.subr.mxu0 0.0
        %1319 = vmatpush1.xpose.msra.mxu0 %v946
        %1320 = vmatprep.subr.mxu0 0.0
        %1321 = vmatpush1.xpose.msra.mxu0 %v949
        %1322 = vmatprep.subr.mxu0 0.0
        %1323 = vmatpush1.xpose.msra.mxu0 %v952
        %1324 = vmatprep.subr.mxu0 0.0
        %1325 = vmatpush1.xpose.msra.mxu0 %v955
        %1326 = vmatprep.subr.mxu0 0.0
        %1327 = vmatpush1.xpose.msra.mxu0 %v958
        %1328 = vmatprep.subr.mxu0 0.0
        %1329 = vmatpush1.xpose.msra.mxu0 %v961
        %1330 = vmatprep.subr.mxu0 0.0
        %1331 = vmatpush1.xpose.msra.mxu0 %v964
        %1332 = vmatprep.subr.mxu0 0.0
        %1333 = vmatpush1.xpose.msra.mxu0 %v967
        %1334 = vmatprep.subr.mxu0 0.0
        %1335 = vmatpush1.xpose.msra.mxu0 %v970
        %1336 = vmatprep.subr.mxu0 0.0
        %1337 = vmatpush1.xpose.msra.mxu0 %v973
        %1338 = vmatprep.subr.mxu0 0.0
        %1339 = vmatpush1.xpose.msra.mxu0 %v976
        %1340 = vmatprep.subr.mxu0 0.0
        %1341 = vmatpush1.xpose.msra.mxu0 %v979
        %1342 = vmatprep.subr.mxu0 0.0
        %1343 = vmatpush1.xpose.msra.mxu0 %v982
        %1344 = vmatprep.subr.mxu0 0.0
        %1345 = vmatpush1.xpose.msra.mxu0 %v985
        %1346 = vmatprep.subr.mxu0 0.0
        %1347 = vmatpush1.xpose.msra.mxu0 %v988
        %1348 = vmatprep.subr.mxu0 0.0
        %1349 = vmatpush1.xpose.msra.mxu0 %v991
        %1350 = vmatprep.subr.mxu0 0.0
        %1351 = vmatpush1.xpose.msra.mxu0 %v994
        %1352 = vmatprep.subr.mxu0 0.0
        %1353 = vmatpush1.xpose.msra.mxu0 %v997
        %1354 = vmatprep.subr.mxu0 0.0
        %1355 = vmatpush1.xpose.msra.mxu0 %v1000
        %1356 = vmatprep.subr.mxu0 0.0
        %1357 = vmatpush1.xpose.msra.mxu0 %v1003
        %1358 = vmatprep.subr.mxu0 0.0
        %1359 = vmatpush1.xpose.msra.mxu0 %v1006
        %1360 = vmatprep.subr.mxu0 0.0
        %1361 = vmatpush1.xpose.msra.mxu0 %v1009
        %1362 = vmatprep.subr.mxu0 0.0
        %1363 = vmatpush1.xpose.msra.mxu0 %v1012
        %1364 = vmatprep.subr.mxu0 0.0
        %1365 = vmatpush1.xpose.msra.mxu0 %v1015
        %1366 = vmatprep.subr.mxu0 0.0
        %1367 = vmatpush1.xpose.msra.mxu0 %v1018
        %1368 = vmatprep.subr.mxu0 0.0
        %1369 = vmatpush1.xpose.msra.mxu0 %v1021
        %1370 = vmatprep.subr.mxu0 0.0
        %1371 = vmatpush1.xpose.msra.mxu0 %v1024
        %1372 = vmatprep.subr.mxu0 0.0
        %1373 = vmatpush1.xpose.msra.mxu0 %v1027
        %1374 = vmatprep.mubr.f32.mxu0 0.0
        %1375 = vmatmul.mubr.f32.gmra.mrb[0].mxu0 %v826
        %v1376 = vpop.f32.mrb[0].mxu0
        %v1377 = vadd.f32 %v794, %v1376
        %v1378 = vpop.f32.mrb[0].mxu0
        %v1379 = vadd.f32 %v795, %v1378
        %1380 = vmatprep.mubr.f32.mxu0 0.0
        %1381 = vmatmul.mubr.f32.gmra.mrb[0].mxu0 %v829
        %v1382 = vpop.f32.mrb[0].mxu0
        %v1383 = vadd.f32 %v802, %v1382
        %v1384 = vpop.f32.mrb[0].mxu0
        %v1385 = vadd.f32 %v803, %v1384
        %1386 = vmatprep.mubr.f32.mxu0 0.0
        %1387 = vmatmul.mubr.f32.gmra.mrb[0].mxu0 %v832
        %v1388 = vpop.f32.mrb[0].mxu0
        %v1389 = vadd.f32 %v810, %v1388
        %v1390 = vpop.f32.mrb[0].mxu0
        %v1391 = vadd.f32 %v811, %v1390
        %1392 = vmatprep.mubr.f32.mxu0 0.0
        %1393 = vmatmul.mubr.f32.gmra.mrb[0].mxu0 %v835
        %v1394 = vpop.f32.mrb[0].mxu0
        %v1395 = vadd.f32 %v818, %v1394
        %v1396 = vpop.f32.mrb[0].mxu0
        %v1397 = vadd.f32 %v819, %v1396
        %1398 = vdwg.mxu0
        %1399 = vmatprep.subr.mxu0 0.0
        %1400 = vmatpush1.xpose.msra.mxu0 %v1030
        %1401 = vmatprep.subr.mxu0 0.0
        %1402 = vmatpush1.xpose.msra.mxu0 %v1033
        %1403 = vmatprep.subr.mxu0 0.0
        %1404 = vmatpush1.xpose.msra.mxu0 %v1036
        %1405 = vmatprep.subr.mxu0 0.0
        %1406 = vmatpush1.xpose.msra.mxu0 %v1039
        %1407 = vmatprep.subr.mxu0 0.0
        %1408 = vmatpush1.xpose.msra.mxu0 %v1042
        %1409 = vmatprep.subr.mxu0 0.0
        %1410 = vmatpush1.xpose.msra.mxu0 %v1045
        %1411 = vmatprep.subr.mxu0 0.0
        %1412 = vmatpush1.xpose.msra.mxu0 %v1048
        %1413 = vmatprep.subr.mxu0 0.0
        %1414 = vmatpush1.xpose.msra.mxu0 %v1051
        %1415 = vmatprep.subr.mxu0 0.0
        %1416 = vmatpush1.xpose.msra.mxu0 %v1054
        %1417 = vmatprep.subr.mxu0 0.0
        %1418 = vmatpush1.xpose.msra.mxu0 %v1057
        %1419 = vmatprep.subr.mxu0 0.0
        %1420 = vmatpush1.xpose.msra.mxu0 %v1060
        %1421 = vmatprep.subr.mxu0 0.0
        %1422 = vmatpush1.xpose.msra.mxu0 %v1063
        %1423 = vmatprep.subr.mxu0 0.0
        %1424 = vmatpush1.xpose.msra.mxu0 %v1066
        %1425 = vmatprep.subr.mxu0 0.0
        %1426 = vmatpush1.xpose.msra.mxu0 %v1069
        %1427 = vmatprep.subr.mxu0 0.0
        %1428 = vmatpush1.xpose.msra.mxu0 %v1072
        %1429 = vmatprep.subr.mxu0 0.0
        %1430 = vmatpush1.xpose.msra.mxu0 %v1075
        %1431 = vmatprep.subr.mxu0 0.0
        %1432 = vmatpush1.xpose.msra.mxu0 %v1078
        %1433 = vmatprep.subr.mxu0 0.0
        %1434 = vmatpush1.xpose.msra.mxu0 %v1081
        %1435 = vmatprep.subr.mxu0 0.0
        %1436 = vmatpush1.xpose.msra.mxu0 %v1084
        %1437 = vmatprep.subr.mxu0 0.0
        %1438 = vmatpush1.xpose.msra.mxu0 %v1087
        %1439 = vmatprep.subr.mxu0 0.0
        %1440 = vmatpush1.xpose.msra.mxu0 %v1090
        %1441 = vmatprep.subr.mxu0 0.0
        %1442 = vmatpush1.xpose.msra.mxu0 %v1093
        %1443 = vmatprep.subr.mxu0 0.0
        %1444 = vmatpush1.xpose.msra.mxu0 %v1096
        %1445 = vmatprep.subr.mxu0 0.0
        %1446 = vmatpush1.xpose.msra.mxu0 %v1099
        %1447 = vmatprep.subr.mxu0 0.0
        %1448 = vmatpush1.xpose.msra.mxu0 %v1102
        %1449 = vmatprep.subr.mxu0 0.0
        %1450 = vmatpush1.xpose.msra.mxu0 %v1105
        %1451 = vmatprep.subr.mxu0 0.0
        %1452 = vmatpush1.xpose.msra.mxu0 %v1108
        %1453 = vmatprep.subr.mxu0 0.0
        %1454 = vmatpush1.xpose.msra.mxu0 %v1111
        %1455 = vmatprep.subr.mxu0 0.0
        %1456 = vmatpush1.xpose.msra.mxu0 %v1114
        %1457 = vmatprep.subr.mxu0 0.0
        %1458 = vmatpush1.xpose.msra.mxu0 %v1117
        %1459 = vmatprep.subr.mxu0 0.0
        %1460 = vmatpush1.xpose.msra.mxu0 %v1120
        %1461 = vmatprep.subr.mxu0 0.0
        %1462 = vmatpush1.xpose.msra.mxu0 %v1123
        %1463 = vmatprep.mubr.f32.mxu0 0.0
        %1464 = vmatmul.mubr.f32.gmra.mrb[0].mxu0 %v826
        %v1465 = vpop.f32.mrb[0].mxu0
        %v1466 = vadd.f32 %v796, %v1465
        %v1467 = vpop.f32.mrb[0].mxu0
        %v1468 = vadd.f32 %v797, %v1467
        %1469 = vmatprep.mubr.f32.mxu0 0.0
        %1470 = vmatmul.mubr.f32.gmra.mrb[0].mxu0 %v829
        %v1471 = vpop.f32.mrb[0].mxu0
        %v1472 = vadd.f32 %v804, %v1471
        %v1473 = vpop.f32.mrb[0].mxu0
        %v1474 = vadd.f32 %v805, %v1473
        %1475 = vmatprep.mubr.f32.mxu0 0.0
        %1476 = vmatmul.mubr.f32.gmra.mrb[0].mxu0 %v832
        %v1477 = vpop.f32.mrb[0].mxu0
        %v1478 = vadd.f32 %v812, %v1477
        %v1479 = vpop.f32.mrb[0].mxu0
        %v1480 = vadd.f32 %v813, %v1479
        %1481 = vmatprep.mubr.f32.mxu0 0.0
        %1482 = vmatmul.mubr.f32.gmra.mrb[0].mxu0 %v835
        %v1483 = vpop.f32.mrb[0].mxu0
        %v1484 = vadd.f32 %v820, %v1483
        %v1485 = vpop.f32.mrb[0].mxu0
        %v1486 = vadd.f32 %v821, %v1485
        %1487 = vdwg.mxu0
        %1488 = vmatprep.subr.mxu0 0.0
        %1489 = vmatpush1.xpose.msra.mxu0 %v1126
        %1490 = vmatprep.subr.mxu0 0.0
        %1491 = vmatpush1.xpose.msra.mxu0 %v1129
        %1492 = vmatprep.subr.mxu0 0.0
        %1493 = vmatpush1.xpose.msra.mxu0 %v1132
        %1494 = vmatprep.subr.mxu0 0.0
        %1495 = vmatpush1.xpose.msra.mxu0 %v1135
        %1496 = vmatprep.subr.mxu0 0.0
        %1497 = vmatpush1.xpose.msra.mxu0 %v1138
        %1498 = vmatprep.subr.mxu0 0.0
        %1499 = vmatpush1.xpose.msra.mxu0 %v1141
        %1500 = vmatprep.subr.mxu0 0.0
        %1501 = vmatpush1.xpose.msra.mxu0 %v1144
        %1502 = vmatprep.subr.mxu0 0.0
        %1503 = vmatpush1.xpose.msra.mxu0 %v1147
        %1504 = vmatprep.subr.mxu0 0.0
        %1505 = vmatpush1.xpose.msra.mxu0 %v1150
        %1506 = vmatprep.subr.mxu0 0.0
        %1507 = vmatpush1.xpose.msra.mxu0 %v1153
        %1508 = vmatprep.subr.mxu0 0.0
        %1509 = vmatpush1.xpose.msra.mxu0 %v1156
        %1510 = vmatprep.subr.mxu0 0.0
        %1511 = vmatpush1.xpose.msra.mxu0 %v1159
        %1512 = vmatprep.subr.mxu0 0.0
        %1513 = vmatpush1.xpose.msra.mxu0 %v1162
        %1514 = vmatprep.subr.mxu0 0.0
        %1515 = vmatpush1.xpose.msra.mxu0 %v1165
        %1516 = vmatprep.subr.mxu0 0.0
        %1517 = vmatpush1.xpose.msra.mxu0 %v1168
        %1518 = vmatprep.subr.mxu0 0.0
        %1519 = vmatpush1.xpose.msra.mxu0 %v1171
        %1520 = vmatprep.subr.mxu0 0.0
        %1521 = vmatpush1.xpose.msra.mxu0 %v1174
        %1522 = vmatprep.subr.mxu0 0.0
        %1523 = vmatpush1.xpose.msra.mxu0 %v1177
        %1524 = vmatprep.subr.mxu0 0.0
        %1525 = vmatpush1.xpose.msra.mxu0 %v1180
        %1526 = vmatprep.subr.mxu0 0.0
        %1527 = vmatpush1.xpose.msra.mxu0 %v1183
        %1528 = vmatprep.subr.mxu0 0.0
        %1529 = vmatpush1.xpose.msra.mxu0 %v1186
        %1530 = vmatprep.subr.mxu0 0.0
        %1531 = vmatpush1.xpose.msra.mxu0 %v1189
        %1532 = vmatprep.subr.mxu0 0.0
        %1533 = vmatpush1.xpose.msra.mxu0 %v1192
        %1534 = vmatprep.subr.mxu0 0.0
        %1535 = vmatpush1.xpose.msra.mxu0 %v1195
        %1536 = vmatprep.subr.mxu0 0.0
        %1537 = vmatpush1.xpose.msra.mxu0 %v1198
        %1538 = vmatprep.subr.mxu0 0.0
        %1539 = vmatpush1.xpose.msra.mxu0 %v1201
        %1540 = vmatprep.subr.mxu0 0.0
        %1541 = vmatpush1.xpose.msra.mxu0 %v1204
        %1542 = vmatprep.subr.mxu0 0.0
        %1543 = vmatpush1.xpose.msra.mxu0 %v1207
        %1544 = vmatprep.subr.mxu0 0.0
        %1545 = vmatpush1.xpose.msra.mxu0 %v1210
        %1546 = vmatprep.subr.mxu0 0.0
        %1547 = vmatpush1.xpose.msra.mxu0 %v1213
        %1548 = vmatprep.subr.mxu0 0.0
        %1549 = vmatpush1.xpose.msra.mxu0 %v1216
        %1550 = vmatprep.subr.mxu0 0.0
        %1551 = vmatpush1.xpose.msra.mxu0 %v1219
        %1552 = vmatprep.mubr.f32.mxu0 0.0
        %1553 = vmatmul.mubr.f32.gmra.mrb[0].mxu0 %v826
        %v1554 = vpop.f32.mrb[0].mxu0
        %v1555 = vadd.f32 %v798, %v1554
        %v1556 = vpop.f32.mrb[0].mxu0
        %v1557 = vadd.f32 %v799, %v1556
        %1558 = vmatprep.mubr.f32.mxu0 0.0
        %1559 = vmatmul.mubr.f32.gmra.mrb[0].mxu0 %v829
        %v1560 = vpop.f32.mrb[0].mxu0
        %v1561 = vadd.f32 %v806, %v1560
        %v1562 = vpop.f32.mrb[0].mxu0
        %v1563 = vadd.f32 %v807, %v1562
        %1564 = vmatprep.mubr.f32.mxu0 0.0
        %1565 = vmatmul.mubr.f32.gmra.mrb[0].mxu0 %v832
        %v1566 = vpop.f32.mrb[0].mxu0
        %v1567 = vadd.f32 %v814, %v1566
        %v1568 = vpop.f32.mrb[0].mxu0
        %v1569 = vadd.f32 %v815, %v1568
        %1570 = vmatprep.mubr.f32.mxu0 0.0
        %1571 = vmatmul.mubr.f32.gmra.mrb[0].mxu0 %v835
        %v1572 = vpop.f32.mrb[0].mxu0
        %v1573 = vadd.f32 %v822, %v1572
        %v1574 = vpop.f32.mrb[0].mxu0
        %v1575 = vadd.f32 %v823, %v1574
        %1576 = vdwg.mxu0
        %v1577 = vld [vmem:[%s4] sm:$0xff]
        %v1578 = vld [vmem:[%s4 + $0x8] sm:$0xff]
        %v1579 = vld [vmem:[%s4 + $0x10] sm:$0xff]
        %v1580 = vld [vmem:[%s4 + $0x18] sm:$0xff]
        %1582 = vset.pattern.permute.xlu0 0
        %1583 = vperm.xlu0 %1582, %v1577
        %v1584 = vpop.permute.xlu0 %1583
        %1587 = vset.pattern.permute.xlu0 0
        %1588 = vperm.xlu0 %1587, %v1578
        %v1589 = vpop.permute.xlu0 %1588
        %1592 = vset.pattern.permute.xlu0 0
        %1593 = vperm.xlu0 %1592, %v1579
        %v1594 = vpop.permute.xlu0 %1593
        %1597 = vset.pattern.permute.xlu0 0
        %1598 = vperm.xlu0 %1597, %v1580
        %v1599 = vpop.permute.xlu0 %1598
        %v1601 = vadd.f32 %v1288, %v1584
        %v1602 = vadd.f32 %v1290, %v1584
        %v1603 = vadd.f32 %v1377, %v1584
        %v1604 = vadd.f32 %v1379, %v1584
        %v1605 = vadd.f32 %v1466, %v1584
        %v1606 = vadd.f32 %v1468, %v1584
        %v1607 = vadd.f32 %v1555, %v1584
        %v1608 = vadd.f32 %v1557, %v1584
        %v1609 = vadd.f32 %v1294, %v1589
        %v1610 = vadd.f32 %v1296, %v1589
        %v1611 = vadd.f32 %v1383, %v1589
        %v1612 = vadd.f32 %v1385, %v1589
        %v1613 = vadd.f32 %v1472, %v1589
        %v1614 = vadd.f32 %v1474, %v1589
        %v1615 = vadd.f32 %v1561, %v1589
        %v1616 = vadd.f32 %v1563, %v1589
        %v1617 = vadd.f32 %v1300, %v1594
        %v1618 = vadd.f32 %v1302, %v1594
        %v1619 = vadd.f32 %v1389, %v1594
        %v1620 = vadd.f32 %v1391, %v1594
        %v1621 = vadd.f32 %v1478, %v1594
        %v1622 = vadd.f32 %v1480, %v1594
        %v1623 = vadd.f32 %v1567, %v1594
        %v1624 = vadd.f32 %v1569, %v1594
        %v1625 = vadd.f32 %v1306, %v1599
        %v1626 = vadd.f32 %v1308, %v1599
        %v1627 = vadd.f32 %v1395, %v1599
        %v1628 = vadd.f32 %v1397, %v1599
        %v1629 = vadd.f32 %v1484, %v1599
        %v1630 = vadd.f32 %v1486, %v1599
        %v1631 = vadd.f32 %v1573, %v1599
        %v1632 = vadd.f32 %v1575, %v1599
        %v1633 = vpack.c.bf16 %v1609, %v1601
        %v1634 = vpack.c.bf16 %v1610, %v1602
        %v1635 = vpack.c.bf16 %v1611, %v1603
        %v1636 = vpack.c.bf16 %v1612, %v1604
        %v1637 = vpack.c.bf16 %v1613, %v1605
        %v1638 = vpack.c.bf16 %v1614, %v1606
        %v1639 = vpack.c.bf16 %v1615, %v1607
        %v1640 = vpack.c.bf16 %v1616, %v1608
        %v1641 = vpack.c.bf16 %v1625, %v1617
        %v1642 = vpack.c.bf16 %v1626, %v1618
        %v1643 = vpack.c.bf16 %v1627, %v1619
        %v1644 = vpack.c.bf16 %v1628, %v1620
        %v1645 = vpack.c.bf16 %v1629, %v1621
        %v1646 = vpack.c.bf16 %v1630, %v1622
        %v1647 = vpack.c.bf16 %v1631, %v1623
        %v1648 = vpack.c.bf16 %v1632, %v1624
        %v1649 = vmul.bf16 %v1633, 1120420552
        %v1650 = vmul.bf16 %v1634, 1120420552
        %v1651 = vmul.bf16 %v1635, 1120420552
        %v1652 = vmul.bf16 %v1636, 1120420552
        %v1653 = vmul.bf16 %v1637, 1120420552
        %v1654 = vmul.bf16 %v1638, 1120420552
        %v1655 = vmul.bf16 %v1639, 1120420552
        %v1656 = vmul.bf16 %v1640, 1120420552
        %v1657 = vmul.bf16 %v1641, 1120420552
        %v1658 = vmul.bf16 %v1642, 1120420552
        %v1659 = vmul.bf16 %v1643, 1120420552
        %v1660 = vmul.bf16 %v1644, 1120420552
        %v1661 = vmul.bf16 %v1645, 1120420552
        %v1662 = vmul.bf16 %v1646, 1120420552
        %v1663 = vmul.bf16 %v1647, 1120420552
        %v1664 = vmul.bf16 %v1648, 1120420552
        %v1665 = vmin.bf16 %v1649, 1101021600
        %v1666 = vmin.bf16 %v1650, 1101021600
        %v1667 = vmin.bf16 %v1651, 1101021600
        %v1668 = vmin.bf16 %v1652, 1101021600
        %v1669 = vmin.bf16 %v1653, 1101021600
        %v1670 = vmin.bf16 %v1654, 1101021600
        %v1671 = vmin.bf16 %v1655, 1101021600
        %v1672 = vmin.bf16 %v1656, 1101021600
        %v1673 = vmin.bf16 %v1657, 1101021600
        %v1674 = vmin.bf16 %v1658, 1101021600
        %v1675 = vmin.bf16 %v1659, 1101021600
        %v1676 = vmin.bf16 %v1660, 1101021600
        %v1677 = vmin.bf16 %v1661, 1101021600
        %v1678 = vmin.bf16 %v1662, 1101021600
        %v1679 = vmin.bf16 %v1663, 1101021600
        %v1680 = vmin.bf16 %v1664, 1101021600
        %v1682 = vmul.bf16 %v1665, 1069105081
        %v1683 = vpow.bf16.pop %v1682
        %v1685 = vmul.bf16 %v1666, 1069105081
        %v1686 = vpow.bf16.pop %v1685
        %v1688 = vmul.bf16 %v1667, 1069105081
        %v1689 = vpow.bf16.pop %v1688
        %v1691 = vmul.bf16 %v1668, 1069105081
        %v1692 = vpow.bf16.pop %v1691
        %v1694 = vmul.bf16 %v1669, 1069105081
        %v1695 = vpow.bf16.pop %v1694
        %v1697 = vmul.bf16 %v1670, 1069105081
        %v1698 = vpow.bf16.pop %v1697
        %v1700 = vmul.bf16 %v1671, 1069105081
        %v1701 = vpow.bf16.pop %v1700
        %v1703 = vmul.bf16 %v1672, 1069105081
        %v1704 = vpow.bf16.pop %v1703
        %v1706 = vmul.bf16 %v1673, 1069105081
        %v1707 = vpow.bf16.pop %v1706
        %v1709 = vmul.bf16 %v1674, 1069105081
        %v1710 = vpow.bf16.pop %v1709
        %v1712 = vmul.bf16 %v1675, 1069105081
        %v1713 = vpow.bf16.pop %v1712
        %v1715 = vmul.bf16 %v1676, 1069105081
        %v1716 = vpow.bf16.pop %v1715
        %v1718 = vmul.bf16 %v1677, 1069105081
        %v1719 = vpow.bf16.pop %v1718
        %v1721 = vmul.bf16 %v1678, 1069105081
        %v1722 = vpow.bf16.pop %v1721
        %v1724 = vmul.bf16 %v1679, 1069105081
        %v1725 = vpow.bf16.pop %v1724
        %v1727 = vmul.bf16 %v1680, 1069105081
        %v1728 = vpow.bf16.pop %v1727
        %v1729 = vadd.bf16 %v1683, 1065369472
        %v1730 = vadd.bf16 %v1686, 1065369472
        %v1731 = vadd.bf16 %v1689, 1065369472
        %v1732 = vadd.bf16 %v1692, 1065369472
        %v1733 = vadd.bf16 %v1695, 1065369472
        %v1734 = vadd.bf16 %v1698, 1065369472
        %v1735 = vadd.bf16 %v1701, 1065369472
        %v1736 = vadd.bf16 %v1704, 1065369472
        %v1737 = vadd.bf16 %v1707, 1065369472
        %v1738 = vadd.bf16 %v1710, 1065369472
        %v1739 = vadd.bf16 %v1713, 1065369472
        %v1740 = vadd.bf16 %v1716, 1065369472
        %v1741 = vadd.bf16 %v1719, 1065369472
        %v1742 = vadd.bf16 %v1722, 1065369472
        %v1743 = vadd.bf16 %v1725, 1065369472
        %v1744 = vadd.bf16 %v1728, 1065369472
        %v1745 = vlog2.bf16.pop %v1729
        %v1747 = vmul.bf16 %v1745, 1060192049
        %v1748 = vlog2.bf16.pop %v1730
        %v1750 = vmul.bf16 %v1748, 1060192049
        %v1751 = vlog2.bf16.pop %v1731
        %v1753 = vmul.bf16 %v1751, 1060192049
        %v1754 = vlog2.bf16.pop %v1732
        %v1756 = vmul.bf16 %v1754, 1060192049
        %v1757 = vlog2.bf16.pop %v1733
        %v1759 = vmul.bf16 %v1757, 1060192049
        %v1760 = vlog2.bf16.pop %v1734
        %v1762 = vmul.bf16 %v1760, 1060192049
        %v1763 = vlog2.bf16.pop %v1735
        %v1765 = vmul.bf16 %v1763, 1060192049
        %v1766 = vlog2.bf16.pop %v1736
        %v1768 = vmul.bf16 %v1766, 1060192049
        %v1769 = vlog2.bf16.pop %v1737
        %v1771 = vmul.bf16 %v1769, 1060192049
        %v1772 = vlog2.bf16.pop %v1738
        %v1774 = vmul.bf16 %v1772, 1060192049
        %v1775 = vlog2.bf16.pop %v1739
        %v1777 = vmul.bf16 %v1775, 1060192049
        %v1778 = vlog2.bf16.pop %v1740
        %v1780 = vmul.bf16 %v1778, 1060192049
        %v1781 = vlog2.bf16.pop %v1741
        %v1783 = vmul.bf16 %v1781, 1060192049
        %v1784 = vlog2.bf16.pop %v1742
        %v1786 = vmul.bf16 %v1784, 1060192049
        %v1787 = vlog2.bf16.pop %v1743
        %v1789 = vmul.bf16 %v1787, 1060192049
        %v1790 = vlog2.bf16.pop %v1744
        %v1792 = vmul.bf16 %v1790, 1060192049
        %v1793 = vmul.bf16 %v1747, 1009007652
        %v1794 = vmul.bf16 %v1750, 1009007652
        %v1795 = vmul.bf16 %v1753, 1009007652
        %v1796 = vmul.bf16 %v1756, 1009007652
        %v1797 = vmul.bf16 %v1759, 1009007652
        %v1798 = vmul.bf16 %v1762, 1009007652
        %v1799 = vmul.bf16 %v1765, 1009007652
        %v1800 = vmul.bf16 %v1768, 1009007652
        %v1801 = vmul.bf16 %v1771, 1009007652
        %v1802 = vmul.bf16 %v1774, 1009007652
        %v1803 = vmul.bf16 %v1777, 1009007652
        %v1804 = vmul.bf16 %v1780, 1009007652
        %v1805 = vmul.bf16 %v1783, 1009007652
        %v1806 = vmul.bf16 %v1786, 1009007652
        %v1807 = vmul.bf16 %v1789, 1009007652
        %v1808 = vmul.bf16 %v1792, 1009007652
        %vm1809 = vcmp.gt.bf16.partialorder %v1649, 1101021600
        %vm1810 = vcmp.gt.bf16.partialorder %v1650, 1101021600
        %vm1811 = vcmp.gt.bf16.partialorder %v1651, 1101021600
        %vm1812 = vcmp.gt.bf16.partialorder %v1652, 1101021600
        %vm1813 = vcmp.gt.bf16.partialorder %v1653, 1101021600
        %vm1814 = vcmp.gt.bf16.partialorder %v1654, 1101021600
        %vm1815 = vcmp.gt.bf16.partialorder %v1655, 1101021600
        %vm1816 = vcmp.gt.bf16.partialorder %v1656, 1101021600
        %vm1817 = vcmp.gt.bf16.partialorder %v1657, 1101021600
        %vm1818 = vcmp.gt.bf16.partialorder %v1658, 1101021600
        %vm1819 = vcmp.gt.bf16.partialorder %v1659, 1101021600
        %vm1820 = vcmp.gt.bf16.partialorder %v1660, 1101021600
        %vm1821 = vcmp.gt.bf16.partialorder %v1661, 1101021600
        %vm1822 = vcmp.gt.bf16.partialorder %v1662, 1101021600
        %vm1823 = vcmp.gt.bf16.partialorder %v1663, 1101021600
        %vm1824 = vcmp.gt.bf16.partialorder %v1664, 1101021600
        %v1825 = vsel %vm1809, %v1633, %v1793
        %v1826 = vsel %vm1810, %v1634, %v1794
        %v1827 = vsel %vm1811, %v1635, %v1795
        %v1828 = vsel %vm1812, %v1636, %v1796
        %v1829 = vsel %vm1813, %v1637, %v1797
        %v1830 = vsel %vm1814, %v1638, %v1798
        %v1831 = vsel %vm1815, %v1639, %v1799
        %v1832 = vsel %vm1816, %v1640, %v1800
        %v1833 = vsel %vm1817, %v1641, %v1801
        %v1834 = vsel %vm1818, %v1642, %v1802
        %v1835 = vsel %vm1819, %v1643, %v1803
        %v1836 = vsel %vm1820, %v1644, %v1804
        %v1837 = vsel %vm1821, %v1645, %v1805
        %v1838 = vsel %vm1822, %v1646, %v1806
        %v1839 = vsel %vm1823, %v1647, %v1807
        %v1840 = vsel %vm1824, %v1648, %v1808
        %v1841 = vld [vmem:[%s5] sm:$0xf]
        %v1842 = vld [vmem:[%s5 + $0x4] sm:$0xf]
        %v1843 = vld [vmem:[%s5 + $0x8] sm:$0xf]
        %v1844 = vld [vmem:[%s5 + $0xc] sm:$0xf]
        %v1845 = vld [vmem:[%s6] sm:$0xff]
        %v1846 = vld [vmem:[%s6 + $0x8] sm:$0xff]
        %v1847 = vld [vmem:[%s6 + $0x10] sm:$0xff]
        %v1848 = vld [vmem:[%s6 + $0x18] sm:$0xff]
        %1850 = vset.pattern.permute.xlu0 0
        %1851 = vperm.xlu0 %1850, %v1845
        %v1852 = vpop.permute.xlu0 %1851
        %1855 = vset.pattern.permute.xlu0 0
        %1856 = vperm.xlu0 %1855, %v1846
        %v1857 = vpop.permute.xlu0 %1856
        %1860 = vset.pattern.permute.xlu0 0
        %1861 = vperm.xlu0 %1860, %v1847
        %v1862 = vpop.permute.xlu0 %1861
        %1865 = vset.pattern.permute.xlu0 0
        %1866 = vperm.xlu0 %1865, %v1848
        %v1867 = vpop.permute.xlu0 %1866
        %v1873 = vunpack.c.l.b16 %v1841
        %v1874 = vunpack.c.l.b16 %v1842
        %v1875 = vunpack.c.l.b16 %v1843
        %v1876 = vunpack.c.l.b16 %v1844
        %v1877 = vpack.c.b16 %v1874, %v1873
        %v1878 = vpack.c.b16 %v1876, %v1875
        %vm1879 = vcmask 261120
        %v1881 = vsel %vm1879, %v1877, 0
        %v1884 = vsel %vm1879, %v1878, 0
        %1886 = vmatprep.subr.bf16.mxu0 %v1826
        %1887 = vmatpush1.bf16.msra.mxu0 %v1825
        %1888 = vmatprep.subr.bf16.mxu0 %v1834
        %1889 = vmatpush1.bf16.msra.mxu0 %v1833
        %1890 = vmatprep.subr.bf16.mxu0 0
        %1891 = vmatpush1.bf16.msra.mxu0 0
        %1892 = vmatprep.subr.bf16.mxu0 0
        %1893 = vmatpush1.bf16.msra.mxu0 0
        %1894 = vmatprep.subr.bf16.mxu0 0
        %1895 = vmatpush1.bf16.msra.mxu0 0
        %1896 = vmatprep.subr.bf16.mxu0 0
        %1897 = vmatpush1.bf16.msra.mxu0 0
        %1898 = vmatprep.subr.bf16.mxu0 0
        %1899 = vmatpush1.bf16.msra.mxu0 0
        %1900 = vmatprep.subr.bf16.mxu0 0
        %1901 = vmatpush1.bf16.msra.mxu0 0
        %1902 = vmatprep.subr.bf16.mxu0 0
        %1903 = vmatpush1.bf16.msra.mxu0 0
        %1904 = vmatprep.subr.bf16.mxu0 0
        %1905 = vmatpush1.bf16.msra.mxu0 0
        %1906 = vmatprep.subr.bf16.mxu0 0
        %1907 = vmatpush1.bf16.msra.mxu0 0
        %1908 = vmatprep.subr.bf16.mxu0 0
        %1909 = vmatpush1.bf16.msra.mxu0 0
        %1910 = vmatprep.subr.bf16.mxu0 0
        %1911 = vmatpush1.bf16.msra.mxu0 0
        %1912 = vmatprep.subr.bf16.mxu0 0
        %1913 = vmatpush1.bf16.msra.mxu0 0
        %1914 = vmatprep.subr.bf16.mxu0 0
        %1915 = vmatpush1.bf16.msra.mxu0 0
        %1916 = vmatprep.subr.bf16.mxu0 0
        %1917 = vmatpush1.bf16.msra.mxu0 0
        %1918 = vmatprep.mubr.bf16.mxu0 0
        %1919 = vmatmul.mubr.bf16.gmra.mrb[0].mxu0 %v1881
        %v1920 = vpop.f32.mrb[0].mxu0
        %v1921 = vadd.f32 %v1852, %v1920
        %v1922 = vpop.f32.mrb[0].mxu0
        %v1923 = vadd.f32 %v1852, %v1922
        %v1924 = vpop.f32.mrb[0].mxu0
        %v1925 = vadd.f32 %v1857, %v1924
        %v1926 = vpop.f32.mrb[0].mxu0
        %v1927 = vadd.f32 %v1857, %v1926
        %1928 = vmatprep.mubr.bf16.mxu0 0
        %1929 = vmatmul.mubr.bf16.gmra.mrb[0].mxu0 %v1884
        %v1930 = vpop.f32.mrb[0].mxu0
        %v1931 = vadd.f32 %v1862, %v1930
        %v1932 = vpop.f32.mrb[0].mxu0
        %v1933 = vadd.f32 %v1862, %v1932
        %v1934 = vpop.f32.mrb[0].mxu0
        %v1935 = vadd.f32 %v1867, %v1934
        %v1936 = vpop.f32.mrb[0].mxu0
        %v1937 = vadd.f32 %v1867, %v1936
        %1938 = vdwg.mxu0
        %1939 = vmatprep.subr.bf16.mxu0 %v1828
        %1940 = vmatpush1.bf16.msra.mxu0 %v1827
        %1941 = vmatprep.subr.bf16.mxu0 %v1836
        %1942 = vmatpush1.bf16.msra.mxu0 %v1835
        %1943 = vmatprep.subr.bf16.mxu0 0
        %1944 = vmatpush1.bf16.msra.mxu0 0
        %1945 = vmatprep.subr.bf16.mxu0 0
        %1946 = vmatpush1.bf16.msra.mxu0 0
        %1947 = vmatprep.subr.bf16.mxu0 0
        %1948 = vmatpush1.bf16.msra.mxu0 0
        %1949 = vmatprep.subr.bf16.mxu0 0
        %1950 = vmatpush1.bf16.msra.mxu0 0
        %1951 = vmatprep.subr.bf16.mxu0 0
        %1952 = vmatpush1.bf16.msra.mxu0 0
        %1953 = vmatprep.subr.bf16.mxu0 0
        %1954 = vmatpush1.bf16.msra.mxu0 0
        %1955 = vmatprep.subr.bf16.mxu0 0
        %1956 = vmatpush1.bf16.msra.mxu0 0
        %1957 = vmatprep.subr.bf16.mxu0 0
        %1958 = vmatpush1.bf16.msra.mxu0 0
        %1959 = vmatprep.subr.bf16.mxu0 0
        %1960 = vmatpush1.bf16.msra.mxu0 0
        %1961 = vmatprep.subr.bf16.mxu0 0
        %1962 = vmatpush1.bf16.msra.mxu0 0
        %1963 = vmatprep.subr.bf16.mxu0 0
        %1964 = vmatpush1.bf16.msra.mxu0 0
        %1965 = vmatprep.subr.bf16.mxu0 0
        %1966 = vmatpush1.bf16.msra.mxu0 0
        %1967 = vmatprep.subr.bf16.mxu0 0
        %1968 = vmatpush1.bf16.msra.mxu0 0
        %1969 = vmatprep.subr.bf16.mxu0 0
        %1970 = vmatpush1.bf16.msra.mxu0 0
        %1971 = vmatprep.mubr.bf16.mxu0 0
        %1972 = vmatmul.mubr.bf16.gmra.mrb[0].mxu0 %v1881
        %v1973 = vpop.f32.mrb[0].mxu0
        %v1974 = vadd.f32 %v1852, %v1973
        %v1975 = vpop.f32.mrb[0].mxu0
        %v1976 = vadd.f32 %v1852, %v1975
        %v1977 = vpop.f32.mrb[0].mxu0
        %v1978 = vadd.f32 %v1857, %v1977
        %v1979 = vpop.f32.mrb[0].mxu0
        %v1980 = vadd.f32 %v1857, %v1979
        %1981 = vmatprep.mubr.bf16.mxu0 0
        %1982 = vmatmul.mubr.bf16.gmra.mrb[0].mxu0 %v1884
        %v1983 = vpop.f32.mrb[0].mxu0
        %v1984 = vadd.f32 %v1862, %v1983
        %v1985 = vpop.f32.mrb[0].mxu0
        %v1986 = vadd.f32 %v1862, %v1985
        %v1987 = vpop.f32.mrb[0].mxu0
        %v1988 = vadd.f32 %v1867, %v1987
        %v1989 = vpop.f32.mrb[0].mxu0
        %v1990 = vadd.f32 %v1867, %v1989
        %1991 = vdwg.mxu0
        %1992 = vmatprep.subr.bf16.mxu0 %v1830
        %1993 = vmatpush1.bf16.msra.mxu0 %v1829
        %1994 = vmatprep.subr.bf16.mxu0 %v1838
        %1995 = vmatpush1.bf16.msra.mxu0 %v1837
        %1996 = vmatprep.subr.bf16.mxu0 0
        %1997 = vmatpush1.bf16.msra.mxu0 0
        %1998 = vmatprep.subr.bf16.mxu0 0
        %1999 = vmatpush1.bf16.msra.mxu0 0
        %2000 = vmatprep.subr.bf16.mxu0 0
        %2001 = vmatpush1.bf16.msra.mxu0 0
        %2002 = vmatprep.subr.bf16.mxu0 0
        %2003 = vmatpush1.bf16.msra.mxu0 0
        %2004 = vmatprep.subr.bf16.mxu0 0
        %2005 = vmatpush1.bf16.msra.mxu0 0
        %2006 = vmatprep.subr.bf16.mxu0 0
        %2007 = vmatpush1.bf16.msra.mxu0 0
        %2008 = vmatprep.subr.bf16.mxu0 0
        %2009 = vmatpush1.bf16.msra.mxu0 0
        %2010 = vmatprep.subr.bf16.mxu0 0
        %2011 = vmatpush1.bf16.msra.mxu0 0
        %2012 = vmatprep.subr.bf16.mxu0 0
        %2013 = vmatpush1.bf16.msra.mxu0 0
        %2014 = vmatprep.subr.bf16.mxu0 0
        %2015 = vmatpush1.bf16.msra.mxu0 0
        %2016 = vmatprep.subr.bf16.mxu0 0
        %2017 = vmatpush1.bf16.msra.mxu0 0
        %2018 = vmatprep.subr.bf16.mxu0 0
        %2019 = vmatpush1.bf16.msra.mxu0 0
        %2020 = vmatprep.subr.bf16.mxu0 0
        %2021 = vmatpush1.bf16.msra.mxu0 0
        %2022 = vmatprep.subr.bf16.mxu0 0
        %2023 = vmatpush1.bf16.msra.mxu0 0
        %2024 = vmatprep.mubr.bf16.mxu0 0
        %2025 = vmatmul.mubr.bf16.gmra.mrb[0].mxu0 %v1881
        %v2026 = vpop.f32.mrb[0].mxu0
        %v2027 = vadd.f32 %v1852, %v2026
        %v2028 = vpop.f32.mrb[0].mxu0
        %v2029 = vadd.f32 %v1852, %v2028
        %v2030 = vpop.f32.mrb[0].mxu0
        %v2031 = vadd.f32 %v1857, %v2030
        %v2032 = vpop.f32.mrb[0].mxu0
        %v2033 = vadd.f32 %v1857, %v2032
        %2034 = vmatprep.mubr.bf16.mxu0 0
        %2035 = vmatmul.mubr.bf16.gmra.mrb[0].mxu0 %v1884
        %v2036 = vpop.f32.mrb[0].mxu0
        %v2037 = vadd.f32 %v1862, %v2036
        %v2038 = vpop.f32.mrb[0].mxu0
        %v2039 = vadd.f32 %v1862, %v2038
        %v2040 = vpop.f32.mrb[0].mxu0
        %v2041 = vadd.f32 %v1867, %v2040
        %v2042 = vpop.f32.mrb[0].mxu0
        %v2043 = vadd.f32 %v1867, %v2042
        %2044 = vdwg.mxu0
        %2045 = vmatprep.subr.bf16.mxu0 %v1832
        %2046 = vmatpush1.bf16.msra.mxu0 %v1831
        %2047 = vmatprep.subr.bf16.mxu0 %v1840
        %2048 = vmatpush1.bf16.msra.mxu0 %v1839
        %2049 = vmatprep.subr.bf16.mxu0 0
        %2050 = vmatpush1.bf16.msra.mxu0 0
        %2051 = vmatprep.subr.bf16.mxu0 0
        %2052 = vmatpush1.bf16.msra.mxu0 0
        %2053 = vmatprep.subr.bf16.mxu0 0
        %2054 = vmatpush1.bf16.msra.mxu0 0
        %2055 = vmatprep.subr.bf16.mxu0 0
        %2056 = vmatpush1.bf16.msra.mxu0 0
        %2057 = vmatprep.subr.bf16.mxu0 0
        %2058 = vmatpush1.bf16.msra.mxu0 0
        %2059 = vmatprep.subr.bf16.mxu0 0
        %2060 = vmatpush1.bf16.msra.mxu0 0
        %2061 = vmatprep.subr.bf16.mxu0 0
        %2062 = vmatpush1.bf16.msra.mxu0 0
        %2063 = vmatprep.subr.bf16.mxu0 0
        %2064 = vmatpush1.bf16.msra.mxu0 0
        %2065 = vmatprep.subr.bf16.mxu0 0
        %2066 = vmatpush1.bf16.msra.mxu0 0
        %2067 = vmatprep.subr.bf16.mxu0 0
        %2068 = vmatpush1.bf16.msra.mxu0 0
        %2069 = vmatprep.subr.bf16.mxu0 0
        %2070 = vmatpush1.bf16.msra.mxu0 0
        %2071 = vmatprep.subr.bf16.mxu0 0
        %2072 = vmatpush1.bf16.msra.mxu0 0
        %2073 = vmatprep.subr.bf16.mxu0 0
        %2074 = vmatpush1.bf16.msra.mxu0 0
        %2075 = vmatprep.subr.bf16.mxu0 0
        %2076 = vmatpush1.bf16.msra.mxu0 0
        %2077 = vmatprep.mubr.bf16.mxu0 0
        %2078 = vmatmul.mubr.bf16.gmra.mrb[0].mxu0 %v1881
        %v2079 = vpop.f32.mrb[0].mxu0
        %v2080 = vadd.f32 %v1852, %v2079
        %v2081 = vpop.f32.mrb[0].mxu0
        %v2082 = vadd.f32 %v1852, %v2081
        %v2083 = vpop.f32.mrb[0].mxu0
        %v2084 = vadd.f32 %v1857, %v2083
        %v2085 = vpop.f32.mrb[0].mxu0
        %v2086 = vadd.f32 %v1857, %v2085
        %2087 = vmatprep.mubr.bf16.mxu0 0
        %2088 = vmatmul.mubr.bf16.gmra.mrb[0].mxu0 %v1884
        %v2089 = vpop.f32.mrb[0].mxu0
        %v2090 = vadd.f32 %v1862, %v2089
        %v2091 = vpop.f32.mrb[0].mxu0
        %v2092 = vadd.f32 %v1862, %v2091
        %v2093 = vpop.f32.mrb[0].mxu0
        %v2094 = vadd.f32 %v1867, %v2093
        %v2095 = vpop.f32.mrb[0].mxu0
        %v2096 = vadd.f32 %v1867, %v2095
        %2097 = vdwg.mxu0
        %v2098 = vpack.c.bf16 %v1925, %v1921
        %v2099 = vpack.c.bf16 %v1927, %v1923
        %v2100 = vpack.c.bf16 %v1978, %v1974
        %v2101 = vpack.c.bf16 %v1980, %v1976
        %v2102 = vpack.c.bf16 %v2031, %v2027
        %v2103 = vpack.c.bf16 %v2033, %v2029
        %v2104 = vpack.c.bf16 %v2084, %v2080
        %v2105 = vpack.c.bf16 %v2086, %v2082
        %v2106 = vpack.c.bf16 %v1935, %v1931
        %v2107 = vpack.c.bf16 %v1937, %v1933
        %v2108 = vpack.c.bf16 %v1988, %v1984
        %v2109 = vpack.c.bf16 %v1990, %v1986
        %v2110 = vpack.c.bf16 %v2041, %v2037
        %v2111 = vpack.c.bf16 %v2043, %v2039
        %v2112 = vpack.c.bf16 %v2094, %v2090
        %v2113 = vpack.c.bf16 %v2096, %v2092
        %v2114 = vmul.bf16 %v2098, 1120420552
        %v2115 = vmul.bf16 %v2099, 1120420552
        %v2116 = vmul.bf16 %v2100, 1120420552
        %v2117 = vmul.bf16 %v2101, 1120420552
        %v2118 = vmul.bf16 %v2102, 1120420552
        %v2119 = vmul.bf16 %v2103, 1120420552
        %v2120 = vmul.bf16 %v2104, 1120420552
        %v2121 = vmul.bf16 %v2105, 1120420552
        %v2122 = vmul.bf16 %v2106, 1120420552
        %v2123 = vmul.bf16 %v2107, 1120420552
        %v2124 = vmul.bf16 %v2108, 1120420552
        %v2125 = vmul.bf16 %v2109, 1120420552
        %v2126 = vmul.bf16 %v2110, 1120420552
        %v2127 = vmul.bf16 %v2111, 1120420552
        %v2128 = vmul.bf16 %v2112, 1120420552
        %v2129 = vmul.bf16 %v2113, 1120420552
        %v2130 = vmin.bf16 %v2114, 1101021600
        %v2131 = vmin.bf16 %v2115, 1101021600
        %v2132 = vmin.bf16 %v2116, 1101021600
        %v2133 = vmin.bf16 %v2117, 1101021600
        %v2134 = vmin.bf16 %v2118, 1101021600
        %v2135 = vmin.bf16 %v2119, 1101021600
        %v2136 = vmin.bf16 %v2120, 1101021600
        %v2137 = vmin.bf16 %v2121, 1101021600
        %v2138 = vmin.bf16 %v2122, 1101021600
        %v2139 = vmin.bf16 %v2123, 1101021600
        %v2140 = vmin.bf16 %v2124, 1101021600
        %v2141 = vmin.bf16 %v2125, 1101021600
        %v2142 = vmin.bf16 %v2126, 1101021600
        %v2143 = vmin.bf16 %v2127, 1101021600
        %v2144 = vmin.bf16 %v2128, 1101021600
        %v2145 = vmin.bf16 %v2129, 1101021600
        %v2147 = vmul.bf16 %v2130, 1069105081
        %v2148 = vpow.bf16.pop %v2147
        %v2150 = vmul.bf16 %v2131, 1069105081
        %v2151 = vpow.bf16.pop %v2150
        %v2153 = vmul.bf16 %v2132, 1069105081
        %v2154 = vpow.bf16.pop %v2153
        %v2156 = vmul.bf16 %v2133, 1069105081
        %v2157 = vpow.bf16.pop %v2156
        %v2159 = vmul.bf16 %v2134, 1069105081
        %v2160 = vpow.bf16.pop %v2159
        %v2162 = vmul.bf16 %v2135, 1069105081
        %v2163 = vpow.bf16.pop %v2162
        %v2165 = vmul.bf16 %v2136, 1069105081
        %v2166 = vpow.bf16.pop %v2165
        %v2168 = vmul.bf16 %v2137, 1069105081
        %v2169 = vpow.bf16.pop %v2168
        %v2171 = vmul.bf16 %v2138, 1069105081
        %v2172 = vpow.bf16.pop %v2171
        %v2174 = vmul.bf16 %v2139, 1069105081
        %v2175 = vpow.bf16.pop %v2174
        %v2177 = vmul.bf16 %v2140, 1069105081
        %v2178 = vpow.bf16.pop %v2177
        %v2180 = vmul.bf16 %v2141, 1069105081
        %v2181 = vpow.bf16.pop %v2180
        %v2183 = vmul.bf16 %v2142, 1069105081
        %v2184 = vpow.bf16.pop %v2183
        %v2186 = vmul.bf16 %v2143, 1069105081
        %v2187 = vpow.bf16.pop %v2186
        %v2189 = vmul.bf16 %v2144, 1069105081
        %v2190 = vpow.bf16.pop %v2189
        %v2192 = vmul.bf16 %v2145, 1069105081
        %v2193 = vpow.bf16.pop %v2192
        %v2194 = vadd.bf16 %v2148, 1065369472
        %v2195 = vadd.bf16 %v2151, 1065369472
        %v2196 = vadd.bf16 %v2154, 1065369472
        %v2197 = vadd.bf16 %v2157, 1065369472
        %v2198 = vadd.bf16 %v2160, 1065369472
        %v2199 = vadd.bf16 %v2163, 1065369472
        %v2200 = vadd.bf16 %v2166, 1065369472
        %v2201 = vadd.bf16 %v2169, 1065369472
        %v2202 = vadd.bf16 %v2172, 1065369472
        %v2203 = vadd.bf16 %v2175, 1065369472
        %v2204 = vadd.bf16 %v2178, 1065369472
        %v2205 = vadd.bf16 %v2181, 1065369472
        %v2206 = vadd.bf16 %v2184, 1065369472
        %v2207 = vadd.bf16 %v2187, 1065369472
        %v2208 = vadd.bf16 %v2190, 1065369472
        %v2209 = vadd.bf16 %v2193, 1065369472
        %v2210 = vlog2.bf16.pop %v2194
        %v2212 = vmul.bf16 %v2210, 1060192049
        %v2213 = vlog2.bf16.pop %v2195
        %v2215 = vmul.bf16 %v2213, 1060192049
        %v2216 = vlog2.bf16.pop %v2196
        %v2218 = vmul.bf16 %v2216, 1060192049
        %v2219 = vlog2.bf16.pop %v2197
        %v2221 = vmul.bf16 %v2219, 1060192049
        %v2222 = vlog2.bf16.pop %v2198
        %v2224 = vmul.bf16 %v2222, 1060192049
        %v2225 = vlog2.bf16.pop %v2199
        %v2227 = vmul.bf16 %v2225, 1060192049
        %v2228 = vlog2.bf16.pop %v2200
        %v2230 = vmul.bf16 %v2228, 1060192049
        %v2231 = vlog2.bf16.pop %v2201
        %v2233 = vmul.bf16 %v2231, 1060192049
        %v2234 = vlog2.bf16.pop %v2202
        %v2236 = vmul.bf16 %v2234, 1060192049
        %v2237 = vlog2.bf16.pop %v2203
        %v2239 = vmul.bf16 %v2237, 1060192049
        %v2240 = vlog2.bf16.pop %v2204
        %v2242 = vmul.bf16 %v2240, 1060192049
        %v2243 = vlog2.bf16.pop %v2205
        %v2245 = vmul.bf16 %v2243, 1060192049
        %v2246 = vlog2.bf16.pop %v2206
        %v2248 = vmul.bf16 %v2246, 1060192049
        %v2249 = vlog2.bf16.pop %v2207
        %v2251 = vmul.bf16 %v2249, 1060192049
        %v2252 = vlog2.bf16.pop %v2208
        %v2254 = vmul.bf16 %v2252, 1060192049
        %v2255 = vlog2.bf16.pop %v2209
        %v2257 = vmul.bf16 %v2255, 1060192049
        %v2258 = vmul.bf16 %v2212, 1009007652
        %v2259 = vmul.bf16 %v2215, 1009007652
        %v2260 = vmul.bf16 %v2218, 1009007652
        %v2261 = vmul.bf16 %v2221, 1009007652
        %v2262 = vmul.bf16 %v2224, 1009007652
        %v2263 = vmul.bf16 %v2227, 1009007652
        %v2264 = vmul.bf16 %v2230, 1009007652
        %v2265 = vmul.bf16 %v2233, 1009007652
        %v2266 = vmul.bf16 %v2236, 1009007652
        %v2267 = vmul.bf16 %v2239, 1009007652
        %v2268 = vmul.bf16 %v2242, 1009007652
        %v2269 = vmul.bf16 %v2245, 1009007652
        %v2270 = vmul.bf16 %v2248, 1009007652
        %v2271 = vmul.bf16 %v2251, 1009007652
        %v2272 = vmul.bf16 %v2254, 1009007652
        %v2273 = vmul.bf16 %v2257, 1009007652
        %vm2274 = vcmp.gt.bf16.partialorder %v2114, 1101021600
        %vm2275 = vcmp.gt.bf16.partialorder %v2115, 1101021600
        %vm2276 = vcmp.gt.bf16.partialorder %v2116, 1101021600
        %vm2277 = vcmp.gt.bf16.partialorder %v2117, 1101021600
        %vm2278 = vcmp.gt.bf16.partialorder %v2118, 1101021600
        %vm2279 = vcmp.gt.bf16.partialorder %v2119, 1101021600
        %vm2280 = vcmp.gt.bf16.partialorder %v2120, 1101021600
        %vm2281 = vcmp.gt.bf16.partialorder %v2121, 1101021600
        %vm2282 = vcmp.gt.bf16.partialorder %v2122, 1101021600
        %vm2283 = vcmp.gt.bf16.partialorder %v2123, 1101021600
        %vm2284 = vcmp.gt.bf16.partialorder %v2124, 1101021600
        %vm2285 = vcmp.gt.bf16.partialorder %v2125, 1101021600
        %vm2286 = vcmp.gt.bf16.partialorder %v2126, 1101021600
        %vm2287 = vcmp.gt.bf16.partialorder %v2127, 1101021600
        %vm2288 = vcmp.gt.bf16.partialorder %v2128, 1101021600
        %vm2289 = vcmp.gt.bf16.partialorder %v2129, 1101021600
        %v2290 = vsel %vm2274, %v2098, %v2258
        %v2291 = vsel %vm2275, %v2099, %v2259
        %v2292 = vsel %vm2276, %v2100, %v2260
        %v2293 = vsel %vm2277, %v2101, %v2261
        %v2294 = vsel %vm2278, %v2102, %v2262
        %v2295 = vsel %vm2279, %v2103, %v2263
        %v2296 = vsel %vm2280, %v2104, %v2264
        %v2297 = vsel %vm2281, %v2105, %v2265
        %v2298 = vsel %vm2282, %v2106, %v2266
        %v2299 = vsel %vm2283, %v2107, %v2267
        %v2300 = vsel %vm2284, %v2108, %v2268
        %v2301 = vsel %vm2285, %v2109, %v2269
        %v2302 = vsel %vm2286, %v2110, %v2270
        %v2303 = vsel %vm2287, %v2111, %v2271
        %v2304 = vsel %vm2288, %v2112, %v2272
        %v2305 = vsel %vm2289, %v2113, %v2273
        %v2306 = vld [vmem:[%s7] sm:$0xf]
        %v2307 = vld [vmem:[%s7 + $0x4] sm:$0xf]
        %v2308 = vld [vmem:[%s7 + $0x8] sm:$0xf]
        %v2309 = vld [vmem:[%s7 + $0xc] sm:$0xf]
        %v2310 = vld [vmem:[%s8] sm:$0xff]
        %v2311 = vld [vmem:[%s8 + $0x8] sm:$0xff]
        %v2312 = vld [vmem:[%s8 + $0x10] sm:$0xff]
        %v2313 = vld [vmem:[%s8 + $0x18] sm:$0xff]
        %2315 = vset.pattern.permute.xlu0 0
        %2316 = vperm.xlu0 %2315, %v2310
        %v2317 = vpop.permute.xlu0 %2316
        %2320 = vset.pattern.permute.xlu0 0
        %2321 = vperm.xlu0 %2320, %v2311
        %v2322 = vpop.permute.xlu0 %2321
        %2325 = vset.pattern.permute.xlu0 0
        %2326 = vperm.xlu0 %2325, %v2312
        %v2327 = vpop.permute.xlu0 %2326
        %2330 = vset.pattern.permute.xlu0 0
        %2331 = vperm.xlu0 %2330, %v2313
        %v2332 = vpop.permute.xlu0 %2331
        %v2338 = vunpack.c.l.b16 %v2306
        %v2339 = vunpack.c.l.b16 %v2307
        %v2340 = vunpack.c.l.b16 %v2308
        %v2341 = vunpack.c.l.b16 %v2309
        %v2342 = vpack.c.b16 %v2339, %v2338
        %v2343 = vpack.c.b16 %v2341, %v2340
        %v2345 = vsel %vm1879, %v2342, 0
        %v2348 = vsel %vm1879, %v2343, 0
        %2350 = vmatprep.subr.bf16.mxu0 %v2291
        %2351 = vmatpush1.bf16.msra.mxu0 %v2290
        %2352 = vmatprep.subr.bf16.mxu0 %v2299
        %2353 = vmatpush1.bf16.msra.mxu0 %v2298
        %2354 = vmatprep.subr.bf16.mxu0 0
        %2355 = vmatpush1.bf16.msra.mxu0 0
        %2356 = vmatprep.subr.bf16.mxu0 0
        %2357 = vmatpush1.bf16.msra.mxu0 0
        %2358 = vmatprep.subr.bf16.mxu0 0
        %2359 = vmatpush1.bf16.msra.mxu0 0
        %2360 = vmatprep.subr.bf16.mxu0 0
        %2361 = vmatpush1.bf16.msra.mxu0 0
        %2362 = vmatprep.subr.bf16.mxu0 0
        %2363 = vmatpush1.bf16.msra.mxu0 0
        %2364 = vmatprep.subr.bf16.mxu0 0
        %2365 = vmatpush1.bf16.msra.mxu0 0
        %2366 = vmatprep.subr.bf16.mxu0 0
        %2367 = vmatpush1.bf16.msra.mxu0 0
        %2368 = vmatprep.subr.bf16.mxu0 0
        %2369 = vmatpush1.bf16.msra.mxu0 0
        %2370 = vmatprep.subr.bf16.mxu0 0
        %2371 = vmatpush1.bf16.msra.mxu0 0
        %2372 = vmatprep.subr.bf16.mxu0 0
        %2373 = vmatpush1.bf16.msra.mxu0 0
        %2374 = vmatprep.subr.bf16.mxu0 0
        %2375 = vmatpush1.bf16.msra.mxu0 0
        %2376 = vmatprep.subr.bf16.mxu0 0
        %2377 = vmatpush1.bf16.msra.mxu0 0
        %2378 = vmatprep.subr.bf16.mxu0 0
        %2379 = vmatpush1.bf16.msra.mxu0 0
        %2380 = vmatprep.subr.bf16.mxu0 0
        %2381 = vmatpush1.bf16.msra.mxu0 0
        %2382 = vmatprep.mubr.bf16.mxu0 0
        %2383 = vmatmul.mubr.bf16.gmra.mrb[0].mxu0 %v2345
        %v2384 = vpop.f32.mrb[0].mxu0
        %v2385 = vadd.f32 %v2317, %v2384
        %v2386 = vpop.f32.mrb[0].mxu0
        %v2387 = vadd.f32 %v2317, %v2386
        %v2388 = vpop.f32.mrb[0].mxu0
        %v2389 = vadd.f32 %v2322, %v2388
        %v2390 = vpop.f32.mrb[0].mxu0
        %v2391 = vadd.f32 %v2322, %v2390
        %2392 = vmatprep.mubr.bf16.mxu0 0
        %2393 = vmatmul.mubr.bf16.gmra.mrb[0].mxu0 %v2348
        %v2394 = vpop.f32.mrb[0].mxu0
        %v2395 = vadd.f32 %v2327, %v2394
        %v2396 = vpop.f32.mrb[0].mxu0
        %v2397 = vadd.f32 %v2327, %v2396
        %v2398 = vpop.f32.mrb[0].mxu0
        %v2399 = vadd.f32 %v2332, %v2398
        %v2400 = vpop.f32.mrb[0].mxu0
        %v2401 = vadd.f32 %v2332, %v2400
        %2402 = vdwg.mxu0
        %2403 = vmatprep.subr.bf16.mxu0 %v2293
        %2404 = vmatpush1.bf16.msra.mxu0 %v2292
        %2405 = vmatprep.subr.bf16.mxu0 %v2301
        %2406 = vmatpush1.bf16.msra.mxu0 %v2300
        %2407 = vmatprep.subr.bf16.mxu0 0
        %2408 = vmatpush1.bf16.msra.mxu0 0
        %2409 = vmatprep.subr.bf16.mxu0 0
        %2410 = vmatpush1.bf16.msra.mxu0 0
        %2411 = vmatprep.subr.bf16.mxu0 0
        %2412 = vmatpush1.bf16.msra.mxu0 0
        %2413 = vmatprep.subr.bf16.mxu0 0
        %2414 = vmatpush1.bf16.msra.mxu0 0
        %2415 = vmatprep.subr.bf16.mxu0 0
        %2416 = vmatpush1.bf16.msra.mxu0 0
        %2417 = vmatprep.subr.bf16.mxu0 0
        %2418 = vmatpush1.bf16.msra.mxu0 0
        %2419 = vmatprep.subr.bf16.mxu0 0
        %2420 = vmatpush1.bf16.msra.mxu0 0
        %2421 = vmatprep.subr.bf16.mxu0 0
        %2422 = vmatpush1.bf16.msra.mxu0 0
        %2423 = vmatprep.subr.bf16.mxu0 0
        %2424 = vmatpush1.bf16.msra.mxu0 0
        %2425 = vmatprep.subr.bf16.mxu0 0
        %2426 = vmatpush1.bf16.msra.mxu0 0
        %2427 = vmatprep.subr.bf16.mxu0 0
        %2428 = vmatpush1.bf16.msra.mxu0 0
        %2429 = vmatprep.subr.bf16.mxu0 0
        %2430 = vmatpush1.bf16.msra.mxu0 0
        %2431 = vmatprep.subr.bf16.mxu0 0
        %2432 = vmatpush1.bf16.msra.mxu0 0
        %2433 = vmatprep.subr.bf16.mxu0 0
        %2434 = vmatpush1.bf16.msra.mxu0 0
        %2435 = vmatprep.mubr.bf16.mxu0 0
        %2436 = vmatmul.mubr.bf16.gmra.mrb[0].mxu0 %v2345
        %v2437 = vpop.f32.mrb[0].mxu0
        %v2438 = vadd.f32 %v2317, %v2437
        %v2439 = vpop.f32.mrb[0].mxu0
        %v2440 = vadd.f32 %v2317, %v2439
        %v2441 = vpop.f32.mrb[0].mxu0
        %v2442 = vadd.f32 %v2322, %v2441
        %v2443 = vpop.f32.mrb[0].mxu0
        %v2444 = vadd.f32 %v2322, %v2443
        %2445 = vmatprep.mubr.bf16.mxu0 0
        %2446 = vmatmul.mubr.bf16.gmra.mrb[0].mxu0 %v2348
        %v2447 = vpop.f32.mrb[0].mxu0
        %v2448 = vadd.f32 %v2327, %v2447
        %v2449 = vpop.f32.mrb[0].mxu0
        %v2450 = vadd.f32 %v2327, %v2449
        %v2451 = vpop.f32.mrb[0].mxu0
        %v2452 = vadd.f32 %v2332, %v2451
        %v2453 = vpop.f32.mrb[0].mxu0
        %v2454 = vadd.f32 %v2332, %v2453
        %2455 = vdwg.mxu0
        %2456 = vmatprep.subr.bf16.mxu0 %v2295
        %2457 = vmatpush1.bf16.msra.mxu0 %v2294
        %2458 = vmatprep.subr.bf16.mxu0 %v2303
        %2459 = vmatpush1.bf16.msra.mxu0 %v2302
        %2460 = vmatprep.subr.bf16.mxu0 0
        %2461 = vmatpush1.bf16.msra.mxu0 0
        %2462 = vmatprep.subr.bf16.mxu0 0
        %2463 = vmatpush1.bf16.msra.mxu0 0
        %2464 = vmatprep.subr.bf16.mxu0 0
        %2465 = vmatpush1.bf16.msra.mxu0 0
        %2466 = vmatprep.subr.bf16.mxu0 0
        %2467 = vmatpush1.bf16.msra.mxu0 0
        %2468 = vmatprep.subr.bf16.mxu0 0
        %2469 = vmatpush1.bf16.msra.mxu0 0
        %2470 = vmatprep.subr.bf16.mxu0 0
        %2471 = vmatpush1.bf16.msra.mxu0 0
        %2472 = vmatprep.subr.bf16.mxu0 0
        %2473 = vmatpush1.bf16.msra.mxu0 0
        %2474 = vmatprep.subr.bf16.mxu0 0
        %2475 = vmatpush1.bf16.msra.mxu0 0
        %2476 = vmatprep.subr.bf16.mxu0 0
        %2477 = vmatpush1.bf16.msra.mxu0 0
        %2478 = vmatprep.subr.bf16.mxu0 0
        %2479 = vmatpush1.bf16.msra.mxu0 0
        %2480 = vmatprep.subr.bf16.mxu0 0
        %2481 = vmatpush1.bf16.msra.mxu0 0
        %2482 = vmatprep.subr.bf16.mxu0 0
        %2483 = vmatpush1.bf16.msra.mxu0 0
        %2484 = vmatprep.subr.bf16.mxu0 0
        %2485 = vmatpush1.bf16.msra.mxu0 0
        %2486 = vmatprep.subr.bf16.mxu0 0
        %2487 = vmatpush1.bf16.msra.mxu0 0
        %2488 = vmatprep.mubr.bf16.mxu0 0
        %2489 = vmatmul.mubr.bf16.gmra.mrb[0].mxu0 %v2345
        %v2490 = vpop.f32.mrb[0].mxu0
        %v2491 = vadd.f32 %v2317, %v2490
        %v2492 = vpop.f32.mrb[0].mxu0
        %v2493 = vadd.f32 %v2317, %v2492
        %v2494 = vpop.f32.mrb[0].mxu0
        %v2495 = vadd.f32 %v2322, %v2494
        %v2496 = vpop.f32.mrb[0].mxu0
        %v2497 = vadd.f32 %v2322, %v2496
        %2498 = vmatprep.mubr.bf16.mxu0 0
        %2499 = vmatmul.mubr.bf16.gmra.mrb[0].mxu0 %v2348
        %v2500 = vpop.f32.mrb[0].mxu0
        %v2501 = vadd.f32 %v2327, %v2500
        %v2502 = vpop.f32.mrb[0].mxu0
        %v2503 = vadd.f32 %v2327, %v2502
        %v2504 = vpop.f32.mrb[0].mxu0
        %v2505 = vadd.f32 %v2332, %v2504
        %v2506 = vpop.f32.mrb[0].mxu0
        %v2507 = vadd.f32 %v2332, %v2506
        %2508 = vdwg.mxu0
        %2509 = vmatprep.subr.bf16.mxu0 %v2297
        %2510 = vmatpush1.bf16.msra.mxu0 %v2296
        %2511 = vmatprep.subr.bf16.mxu0 %v2305
        %2512 = vmatpush1.bf16.msra.mxu0 %v2304
        %2513 = vmatprep.subr.bf16.mxu0 0
        %2514 = vmatpush1.bf16.msra.mxu0 0
        %2515 = vmatprep.subr.bf16.mxu0 0
        %2516 = vmatpush1.bf16.msra.mxu0 0
        %2517 = vmatprep.subr.bf16.mxu0 0
        %2518 = vmatpush1.bf16.msra.mxu0 0
        %2519 = vmatprep.subr.bf16.mxu0 0
        %2520 = vmatpush1.bf16.msra.mxu0 0
        %2521 = vmatprep.subr.bf16.mxu0 0
        %2522 = vmatpush1.bf16.msra.mxu0 0
        %2523 = vmatprep.subr.bf16.mxu0 0
        %2524 = vmatpush1.bf16.msra.mxu0 0
        %2525 = vmatprep.subr.bf16.mxu0 0
        %2526 = vmatpush1.bf16.msra.mxu0 0
        %2527 = vmatprep.subr.bf16.mxu0 0
        %2528 = vmatpush1.bf16.msra.mxu0 0
        %2529 = vmatprep.subr.bf16.mxu0 0
        %2530 = vmatpush1.bf16.msra.mxu0 0
        %2531 = vmatprep.subr.bf16.mxu0 0
        %2532 = vmatpush1.bf16.msra.mxu0 0
        %2533 = vmatprep.subr.bf16.mxu0 0
        %2534 = vmatpush1.bf16.msra.mxu0 0
        %2535 = vmatprep.subr.bf16.mxu0 0
        %2536 = vmatpush1.bf16.msra.mxu0 0
        %2537 = vmatprep.subr.bf16.mxu0 0
        %2538 = vmatpush1.bf16.msra.mxu0 0
        %2539 = vmatprep.subr.bf16.mxu0 0
        %2540 = vmatpush1.bf16.msra.mxu0 0
        %2541 = vmatprep.mubr.bf16.mxu0 0
        %2542 = vmatmul.mubr.bf16.gmra.mrb[0].mxu0 %v2345
        %v2543 = vpop.f32.mrb[0].mxu0
        %v2544 = vadd.f32 %v2317, %v2543
        %v2545 = vpop.f32.mrb[0].mxu0
        %v2546 = vadd.f32 %v2317, %v2545
        %v2547 = vpop.f32.mrb[0].mxu0
        %v2548 = vadd.f32 %v2322, %v2547
        %v2549 = vpop.f32.mrb[0].mxu0
        %v2550 = vadd.f32 %v2322, %v2549
        %2551 = vmatprep.mubr.bf16.mxu0 0
        %2552 = vmatmul.mubr.bf16.gmra.mrb[0].mxu0 %v2348
        %v2553 = vpop.f32.mrb[0].mxu0
        %v2554 = vadd.f32 %v2327, %v2553
        %v2555 = vpop.f32.mrb[0].mxu0
        %v2556 = vadd.f32 %v2327, %v2555
        %v2557 = vpop.f32.mrb[0].mxu0
        %v2558 = vadd.f32 %v2332, %v2557
        %v2559 = vpop.f32.mrb[0].mxu0
        %v2560 = vadd.f32 %v2332, %v2559
        %2561 = vdwg.mxu0
        %v2562 = vpack.c.bf16 %v2389, %v2385
        %v2563 = vpack.c.bf16 %v2391, %v2387
        %v2564 = vpack.c.bf16 %v2442, %v2438
        %v2565 = vpack.c.bf16 %v2444, %v2440
        %v2566 = vpack.c.bf16 %v2495, %v2491
        %v2567 = vpack.c.bf16 %v2497, %v2493
        %v2568 = vpack.c.bf16 %v2548, %v2544
        %v2569 = vpack.c.bf16 %v2550, %v2546
        %v2570 = vpack.c.bf16 %v2399, %v2395
        %v2571 = vpack.c.bf16 %v2401, %v2397
        %v2572 = vpack.c.bf16 %v2452, %v2448
        %v2573 = vpack.c.bf16 %v2454, %v2450
        %v2574 = vpack.c.bf16 %v2505, %v2501
        %v2575 = vpack.c.bf16 %v2507, %v2503
        %v2576 = vpack.c.bf16 %v2558, %v2554
        %v2577 = vpack.c.bf16 %v2560, %v2556
        %v2578 = vmul.bf16 %v2562, 1120420552
        %v2579 = vmul.bf16 %v2563, 1120420552
        %v2580 = vmul.bf16 %v2564, 1120420552
        %v2581 = vmul.bf16 %v2565, 1120420552
        %v2582 = vmul.bf16 %v2566, 1120420552
        %v2583 = vmul.bf16 %v2567, 1120420552
        %v2584 = vmul.bf16 %v2568, 1120420552
        %v2585 = vmul.bf16 %v2569, 1120420552
        %v2586 = vmul.bf16 %v2570, 1120420552
        %v2587 = vmul.bf16 %v2571, 1120420552
        %v2588 = vmul.bf16 %v2572, 1120420552
        %v2589 = vmul.bf16 %v2573, 1120420552
        %v2590 = vmul.bf16 %v2574, 1120420552
        %v2591 = vmul.bf16 %v2575, 1120420552
        %v2592 = vmul.bf16 %v2576, 1120420552
        %v2593 = vmul.bf16 %v2577, 1120420552
        %v2594 = vmin.bf16 %v2578, 1101021600
        %v2595 = vmin.bf16 %v2579, 1101021600
        %v2596 = vmin.bf16 %v2580, 1101021600
        %v2597 = vmin.bf16 %v2581, 1101021600
        %v2598 = vmin.bf16 %v2582, 1101021600
        %v2599 = vmin.bf16 %v2583, 1101021600
        %v2600 = vmin.bf16 %v2584, 1101021600
        %v2601 = vmin.bf16 %v2585, 1101021600
        %v2602 = vmin.bf16 %v2586, 1101021600
        %v2603 = vmin.bf16 %v2587, 1101021600
        %v2604 = vmin.bf16 %v2588, 1101021600
        %v2605 = vmin.bf16 %v2589, 1101021600
        %v2606 = vmin.bf16 %v2590, 1101021600
        %v2607 = vmin.bf16 %v2591, 1101021600
        %v2608 = vmin.bf16 %v2592, 1101021600
        %v2609 = vmin.bf16 %v2593, 1101021600
        %v2611 = vmul.bf16 %v2594, 1069105081
        %v2612 = vpow.bf16.pop %v2611
        %v2614 = vmul.bf16 %v2595, 1069105081
        %v2615 = vpow.bf16.pop %v2614
        %v2617 = vmul.bf16 %v2596, 1069105081
        %v2618 = vpow.bf16.pop %v2617
        %v2620 = vmul.bf16 %v2597, 1069105081
        %v2621 = vpow.bf16.pop %v2620
        %v2623 = vmul.bf16 %v2598, 1069105081
        %v2624 = vpow.bf16.pop %v2623
        %v2626 = vmul.bf16 %v2599, 1069105081
        %v2627 = vpow.bf16.pop %v2626
        %v2629 = vmul.bf16 %v2600, 1069105081
        %v2630 = vpow.bf16.pop %v2629
        %v2632 = vmul.bf16 %v2601, 1069105081
        %v2633 = vpow.bf16.pop %v2632
        %v2635 = vmul.bf16 %v2602, 1069105081
        %v2636 = vpow.bf16.pop %v2635
        %v2638 = vmul.bf16 %v2603, 1069105081
        %v2639 = vpow.bf16.pop %v2638
        %v2641 = vmul.bf16 %v2604, 1069105081
        %v2642 = vpow.bf16.pop %v2641
        %v2644 = vmul.bf16 %v2605, 1069105081
        %v2645 = vpow.bf16.pop %v2644
        %v2647 = vmul.bf16 %v2606, 1069105081
        %v2648 = vpow.bf16.pop %v2647
        %v2650 = vmul.bf16 %v2607, 1069105081
        %v2651 = vpow.bf16.pop %v2650
        %v2653 = vmul.bf16 %v2608, 1069105081
        %v2654 = vpow.bf16.pop %v2653
        %v2656 = vmul.bf16 %v2609, 1069105081
        %v2657 = vpow.bf16.pop %v2656
        %v2658 = vadd.bf16 %v2612, 1065369472
        %v2659 = vadd.bf16 %v2615, 1065369472
        %v2660 = vadd.bf16 %v2618, 1065369472
        %v2661 = vadd.bf16 %v2621, 1065369472
        %v2662 = vadd.bf16 %v2624, 1065369472
        %v2663 = vadd.bf16 %v2627, 1065369472
        %v2664 = vadd.bf16 %v2630, 1065369472
        %v2665 = vadd.bf16 %v2633, 1065369472
        %v2666 = vadd.bf16 %v2636, 1065369472
        %v2667 = vadd.bf16 %v2639, 1065369472
        %v2668 = vadd.bf16 %v2642, 1065369472
        %v2669 = vadd.bf16 %v2645, 1065369472
        %v2670 = vadd.bf16 %v2648, 1065369472
        %v2671 = vadd.bf16 %v2651, 1065369472
        %v2672 = vadd.bf16 %v2654, 1065369472
        %v2673 = vadd.bf16 %v2657, 1065369472
        %v2674 = vlog2.bf16.pop %v2658
        %v2676 = vmul.bf16 %v2674, 1060192049
        %v2677 = vlog2.bf16.pop %v2659
        %v2679 = vmul.bf16 %v2677, 1060192049
        %v2680 = vlog2.bf16.pop %v2660
        %v2682 = vmul.bf16 %v2680, 1060192049
        %v2683 = vlog2.bf16.pop %v2661
        %v2685 = vmul.bf16 %v2683, 1060192049
        %v2686 = vlog2.bf16.pop %v2662
        %v2688 = vmul.bf16 %v2686, 1060192049
        %v2689 = vlog2.bf16.pop %v2663
        %v2691 = vmul.bf16 %v2689, 1060192049
        %v2692 = vlog2.bf16.pop %v2664
        %v2694 = vmul.bf16 %v2692, 1060192049
        %v2695 = vlog2.bf16.pop %v2665
        %v2697 = vmul.bf16 %v2695, 1060192049
        %v2698 = vlog2.bf16.pop %v2666
        %v2700 = vmul.bf16 %v2698, 1060192049
        %v2701 = vlog2.bf16.pop %v2667
        %v2703 = vmul.bf16 %v2701, 1060192049
        %v2704 = vlog2.bf16.pop %v2668
        %v2706 = vmul.bf16 %v2704, 1060192049
        %v2707 = vlog2.bf16.pop %v2669
        %v2709 = vmul.bf16 %v2707, 1060192049
        %v2710 = vlog2.bf16.pop %v2670
        %v2712 = vmul.bf16 %v2710, 1060192049
        %v2713 = vlog2.bf16.pop %v2671
        %v2715 = vmul.bf16 %v2713, 1060192049
        %v2716 = vlog2.bf16.pop %v2672
        %v2718 = vmul.bf16 %v2716, 1060192049
        %v2719 = vlog2.bf16.pop %v2673
        %v2721 = vmul.bf16 %v2719, 1060192049
        %v2722 = vmul.bf16 %v2676, 1009007652
        %v2723 = vmul.bf16 %v2679, 1009007652
        %v2724 = vmul.bf16 %v2682, 1009007652
        %v2725 = vmul.bf16 %v2685, 1009007652
        %v2726 = vmul.bf16 %v2688, 1009007652
        %v2727 = vmul.bf16 %v2691, 1009007652
        %v2728 = vmul.bf16 %v2694, 1009007652
        %v2729 = vmul.bf16 %v2697, 1009007652
        %v2730 = vmul.bf16 %v2700, 1009007652
        %v2731 = vmul.bf16 %v2703, 1009007652
        %v2732 = vmul.bf16 %v2706, 1009007652
        %v2733 = vmul.bf16 %v2709, 1009007652
        %v2734 = vmul.bf16 %v2712, 1009007652
        %v2735 = vmul.bf16 %v2715, 1009007652
        %v2736 = vmul.bf16 %v2718, 1009007652
        %v2737 = vmul.bf16 %v2721, 1009007652
        %vm2738 = vcmp.gt.bf16.partialorder %v2578, 1101021600
        %vm2739 = vcmp.gt.bf16.partialorder %v2579, 1101021600
        %vm2740 = vcmp.gt.bf16.partialorder %v2580, 1101021600
        %vm2741 = vcmp.gt.bf16.partialorder %v2581, 1101021600
        %vm2742 = vcmp.gt.bf16.partialorder %v2582, 1101021600
        %vm2743 = vcmp.gt.bf16.partialorder %v2583, 1101021600
        %vm2744 = vcmp.gt.bf16.partialorder %v2584, 1101021600
        %vm2745 = vcmp.gt.bf16.partialorder %v2585, 1101021600
        %vm2746 = vcmp.gt.bf16.partialorder %v2586, 1101021600
        %vm2747 = vcmp.gt.bf16.partialorder %v2587, 1101021600
        %vm2748 = vcmp.gt.bf16.partialorder %v2588, 1101021600
        %vm2749 = vcmp.gt.bf16.partialorder %v2589, 1101021600
        %vm2750 = vcmp.gt.bf16.partialorder %v2590, 1101021600
        %vm2751 = vcmp.gt.bf16.partialorder %v2591, 1101021600
        %vm2752 = vcmp.gt.bf16.partialorder %v2592, 1101021600
        %vm2753 = vcmp.gt.bf16.partialorder %v2593, 1101021600
        %v2754 = vsel %vm2738, %v2562, %v2722
        %v2755 = vsel %vm2739, %v2563, %v2723
        %v2756 = vsel %vm2740, %v2564, %v2724
        %v2757 = vsel %vm2741, %v2565, %v2725
        %v2758 = vsel %vm2742, %v2566, %v2726
        %v2759 = vsel %vm2743, %v2567, %v2727
        %v2760 = vsel %vm2744, %v2568, %v2728
        %v2761 = vsel %vm2745, %v2569, %v2729
        %v2762 = vsel %vm2746, %v2570, %v2730
        %v2763 = vsel %vm2747, %v2571, %v2731
        %v2764 = vsel %vm2748, %v2572, %v2732
        %v2765 = vsel %vm2749, %v2573, %v2733
        %v2766 = vsel %vm2750, %v2574, %v2734
        %v2767 = vsel %vm2751, %v2575, %v2735
        %v2768 = vsel %vm2752, %v2576, %v2736
        %v2769 = vsel %vm2753, %v2577, %v2737
        %v2770 = vld [vmem:[%s9] sm:$0xf]
        %v2771 = vld [vmem:[%s9 + $0x4] sm:$0xf]
        %v2772 = vld [vmem:[%s9 + $0x8] sm:$0xf]
        %v2773 = vld [vmem:[%s9 + $0xc] sm:$0x3]
        %v2774 = vld [vmem:[%s10] sm:$0xff]
        %v2775 = vld [vmem:[%s10 + $0x8] sm:$0xff]
        %v2776 = vld [vmem:[%s10 + $0x10] sm:$0xff]
        %v2777 = vld [vmem:[%s10 + $0x18] sm:$0xf]
        %2779 = vset.pattern.permute.xlu0 0
        %2780 = vperm.xlu0 %2779, %v2774
        %v2781 = vpop.permute.xlu0 %2780
        %2784 = vset.pattern.permute.xlu0 0
        %2785 = vperm.xlu0 %2784, %v2775
        %v2786 = vpop.permute.xlu0 %2785
        %2789 = vset.pattern.permute.xlu0 0
        %2790 = vperm.xlu0 %2789, %v2776
        %v2791 = vpop.permute.xlu0 %2790
        %2794 = vset.pattern.permute.xlu0 0
        %2795 = vperm.xlu0 %2794, %v2777
        %v2796 = vpop.permute.xlu0 %2795
        %v2802 = vunpack.c.l.b16 %v2770
        %v2803 = vunpack.c.l.b16 %v2771
        %v2804 = vunpack.c.l.b16 %v2772
        %v2805 = vunpack.c.l.b16 %v2773
        %v2806 = vpack.c.b16 %v2803, %v2802
        %v2807 = vpack.c.b16 %v2805, %v2804
        %v2809 = vsel %vm1879, %v2806, 0
        %v2812 = vsel %vm1879, %v2807, 0
        %2814 = vmatprep.subr.bf16.mxu0 %v2755
        %2815 = vmatpush1.bf16.msra.mxu0 %v2754
        %2816 = vmatprep.subr.bf16.mxu0 %v2763
        %2817 = vmatpush1.bf16.msra.mxu0 %v2762
        %2818 = vmatprep.subr.bf16.mxu0 0
        %2819 = vmatpush1.bf16.msra.mxu0 0
        %2820 = vmatprep.subr.bf16.mxu0 0
        %2821 = vmatpush1.bf16.msra.mxu0 0
        %2822 = vmatprep.subr.bf16.mxu0 0
        %2823 = vmatpush1.bf16.msra.mxu0 0
        %2824 = vmatprep.subr.bf16.mxu0 0
        %2825 = vmatpush1.bf16.msra.mxu0 0
        %2826 = vmatprep.subr.bf16.mxu0 0
        %2827 = vmatpush1.bf16.msra.mxu0 0
        %2828 = vmatprep.subr.bf16.mxu0 0
        %2829 = vmatpush1.bf16.msra.mxu0 0
        %2830 = vmatprep.subr.bf16.mxu0 0
        %2831 = vmatpush1.bf16.msra.mxu0 0
        %2832 = vmatprep.subr.bf16.mxu0 0
        %2833 = vmatpush1.bf16.msra.mxu0 0
        %2834 = vmatprep.subr.bf16.mxu0 0
        %2835 = vmatpush1.bf16.msra.mxu0 0
        %2836 = vmatprep.subr.bf16.mxu0 0
        %2837 = vmatpush1.bf16.msra.mxu0 0
        %2838 = vmatprep.subr.bf16.mxu0 0
        %2839 = vmatpush1.bf16.msra.mxu0 0
        %2840 = vmatprep.subr.bf16.mxu0 0
        %2841 = vmatpush1.bf16.msra.mxu0 0
        %2842 = vmatprep.subr.bf16.mxu0 0
        %2843 = vmatpush1.bf16.msra.mxu0 0
        %2844 = vmatprep.subr.bf16.mxu0 0
        %2845 = vmatpush1.bf16.msra.mxu0 0
        %2846 = vmatprep.mubr.bf16.mxu0 0
        %2847 = vmatmul.mubr.bf16.gmra.mrb[0].mxu0 %v2809
        %v2848 = vpop.f32.mrb[0].mxu0
        %v2849 = vadd.f32 %v2781, %v2848
        %v2850 = vpop.f32.mrb[0].mxu0
        %v2851 = vadd.f32 %v2781, %v2850
        %v2852 = vpop.f32.mrb[0].mxu0
        %v2853 = vadd.f32 %v2786, %v2852
        %v2854 = vpop.f32.mrb[0].mxu0
        %v2855 = vadd.f32 %v2786, %v2854
        %2856 = vmatprep.mubr.bf16.mxu0 0
        %2857 = vmatmul.mubr.bf16.gmra.mrb[0].mxu0 %v2812
        %v2858 = vpop.f32.mrb[0].mxu0
        %v2859 = vadd.f32 %v2791, %v2858
        %v2860 = vpop.f32.mrb[0].mxu0
        %v2861 = vadd.f32 %v2791, %v2860
        %v2862 = vpop.f32.mrb[0].mxu0
        %v2863 = vadd.f32 %v2796, %v2862
        %v2864 = vpop.f32.mrb[0].mxu0
        %v2865 = vadd.f32 %v2796, %v2864
        %2866 = vdwg.mxu0
        %2867 = vmatprep.subr.bf16.mxu0 %v2757
        %2868 = vmatpush1.bf16.msra.mxu0 %v2756
        %2869 = vmatprep.subr.bf16.mxu0 %v2765
        %2870 = vmatpush1.bf16.msra.mxu0 %v2764
        %2871 = vmatprep.subr.bf16.mxu0 0
        %2872 = vmatpush1.bf16.msra.mxu0 0
        %2873 = vmatprep.subr.bf16.mxu0 0
        %2874 = vmatpush1.bf16.msra.mxu0 0
        %2875 = vmatprep.subr.bf16.mxu0 0
        %2876 = vmatpush1.bf16.msra.mxu0 0
        %2877 = vmatprep.subr.bf16.mxu0 0
        %2878 = vmatpush1.bf16.msra.mxu0 0
        %2879 = vmatprep.subr.bf16.mxu0 0
        %2880 = vmatpush1.bf16.msra.mxu0 0
        %2881 = vmatprep.subr.bf16.mxu0 0
        %2882 = vmatpush1.bf16.msra.mxu0 0
        %2883 = vmatprep.subr.bf16.mxu0 0
        %2884 = vmatpush1.bf16.msra.mxu0 0
        %2885 = vmatprep.subr.bf16.mxu0 0
        %2886 = vmatpush1.bf16.msra.mxu0 0
        %2887 = vmatprep.subr.bf16.mxu0 0
        %2888 = vmatpush1.bf16.msra.mxu0 0
        %2889 = vmatprep.subr.bf16.mxu0 0
        %2890 = vmatpush1.bf16.msra.mxu0 0
        %2891 = vmatprep.subr.bf16.mxu0 0
        %2892 = vmatpush1.bf16.msra.mxu0 0
        %2893 = vmatprep.subr.bf16.mxu0 0
        %2894 = vmatpush1.bf16.msra.mxu0 0
        %2895 = vmatprep.subr.bf16.mxu0 0
        %2896 = vmatpush1.bf16.msra.mxu0 0
        %2897 = vmatprep.subr.bf16.mxu0 0
        %2898 = vmatpush1.bf16.msra.mxu0 0
        %2899 = vmatprep.mubr.bf16.mxu0 0
        %2900 = vmatmul.mubr.bf16.gmra.mrb[0].mxu0 %v2809
        %v2901 = vpop.f32.mrb[0].mxu0
        %v2902 = vadd.f32 %v2781, %v2901
        %v2903 = vpop.f32.mrb[0].mxu0
        %v2904 = vadd.f32 %v2781, %v2903
        %v2905 = vpop.f32.mrb[0].mxu0
        %v2906 = vadd.f32 %v2786, %v2905
        %v2907 = vpop.f32.mrb[0].mxu0
        %v2908 = vadd.f32 %v2786, %v2907
        %2909 = vmatprep.mubr.bf16.mxu0 0
        %2910 = vmatmul.mubr.bf16.gmra.mrb[0].mxu0 %v2812
        %v2911 = vpop.f32.mrb[0].mxu0
        %v2912 = vadd.f32 %v2791, %v2911
        %v2913 = vpop.f32.mrb[0].mxu0
        %v2914 = vadd.f32 %v2791, %v2913
        %v2915 = vpop.f32.mrb[0].mxu0
        %v2916 = vadd.f32 %v2796, %v2915
        %v2917 = vpop.f32.mrb[0].mxu0
        %v2918 = vadd.f32 %v2796, %v2917
        %2919 = vdwg.mxu0
        %2920 = vmatprep.subr.bf16.mxu0 %v2759
        %2921 = vmatpush1.bf16.msra.mxu0 %v2758
        %2922 = vmatprep.subr.bf16.mxu0 %v2767
        %2923 = vmatpush1.bf16.msra.mxu0 %v2766
        %2924 = vmatprep.subr.bf16.mxu0 0
        %2925 = vmatpush1.bf16.msra.mxu0 0
        %2926 = vmatprep.subr.bf16.mxu0 0
        %2927 = vmatpush1.bf16.msra.mxu0 0
        %2928 = vmatprep.subr.bf16.mxu0 0
        %2929 = vmatpush1.bf16.msra.mxu0 0
        %2930 = vmatprep.subr.bf16.mxu0 0
        %2931 = vmatpush1.bf16.msra.mxu0 0
        %2932 = vmatprep.subr.bf16.mxu0 0
        %2933 = vmatpush1.bf16.msra.mxu0 0
        %2934 = vmatprep.subr.bf16.mxu0 0
        %2935 = vmatpush1.bf16.msra.mxu0 0
        %2936 = vmatprep.subr.bf16.mxu0 0
        %2937 = vmatpush1.bf16.msra.mxu0 0
        %2938 = vmatprep.subr.bf16.mxu0 0
        %2939 = vmatpush1.bf16.msra.mxu0 0
        %2940 = vmatprep.subr.bf16.mxu0 0
        %2941 = vmatpush1.bf16.msra.mxu0 0
        %2942 = vmatprep.subr.bf16.mxu0 0
        %2943 = vmatpush1.bf16.msra.mxu0 0
        %2944 = vmatprep.subr.bf16.mxu0 0
        %2945 = vmatpush1.bf16.msra.mxu0 0
        %2946 = vmatprep.subr.bf16.mxu0 0
        %2947 = vmatpush1.bf16.msra.mxu0 0
        %2948 = vmatprep.subr.bf16.mxu0 0
        %2949 = vmatpush1.bf16.msra.mxu0 0
        %2950 = vmatprep.subr.bf16.mxu0 0
        %2951 = vmatpush1.bf16.msra.mxu0 0
        %2952 = vmatprep.mubr.bf16.mxu0 0
        %2953 = vmatmul.mubr.bf16.gmra.mrb[0].mxu0 %v2809
        %v2954 = vpop.f32.mrb[0].mxu0
        %v2955 = vadd.f32 %v2781, %v2954
        %v2956 = vpop.f32.mrb[0].mxu0
        %v2957 = vadd.f32 %v2781, %v2956
        %v2958 = vpop.f32.mrb[0].mxu0
        %v2959 = vadd.f32 %v2786, %v2958
        %v2960 = vpop.f32.mrb[0].mxu0
        %v2961 = vadd.f32 %v2786, %v2960
        %2962 = vmatprep.mubr.bf16.mxu0 0
        %2963 = vmatmul.mubr.bf16.gmra.mrb[0].mxu0 %v2812
        %v2964 = vpop.f32.mrb[0].mxu0
        %v2965 = vadd.f32 %v2791, %v2964
        %v2966 = vpop.f32.mrb[0].mxu0
        %v2967 = vadd.f32 %v2791, %v2966
        %v2968 = vpop.f32.mrb[0].mxu0
        %v2969 = vadd.f32 %v2796, %v2968
        %v2970 = vpop.f32.mrb[0].mxu0
        %v2971 = vadd.f32 %v2796, %v2970
        %2972 = vdwg.mxu0
        %2973 = vmatprep.subr.bf16.mxu0 %v2761
        %2974 = vmatpush1.bf16.msra.mxu0 %v2760
        %2975 = vmatprep.subr.bf16.mxu0 %v2769
        %2976 = vmatpush1.bf16.msra.mxu0 %v2768
        %2977 = vmatprep.subr.bf16.mxu0 0
        %2978 = vmatpush1.bf16.msra.mxu0 0
        %2979 = vmatprep.subr.bf16.mxu0 0
        %2980 = vmatpush1.bf16.msra.mxu0 0
        %2981 = vmatprep.subr.bf16.mxu0 0
        %2982 = vmatpush1.bf16.msra.mxu0 0
        %2983 = vmatprep.subr.bf16.mxu0 0
        %2984 = vmatpush1.bf16.msra.mxu0 0
        %2985 = vmatprep.subr.bf16.mxu0 0
        %2986 = vmatpush1.bf16.msra.mxu0 0
        %2987 = vmatprep.subr.bf16.mxu0 0
        %2988 = vmatpush1.bf16.msra.mxu0 0
        %2989 = vmatprep.subr.bf16.mxu0 0
        %2990 = vmatpush1.bf16.msra.mxu0 0
        %2991 = vmatprep.subr.bf16.mxu0 0
        %2992 = vmatpush1.bf16.msra.mxu0 0
        %2993 = vmatprep.subr.bf16.mxu0 0
        %2994 = vmatpush1.bf16.msra.mxu0 0
        %2995 = vmatprep.subr.bf16.mxu0 0
        %2996 = vmatpush1.bf16.msra.mxu0 0
        %2997 = vmatprep.subr.bf16.mxu0 0
        %2998 = vmatpush1.bf16.msra.mxu0 0
        %2999 = vmatprep.subr.bf16.mxu0 0
        %3000 = vmatpush1.bf16.msra.mxu0 0
        %3001 = vmatprep.subr.bf16.mxu0 0
        %3002 = vmatpush1.bf16.msra.mxu0 0
        %3003 = vmatprep.subr.bf16.mxu0 0
        %3004 = vmatpush1.bf16.msra.mxu0 0
        %3005 = vmatprep.mubr.bf16.mxu0 0
        %3006 = vmatmul.mubr.bf16.gmra.mrb[0].mxu0 %v2809
        %v3007 = vpop.f32.mrb[0].mxu0
        %v3008 = vadd.f32 %v2781, %v3007
        %v3009 = vpop.f32.mrb[0].mxu0
        %v3010 = vadd.f32 %v2781, %v3009
        %v3011 = vpop.f32.mrb[0].mxu0
        %v3012 = vadd.f32 %v2786, %v3011
        %v3013 = vpop.f32.mrb[0].mxu0
        %v3014 = vadd.f32 %v2786, %v3013
        %3015 = vmatprep.mubr.bf16.mxu0 0
        %3016 = vmatmul.mubr.bf16.gmra.mrb[0].mxu0 %v2812
        %v3017 = vpop.f32.mrb[0].mxu0
        %v3018 = vadd.f32 %v2791, %v3017
        %v3019 = vpop.f32.mrb[0].mxu0
        %v3020 = vadd.f32 %v2791, %v3019
        %v3021 = vpop.f32.mrb[0].mxu0
        %v3022 = vadd.f32 %v2796, %v3021
        %v3023 = vpop.f32.mrb[0].mxu0
        %v3024 = vadd.f32 %v2796, %v3023
        %3025 = vdwg.mxu0
        %v3026 = vpack.c.bf16 %v2853, %v2849
        %v3027 = vpack.c.bf16 %v2855, %v2851
        %v3028 = vpack.c.bf16 %v2906, %v2902
        %v3029 = vpack.c.bf16 %v2908, %v2904
        %v3030 = vpack.c.bf16 %v2959, %v2955
        %v3031 = vpack.c.bf16 %v2961, %v2957
        %v3032 = vpack.c.bf16 %v3012, %v3008
        %v3033 = vpack.c.bf16 %v3014, %v3010
        %v3034 = vpack.c.bf16 %v2863, %v2859
        %v3035 = vpack.c.bf16 %v2865, %v2861
        %v3036 = vpack.c.bf16 %v2916, %v2912
        %v3037 = vpack.c.bf16 %v2918, %v2914
        %v3038 = vpack.c.bf16 %v2969, %v2965
        %v3039 = vpack.c.bf16 %v2971, %v2967
        %v3040 = vpack.c.bf16 %v3022, %v3018
        %v3041 = vpack.c.bf16 %v3024, %v3020
        %v3042 = vmul.bf16 %v3026, 1120420552
        %v3043 = vmul.bf16 %v3027, 1120420552
        %v3044 = vmul.bf16 %v3028, 1120420552
        %v3045 = vmul.bf16 %v3029, 1120420552
        %v3046 = vmul.bf16 %v3030, 1120420552
        %v3047 = vmul.bf16 %v3031, 1120420552
        %v3048 = vmul.bf16 %v3032, 1120420552
        %v3049 = vmul.bf16 %v3033, 1120420552
        %v3050 = vmul.bf16 %v3034, 1120420552
        %v3051 = vmul.bf16 %v3035, 1120420552
        %v3052 = vmul.bf16 %v3036, 1120420552
        %v3053 = vmul.bf16 %v3037, 1120420552
        %v3054 = vmul.bf16 %v3038, 1120420552
        %v3055 = vmul.bf16 %v3039, 1120420552
        %v3056 = vmul.bf16 %v3040, 1120420552
        %v3057 = vmul.bf16 %v3041, 1120420552
        %v3058 = vmin.bf16 %v3042, 1101021600
        %v3059 = vmin.bf16 %v3043, 1101021600
        %v3060 = vmin.bf16 %v3044, 1101021600
        %v3061 = vmin.bf16 %v3045, 1101021600
        %v3062 = vmin.bf16 %v3046, 1101021600
        %v3063 = vmin.bf16 %v3047, 1101021600
        %v3064 = vmin.bf16 %v3048, 1101021600
        %v3065 = vmin.bf16 %v3049, 1101021600
        %v3066 = vmin.bf16 %v3050, 1101021600
        %v3067 = vmin.bf16 %v3051, 1101021600
        %v3068 = vmin.bf16 %v3052, 1101021600
        %v3069 = vmin.bf16 %v3053, 1101021600
        %v3070 = vmin.bf16 %v3054, 1101021600
        %v3071 = vmin.bf16 %v3055, 1101021600
        %v3072 = vmin.bf16 %v3056, 1101021600
        %v3073 = vmin.bf16 %v3057, 1101021600
        %v3075 = vmul.bf16 %v3058, 1069105081
        %v3076 = vpow.bf16.pop %v3075
        %v3078 = vmul.bf16 %v3059, 1069105081
        %v3079 = vpow.bf16.pop %v3078
        %v3081 = vmul.bf16 %v3060, 1069105081
        %v3082 = vpow.bf16.pop %v3081
        %v3084 = vmul.bf16 %v3061, 1069105081
        %v3085 = vpow.bf16.pop %v3084
        %v3087 = vmul.bf16 %v3062, 1069105081
        %v3088 = vpow.bf16.pop %v3087
        %v3090 = vmul.bf16 %v3063, 1069105081
        %v3091 = vpow.bf16.pop %v3090
        %v3093 = vmul.bf16 %v3064, 1069105081
        %v3094 = vpow.bf16.pop %v3093
        %v3096 = vmul.bf16 %v3065, 1069105081
        %v3097 = vpow.bf16.pop %v3096
        %v3099 = vmul.bf16 %v3066, 1069105081
        %v3100 = vpow.bf16.pop %v3099
        %v3102 = vmul.bf16 %v3067, 1069105081
        %v3103 = vpow.bf16.pop %v3102
        %v3105 = vmul.bf16 %v3068, 1069105081
        %v3106 = vpow.bf16.pop %v3105
        %v3108 = vmul.bf16 %v3069, 1069105081
        %v3109 = vpow.bf16.pop %v3108
        %v3111 = vmul.bf16 %v3070, 1069105081
        %v3112 = vpow.bf16.pop %v3111
        %v3114 = vmul.bf16 %v3071, 1069105081
        %v3115 = vpow.bf16.pop %v3114
        %v3117 = vmul.bf16 %v3072, 1069105081
        %v3118 = vpow.bf16.pop %v3117
        %v3120 = vmul.bf16 %v3073, 1069105081
        %v3121 = vpow.bf16.pop %v3120
        %v3122 = vadd.bf16 %v3076, 1065369472
        %v3123 = vadd.bf16 %v3079, 1065369472
        %v3124 = vadd.bf16 %v3082, 1065369472
        %v3125 = vadd.bf16 %v3085, 1065369472
        %v3126 = vadd.bf16 %v3088, 1065369472
        %v3127 = vadd.bf16 %v3091, 1065369472
        %v3128 = vadd.bf16 %v3094, 1065369472
        %v3129 = vadd.bf16 %v3097, 1065369472
        %v3130 = vadd.bf16 %v3100, 1065369472
        %v3131 = vadd.bf16 %v3103, 1065369472
        %v3132 = vadd.bf16 %v3106, 1065369472
        %v3133 = vadd.bf16 %v3109, 1065369472
        %v3134 = vadd.bf16 %v3112, 1065369472
        %v3135 = vadd.bf16 %v3115, 1065369472
        %v3136 = vadd.bf16 %v3118, 1065369472
        %v3137 = vadd.bf16 %v3121, 1065369472
        %v3138 = vlog2.bf16.pop %v3122
        %v3140 = vmul.bf16 %v3138, 1060192049
        %v3141 = vlog2.bf16.pop %v3123
        %v3143 = vmul.bf16 %v3141, 1060192049
        %v3144 = vlog2.bf16.pop %v3124
        %v3146 = vmul.bf16 %v3144, 1060192049
        %v3147 = vlog2.bf16.pop %v3125
        %v3149 = vmul.bf16 %v3147, 1060192049
        %v3150 = vlog2.bf16.pop %v3126
        %v3152 = vmul.bf16 %v3150, 1060192049
        %v3153 = vlog2.bf16.pop %v3127
        %v3155 = vmul.bf16 %v3153, 1060192049
        %v3156 = vlog2.bf16.pop %v3128
        %v3158 = vmul.bf16 %v3156, 1060192049
        %v3159 = vlog2.bf16.pop %v3129
        %v3161 = vmul.bf16 %v3159, 1060192049
        %v3162 = vlog2.bf16.pop %v3130
        %v3164 = vmul.bf16 %v3162, 1060192049
        %v3165 = vlog2.bf16.pop %v3131
        %v3167 = vmul.bf16 %v3165, 1060192049
        %v3168 = vlog2.bf16.pop %v3132
        %v3170 = vmul.bf16 %v3168, 1060192049
        %v3171 = vlog2.bf16.pop %v3133
        %v3173 = vmul.bf16 %v3171, 1060192049
        %v3174 = vlog2.bf16.pop %v3134
        %v3176 = vmul.bf16 %v3174, 1060192049
        %v3177 = vlog2.bf16.pop %v3135
        %v3179 = vmul.bf16 %v3177, 1060192049
        %v3180 = vlog2.bf16.pop %v3136
        %v3182 = vmul.bf16 %v3180, 1060192049
        %v3183 = vlog2.bf16.pop %v3137
        %v3185 = vmul.bf16 %v3183, 1060192049
        %v3186 = vmul.bf16 %v3140, 1009007652
        %v3187 = vmul.bf16 %v3143, 1009007652
        %v3188 = vmul.bf16 %v3146, 1009007652
        %v3189 = vmul.bf16 %v3149, 1009007652
        %v3190 = vmul.bf16 %v3152, 1009007652
        %v3191 = vmul.bf16 %v3155, 1009007652
        %v3192 = vmul.bf16 %v3158, 1009007652
        %v3193 = vmul.bf16 %v3161, 1009007652
        %v3194 = vmul.bf16 %v3164, 1009007652
        %v3195 = vmul.bf16 %v3167, 1009007652
        %v3196 = vmul.bf16 %v3170, 1009007652
        %v3197 = vmul.bf16 %v3173, 1009007652
        %v3198 = vmul.bf16 %v3176, 1009007652
        %v3199 = vmul.bf16 %v3179, 1009007652
        %v3200 = vmul.bf16 %v3182, 1009007652
        %v3201 = vmul.bf16 %v3185, 1009007652
        %vm3202 = vcmp.gt.bf16.partialorder %v3042, 1101021600
        %vm3203 = vcmp.gt.bf16.partialorder %v3043, 1101021600
        %vm3204 = vcmp.gt.bf16.partialorder %v3044, 1101021600
        %vm3205 = vcmp.gt.bf16.partialorder %v3045, 1101021600
        %vm3206 = vcmp.gt.bf16.partialorder %v3046, 1101021600
        %vm3207 = vcmp.gt.bf16.partialorder %v3047, 1101021600
        %vm3208 = vcmp.gt.bf16.partialorder %v3048, 1101021600
        %vm3209 = vcmp.gt.bf16.partialorder %v3049, 1101021600
        %vm3210 = vcmp.gt.bf16.partialorder %v3050, 1101021600
        %vm3211 = vcmp.gt.bf16.partialorder %v3051, 1101021600
        %vm3212 = vcmp.gt.bf16.partialorder %v3052, 1101021600
        %vm3213 = vcmp.gt.bf16.partialorder %v3053, 1101021600
        %vm3214 = vcmp.gt.bf16.partialorder %v3054, 1101021600
        %vm3215 = vcmp.gt.bf16.partialorder %v3055, 1101021600
        %vm3216 = vcmp.gt.bf16.partialorder %v3056, 1101021600
        %vm3217 = vcmp.gt.bf16.partialorder %v3057, 1101021600
        %v3218 = vsel %vm3202, %v3026, %v3186
        %v3219 = vsel %vm3203, %v3027, %v3187
        %v3220 = vsel %vm3204, %v3028, %v3188
        %v3221 = vsel %vm3205, %v3029, %v3189
        %v3222 = vsel %vm3206, %v3030, %v3190
        %v3223 = vsel %vm3207, %v3031, %v3191
        %v3224 = vsel %vm3208, %v3032, %v3192
        %v3225 = vsel %vm3209, %v3033, %v3193
        %v3226 = vsel %vm3210, %v3034, %v3194
        %v3227 = vsel %vm3211, %v3035, %v3195
        %v3228 = vsel %vm3212, %v3036, %v3196
        %v3229 = vsel %vm3213, %v3037, %v3197
        %v3230 = vsel %vm3214, %v3038, %v3198
        %v3231 = vsel %vm3215, %v3039, %v3199
        %v3232 = vsel %vm3216, %v3040, %v3200
        %v3233 = vsel %vm3217, %v3041, %v3201
        %v3234 = vld [vmem:[%s11] sm:$0xf]
        %v3235 = vld [vmem:[%s11 + $0x4] sm:$0xf]
        %v3236 = vld [vmem:[%s11 + $0x8] sm:$0xf]
        %v3237 = vld [vmem:[%s11 + $0xc] sm:$0xf]
        %v3238 = vld [vmem:[%s12] sm:$0xff]
        %v3239 = vld [vmem:[%s12 + $0x8] sm:$0xff]
        %v3240 = vld [vmem:[%s12 + $0x10] sm:$0xff]
        %v3241 = vld [vmem:[%s12 + $0x18] sm:$0xff]
        %v3243 = vsel %vm824, %v3238, 0
        %v3246 = vsel %vm824, %v3239, 0
        %v3249 = vsel %vm824, %v3240, 0
        %v3252 = vsel %vm824, %v3241, 0
        %3254 = vmatprep.subr.mxu0 0.0
        %3255 = vmatpush1.xpose.msra.mxu0 %v838
        %3256 = vmatprep.subr.mxu0 0.0
        %3257 = vmatpush1.xpose.msra.mxu0 %v841
        %3258 = vmatprep.subr.mxu0 0.0
        %3259 = vmatpush1.xpose.msra.mxu0 %v844
        %3260 = vmatprep.subr.mxu0 0.0
        %3261 = vmatpush1.xpose.msra.mxu0 %v847
        %3262 = vmatprep.subr.mxu0 0.0
        %3263 = vmatpush1.xpose.msra.mxu0 %v850
        %3264 = vmatprep.subr.mxu0 0.0
        %3265 = vmatpush1.xpose.msra.mxu0 %v853
        %3266 = vmatprep.subr.mxu0 0.0
        %3267 = vmatpush1.xpose.msra.mxu0 %v856
        %3268 = vmatprep.subr.mxu0 0.0
        %3269 = vmatpush1.xpose.msra.mxu0 %v859
        %3270 = vmatprep.subr.mxu0 0.0
        %3271 = vmatpush1.xpose.msra.mxu0 %v862
        %3272 = vmatprep.subr.mxu0 0.0
        %3273 = vmatpush1.xpose.msra.mxu0 %v865
        %3274 = vmatprep.subr.mxu0 0.0
        %3275 = vmatpush1.xpose.msra.mxu0 %v868
        %3276 = vmatprep.subr.mxu0 0.0
        %3277 = vmatpush1.xpose.msra.mxu0 %v871
        %3278 = vmatprep.subr.mxu0 0.0
        %3279 = vmatpush1.xpose.msra.mxu0 %v874
        %3280 = vmatprep.subr.mxu0 0.0
        %3281 = vmatpush1.xpose.msra.mxu0 %v877
        %3282 = vmatprep.subr.mxu0 0.0
        %3283 = vmatpush1.xpose.msra.mxu0 %v880
        %3284 = vmatprep.subr.mxu0 0.0
        %3285 = vmatpush1.xpose.msra.mxu0 %v883
        %3286 = vmatprep.subr.mxu0 0.0
        %3287 = vmatpush1.xpose.msra.mxu0 %v886
        %3288 = vmatprep.subr.mxu0 0.0
        %3289 = vmatpush1.xpose.msra.mxu0 %v889
        %3290 = vmatprep.subr.mxu0 0.0
        %3291 = vmatpush1.xpose.msra.mxu0 %v892
        %3292 = vmatprep.subr.mxu0 0.0
        %3293 = vmatpush1.xpose.msra.mxu0 %v895
        %3294 = vmatprep.subr.mxu0 0.0
        %3295 = vmatpush1.xpose.msra.mxu0 %v898
        %3296 = vmatprep.subr.mxu0 0.0
        %3297 = vmatpush1.xpose.msra.mxu0 %v901
        %3298 = vmatprep.subr.mxu0 0.0
        %3299 = vmatpush1.xpose.msra.mxu0 %v904
        %3300 = vmatprep.subr.mxu0 0.0
        %3301 = vmatpush1.xpose.msra.mxu0 %v907
        %3302 = vmatprep.subr.mxu0 0.0
        %3303 = vmatpush1.xpose.msra.mxu0 %v910
        %3304 = vmatprep.subr.mxu0 0.0
        %3305 = vmatpush1.xpose.msra.mxu0 %v913
        %3306 = vmatprep.subr.mxu0 0.0
        %3307 = vmatpush1.xpose.msra.mxu0 %v916
        %3308 = vmatprep.subr.mxu0 0.0
        %3309 = vmatpush1.xpose.msra.mxu0 %v919
        %3310 = vmatprep.subr.mxu0 0.0
        %3311 = vmatpush1.xpose.msra.mxu0 %v922
        %3312 = vmatprep.subr.mxu0 0.0
        %3313 = vmatpush1.xpose.msra.mxu0 %v925
        %3314 = vmatprep.subr.mxu0 0.0
        %3315 = vmatpush1.xpose.msra.mxu0 %v928
        %3316 = vmatprep.subr.mxu0 0.0
        %3317 = vmatpush1.xpose.msra.mxu0 %v931
        %3318 = vmatprep.mubr.f32.mxu0 0.0
        %3319 = vmatmul.mubr.f32.gmra.mrb[0].mxu0 %v3243
        %v3320 = vpop.f32.mrb[0].mxu0
        %v3321 = vadd.f32 0.0, %v3320
        %v3322 = vpop.f32.mrb[0].mxu0
        %v3323 = vadd.f32 0.0, %v3322
        %3324 = vmatprep.mubr.f32.mxu0 0.0
        %3325 = vmatmul.mubr.f32.gmra.mrb[0].mxu0 %v3246
        %v3326 = vpop.f32.mrb[0].mxu0
        %v3327 = vadd.f32 0.0, %v3326
        %v3328 = vpop.f32.mrb[0].mxu0
        %v3329 = vadd.f32 0.0, %v3328
        %3330 = vmatprep.mubr.f32.mxu0 0.0
        %3331 = vmatmul.mubr.f32.gmra.mrb[0].mxu0 %v3249
        %v3332 = vpop.f32.mrb[0].mxu0
        %v3333 = vadd.f32 0.0, %v3332
        %v3334 = vpop.f32.mrb[0].mxu0
        %v3335 = vadd.f32 0.0, %v3334
        %3336 = vmatprep.mubr.f32.mxu0 0.0
        %3337 = vmatmul.mubr.f32.gmra.mrb[0].mxu0 %v3252
        %v3338 = vpop.f32.mrb[0].mxu0
        %v3339 = vadd.f32 0.0, %v3338
        %v3340 = vpop.f32.mrb[0].mxu0
        %v3341 = vadd.f32 0.0, %v3340
        %3342 = vdwg.mxu0
        %3343 = vmatprep.subr.mxu0 0.0
        %3344 = vmatpush1.xpose.msra.mxu0 %v934
        %3345 = vmatprep.subr.mxu0 0.0
        %3346 = vmatpush1.xpose.msra.mxu0 %v937
        %3347 = vmatprep.subr.mxu0 0.0
        %3348 = vmatpush1.xpose.msra.mxu0 %v940
        %3349 = vmatprep.subr.mxu0 0.0
        %3350 = vmatpush1.xpose.msra.mxu0 %v943
        %3351 = vmatprep.subr.mxu0 0.0
        %3352 = vmatpush1.xpose.msra.mxu0 %v946
        %3353 = vmatprep.subr.mxu0 0.0
        %3354 = vmatpush1.xpose.msra.mxu0 %v949
        %3355 = vmatprep.subr.mxu0 0.0
        %3356 = vmatpush1.xpose.msra.mxu0 %v952
        %3357 = vmatprep.subr.mxu0 0.0
        %3358 = vmatpush1.xpose.msra.mxu0 %v955
        %3359 = vmatprep.subr.mxu0 0.0
        %3360 = vmatpush1.xpose.msra.mxu0 %v958
        %3361 = vmatprep.subr.mxu0 0.0
        %3362 = vmatpush1.xpose.msra.mxu0 %v961
        %3363 = vmatprep.subr.mxu0 0.0
        %3364 = vmatpush1.xpose.msra.mxu0 %v964
        %3365 = vmatprep.subr.mxu0 0.0
        %3366 = vmatpush1.xpose.msra.mxu0 %v967
        %3367 = vmatprep.subr.mxu0 0.0
        %3368 = vmatpush1.xpose.msra.mxu0 %v970
        %3369 = vmatprep.subr.mxu0 0.0
        %3370 = vmatpush1.xpose.msra.mxu0 %v973
        %3371 = vmatprep.subr.mxu0 0.0
        %3372 = vmatpush1.xpose.msra.mxu0 %v976
        %3373 = vmatprep.subr.mxu0 0.0
        %3374 = vmatpush1.xpose.msra.mxu0 %v979
        %3375 = vmatprep.subr.mxu0 0.0
        %3376 = vmatpush1.xpose.msra.mxu0 %v982
        %3377 = vmatprep.subr.mxu0 0.0
        %3378 = vmatpush1.xpose.msra.mxu0 %v985
        %3379 = vmatprep.subr.mxu0 0.0
        %3380 = vmatpush1.xpose.msra.mxu0 %v988
        %3381 = vmatprep.subr.mxu0 0.0
        %3382 = vmatpush1.xpose.msra.mxu0 %v991
        %3383 = vmatprep.subr.mxu0 0.0
        %3384 = vmatpush1.xpose.msra.mxu0 %v994
        %3385 = vmatprep.subr.mxu0 0.0
        %3386 = vmatpush1.xpose.msra.mxu0 %v997
        %3387 = vmatprep.subr.mxu0 0.0
        %3388 = vmatpush1.xpose.msra.mxu0 %v1000
        %3389 = vmatprep.subr.mxu0 0.0
        %3390 = vmatpush1.xpose.msra.mxu0 %v1003
        %3391 = vmatprep.subr.mxu0 0.0
        %3392 = vmatpush1.xpose.msra.mxu0 %v1006
        %3393 = vmatprep.subr.mxu0 0.0
        %3394 = vmatpush1.xpose.msra.mxu0 %v1009
        %3395 = vmatprep.subr.mxu0 0.0
        %3396 = vmatpush1.xpose.msra.mxu0 %v1012
        %3397 = vmatprep.subr.mxu0 0.0
        %3398 = vmatpush1.xpose.msra.mxu0 %v1015
        %3399 = vmatprep.subr.mxu0 0.0
        %3400 = vmatpush1.xpose.msra.mxu0 %v1018
        %3401 = vmatprep.subr.mxu0 0.0
        %3402 = vmatpush1.xpose.msra.mxu0 %v1021
        %3403 = vmatprep.subr.mxu0 0.0
        %3404 = vmatpush1.xpose.msra.mxu0 %v1024
        %3405 = vmatprep.subr.mxu0 0.0
        %3406 = vmatpush1.xpose.msra.mxu0 %v1027
        %3407 = vmatprep.mubr.f32.mxu0 0.0
        %3408 = vmatmul.mubr.f32.gmra.mrb[0].mxu0 %v3243
        %v3409 = vpop.f32.mrb[0].mxu0
        %v3410 = vadd.f32 0.0, %v3409
        %v3411 = vpop.f32.mrb[0].mxu0
        %v3412 = vadd.f32 0.0, %v3411
        %3413 = vmatprep.mubr.f32.mxu0 0.0
        %3414 = vmatmul.mubr.f32.gmra.mrb[0].mxu0 %v3246
        %v3415 = vpop.f32.mrb[0].mxu0
        %v3416 = vadd.f32 0.0, %v3415
        %v3417 = vpop.f32.mrb[0].mxu0
        %v3418 = vadd.f32 0.0, %v3417
        %3419 = vmatprep.mubr.f32.mxu0 0.0
        %3420 = vmatmul.mubr.f32.gmra.mrb[0].mxu0 %v3249
        %v3421 = vpop.f32.mrb[0].mxu0
        %v3422 = vadd.f32 0.0, %v3421
        %v3423 = vpop.f32.mrb[0].mxu0
        %v3424 = vadd.f32 0.0, %v3423
        %3425 = vmatprep.mubr.f32.mxu0 0.0
        %3426 = vmatmul.mubr.f32.gmra.mrb[0].mxu0 %v3252
        %v3427 = vpop.f32.mrb[0].mxu0
        %v3428 = vadd.f32 0.0, %v3427
        %v3429 = vpop.f32.mrb[0].mxu0
        %v3430 = vadd.f32 0.0, %v3429
        %3431 = vdwg.mxu0
        %3432 = vmatprep.subr.mxu0 0.0
        %3433 = vmatpush1.xpose.msra.mxu0 %v1030
        %3434 = vmatprep.subr.mxu0 0.0
        %3435 = vmatpush1.xpose.msra.mxu0 %v1033
        %3436 = vmatprep.subr.mxu0 0.0
        %3437 = vmatpush1.xpose.msra.mxu0 %v1036
        %3438 = vmatprep.subr.mxu0 0.0
        %3439 = vmatpush1.xpose.msra.mxu0 %v1039
        %3440 = vmatprep.subr.mxu0 0.0
        %3441 = vmatpush1.xpose.msra.mxu0 %v1042
        %3442 = vmatprep.subr.mxu0 0.0
        %3443 = vmatpush1.xpose.msra.mxu0 %v1045
        %3444 = vmatprep.subr.mxu0 0.0
        %3445 = vmatpush1.xpose.msra.mxu0 %v1048
        %3446 = vmatprep.subr.mxu0 0.0
        %3447 = vmatpush1.xpose.msra.mxu0 %v1051
        %3448 = vmatprep.subr.mxu0 0.0
        %3449 = vmatpush1.xpose.msra.mxu0 %v1054
        %3450 = vmatprep.subr.mxu0 0.0
        %3451 = vmatpush1.xpose.msra.mxu0 %v1057
        %3452 = vmatprep.subr.mxu0 0.0
        %3453 = vmatpush1.xpose.msra.mxu0 %v1060
        %3454 = vmatprep.subr.mxu0 0.0
        %3455 = vmatpush1.xpose.msra.mxu0 %v1063
        %3456 = vmatprep.subr.mxu0 0.0
        %3457 = vmatpush1.xpose.msra.mxu0 %v1066
        %3458 = vmatprep.subr.mxu0 0.0
        %3459 = vmatpush1.xpose.msra.mxu0 %v1069
        %3460 = vmatprep.subr.mxu0 0.0
        %3461 = vmatpush1.xpose.msra.mxu0 %v1072
        %3462 = vmatprep.subr.mxu0 0.0
        %3463 = vmatpush1.xpose.msra.mxu0 %v1075
        %3464 = vmatprep.subr.mxu0 0.0
        %3465 = vmatpush1.xpose.msra.mxu0 %v1078
        %3466 = vmatprep.subr.mxu0 0.0
        %3467 = vmatpush1.xpose.msra.mxu0 %v1081
        %3468 = vmatprep.subr.mxu0 0.0
        %3469 = vmatpush1.xpose.msra.mxu0 %v1084
        %3470 = vmatprep.subr.mxu0 0.0
        %3471 = vmatpush1.xpose.msra.mxu0 %v1087
        %3472 = vmatprep.subr.mxu0 0.0
        %3473 = vmatpush1.xpose.msra.mxu0 %v1090
        %3474 = vmatprep.subr.mxu0 0.0
        %3475 = vmatpush1.xpose.msra.mxu0 %v1093
        %3476 = vmatprep.subr.mxu0 0.0
        %3477 = vmatpush1.xpose.msra.mxu0 %v1096
        %3478 = vmatprep.subr.mxu0 0.0
        %3479 = vmatpush1.xpose.msra.mxu0 %v1099
        %3480 = vmatprep.subr.mxu0 0.0
        %3481 = vmatpush1.xpose.msra.mxu0 %v1102
        %3482 = vmatprep.subr.mxu0 0.0
        %3483 = vmatpush1.xpose.msra.mxu0 %v1105
        %3484 = vmatprep.subr.mxu0 0.0
        %3485 = vmatpush1.xpose.msra.mxu0 %v1108
        %3486 = vmatprep.subr.mxu0 0.0
        %3487 = vmatpush1.xpose.msra.mxu0 %v1111
        %3488 = vmatprep.subr.mxu0 0.0
        %3489 = vmatpush1.xpose.msra.mxu0 %v1114
        %3490 = vmatprep.subr.mxu0 0.0
        %3491 = vmatpush1.xpose.msra.mxu0 %v1117
        %3492 = vmatprep.subr.mxu0 0.0
        %3493 = vmatpush1.xpose.msra.mxu0 %v1120
        %3494 = vmatprep.subr.mxu0 0.0
        %3495 = vmatpush1.xpose.msra.mxu0 %v1123
        %3496 = vmatprep.mubr.f32.mxu0 0.0
        %3497 = vmatmul.mubr.f32.gmra.mrb[0].mxu0 %v3243
        %v3498 = vpop.f32.mrb[0].mxu0
        %v3499 = vadd.f32 0.0, %v3498
        %v3500 = vpop.f32.mrb[0].mxu0
        %v3501 = vadd.f32 0.0, %v3500
        %3502 = vmatprep.mubr.f32.mxu0 0.0
        %3503 = vmatmul.mubr.f32.gmra.mrb[0].mxu0 %v3246
        %v3504 = vpop.f32.mrb[0].mxu0
        %v3505 = vadd.f32 0.0, %v3504
        %v3506 = vpop.f32.mrb[0].mxu0
        %v3507 = vadd.f32 0.0, %v3506
        %3508 = vmatprep.mubr.f32.mxu0 0.0
        %3509 = vmatmul.mubr.f32.gmra.mrb[0].mxu0 %v3249
        %v3510 = vpop.f32.mrb[0].mxu0
        %v3511 = vadd.f32 0.0, %v3510
        %v3512 = vpop.f32.mrb[0].mxu0
        %v3513 = vadd.f32 0.0, %v3512
        %3514 = vmatprep.mubr.f32.mxu0 0.0
        %3515 = vmatmul.mubr.f32.gmra.mrb[0].mxu0 %v3252
        %v3516 = vpop.f32.mrb[0].mxu0
        %v3517 = vadd.f32 0.0, %v3516
        %v3518 = vpop.f32.mrb[0].mxu0
        %v3519 = vadd.f32 0.0, %v3518
        %3520 = vdwg.mxu0
        %3521 = vmatprep.subr.mxu0 0.0
        %3522 = vmatpush1.xpose.msra.mxu0 %v1126
        %3523 = vmatprep.subr.mxu0 0.0
        %3524 = vmatpush1.xpose.msra.mxu0 %v1129
        %3525 = vmatprep.subr.mxu0 0.0
        %3526 = vmatpush1.xpose.msra.mxu0 %v1132
        %3527 = vmatprep.subr.mxu0 0.0
        %3528 = vmatpush1.xpose.msra.mxu0 %v1135
        %3529 = vmatprep.subr.mxu0 0.0
        %3530 = vmatpush1.xpose.msra.mxu0 %v1138
        %3531 = vmatprep.subr.mxu0 0.0
        %3532 = vmatpush1.xpose.msra.mxu0 %v1141
        %3533 = vmatprep.subr.mxu0 0.0
        %3534 = vmatpush1.xpose.msra.mxu0 %v1144
        %3535 = vmatprep.subr.mxu0 0.0
        %3536 = vmatpush1.xpose.msra.mxu0 %v1147
        %3537 = vmatprep.subr.mxu0 0.0
        %3538 = vmatpush1.xpose.msra.mxu0 %v1150
        %3539 = vmatprep.subr.mxu0 0.0
        %3540 = vmatpush1.xpose.msra.mxu0 %v1153
        %3541 = vmatprep.subr.mxu0 0.0
        %3542 = vmatpush1.xpose.msra.mxu0 %v1156
        %3543 = vmatprep.subr.mxu0 0.0
        %3544 = vmatpush1.xpose.msra.mxu0 %v1159
        %3545 = vmatprep.subr.mxu0 0.0
        %3546 = vmatpush1.xpose.msra.mxu0 %v1162
        %3547 = vmatprep.subr.mxu0 0.0
        %3548 = vmatpush1.xpose.msra.mxu0 %v1165
        %3549 = vmatprep.subr.mxu0 0.0
        %3550 = vmatpush1.xpose.msra.mxu0 %v1168
        %3551 = vmatprep.subr.mxu0 0.0
        %3552 = vmatpush1.xpose.msra.mxu0 %v1171
        %3553 = vmatprep.subr.mxu0 0.0
        %3554 = vmatpush1.xpose.msra.mxu0 %v1174
        %3555 = vmatprep.subr.mxu0 0.0
        %3556 = vmatpush1.xpose.msra.mxu0 %v1177
        %3557 = vmatprep.subr.mxu0 0.0
        %3558 = vmatpush1.xpose.msra.mxu0 %v1180
        %3559 = vmatprep.subr.mxu0 0.0
        %3560 = vmatpush1.xpose.msra.mxu0 %v1183
        %3561 = vmatprep.subr.mxu0 0.0
        %3562 = vmatpush1.xpose.msra.mxu0 %v1186
        %3563 = vmatprep.subr.mxu0 0.0
        %3564 = vmatpush1.xpose.msra.mxu0 %v1189
        %3565 = vmatprep.subr.mxu0 0.0
        %3566 = vmatpush1.xpose.msra.mxu0 %v1192
        %3567 = vmatprep.subr.mxu0 0.0
        %3568 = vmatpush1.xpose.msra.mxu0 %v1195
        %3569 = vmatprep.subr.mxu0 0.0
        %3570 = vmatpush1.xpose.msra.mxu0 %v1198
        %3571 = vmatprep.subr.mxu0 0.0
        %3572 = vmatpush1.xpose.msra.mxu0 %v1201
        %3573 = vmatprep.subr.mxu0 0.0
        %3574 = vmatpush1.xpose.msra.mxu0 %v1204
        %3575 = vmatprep.subr.mxu0 0.0
        %3576 = vmatpush1.xpose.msra.mxu0 %v1207
        %3577 = vmatprep.subr.mxu0 0.0
        %3578 = vmatpush1.xpose.msra.mxu0 %v1210
        %3579 = vmatprep.subr.mxu0 0.0
        %3580 = vmatpush1.xpose.msra.mxu0 %v1213
        %3581 = vmatprep.subr.mxu0 0.0
        %3582 = vmatpush1.xpose.msra.mxu0 %v1216
        %3583 = vmatprep.subr.mxu0 0.0
        %3584 = vmatpush1.xpose.msra.mxu0 %v1219
        %3585 = vmatprep.mubr.f32.mxu0 0.0
        %3586 = vmatmul.mubr.f32.gmra.mrb[0].mxu0 %v3243
        %v3587 = vpop.f32.mrb[0].mxu0
        %v3588 = vadd.f32 0.0, %v3587
        %v3589 = vpop.f32.mrb[0].mxu0
        %v3590 = vadd.f32 0.0, %v3589
        %3591 = vmatprep.mubr.f32.mxu0 0.0
        %3592 = vmatmul.mubr.f32.gmra.mrb[0].mxu0 %v3246
        %v3593 = vpop.f32.mrb[0].mxu0
        %v3594 = vadd.f32 0.0, %v3593
        %v3595 = vpop.f32.mrb[0].mxu0
        %v3596 = vadd.f32 0.0, %v3595
        %3597 = vmatprep.mubr.f32.mxu0 0.0
        %3598 = vmatmul.mubr.f32.gmra.mrb[0].mxu0 %v3249
        %v3599 = vpop.f32.mrb[0].mxu0
        %v3600 = vadd.f32 0.0, %v3599
        %v3601 = vpop.f32.mrb[0].mxu0
        %v3602 = vadd.f32 0.0, %v3601
        %3603 = vmatprep.mubr.f32.mxu0 0.0
        %3604 = vmatmul.mubr.f32.gmra.mrb[0].mxu0 %v3252
        %v3605 = vpop.f32.mrb[0].mxu0
        %v3606 = vadd.f32 0.0, %v3605
        %v3607 = vpop.f32.mrb[0].mxu0
        %v3608 = vadd.f32 0.0, %v3607
        %3609 = vdwg.mxu0
        %v3614 = vunpack.c.l.b16 %v3234
        %v3615 = vunpack.c.l.b16 %v3235
        %v3616 = vunpack.c.l.b16 %v3236
        %v3617 = vunpack.c.l.b16 %v3237
        %v3618 = vpack.c.b16 %v3615, %v3614
        %v3619 = vpack.c.b16 %v3617, %v3616
        %vm3620 = vcmask 228352
        %v3622 = vsel %vm3620, %v3618, 0
        %v3625 = vsel %vm3620, %v3619, 0
        %vm3627 = vcmask 1045504
        %v3629 = vsel %vm3627, %v3226, 0
        %v3632 = vsel %vm3627, %v3227, 0
        %v3635 = vsel %vm3627, %v3228, 0
        %v3638 = vsel %vm3627, %v3229, 0
        %v3641 = vsel %vm3627, %v3230, 0
        %v3644 = vsel %vm3627, %v3231, 0
        %v3647 = vsel %vm3627, %v3232, 0
        %v3650 = vsel %vm3627, %v3233, 0
        %3652 = vmatprep.subr.bf16.mxu0 %v3219
        %3653 = vmatpush1.bf16.msra.mxu0 %v3218
        %3654 = vmatprep.subr.bf16.mxu0 %v3632
        %3655 = vmatpush1.bf16.msra.mxu0 %v3629
        %3656 = vmatprep.subr.bf16.mxu0 0
        %3657 = vmatpush1.bf16.msra.mxu0 0
        %3658 = vmatprep.subr.bf16.mxu0 0
        %3659 = vmatpush1.bf16.msra.mxu0 0
        %3660 = vmatprep.subr.bf16.mxu0 0
        %3661 = vmatpush1.bf16.msra.mxu0 0
        %3662 = vmatprep.subr.bf16.mxu0 0
        %3663 = vmatpush1.bf16.msra.mxu0 0
        %3664 = vmatprep.subr.bf16.mxu0 0
        %3665 = vmatpush1.bf16.msra.mxu0 0
        %3666 = vmatprep.subr.bf16.mxu0 0
        %3667 = vmatpush1.bf16.msra.mxu0 0
        %3668 = vmatprep.subr.bf16.mxu0 0
        %3669 = vmatpush1.bf16.msra.mxu0 0
        %3670 = vmatprep.subr.bf16.mxu0 0
        %3671 = vmatpush1.bf16.msra.mxu0 0
        %3672 = vmatprep.subr.bf16.mxu0 0
        %3673 = vmatpush1.bf16.msra.mxu0 0
        %3674 = vmatprep.subr.bf16.mxu0 0
        %3675 = vmatpush1.bf16.msra.mxu0 0
        %3676 = vmatprep.subr.bf16.mxu0 0
        %3677 = vmatpush1.bf16.msra.mxu0 0
        %3678 = vmatprep.subr.bf16.mxu0 0
        %3679 = vmatpush1.bf16.msra.mxu0 0
        %3680 = vmatprep.subr.bf16.mxu0 0
        %3681 = vmatpush1.bf16.msra.mxu0 0
        %3682 = vmatprep.subr.bf16.mxu0 0
        %3683 = vmatpush1.bf16.msra.mxu0 0
        %3684 = vmatprep.mubr.bf16.mxu0 0
        %3685 = vmatmul.mubr.bf16.gmra.mrb[0].mxu0 %v3622
        %v3686 = vpop.f32.mrb[0].mxu0
        %v3687 = vadd.f32 %v3321, %v3686
        %v3688 = vpop.f32.mrb[0].mxu0
        %v3689 = vadd.f32 %v3323, %v3688
        %v3690 = vpop.f32.mrb[0].mxu0
        %v3691 = vadd.f32 %v3327, %v3690
        %v3692 = vpop.f32.mrb[0].mxu0
        %v3693 = vadd.f32 %v3329, %v3692
        %3694 = vmatprep.mubr.bf16.mxu0 0
        %3695 = vmatmul.mubr.bf16.gmra.mrb[0].mxu0 %v3625
        %v3696 = vpop.f32.mrb[0].mxu0
        %v3697 = vadd.f32 %v3333, %v3696
        %v3698 = vpop.f32.mrb[0].mxu0
        %v3699 = vadd.f32 %v3335, %v3698
        %v3700 = vpop.f32.mrb[0].mxu0
        %v3701 = vadd.f32 %v3339, %v3700
        %v3702 = vpop.f32.mrb[0].mxu0
        %v3703 = vadd.f32 %v3341, %v3702
        %3704 = vdwg.mxu0
        %3705 = vmatprep.subr.bf16.mxu0 %v3221
        %3706 = vmatpush1.bf16.msra.mxu0 %v3220
        %3707 = vmatprep.subr.bf16.mxu0 %v3638
        %3708 = vmatpush1.bf16.msra.mxu0 %v3635
        %3709 = vmatprep.subr.bf16.mxu0 0
        %3710 = vmatpush1.bf16.msra.mxu0 0
        %3711 = vmatprep.subr.bf16.mxu0 0
        %3712 = vmatpush1.bf16.msra.mxu0 0
        %3713 = vmatprep.subr.bf16.mxu0 0
        %3714 = vmatpush1.bf16.msra.mxu0 0
        %3715 = vmatprep.subr.bf16.mxu0 0
        %3716 = vmatpush1.bf16.msra.mxu0 0
        %3717 = vmatprep.subr.bf16.mxu0 0
        %3718 = vmatpush1.bf16.msra.mxu0 0
        %3719 = vmatprep.subr.bf16.mxu0 0
        %3720 = vmatpush1.bf16.msra.mxu0 0
        %3721 = vmatprep.subr.bf16.mxu0 0
        %3722 = vmatpush1.bf16.msra.mxu0 0
        %3723 = vmatprep.subr.bf16.mxu0 0
        %3724 = vmatpush1.bf16.msra.mxu0 0
        %3725 = vmatprep.subr.bf16.mxu0 0
        %3726 = vmatpush1.bf16.msra.mxu0 0
        %3727 = vmatprep.subr.bf16.mxu0 0
        %3728 = vmatpush1.bf16.msra.mxu0 0
        %3729 = vmatprep.subr.bf16.mxu0 0
        %3730 = vmatpush1.bf16.msra.mxu0 0
        %3731 = vmatprep.subr.bf16.mxu0 0
        %3732 = vmatpush1.bf16.msra.mxu0 0
        %3733 = vmatprep.subr.bf16.mxu0 0
        %3734 = vmatpush1.bf16.msra.mxu0 0
        %3735 = vmatprep.subr.bf16.mxu0 0
        %3736 = vmatpush1.bf16.msra.mxu0 0
        %3737 = vmatprep.mubr.bf16.mxu0 0
        %3738 = vmatmul.mubr.bf16.gmra.mrb[0].mxu0 %v3622
        %v3739 = vpop.f32.mrb[0].mxu0
        %v3740 = vadd.f32 %v3410, %v3739
        %v3741 = vpop.f32.mrb[0].mxu0
        %v3742 = vadd.f32 %v3412, %v3741
        %v3743 = vpop.f32.mrb[0].mxu0
        %v3744 = vadd.f32 %v3416, %v3743
        %v3745 = vpop.f32.mrb[0].mxu0
        %v3746 = vadd.f32 %v3418, %v3745
        %3747 = vmatprep.mubr.bf16.mxu0 0
        %3748 = vmatmul.mubr.bf16.gmra.mrb[0].mxu0 %v3625
        %v3749 = vpop.f32.mrb[0].mxu0
        %v3750 = vadd.f32 %v3422, %v3749
        %v3751 = vpop.f32.mrb[0].mxu0
        %v3752 = vadd.f32 %v3424, %v3751
        %v3753 = vpop.f32.mrb[0].mxu0
        %v3754 = vadd.f32 %v3428, %v3753
        %v3755 = vpop.f32.mrb[0].mxu0
        %v3756 = vadd.f32 %v3430, %v3755
        %3757 = vdwg.mxu0
        %3758 = vmatprep.subr.bf16.mxu0 %v3223
        %3759 = vmatpush1.bf16.msra.mxu0 %v3222
        %3760 = vmatprep.subr.bf16.mxu0 %v3644
        %3761 = vmatpush1.bf16.msra.mxu0 %v3641
        %3762 = vmatprep.subr.bf16.mxu0 0
        %3763 = vmatpush1.bf16.msra.mxu0 0
        %3764 = vmatprep.subr.bf16.mxu0 0
        %3765 = vmatpush1.bf16.msra.mxu0 0
        %3766 = vmatprep.subr.bf16.mxu0 0
        %3767 = vmatpush1.bf16.msra.mxu0 0
        %3768 = vmatprep.subr.bf16.mxu0 0
        %3769 = vmatpush1.bf16.msra.mxu0 0
        %3770 = vmatprep.subr.bf16.mxu0 0
        %3771 = vmatpush1.bf16.msra.mxu0 0
        %3772 = vmatprep.subr.bf16.mxu0 0
        %3773 = vmatpush1.bf16.msra.mxu0 0
        %3774 = vmatprep.subr.bf16.mxu0 0
        %3775 = vmatpush1.bf16.msra.mxu0 0
        %3776 = vmatprep.subr.bf16.mxu0 0
        %3777 = vmatpush1.bf16.msra.mxu0 0
        %3778 = vmatprep.subr.bf16.mxu0 0
        %3779 = vmatpush1.bf16.msra.mxu0 0
        %3780 = vmatprep.subr.bf16.mxu0 0
        %3781 = vmatpush1.bf16.msra.mxu0 0
        %3782 = vmatprep.subr.bf16.mxu0 0
        %3783 = vmatpush1.bf16.msra.mxu0 0
        %3784 = vmatprep.subr.bf16.mxu0 0
        %3785 = vmatpush1.bf16.msra.mxu0 0
        %3786 = vmatprep.subr.bf16.mxu0 0
        %3787 = vmatpush1.bf16.msra.mxu0 0
        %3788 = vmatprep.subr.bf16.mxu0 0
        %3789 = vmatpush1.bf16.msra.mxu0 0
        %3790 = vmatprep.mubr.bf16.mxu0 0
        %3791 = vmatmul.mubr.bf16.gmra.mrb[0].mxu0 %v3622
        %v3792 = vpop.f32.mrb[0].mxu0
        %v3793 = vadd.f32 %v3499, %v3792
        %v3794 = vpop.f32.mrb[0].mxu0
        %v3795 = vadd.f32 %v3501, %v3794
        %v3796 = vpop.f32.mrb[0].mxu0
        %v3797 = vadd.f32 %v3505, %v3796
        %v3798 = vpop.f32.mrb[0].mxu0
        %v3799 = vadd.f32 %v3507, %v3798
        %3800 = vmatprep.mubr.bf16.mxu0 0
        %3801 = vmatmul.mubr.bf16.gmra.mrb[0].mxu0 %v3625
        %v3802 = vpop.f32.mrb[0].mxu0
        %v3803 = vadd.f32 %v3511, %v3802
        %v3804 = vpop.f32.mrb[0].mxu0
        %v3805 = vadd.f32 %v3513, %v3804
        %v3806 = vpop.f32.mrb[0].mxu0
        %v3807 = vadd.f32 %v3517, %v3806
        %v3808 = vpop.f32.mrb[0].mxu0
        %v3809 = vadd.f32 %v3519, %v3808
        %3810 = vdwg.mxu0
        %3811 = vmatprep.subr.bf16.mxu0 %v3225
        %3812 = vmatpush1.bf16.msra.mxu0 %v3224
        %3813 = vmatprep.subr.bf16.mxu0 %v3650
        %3814 = vmatpush1.bf16.msra.mxu0 %v3647
        %3815 = vmatprep.subr.bf16.mxu0 0
        %3816 = vmatpush1.bf16.msra.mxu0 0
        %3817 = vmatprep.subr.bf16.mxu0 0
        %3818 = vmatpush1.bf16.msra.mxu0 0
        %3819 = vmatprep.subr.bf16.mxu0 0
        %3820 = vmatpush1.bf16.msra.mxu0 0
        %3821 = vmatprep.subr.bf16.mxu0 0
        %3822 = vmatpush1.bf16.msra.mxu0 0
        %3823 = vmatprep.subr.bf16.mxu0 0
        %3824 = vmatpush1.bf16.msra.mxu0 0
        %3825 = vmatprep.subr.bf16.mxu0 0
        %3826 = vmatpush1.bf16.msra.mxu0 0
        %3827 = vmatprep.subr.bf16.mxu0 0
        %3828 = vmatpush1.bf16.msra.mxu0 0
        %3829 = vmatprep.subr.bf16.mxu0 0
        %3830 = vmatpush1.bf16.msra.mxu0 0
        %3831 = vmatprep.subr.bf16.mxu0 0
        %3832 = vmatpush1.bf16.msra.mxu0 0
        %3833 = vmatprep.subr.bf16.mxu0 0
        %3834 = vmatpush1.bf16.msra.mxu0 0
        %3835 = vmatprep.subr.bf16.mxu0 0
        %3836 = vmatpush1.bf16.msra.mxu0 0
        %3837 = vmatprep.subr.bf16.mxu0 0
        %3838 = vmatpush1.bf16.msra.mxu0 0
        %3839 = vmatprep.subr.bf16.mxu0 0
        %3840 = vmatpush1.bf16.msra.mxu0 0
        %3841 = vmatprep.subr.bf16.mxu0 0
        %3842 = vmatpush1.bf16.msra.mxu0 0
        %3843 = vmatprep.mubr.bf16.mxu0 0
        %3844 = vmatmul.mubr.bf16.gmra.mrb[0].mxu0 %v3622
        %v3845 = vpop.f32.mrb[0].mxu0
        %v3846 = vadd.f32 %v3588, %v3845
        %v3847 = vpop.f32.mrb[0].mxu0
        %v3848 = vadd.f32 %v3590, %v3847
        %v3849 = vpop.f32.mrb[0].mxu0
        %v3850 = vadd.f32 %v3594, %v3849
        %v3851 = vpop.f32.mrb[0].mxu0
        %v3852 = vadd.f32 %v3596, %v3851
        %3853 = vmatprep.mubr.bf16.mxu0 0
        %3854 = vmatmul.mubr.bf16.gmra.mrb[0].mxu0 %v3625
        %v3855 = vpop.f32.mrb[0].mxu0
        %v3856 = vadd.f32 %v3600, %v3855
        %v3857 = vpop.f32.mrb[0].mxu0
        %v3858 = vadd.f32 %v3602, %v3857
        %v3859 = vpop.f32.mrb[0].mxu0
        %v3860 = vadd.f32 %v3606, %v3859
        %v3861 = vpop.f32.mrb[0].mxu0
        %v3862 = vadd.f32 %v3608, %v3861
        %3863 = vdwg.mxu0
        %v3864 = vld [vmem:[%s13] sm:$0xff]
        %v3865 = vld [vmem:[%s13 + $0x8] sm:$0xff]
        %v3866 = vld [vmem:[%s13 + $0x10] sm:$0xff]
        %v3867 = vld [vmem:[%s13 + $0x18] sm:$0xff]
        %3869 = vset.pattern.permute.xlu0 0
        %3870 = vperm.xlu0 %3869, %v3864
        %v3871 = vpop.permute.xlu0 %3870
        %3874 = vset.pattern.permute.xlu0 0
        %3875 = vperm.xlu0 %3874, %v3865
        %v3876 = vpop.permute.xlu0 %3875
        %3879 = vset.pattern.permute.xlu0 0
        %3880 = vperm.xlu0 %3879, %v3866
        %v3881 = vpop.permute.xlu0 %3880
        %3884 = vset.pattern.permute.xlu0 0
        %3885 = vperm.xlu0 %3884, %v3867
        %v3886 = vpop.permute.xlu0 %3885
        %v3888 = vmul.f32 %v3871, %v755
        %v3889 = vmul.f32 %v3871, %v759
        %v3890 = vmul.f32 %v3871, %v763
        %v3891 = vmul.f32 %v3871, %v767
        %v3892 = vmul.f32 %v3871, %v771
        %v3893 = vmul.f32 %v3871, %v775
        %v3894 = vmul.f32 %v3871, %v779
        %v3895 = vmul.f32 %v3871, %v783
        %v3896 = vmul.f32 %v3876, %v755
        %v3897 = vmul.f32 %v3876, %v759
        %v3898 = vmul.f32 %v3876, %v763
        %v3899 = vmul.f32 %v3876, %v767
        %v3900 = vmul.f32 %v3876, %v771
        %v3901 = vmul.f32 %v3876, %v775
        %v3902 = vmul.f32 %v3876, %v779
        %v3903 = vmul.f32 %v3876, %v783
        %v3904 = vmul.f32 %v3881, %v755
        %v3905 = vmul.f32 %v3881, %v759
        %v3906 = vmul.f32 %v3881, %v763
        %v3907 = vmul.f32 %v3881, %v767
        %v3908 = vmul.f32 %v3881, %v771
        %v3909 = vmul.f32 %v3881, %v775
        %v3910 = vmul.f32 %v3881, %v779
        %v3911 = vmul.f32 %v3881, %v783
        %v3912 = vmul.f32 %v3886, %v755
        %v3913 = vmul.f32 %v3886, %v759
        %v3914 = vmul.f32 %v3886, %v763
        %v3915 = vmul.f32 %v3886, %v767
        %v3916 = vmul.f32 %v3886, %v771
        %v3917 = vmul.f32 %v3886, %v775
        %v3918 = vmul.f32 %v3886, %v779
        %v3919 = vmul.f32 %v3886, %v783
        %v3920 = vadd.f32 %v3687, %v3888
        %v3921 = vadd.f32 %v3689, %v3889
        %v3922 = vadd.f32 %v3740, %v3890
        %v3923 = vadd.f32 %v3742, %v3891
        %v3924 = vadd.f32 %v3793, %v3892
        %v3925 = vadd.f32 %v3795, %v3893
        %v3926 = vadd.f32 %v3846, %v3894
        %v3927 = vadd.f32 %v3848, %v3895
        %v3928 = vadd.f32 %v3691, %v3896
        %v3929 = vadd.f32 %v3693, %v3897
        %v3930 = vadd.f32 %v3744, %v3898
        %v3931 = vadd.f32 %v3746, %v3899
        %v3932 = vadd.f32 %v3797, %v3900
        %v3933 = vadd.f32 %v3799, %v3901
        %v3934 = vadd.f32 %v3850, %v3902
        %v3935 = vadd.f32 %v3852, %v3903
        %v3936 = vadd.f32 %v3697, %v3904
        %v3937 = vadd.f32 %v3699, %v3905
        %v3938 = vadd.f32 %v3750, %v3906
        %v3939 = vadd.f32 %v3752, %v3907
        %v3940 = vadd.f32 %v3803, %v3908
        %v3941 = vadd.f32 %v3805, %v3909
        %v3942 = vadd.f32 %v3856, %v3910
        %v3943 = vadd.f32 %v3858, %v3911
        %v3944 = vadd.f32 %v3701, %v3912
        %v3945 = vadd.f32 %v3703, %v3913
        %v3946 = vadd.f32 %v3754, %v3914
        %v3947 = vadd.f32 %v3756, %v3915
        %v3948 = vadd.f32 %v3807, %v3916
        %v3949 = vadd.f32 %v3809, %v3917
        %v3950 = vadd.f32 %v3860, %v3918
        %v3951 = vadd.f32 %v3862, %v3919
        %v3952 = vld [vmem:[%s14] sm:$0xff]
        %v3953 = vld [vmem:[%s14 + $0x8] sm:$0xff]
        %v3954 = vld [vmem:[%s14 + $0x10] sm:$0xff]
        %v3955 = vld [vmem:[%s14 + $0x18] sm:$0xff]
        %3957 = vset.pattern.permute.xlu0 0
        %3958 = vperm.xlu0 %3957, %v3952
        %v3959 = vpop.permute.xlu0 %3958
        %3962 = vset.pattern.permute.xlu0 0
        %3963 = vperm.xlu0 %3962, %v3953
        %v3964 = vpop.permute.xlu0 %3963
        %3967 = vset.pattern.permute.xlu0 0
        %3968 = vperm.xlu0 %3967, %v3954
        %v3969 = vpop.permute.xlu0 %3968
        %3972 = vset.pattern.permute.xlu0 0
        %3973 = vperm.xlu0 %3972, %v3955
        %v3974 = vpop.permute.xlu0 %3973
        %v3976 = vadd.f32 %v3920, %v3959
        %v3977 = vadd.f32 %v3921, %v3959
        %v3978 = vadd.f32 %v3922, %v3959
        %v3979 = vadd.f32 %v3923, %v3959
        %v3980 = vadd.f32 %v3924, %v3959
        %v3981 = vadd.f32 %v3925, %v3959
        %v3982 = vadd.f32 %v3926, %v3959
        %v3983 = vadd.f32 %v3927, %v3959
        %v3984 = vadd.f32 %v3928, %v3964
        %v3985 = vadd.f32 %v3929, %v3964
        %v3986 = vadd.f32 %v3930, %v3964
        %v3987 = vadd.f32 %v3931, %v3964
        %v3988 = vadd.f32 %v3932, %v3964
        %v3989 = vadd.f32 %v3933, %v3964
        %v3990 = vadd.f32 %v3934, %v3964
        %v3991 = vadd.f32 %v3935, %v3964
        %v3992 = vadd.f32 %v3936, %v3969
        %v3993 = vadd.f32 %v3937, %v3969
        %v3994 = vadd.f32 %v3938, %v3969
        %v3995 = vadd.f32 %v3939, %v3969
        %v3996 = vadd.f32 %v3940, %v3969
        %v3997 = vadd.f32 %v3941, %v3969
        %v3998 = vadd.f32 %v3942, %v3969
        %v3999 = vadd.f32 %v3943, %v3969
        %v4000 = vadd.f32 %v3944, %v3974
        %v4001 = vadd.f32 %v3945, %v3974
        %v4002 = vadd.f32 %v3946, %v3974
        %v4003 = vadd.f32 %v3947, %v3974
        %v4004 = vadd.f32 %v3948, %v3974
        %v4005 = vadd.f32 %v3949, %v3974
        %v4006 = vadd.f32 %v3950, %v3974
        %v4007 = vadd.f32 %v3951, %v3974
        %v4008 = vpack.c.bf16 %v3984, %v3976
        %v4009 = vpack.c.bf16 %v3985, %v3977
        %v4010 = vpack.c.bf16 %v3986, %v3978
        %v4011 = vpack.c.bf16 %v3987, %v3979
        %v4012 = vpack.c.bf16 %v3988, %v3980
        %v4013 = vpack.c.bf16 %v3989, %v3981
        %v4014 = vpack.c.bf16 %v3990, %v3982
        %v4015 = vpack.c.bf16 %v3991, %v3983
        %v4016 = vpack.c.bf16 %v4000, %v3992
        %v4017 = vpack.c.bf16 %v4001, %v3993
        %v4018 = vpack.c.bf16 %v4002, %v3994
        %v4019 = vpack.c.bf16 %v4003, %v3995
        %v4020 = vpack.c.bf16 %v4004, %v3996
        %v4021 = vpack.c.bf16 %v4005, %v3997
        %v4022 = vpack.c.bf16 %v4006, %v3998
        %v4023 = vpack.c.bf16 %v4007, %v3999
        %v4024 = vmul.bf16 %v4008, 1120420552
        %v4025 = vmul.bf16 %v4009, 1120420552
        %v4026 = vmul.bf16 %v4010, 1120420552
        %v4027 = vmul.bf16 %v4011, 1120420552
        %v4028 = vmul.bf16 %v4012, 1120420552
        %v4029 = vmul.bf16 %v4013, 1120420552
        %v4030 = vmul.bf16 %v4014, 1120420552
        %v4031 = vmul.bf16 %v4015, 1120420552
        %v4032 = vmul.bf16 %v4016, 1120420552
        %v4033 = vmul.bf16 %v4017, 1120420552
        %v4034 = vmul.bf16 %v4018, 1120420552
        %v4035 = vmul.bf16 %v4019, 1120420552
        %v4036 = vmul.bf16 %v4020, 1120420552
        %v4037 = vmul.bf16 %v4021, 1120420552
        %v4038 = vmul.bf16 %v4022, 1120420552
        %v4039 = vmul.bf16 %v4023, 1120420552
        %v4040 = vmin.bf16 %v4024, 1101021600
        %v4041 = vmin.bf16 %v4025, 1101021600
        %v4042 = vmin.bf16 %v4026, 1101021600
        %v4043 = vmin.bf16 %v4027, 1101021600
        %v4044 = vmin.bf16 %v4028, 1101021600
        %v4045 = vmin.bf16 %v4029, 1101021600
        %v4046 = vmin.bf16 %v4030, 1101021600
        %v4047 = vmin.bf16 %v4031, 1101021600
        %v4048 = vmin.bf16 %v4032, 1101021600
        %v4049 = vmin.bf16 %v4033, 1101021600
        %v4050 = vmin.bf16 %v4034, 1101021600
        %v4051 = vmin.bf16 %v4035, 1101021600
        %v4052 = vmin.bf16 %v4036, 1101021600
        %v4053 = vmin.bf16 %v4037, 1101021600
        %v4054 = vmin.bf16 %v4038, 1101021600
        %v4055 = vmin.bf16 %v4039, 1101021600
        %v4057 = vmul.bf16 %v4040, 1069105081
        %v4058 = vpow.bf16.pop %v4057
        %v4060 = vmul.bf16 %v4041, 1069105081
        %v4061 = vpow.bf16.pop %v4060
        %v4063 = vmul.bf16 %v4042, 1069105081
        %v4064 = vpow.bf16.pop %v4063
        %v4066 = vmul.bf16 %v4043, 1069105081
        %v4067 = vpow.bf16.pop %v4066
        %v4069 = vmul.bf16 %v4044, 1069105081
        %v4070 = vpow.bf16.pop %v4069
        %v4072 = vmul.bf16 %v4045, 1069105081
        %v4073 = vpow.bf16.pop %v4072
        %v4075 = vmul.bf16 %v4046, 1069105081
        %v4076 = vpow.bf16.pop %v4075
        %v4078 = vmul.bf16 %v4047, 1069105081
        %v4079 = vpow.bf16.pop %v4078
        %v4081 = vmul.bf16 %v4048, 1069105081
        %v4082 = vpow.bf16.pop %v4081
        %v4084 = vmul.bf16 %v4049, 1069105081
        %v4085 = vpow.bf16.pop %v4084
        %v4087 = vmul.bf16 %v4050, 1069105081
        %v4088 = vpow.bf16.pop %v4087
        %v4090 = vmul.bf16 %v4051, 1069105081
        %v4091 = vpow.bf16.pop %v4090
        %v4093 = vmul.bf16 %v4052, 1069105081
        %v4094 = vpow.bf16.pop %v4093
        %v4096 = vmul.bf16 %v4053, 1069105081
        %v4097 = vpow.bf16.pop %v4096
        %v4099 = vmul.bf16 %v4054, 1069105081
        %v4100 = vpow.bf16.pop %v4099
        %v4102 = vmul.bf16 %v4055, 1069105081
        %v4103 = vpow.bf16.pop %v4102
        %v4104 = vadd.bf16 %v4058, 1065369472
        %v4105 = vadd.bf16 %v4061, 1065369472
        %v4106 = vadd.bf16 %v4064, 1065369472
        %v4107 = vadd.bf16 %v4067, 1065369472
        %v4108 = vadd.bf16 %v4070, 1065369472
        %v4109 = vadd.bf16 %v4073, 1065369472
        %v4110 = vadd.bf16 %v4076, 1065369472
        %v4111 = vadd.bf16 %v4079, 1065369472
        %v4112 = vadd.bf16 %v4082, 1065369472
        %v4113 = vadd.bf16 %v4085, 1065369472
        %v4114 = vadd.bf16 %v4088, 1065369472
        %v4115 = vadd.bf16 %v4091, 1065369472
        %v4116 = vadd.bf16 %v4094, 1065369472
        %v4117 = vadd.bf16 %v4097, 1065369472
        %v4118 = vadd.bf16 %v4100, 1065369472
        %v4119 = vadd.bf16 %v4103, 1065369472
        %v4120 = vlog2.bf16.pop %v4104
        %v4122 = vmul.bf16 %v4120, 1060192049
        %v4123 = vlog2.bf16.pop %v4105
        %v4125 = vmul.bf16 %v4123, 1060192049
        %v4126 = vlog2.bf16.pop %v4106
        %v4128 = vmul.bf16 %v4126, 1060192049
        %v4129 = vlog2.bf16.pop %v4107
        %v4131 = vmul.bf16 %v4129, 1060192049
        %v4132 = vlog2.bf16.pop %v4108
        %v4134 = vmul.bf16 %v4132, 1060192049
        %v4135 = vlog2.bf16.pop %v4109
        %v4137 = vmul.bf16 %v4135, 1060192049
        %v4138 = vlog2.bf16.pop %v4110
        %v4140 = vmul.bf16 %v4138, 1060192049
        %v4141 = vlog2.bf16.pop %v4111
        %v4143 = vmul.bf16 %v4141, 1060192049
        %v4144 = vlog2.bf16.pop %v4112
        %v4146 = vmul.bf16 %v4144, 1060192049
        %v4147 = vlog2.bf16.pop %v4113
        %v4149 = vmul.bf16 %v4147, 1060192049
        %v4150 = vlog2.bf16.pop %v4114
        %v4152 = vmul.bf16 %v4150, 1060192049
        %v4153 = vlog2.bf16.pop %v4115
        %v4155 = vmul.bf16 %v4153, 1060192049
        %v4156 = vlog2.bf16.pop %v4116
        %v4158 = vmul.bf16 %v4156, 1060192049
        %v4159 = vlog2.bf16.pop %v4117
        %v4161 = vmul.bf16 %v4159, 1060192049
        %v4162 = vlog2.bf16.pop %v4118
        %v4164 = vmul.bf16 %v4162, 1060192049
        %v4165 = vlog2.bf16.pop %v4119
        %v4167 = vmul.bf16 %v4165, 1060192049
        %v4168 = vmul.bf16 %v4122, 1009007652
        %v4169 = vmul.bf16 %v4125, 1009007652
        %v4170 = vmul.bf16 %v4128, 1009007652
        %v4171 = vmul.bf16 %v4131, 1009007652
        %v4172 = vmul.bf16 %v4134, 1009007652
        %v4173 = vmul.bf16 %v4137, 1009007652
        %v4174 = vmul.bf16 %v4140, 1009007652
        %v4175 = vmul.bf16 %v4143, 1009007652
        %v4176 = vmul.bf16 %v4146, 1009007652
        %v4177 = vmul.bf16 %v4149, 1009007652
        %v4178 = vmul.bf16 %v4152, 1009007652
        %v4179 = vmul.bf16 %v4155, 1009007652
        %v4180 = vmul.bf16 %v4158, 1009007652
        %v4181 = vmul.bf16 %v4161, 1009007652
        %v4182 = vmul.bf16 %v4164, 1009007652
        %v4183 = vmul.bf16 %v4167, 1009007652
        %vm4184 = vcmp.gt.bf16.partialorder %v4024, 1101021600
        %vm4185 = vcmp.gt.bf16.partialorder %v4025, 1101021600
        %vm4186 = vcmp.gt.bf16.partialorder %v4026, 1101021600
        %vm4187 = vcmp.gt.bf16.partialorder %v4027, 1101021600
        %vm4188 = vcmp.gt.bf16.partialorder %v4028, 1101021600
        %vm4189 = vcmp.gt.bf16.partialorder %v4029, 1101021600
        %vm4190 = vcmp.gt.bf16.partialorder %v4030, 1101021600
        %vm4191 = vcmp.gt.bf16.partialorder %v4031, 1101021600
        %vm4192 = vcmp.gt.bf16.partialorder %v4032, 1101021600
        %vm4193 = vcmp.gt.bf16.partialorder %v4033, 1101021600
        %vm4194 = vcmp.gt.bf16.partialorder %v4034, 1101021600
        %vm4195 = vcmp.gt.bf16.partialorder %v4035, 1101021600
        %vm4196 = vcmp.gt.bf16.partialorder %v4036, 1101021600
        %vm4197 = vcmp.gt.bf16.partialorder %v4037, 1101021600
        %vm4198 = vcmp.gt.bf16.partialorder %v4038, 1101021600
        %vm4199 = vcmp.gt.bf16.partialorder %v4039, 1101021600
        %v4200 = vsel %vm4184, %v4008, %v4168
        %v4201 = vsel %vm4185, %v4009, %v4169
        %v4202 = vsel %vm4186, %v4010, %v4170
        %v4203 = vsel %vm4187, %v4011, %v4171
        %v4204 = vsel %vm4188, %v4012, %v4172
        %v4205 = vsel %vm4189, %v4013, %v4173
        %v4206 = vsel %vm4190, %v4014, %v4174
        %v4207 = vsel %vm4191, %v4015, %v4175
        %v4208 = vsel %vm4192, %v4016, %v4176
        %v4209 = vsel %vm4193, %v4017, %v4177
        %v4210 = vsel %vm4194, %v4018, %v4178
        %v4211 = vsel %vm4195, %v4019, %v4179
        %v4212 = vsel %vm4196, %v4020, %v4180
        %v4213 = vsel %vm4197, %v4021, %v4181
        %v4214 = vsel %vm4198, %v4022, %v4182
        %v4215 = vsel %vm4199, %v4023, %v4183
        %v4216 = vunpack.c.l.bf16 %v4200
        %v4217 = vunpack.c.l.bf16 %v4201
        %v4218 = vunpack.c.l.bf16 %v4202
        %v4219 = vunpack.c.l.bf16 %v4203
        %v4220 = vunpack.c.l.bf16 %v4204
        %v4221 = vunpack.c.l.bf16 %v4205
        %v4222 = vunpack.c.l.bf16 %v4206
        %v4223 = vunpack.c.l.bf16 %v4207
        %v4224 = vunpack.c.h.bf16 %v4200
        %v4225 = vunpack.c.h.bf16 %v4201
        %v4226 = vunpack.c.h.bf16 %v4202
        %v4227 = vunpack.c.h.bf16 %v4203
        %v4228 = vunpack.c.h.bf16 %v4204
        %v4229 = vunpack.c.h.bf16 %v4205
        %v4230 = vunpack.c.h.bf16 %v4206
        %v4231 = vunpack.c.h.bf16 %v4207
        %v4232 = vunpack.c.l.bf16 %v4208
        %v4233 = vunpack.c.l.bf16 %v4209
        %v4234 = vunpack.c.l.bf16 %v4210
        %v4235 = vunpack.c.l.bf16 %v4211
        %v4236 = vunpack.c.l.bf16 %v4212
        %v4237 = vunpack.c.l.bf16 %v4213
        %v4238 = vunpack.c.l.bf16 %v4214
        %v4239 = vunpack.c.l.bf16 %v4215
        %v4240 = vunpack.c.h.bf16 %v4208
        %v4241 = vunpack.c.h.bf16 %v4209
        %v4242 = vunpack.c.h.bf16 %v4210
        %v4243 = vunpack.c.h.bf16 %v4211
        %v4244 = vunpack.c.h.bf16 %v4212
        %v4245 = vunpack.c.h.bf16 %v4213
        %v4246 = vunpack.c.h.bf16 %v4214
        %v4247 = vunpack.c.h.bf16 %v4215
        %4248 = vxpose.xlu0.b32.start [1/16] %v4216, 128
        %4249 = vxpose.xlu0.b32.cont [2/16] %v4224, 128
        %4250 = vxpose.xlu0.b32.cont [3/16] %v4232, 128
        %4251 = vxpose.xlu0.b32.cont [4/16] %v4240, 128
        %4252 = vxpose.xlu0.b32.cont [5/16] 0.0, 128
        %4253 = vxpose.xlu0.b32.cont [6/16] 0.0, 128
        %4254 = vxpose.xlu0.b32.cont [7/16] 0.0, 128
        %4255 = vxpose.xlu0.b32.cont [8/16] 0.0, 128
        %4256 = vxpose.xlu0.b32.cont [9/16] 0.0, 128
        %4257 = vxpose.xlu0.b32.cont [10/16] 0.0, 128
        %4258 = vxpose.xlu0.b32.cont [11/16] 0.0, 128
        %4259 = vxpose.xlu0.b32.cont [12/16] 0.0, 128
        %4260 = vxpose.xlu0.b32.cont [13/16] 0.0, 128
        %4261 = vxpose.xlu0.b32.cont [14/16] 0.0, 128
        %4262 = vxpose.xlu0.b32.cont [15/16] 0.0, 128
        %4263 = vxpose.xlu0.b32.end [16/16] 0.0, 128
        %v4264 = vpop.trf.xlu0
        %v4265 = vpop.trf.xlu0
        %v4266 = vpop.trf.xlu0
        %v4267 = vpop.trf.xlu0
        %v4268 = vpop.trf.xlu0
        %v4269 = vpop.trf.xlu0
        %v4270 = vpop.trf.xlu0
        %v4271 = vpop.trf.xlu0
        %v4272 = vpop.trf.xlu0
        %v4273 = vpop.trf.xlu0
        %v4274 = vpop.trf.xlu0
        %v4275 = vpop.trf.xlu0
        %v4276 = vpop.trf.xlu0
        %v4277 = vpop.trf.xlu0
        %v4278 = vpop.trf.xlu0
        %v4279 = vpop.trf.xlu0
        %4280 = vxpose.xlu0.b32.start [1/16] %v4217, 128
        %4281 = vxpose.xlu0.b32.cont [2/16] %v4225, 128
        %4282 = vxpose.xlu0.b32.cont [3/16] %v4233, 128
        %4283 = vxpose.xlu0.b32.cont [4/16] %v4241, 128
        %4284 = vxpose.xlu0.b32.cont [5/16] 0.0, 128
        %4285 = vxpose.xlu0.b32.cont [6/16] 0.0, 128
        %4286 = vxpose.xlu0.b32.cont [7/16] 0.0, 128
        %4287 = vxpose.xlu0.b32.cont [8/16] 0.0, 128
        %4288 = vxpose.xlu0.b32.cont [9/16] 0.0, 128
        %4289 = vxpose.xlu0.b32.cont [10/16] 0.0, 128
        %4290 = vxpose.xlu0.b32.cont [11/16] 0.0, 128
        %4291 = vxpose.xlu0.b32.cont [12/16] 0.0, 128
        %4292 = vxpose.xlu0.b32.cont [13/16] 0.0, 128
        %4293 = vxpose.xlu0.b32.cont [14/16] 0.0, 128
        %4294 = vxpose.xlu0.b32.cont [15/16] 0.0, 128
        %4295 = vxpose.xlu0.b32.end [16/16] 0.0, 128
        %v4296 = vpop.trf.xlu0
        %v4297 = vpop.trf.xlu0
        %v4298 = vpop.trf.xlu0
        %v4299 = vpop.trf.xlu0
        %v4300 = vpop.trf.xlu0
        %v4301 = vpop.trf.xlu0
        %v4302 = vpop.trf.xlu0
        %v4303 = vpop.trf.xlu0
        %v4304 = vpop.trf.xlu0
        %v4305 = vpop.trf.xlu0
        %v4306 = vpop.trf.xlu0
        %v4307 = vpop.trf.xlu0
        %v4308 = vpop.trf.xlu0
        %v4309 = vpop.trf.xlu0
        %v4310 = vpop.trf.xlu0
        %v4311 = vpop.trf.xlu0
        %4312 = vxpose.xlu0.b32.start [1/16] %v4218, 128
        %4313 = vxpose.xlu0.b32.cont [2/16] %v4226, 128
        %4314 = vxpose.xlu0.b32.cont [3/16] %v4234, 128
        %4315 = vxpose.xlu0.b32.cont [4/16] %v4242, 128
        %4316 = vxpose.xlu0.b32.cont [5/16] 0.0, 128
        %4317 = vxpose.xlu0.b32.cont [6/16] 0.0, 128
        %4318 = vxpose.xlu0.b32.cont [7/16] 0.0, 128
        %4319 = vxpose.xlu0.b32.cont [8/16] 0.0, 128
        %4320 = vxpose.xlu0.b32.cont [9/16] 0.0, 128
        %4321 = vxpose.xlu0.b32.cont [10/16] 0.0, 128
        %4322 = vxpose.xlu0.b32.cont [11/16] 0.0, 128
        %4323 = vxpose.xlu0.b32.cont [12/16] 0.0, 128
        %4324 = vxpose.xlu0.b32.cont [13/16] 0.0, 128
        %4325 = vxpose.xlu0.b32.cont [14/16] 0.0, 128
        %4326 = vxpose.xlu0.b32.cont [15/16] 0.0, 128
        %4327 = vxpose.xlu0.b32.end [16/16] 0.0, 128
        %v4328 = vpop.trf.xlu0
        %v4329 = vpop.trf.xlu0
        %v4330 = vpop.trf.xlu0
        %v4331 = vpop.trf.xlu0
        %v4332 = vpop.trf.xlu0
        %v4333 = vpop.trf.xlu0
        %v4334 = vpop.trf.xlu0
        %v4335 = vpop.trf.xlu0
        %v4336 = vpop.trf.xlu0
        %v4337 = vpop.trf.xlu0
        %v4338 = vpop.trf.xlu0
        %v4339 = vpop.trf.xlu0
        %v4340 = vpop.trf.xlu0
        %v4341 = vpop.trf.xlu0
        %v4342 = vpop.trf.xlu0
        %v4343 = vpop.trf.xlu0
        %4344 = vxpose.xlu0.b32.start [1/16] %v4219, 128
        %4345 = vxpose.xlu0.b32.cont [2/16] %v4227, 128
        %4346 = vxpose.xlu0.b32.cont [3/16] %v4235, 128
        %4347 = vxpose.xlu0.b32.cont [4/16] %v4243, 128
        %4348 = vxpose.xlu0.b32.cont [5/16] 0.0, 128
        %4349 = vxpose.xlu0.b32.cont [6/16] 0.0, 128
        %4350 = vxpose.xlu0.b32.cont [7/16] 0.0, 128
        %4351 = vxpose.xlu0.b32.cont [8/16] 0.0, 128
        %4352 = vxpose.xlu0.b32.cont [9/16] 0.0, 128
        %4353 = vxpose.xlu0.b32.cont [10/16] 0.0, 128
        %4354 = vxpose.xlu0.b32.cont [11/16] 0.0, 128
        %4355 = vxpose.xlu0.b32.cont [12/16] 0.0, 128
        %4356 = vxpose.xlu0.b32.cont [13/16] 0.0, 128
        %4357 = vxpose.xlu0.b32.cont [14/16] 0.0, 128
        %4358 = vxpose.xlu0.b32.cont [15/16] 0.0, 128
        %4359 = vxpose.xlu0.b32.end [16/16] 0.0, 128
        %v4360 = vpop.trf.xlu0
        %v4361 = vpop.trf.xlu0
        %v4362 = vpop.trf.xlu0
        %v4363 = vpop.trf.xlu0
        %v4364 = vpop.trf.xlu0
        %v4365 = vpop.trf.xlu0
        %v4366 = vpop.trf.xlu0
        %v4367 = vpop.trf.xlu0
        %v4368 = vpop.trf.xlu0
        %v4369 = vpop.trf.xlu0
        %v4370 = vpop.trf.xlu0
        %v4371 = vpop.trf.xlu0
        %v4372 = vpop.trf.xlu0
        %v4373 = vpop.trf.xlu0
        %v4374 = vpop.trf.xlu0
        %v4375 = vpop.trf.xlu0
        %4376 = vxpose.xlu0.b32.start [1/16] %v4220, 128
        %4377 = vxpose.xlu0.b32.cont [2/16] %v4228, 128
        %4378 = vxpose.xlu0.b32.cont [3/16] %v4236, 128
        %4379 = vxpose.xlu0.b32.cont [4/16] %v4244, 128
        %4380 = vxpose.xlu0.b32.cont [5/16] 0.0, 128
        %4381 = vxpose.xlu0.b32.cont [6/16] 0.0, 128
        %4382 = vxpose.xlu0.b32.cont [7/16] 0.0, 128
        %4383 = vxpose.xlu0.b32.cont [8/16] 0.0, 128
        %4384 = vxpose.xlu0.b32.cont [9/16] 0.0, 128
        %4385 = vxpose.xlu0.b32.cont [10/16] 0.0, 128
        %4386 = vxpose.xlu0.b32.cont [11/16] 0.0, 128
        %4387 = vxpose.xlu0.b32.cont [12/16] 0.0, 128
        %4388 = vxpose.xlu0.b32.cont [13/16] 0.0, 128
        %4389 = vxpose.xlu0.b32.cont [14/16] 0.0, 128
        %4390 = vxpose.xlu0.b32.cont [15/16] 0.0, 128
        %4391 = vxpose.xlu0.b32.end [16/16] 0.0, 128
        %v4392 = vpop.trf.xlu0
        %v4393 = vpop.trf.xlu0
        %v4394 = vpop.trf.xlu0
        %v4395 = vpop.trf.xlu0
        %v4396 = vpop.trf.xlu0
        %v4397 = vpop.trf.xlu0
        %v4398 = vpop.trf.xlu0
        %v4399 = vpop.trf.xlu0
        %v4400 = vpop.trf.xlu0
        %v4401 = vpop.trf.xlu0
        %v4402 = vpop.trf.xlu0
        %v4403 = vpop.trf.xlu0
        %v4404 = vpop.trf.xlu0
        %v4405 = vpop.trf.xlu0
        %v4406 = vpop.trf.xlu0
        %v4407 = vpop.trf.xlu0
        %4408 = vxpose.xlu0.b32.start [1/16] %v4221, 128
        %4409 = vxpose.xlu0.b32.cont [2/16] %v4229, 128
        %4410 = vxpose.xlu0.b32.cont [3/16] %v4237, 128
        %4411 = vxpose.xlu0.b32.cont [4/16] %v4245, 128
        %4412 = vxpose.xlu0.b32.cont [5/16] 0.0, 128
        %4413 = vxpose.xlu0.b32.cont [6/16] 0.0, 128
        %4414 = vxpose.xlu0.b32.cont [7/16] 0.0, 128
        %4415 = vxpose.xlu0.b32.cont [8/16] 0.0, 128
        %4416 = vxpose.xlu0.b32.cont [9/16] 0.0, 128
        %4417 = vxpose.xlu0.b32.cont [10/16] 0.0, 128
        %4418 = vxpose.xlu0.b32.cont [11/16] 0.0, 128
        %4419 = vxpose.xlu0.b32.cont [12/16] 0.0, 128
        %4420 = vxpose.xlu0.b32.cont [13/16] 0.0, 128
        %4421 = vxpose.xlu0.b32.cont [14/16] 0.0, 128
        %4422 = vxpose.xlu0.b32.cont [15/16] 0.0, 128
        %4423 = vxpose.xlu0.b32.end [16/16] 0.0, 128
        %v4424 = vpop.trf.xlu0
        %v4425 = vpop.trf.xlu0
        %v4426 = vpop.trf.xlu0
        %v4427 = vpop.trf.xlu0
        %v4428 = vpop.trf.xlu0
        %v4429 = vpop.trf.xlu0
        %v4430 = vpop.trf.xlu0
        %v4431 = vpop.trf.xlu0
        %v4432 = vpop.trf.xlu0
        %v4433 = vpop.trf.xlu0
        %v4434 = vpop.trf.xlu0
        %v4435 = vpop.trf.xlu0
        %v4436 = vpop.trf.xlu0
        %v4437 = vpop.trf.xlu0
        %v4438 = vpop.trf.xlu0
        %v4439 = vpop.trf.xlu0
        %4440 = vxpose.xlu0.b32.start [1/16] %v4222, 128
        %4441 = vxpose.xlu0.b32.cont [2/16] %v4230, 128
        %4442 = vxpose.xlu0.b32.cont [3/16] %v4238, 128
        %4443 = vxpose.xlu0.b32.cont [4/16] %v4246, 128
        %4444 = vxpose.xlu0.b32.cont [5/16] 0.0, 128
        %4445 = vxpose.xlu0.b32.cont [6/16] 0.0, 128
        %4446 = vxpose.xlu0.b32.cont [7/16] 0.0, 128
        %4447 = vxpose.xlu0.b32.cont [8/16] 0.0, 128
        %4448 = vxpose.xlu0.b32.cont [9/16] 0.0, 128
        %4449 = vxpose.xlu0.b32.cont [10/16] 0.0, 128
        %4450 = vxpose.xlu0.b32.cont [11/16] 0.0, 128
        %4451 = vxpose.xlu0.b32.cont [12/16] 0.0, 128
        %4452 = vxpose.xlu0.b32.cont [13/16] 0.0, 128
        %4453 = vxpose.xlu0.b32.cont [14/16] 0.0, 128
        %4454 = vxpose.xlu0.b32.cont [15/16] 0.0, 128
        %4455 = vxpose.xlu0.b32.end [16/16] 0.0, 128
        %v4456 = vpop.trf.xlu0
        %v4457 = vpop.trf.xlu0
        %v4458 = vpop.trf.xlu0
        %v4459 = vpop.trf.xlu0
        %v4460 = vpop.trf.xlu0
        %v4461 = vpop.trf.xlu0
        %v4462 = vpop.trf.xlu0
        %v4463 = vpop.trf.xlu0
        %v4464 = vpop.trf.xlu0
        %v4465 = vpop.trf.xlu0
        %v4466 = vpop.trf.xlu0
        %v4467 = vpop.trf.xlu0
        %v4468 = vpop.trf.xlu0
        %v4469 = vpop.trf.xlu0
        %v4470 = vpop.trf.xlu0
        %v4471 = vpop.trf.xlu0
        %4472 = vxpose.xlu0.b32.start [1/16] %v4223, 128
        %4473 = vxpose.xlu0.b32.cont [2/16] %v4231, 128
        %4474 = vxpose.xlu0.b32.cont [3/16] %v4239, 128
        %4475 = vxpose.xlu0.b32.cont [4/16] %v4247, 128
        %4476 = vxpose.xlu0.b32.cont [5/16] 0.0, 128
        %4477 = vxpose.xlu0.b32.cont [6/16] 0.0, 128
        %4478 = vxpose.xlu0.b32.cont [7/16] 0.0, 128
        %4479 = vxpose.xlu0.b32.cont [8/16] 0.0, 128
        %4480 = vxpose.xlu0.b32.cont [9/16] 0.0, 128
        %4481 = vxpose.xlu0.b32.cont [10/16] 0.0, 128
        %4482 = vxpose.xlu0.b32.cont [11/16] 0.0, 128
        %4483 = vxpose.xlu0.b32.cont [12/16] 0.0, 128
        %4484 = vxpose.xlu0.b32.cont [13/16] 0.0, 128
        %4485 = vxpose.xlu0.b32.cont [14/16] 0.0, 128
        %4486 = vxpose.xlu0.b32.cont [15/16] 0.0, 128
        %4487 = vxpose.xlu0.b32.end [16/16] 0.0, 128
        %v4488 = vpop.trf.xlu0
        %v4489 = vpop.trf.xlu0
        %v4490 = vpop.trf.xlu0
        %v4491 = vpop.trf.xlu0
        %v4492 = vpop.trf.xlu0
        %v4493 = vpop.trf.xlu0
        %v4494 = vpop.trf.xlu0
        %v4495 = vpop.trf.xlu0
        %v4496 = vpop.trf.xlu0
        %v4497 = vpop.trf.xlu0
        %v4498 = vpop.trf.xlu0
        %v4499 = vpop.trf.xlu0
        %v4500 = vpop.trf.xlu0
        %v4501 = vpop.trf.xlu0
        %v4502 = vpop.trf.xlu0
        %v4503 = vpop.trf.xlu0
        %v4504 = vpack.c.bf16 %v4265, %v4264
        %v4505 = vpack.c.bf16 %v4267, %v4266
        %v4506 = vpack.c.bf16 %v4269, %v4268
        %v4507 = vpack.c.bf16 %v4271, %v4270
        %v4508 = vpack.c.bf16 %v4273, %v4272
        %v4509 = vpack.c.bf16 %v4275, %v4274
        %v4510 = vpack.c.bf16 %v4277, %v4276
        %v4511 = vpack.c.bf16 %v4279, %v4278
        %v4512 = vpack.c.bf16 %v4297, %v4296
        %v4513 = vpack.c.bf16 %v4299, %v4298
        %v4514 = vpack.c.bf16 %v4301, %v4300
        %v4515 = vpack.c.bf16 %v4303, %v4302
        %v4516 = vpack.c.bf16 %v4305, %v4304
        %v4517 = vpack.c.bf16 %v4307, %v4306
        %v4518 = vpack.c.bf16 %v4309, %v4308
        %v4519 = vpack.c.bf16 %v4311, %v4310
        %v4520 = vpack.c.bf16 %v4329, %v4328
        %v4521 = vpack.c.bf16 %v4331, %v4330
        %v4522 = vpack.c.bf16 %v4333, %v4332
        %v4523 = vpack.c.bf16 %v4335, %v4334
        %v4524 = vpack.c.bf16 %v4337, %v4336
        %v4525 = vpack.c.bf16 %v4339, %v4338
        %v4526 = vpack.c.bf16 %v4341, %v4340
        %v4527 = vpack.c.bf16 %v4343, %v4342
        %v4528 = vpack.c.bf16 %v4361, %v4360
        %v4529 = vpack.c.bf16 %v4363, %v4362
        %v4530 = vpack.c.bf16 %v4365, %v4364
        %v4531 = vpack.c.bf16 %v4367, %v4366
        %v4532 = vpack.c.bf16 %v4369, %v4368
        %v4533 = vpack.c.bf16 %v4371, %v4370
        %v4534 = vpack.c.bf16 %v4373, %v4372
        %v4535 = vpack.c.bf16 %v4375, %v4374
        %v4536 = vpack.c.bf16 %v4393, %v4392
        %v4537 = vpack.c.bf16 %v4395, %v4394
        %v4538 = vpack.c.bf16 %v4397, %v4396
        %v4539 = vpack.c.bf16 %v4399, %v4398
        %v4540 = vpack.c.bf16 %v4401, %v4400
        %v4541 = vpack.c.bf16 %v4403, %v4402
        %v4542 = vpack.c.bf16 %v4405, %v4404
        %v4543 = vpack.c.bf16 %v4407, %v4406
        %v4544 = vpack.c.bf16 %v4425, %v4424
        %v4545 = vpack.c.bf16 %v4427, %v4426
        %v4546 = vpack.c.bf16 %v4429, %v4428
        %v4547 = vpack.c.bf16 %v4431, %v4430
        %v4548 = vpack.c.bf16 %v4433, %v4432
        %v4549 = vpack.c.bf16 %v4435, %v4434
        %v4550 = vpack.c.bf16 %v4437, %v4436
        %v4551 = vpack.c.bf16 %v4439, %v4438
        %v4552 = vpack.c.bf16 %v4457, %v4456
        %v4553 = vpack.c.bf16 %v4459, %v4458
        %v4554 = vpack.c.bf16 %v4461, %v4460
        %v4555 = vpack.c.bf16 %v4463, %v4462
        %v4556 = vpack.c.bf16 %v4465, %v4464
        %v4557 = vpack.c.bf16 %v4467, %v4466
        %v4558 = vpack.c.bf16 %v4469, %v4468
        %v4559 = vpack.c.bf16 %v4471, %v4470
        %v4560 = vpack.c.bf16 %v4489, %v4488
        %v4561 = vpack.c.bf16 %v4491, %v4490
        %v4562 = vpack.c.bf16 %v4493, %v4492
        %v4563 = vpack.c.bf16 %v4495, %v4494
        %v4564 = vpack.c.bf16 %v4497, %v4496
        %v4565 = vpack.c.bf16 %v4499, %v4498
        %v4566 = vpack.c.bf16 %v4501, %v4500
        %v4567 = vpack.c.bf16 %v4503, %v4502
        %v4568 = vld [vmem:[%s15] sm:$0xf]
        %v4569 = vld [vmem:[%s15 + $0x4] sm:$0x1]
        %v4570 = vld [vmem:[%s16] sm:$0x1]
        %v4572 = vlaneseq
        %v4573 = vshrl.u32 %v4572, 7
        %v4574 = vsub.s32 0, %v4573
        %v4575 = vrot.slane %v4570, %v4574
        %v4579 = vunpack.c.l.b16 %v4568
        %v4580 = vunpack.c.l.b16 %v4569
        %v4581 = vpack.c.b16 %v4580, %v4579
        %v4583 = vsel %vm1879, %v4504, 0
        %v4586 = vsel %vm1879, %v4505, 0
        %v4589 = vsel %vm1879, %v4506, 0
        %v4592 = vsel %vm1879, %v4507, 0
        %v4595 = vsel %vm1879, %v4508, 0
        %v4598 = vsel %vm1879, %v4509, 0
        %v4601 = vsel %vm1879, %v4510, 0
        %v4604 = vsel %vm1879, %v4511, 0
        %v4607 = vsel %vm1879, %v4512, 0
        %v4610 = vsel %vm1879, %v4513, 0
        %v4613 = vsel %vm1879, %v4514, 0
        %v4616 = vsel %vm1879, %v4515, 0
        %v4619 = vsel %vm1879, %v4516, 0
        %v4622 = vsel %vm1879, %v4517, 0
        %v4625 = vsel %vm1879, %v4518, 0
        %v4628 = vsel %vm1879, %v4519, 0
        %v4631 = vsel %vm1879, %v4520, 0
        %v4634 = vsel %vm1879, %v4521, 0
        %v4637 = vsel %vm1879, %v4522, 0
        %v4640 = vsel %vm1879, %v4523, 0
        %v4643 = vsel %vm1879, %v4524, 0
        %v4646 = vsel %vm1879, %v4525, 0
        %v4649 = vsel %vm1879, %v4526, 0
        %v4652 = vsel %vm1879, %v4527, 0
        %v4655 = vsel %vm1879, %v4528, 0
        %v4658 = vsel %vm1879, %v4529, 0
        %v4661 = vsel %vm1879, %v4530, 0
        %v4664 = vsel %vm1879, %v4531, 0
        %v4667 = vsel %vm1879, %v4532, 0
        %v4670 = vsel %vm1879, %v4533, 0
        %v4673 = vsel %vm1879, %v4534, 0
        %v4676 = vsel %vm1879, %v4535, 0
        %v4679 = vsel %vm1879, %v4536, 0
        %v4682 = vsel %vm1879, %v4537, 0
        %v4685 = vsel %vm1879, %v4538, 0
        %v4688 = vsel %vm1879, %v4539, 0
        %v4691 = vsel %vm1879, %v4540, 0
        %v4694 = vsel %vm1879, %v4541, 0
        %v4697 = vsel %vm1879, %v4542, 0
        %v4700 = vsel %vm1879, %v4543, 0
        %v4703 = vsel %vm1879, %v4544, 0
        %v4706 = vsel %vm1879, %v4545, 0
        %v4709 = vsel %vm1879, %v4546, 0
        %v4712 = vsel %vm1879, %v4547, 0
        %v4715 = vsel %vm1879, %v4548, 0
        %v4718 = vsel %vm1879, %v4549, 0
        %v4721 = vsel %vm1879, %v4550, 0
        %v4724 = vsel %vm1879, %v4551, 0
        %v4727 = vsel %vm1879, %v4552, 0
        %v4730 = vsel %vm1879, %v4553, 0
        %v4733 = vsel %vm1879, %v4554, 0
        %v4736 = vsel %vm1879, %v4555, 0
        %v4739 = vsel %vm1879, %v4556, 0
        %v4742 = vsel %vm1879, %v4557, 0
        %v4745 = vsel %vm1879, %v4558, 0
        %v4748 = vsel %vm1879, %v4559, 0
        %v4751 = vsel %vm1879, %v4560, 0
        %v4754 = vsel %vm1879, %v4561, 0
        %v4757 = vsel %vm1879, %v4562, 0
        %v4760 = vsel %vm1879, %v4563, 0
        %v4763 = vsel %vm1879, %v4564, 0
        %v4766 = vsel %vm1879, %v4565, 0
        %v4769 = vsel %vm1879, %v4566, 0
        %v4772 = vsel %vm1879, %v4567, 0
        %v4775 = vsel %vm1879, %v4581, 0
        %4777 = vmatprep.subr.bf16.mxu0 0
        %4778 = vmatpush1.bf16.xpose.msra.mxu0 %v4775
        %4779 = vmatprep.subr.bf16.mxu0 0
        %4780 = vmatpush1.bf16.xpose.msra.mxu0 0
        %4781 = vmatprep.subr.bf16.mxu0 0
        %4782 = vmatpush1.bf16.xpose.msra.mxu0 0
        %4783 = vmatprep.subr.bf16.mxu0 0
        %4784 = vmatpush1.bf16.xpose.msra.mxu0 0
        %4785 = vmatprep.subr.bf16.mxu0 0
        %4786 = vmatpush1.bf16.xpose.msra.mxu0 0
        %4787 = vmatprep.subr.bf16.mxu0 0
        %4788 = vmatpush1.bf16.xpose.msra.mxu0 0
        %4789 = vmatprep.subr.bf16.mxu0 0
        %4790 = vmatpush1.bf16.xpose.msra.mxu0 0
        %4791 = vmatprep.subr.bf16.mxu0 0
        %4792 = vmatpush1.bf16.xpose.msra.mxu0 0
        %4793 = vmatprep.subr.bf16.mxu0 0
        %4794 = vmatpush1.bf16.xpose.msra.mxu0 0
        %4795 = vmatprep.subr.bf16.mxu0 0
        %4796 = vmatpush1.bf16.xpose.msra.mxu0 0
        %4797 = vmatprep.subr.bf16.mxu0 0
        %4798 = vmatpush1.bf16.xpose.msra.mxu0 0
        %4799 = vmatprep.subr.bf16.mxu0 0
        %4800 = vmatpush1.bf16.xpose.msra.mxu0 0
        %4801 = vmatprep.subr.bf16.mxu0 0
        %4802 = vmatpush1.bf16.xpose.msra.mxu0 0
        %4803 = vmatprep.subr.bf16.mxu0 0
        %4804 = vmatpush1.bf16.xpose.msra.mxu0 0
        %4805 = vmatprep.subr.bf16.mxu0 0
        %4806 = vmatpush1.bf16.xpose.msra.mxu0 0
        %4807 = vmatprep.subr.bf16.mxu0 0
        %4808 = vmatpush1.bf16.xpose.msra.mxu0 0
        %4809 = vmatprep.mubr.bf16.mxu0 0
        %4810 = vmatmul.mubr.bf16.gmra.mrb[0].mxu0 %v4583
        %v4811 = vpop.f32.mrb[0].mxu0
        %v4812 = vadd.f32 %v4575, %v4811
        %v4813 = vpop.f32.mrb[0].mxu0
        %v4814 = vpop.f32.mrb[0].mxu0
        %v4815 = vadd.f32 %v4575, %v4814
        %v4816 = vpop.f32.mrb[0].mxu0
        %4817 = vmatprep.mubr.bf16.mxu0 0
        %4818 = vmatmul.mubr.bf16.gmra.mrb[0].mxu0 %v4586
        %v4819 = vpop.f32.mrb[0].mxu0
        %v4820 = vadd.f32 %v4575, %v4819
        %v4821 = vpop.f32.mrb[0].mxu0
        %v4822 = vpop.f32.mrb[0].mxu0
        %v4823 = vadd.f32 %v4575, %v4822
        %v4824 = vpop.f32.mrb[0].mxu0
        %4825 = vmatprep.mubr.bf16.mxu0 0
        %4826 = vmatmul.mubr.bf16.gmra.mrb[0].mxu0 %v4589
        %v4827 = vpop.f32.mrb[0].mxu0
        %v4828 = vadd.f32 %v4575, %v4827
        %v4829 = vpop.f32.mrb[0].mxu0
        %v4830 = vpop.f32.mrb[0].mxu0
        %v4831 = vadd.f32 %v4575, %v4830
        %v4832 = vpop.f32.mrb[0].mxu0
        %4833 = vmatprep.mubr.bf16.mxu0 0
        %4834 = vmatmul.mubr.bf16.gmra.mrb[0].mxu0 %v4592
        %v4835 = vpop.f32.mrb[0].mxu0
        %v4836 = vadd.f32 %v4575, %v4835
        %v4837 = vpop.f32.mrb[0].mxu0
        %v4838 = vpop.f32.mrb[0].mxu0
        %v4839 = vadd.f32 %v4575, %v4838
        %v4840 = vpop.f32.mrb[0].mxu0
        %4841 = vmatprep.mubr.bf16.mxu0 0
        %4842 = vmatmul.mubr.bf16.gmra.mrb[0].mxu0 %v4595
        %v4843 = vpop.f32.mrb[0].mxu0
        %v4844 = vadd.f32 %v4575, %v4843
        %v4845 = vpop.f32.mrb[0].mxu0
        %v4846 = vpop.f32.mrb[0].mxu0
        %v4847 = vadd.f32 %v4575, %v4846
        %v4848 = vpop.f32.mrb[0].mxu0
        %4849 = vmatprep.mubr.bf16.mxu0 0
        %4850 = vmatmul.mubr.bf16.gmra.mrb[0].mxu0 %v4598
        %v4851 = vpop.f32.mrb[0].mxu0
        %v4852 = vadd.f32 %v4575, %v4851
        %v4853 = vpop.f32.mrb[0].mxu0
        %v4854 = vpop.f32.mrb[0].mxu0
        %v4855 = vadd.f32 %v4575, %v4854
        %v4856 = vpop.f32.mrb[0].mxu0
        %4857 = vmatprep.mubr.bf16.mxu0 0
        %4858 = vmatmul.mubr.bf16.gmra.mrb[0].mxu0 %v4601
        %v4859 = vpop.f32.mrb[0].mxu0
        %v4860 = vadd.f32 %v4575, %v4859
        %v4861 = vpop.f32.mrb[0].mxu0
        %v4862 = vpop.f32.mrb[0].mxu0
        %v4863 = vadd.f32 %v4575, %v4862
        %v4864 = vpop.f32.mrb[0].mxu0
        %4865 = vmatprep.mubr.bf16.mxu0 0
        %4866 = vmatmul.mubr.bf16.gmra.mrb[0].mxu0 %v4604
        %v4867 = vpop.f32.mrb[0].mxu0
        %v4868 = vadd.f32 %v4575, %v4867
        %v4869 = vpop.f32.mrb[0].mxu0
        %v4870 = vpop.f32.mrb[0].mxu0
        %v4871 = vadd.f32 %v4575, %v4870
        %v4872 = vpop.f32.mrb[0].mxu0
        %4873 = vmatprep.mubr.bf16.mxu0 0
        %4874 = vmatmul.mubr.bf16.gmra.mrb[0].mxu0 %v4607
        %v4875 = vpop.f32.mrb[0].mxu0
        %v4876 = vadd.f32 %v4575, %v4875
        %v4877 = vpop.f32.mrb[0].mxu0
        %v4878 = vpop.f32.mrb[0].mxu0
        %v4879 = vadd.f32 %v4575, %v4878
        %v4880 = vpop.f32.mrb[0].mxu0
        %4881 = vmatprep.mubr.bf16.mxu0 0
        %4882 = vmatmul.mubr.bf16.gmra.mrb[0].mxu0 %v4610
        %v4883 = vpop.f32.mrb[0].mxu0
        %v4884 = vadd.f32 %v4575, %v4883
        %v4885 = vpop.f32.mrb[0].mxu0
        %v4886 = vpop.f32.mrb[0].mxu0
        %v4887 = vadd.f32 %v4575, %v4886
        %v4888 = vpop.f32.mrb[0].mxu0
        %4889 = vmatprep.mubr.bf16.mxu0 0
        %4890 = vmatmul.mubr.bf16.gmra.mrb[0].mxu0 %v4613
        %v4891 = vpop.f32.mrb[0].mxu0
        %v4892 = vadd.f32 %v4575, %v4891
        %v4893 = vpop.f32.mrb[0].mxu0
        %v4894 = vpop.f32.mrb[0].mxu0
        %v4895 = vadd.f32 %v4575, %v4894
        %v4896 = vpop.f32.mrb[0].mxu0
        %4897 = vmatprep.mubr.bf16.mxu0 0
        %4898 = vmatmul.mubr.bf16.gmra.mrb[0].mxu0 %v4616
        %v4899 = vpop.f32.mrb[0].mxu0
        %v4900 = vadd.f32 %v4575, %v4899
        %v4901 = vpop.f32.mrb[0].mxu0
        %v4902 = vpop.f32.mrb[0].mxu0
        %v4903 = vadd.f32 %v4575, %v4902
        %v4904 = vpop.f32.mrb[0].mxu0
        %4905 = vmatprep.mubr.bf16.mxu0 0
        %4906 = vmatmul.mubr.bf16.gmra.mrb[0].mxu0 %v4619
        %v4907 = vpop.f32.mrb[0].mxu0
        %v4908 = vadd.f32 %v4575, %v4907
        %v4909 = vpop.f32.mrb[0].mxu0
        %v4910 = vpop.f32.mrb[0].mxu0
        %v4911 = vadd.f32 %v4575, %v4910
        %v4912 = vpop.f32.mrb[0].mxu0
        %4913 = vmatprep.mubr.bf16.mxu0 0
        %4914 = vmatmul.mubr.bf16.gmra.mrb[0].mxu0 %v4622
        %v4915 = vpop.f32.mrb[0].mxu0
        %v4916 = vadd.f32 %v4575, %v4915
        %v4917 = vpop.f32.mrb[0].mxu0
        %v4918 = vpop.f32.mrb[0].mxu0
        %v4919 = vadd.f32 %v4575, %v4918
        %v4920 = vpop.f32.mrb[0].mxu0
        %4921 = vmatprep.mubr.bf16.mxu0 0
        %4922 = vmatmul.mubr.bf16.gmra.mrb[0].mxu0 %v4625
        %v4923 = vpop.f32.mrb[0].mxu0
        %v4924 = vadd.f32 %v4575, %v4923
        %v4925 = vpop.f32.mrb[0].mxu0
        %v4926 = vpop.f32.mrb[0].mxu0
        %v4927 = vadd.f32 %v4575, %v4926
        %v4928 = vpop.f32.mrb[0].mxu0
        %4929 = vmatprep.mubr.bf16.mxu0 0
        %4930 = vmatmul.mubr.bf16.gmra.mrb[0].mxu0 %v4628
        %v4931 = vpop.f32.mrb[0].mxu0
        %v4932 = vadd.f32 %v4575, %v4931
        %v4933 = vpop.f32.mrb[0].mxu0
        %v4934 = vpop.f32.mrb[0].mxu0
        %v4935 = vadd.f32 %v4575, %v4934
        %v4936 = vpop.f32.mrb[0].mxu0
        %4937 = vmatprep.mubr.bf16.mxu0 0
        %4938 = vmatmul.mubr.bf16.gmra.mrb[0].mxu0 %v4631
        %v4939 = vpop.f32.mrb[0].mxu0
        %v4940 = vadd.f32 %v4575, %v4939
        %v4941 = vpop.f32.mrb[0].mxu0
        %v4942 = vpop.f32.mrb[0].mxu0
        %v4943 = vadd.f32 %v4575, %v4942
        %v4944 = vpop.f32.mrb[0].mxu0
        %4945 = vmatprep.mubr.bf16.mxu0 0
        %4946 = vmatmul.mubr.bf16.gmra.mrb[0].mxu0 %v4634
        %v4947 = vpop.f32.mrb[0].mxu0
        %v4948 = vadd.f32 %v4575, %v4947
        %v4949 = vpop.f32.mrb[0].mxu0
        %v4950 = vpop.f32.mrb[0].mxu0
        %v4951 = vadd.f32 %v4575, %v4950
        %v4952 = vpop.f32.mrb[0].mxu0
        %4953 = vmatprep.mubr.bf16.mxu0 0
        %4954 = vmatmul.mubr.bf16.gmra.mrb[0].mxu0 %v4637
        %v4955 = vpop.f32.mrb[0].mxu0
        %v4956 = vadd.f32 %v4575, %v4955
        %v4957 = vpop.f32.mrb[0].mxu0
        %v4958 = vpop.f32.mrb[0].mxu0
        %v4959 = vadd.f32 %v4575, %v4958
        %v4960 = vpop.f32.mrb[0].mxu0
        %4961 = vmatprep.mubr.bf16.mxu0 0
        %4962 = vmatmul.mubr.bf16.gmra.mrb[0].mxu0 %v4640
        %v4963 = vpop.f32.mrb[0].mxu0
        %v4964 = vadd.f32 %v4575, %v4963
        %v4965 = vpop.f32.mrb[0].mxu0
        %v4966 = vpop.f32.mrb[0].mxu0
        %v4967 = vadd.f32 %v4575, %v4966
        %v4968 = vpop.f32.mrb[0].mxu0
        %4969 = vmatprep.mubr.bf16.mxu0 0
        %4970 = vmatmul.mubr.bf16.gmra.mrb[0].mxu0 %v4643
        %v4971 = vpop.f32.mrb[0].mxu0
        %v4972 = vadd.f32 %v4575, %v4971
        %v4973 = vpop.f32.mrb[0].mxu0
        %v4974 = vpop.f32.mrb[0].mxu0
        %v4975 = vadd.f32 %v4575, %v4974
        %v4976 = vpop.f32.mrb[0].mxu0
        %4977 = vmatprep.mubr.bf16.mxu0 0
        %4978 = vmatmul.mubr.bf16.gmra.mrb[0].mxu0 %v4646
        %v4979 = vpop.f32.mrb[0].mxu0
        %v4980 = vadd.f32 %v4575, %v4979
        %v4981 = vpop.f32.mrb[0].mxu0
        %v4982 = vpop.f32.mrb[0].mxu0
        %v4983 = vadd.f32 %v4575, %v4982
        %v4984 = vpop.f32.mrb[0].mxu0
        %4985 = vmatprep.mubr.bf16.mxu0 0
        %4986 = vmatmul.mubr.bf16.gmra.mrb[0].mxu0 %v4649
        %v4987 = vpop.f32.mrb[0].mxu0
        %v4988 = vadd.f32 %v4575, %v4987
        %v4989 = vpop.f32.mrb[0].mxu0
        %v4990 = vpop.f32.mrb[0].mxu0
        %v4991 = vadd.f32 %v4575, %v4990
        %v4992 = vpop.f32.mrb[0].mxu0
        %4993 = vmatprep.mubr.bf16.mxu0 0
        %4994 = vmatmul.mubr.bf16.gmra.mrb[0].mxu0 %v4652
        %v4995 = vpop.f32.mrb[0].mxu0
        %v4996 = vadd.f32 %v4575, %v4995
        %v4997 = vpop.f32.mrb[0].mxu0
        %v4998 = vpop.f32.mrb[0].mxu0
        %v4999 = vadd.f32 %v4575, %v4998
        %v5000 = vpop.f32.mrb[0].mxu0
        %5001 = vmatprep.mubr.bf16.mxu0 0
        %5002 = vmatmul.mubr.bf16.gmra.mrb[0].mxu0 %v4655
        %v5003 = vpop.f32.mrb[0].mxu0
        %v5004 = vadd.f32 %v4575, %v5003
        %v5005 = vpop.f32.mrb[0].mxu0
        %v5006 = vpop.f32.mrb[0].mxu0
        %v5007 = vadd.f32 %v4575, %v5006
        %v5008 = vpop.f32.mrb[0].mxu0
        %5009 = vmatprep.mubr.bf16.mxu0 0
        %5010 = vmatmul.mubr.bf16.gmra.mrb[0].mxu0 %v4658
        %v5011 = vpop.f32.mrb[0].mxu0
        %v5012 = vadd.f32 %v4575, %v5011
        %v5013 = vpop.f32.mrb[0].mxu0
        %v5014 = vpop.f32.mrb[0].mxu0
        %v5015 = vadd.f32 %v4575, %v5014
        %v5016 = vpop.f32.mrb[0].mxu0
        %5017 = vmatprep.mubr.bf16.mxu0 0
        %5018 = vmatmul.mubr.bf16.gmra.mrb[0].mxu0 %v4661
        %v5019 = vpop.f32.mrb[0].mxu0
        %v5020 = vadd.f32 %v4575, %v5019
        %v5021 = vpop.f32.mrb[0].mxu0
        %v5022 = vpop.f32.mrb[0].mxu0
        %v5023 = vadd.f32 %v4575, %v5022
        %v5024 = vpop.f32.mrb[0].mxu0
        %5025 = vmatprep.mubr.bf16.mxu0 0
        %5026 = vmatmul.mubr.bf16.gmra.mrb[0].mxu0 %v4664
        %v5027 = vpop.f32.mrb[0].mxu0
        %v5028 = vadd.f32 %v4575, %v5027
        %v5029 = vpop.f32.mrb[0].mxu0
        %v5030 = vpop.f32.mrb[0].mxu0
        %v5031 = vadd.f32 %v4575, %v5030
        %v5032 = vpop.f32.mrb[0].mxu0
        %5033 = vmatprep.mubr.bf16.mxu0 0
        %5034 = vmatmul.mubr.bf16.gmra.mrb[0].mxu0 %v4667
        %v5035 = vpop.f32.mrb[0].mxu0
        %v5036 = vadd.f32 %v4575, %v5035
        %v5037 = vpop.f32.mrb[0].mxu0
        %v5038 = vpop.f32.mrb[0].mxu0
        %v5039 = vadd.f32 %v4575, %v5038
        %v5040 = vpop.f32.mrb[0].mxu0
        %5041 = vmatprep.mubr.bf16.mxu0 0
        %5042 = vmatmul.mubr.bf16.gmra.mrb[0].mxu0 %v4670
        %v5043 = vpop.f32.mrb[0].mxu0
        %v5044 = vadd.f32 %v4575, %v5043
        %v5045 = vpop.f32.mrb[0].mxu0
        %v5046 = vpop.f32.mrb[0].mxu0
        %v5047 = vadd.f32 %v4575, %v5046
        %v5048 = vpop.f32.mrb[0].mxu0
        %5049 = vmatprep.mubr.bf16.mxu0 0
        %5050 = vmatmul.mubr.bf16.gmra.mrb[0].mxu0 %v4673
        %v5051 = vpop.f32.mrb[0].mxu0
        %v5052 = vadd.f32 %v4575, %v5051
        %v5053 = vpop.f32.mrb[0].mxu0
        %v5054 = vpop.f32.mrb[0].mxu0
        %v5055 = vadd.f32 %v4575, %v5054
        %v5056 = vpop.f32.mrb[0].mxu0
        %5057 = vmatprep.mubr.bf16.mxu0 0
        %5058 = vmatmul.mubr.bf16.gmra.mrb[0].mxu0 %v4676
        %v5059 = vpop.f32.mrb[0].mxu0
        %v5060 = vadd.f32 %v4575, %v5059
        %v5061 = vpop.f32.mrb[0].mxu0
        %v5062 = vpop.f32.mrb[0].mxu0
        %v5063 = vadd.f32 %v4575, %v5062
        %v5064 = vpop.f32.mrb[0].mxu0
        %5065 = vmatprep.mubr.bf16.mxu0 0
        %5066 = vmatmul.mubr.bf16.gmra.mrb[0].mxu0 %v4679
        %v5067 = vpop.f32.mrb[0].mxu0
        %v5068 = vadd.f32 %v4575, %v5067
        %v5069 = vpop.f32.mrb[0].mxu0
        %v5070 = vpop.f32.mrb[0].mxu0
        %v5071 = vadd.f32 %v4575, %v5070
        %v5072 = vpop.f32.mrb[0].mxu0
        %5073 = vmatprep.mubr.bf16.mxu0 0
        %5074 = vmatmul.mubr.bf16.gmra.mrb[0].mxu0 %v4682
        %v5075 = vpop.f32.mrb[0].mxu0
        %v5076 = vadd.f32 %v4575, %v5075
        %v5077 = vpop.f32.mrb[0].mxu0
        %v5078 = vpop.f32.mrb[0].mxu0
        %v5079 = vadd.f32 %v4575, %v5078
        %v5080 = vpop.f32.mrb[0].mxu0
        %5081 = vmatprep.mubr.bf16.mxu0 0
        %5082 = vmatmul.mubr.bf16.gmra.mrb[0].mxu0 %v4685
        %v5083 = vpop.f32.mrb[0].mxu0
        %v5084 = vadd.f32 %v4575, %v5083
        %v5085 = vpop.f32.mrb[0].mxu0
        %v5086 = vpop.f32.mrb[0].mxu0
        %v5087 = vadd.f32 %v4575, %v5086
        %v5088 = vpop.f32.mrb[0].mxu0
        %5089 = vmatprep.mubr.bf16.mxu0 0
        %5090 = vmatmul.mubr.bf16.gmra.mrb[0].mxu0 %v4688
        %v5091 = vpop.f32.mrb[0].mxu0
        %v5092 = vadd.f32 %v4575, %v5091
        %v5093 = vpop.f32.mrb[0].mxu0
        %v5094 = vpop.f32.mrb[0].mxu0
        %v5095 = vadd.f32 %v4575, %v5094
        %v5096 = vpop.f32.mrb[0].mxu0
        %5097 = vmatprep.mubr.bf16.mxu0 0
        %5098 = vmatmul.mubr.bf16.gmra.mrb[0].mxu0 %v4691
        %v5099 = vpop.f32.mrb[0].mxu0
        %v5100 = vadd.f32 %v4575, %v5099
        %v5101 = vpop.f32.mrb[0].mxu0
        %v5102 = vpop.f32.mrb[0].mxu0
        %v5103 = vadd.f32 %v4575, %v5102
        %v5104 = vpop.f32.mrb[0].mxu0
        %5105 = vmatprep.mubr.bf16.mxu0 0
        %5106 = vmatmul.mubr.bf16.gmra.mrb[0].mxu0 %v4694
        %v5107 = vpop.f32.mrb[0].mxu0
        %v5108 = vadd.f32 %v4575, %v5107
        %v5109 = vpop.f32.mrb[0].mxu0
        %v5110 = vpop.f32.mrb[0].mxu0
        %v5111 = vadd.f32 %v4575, %v5110
        %v5112 = vpop.f32.mrb[0].mxu0
        %5113 = vmatprep.mubr.bf16.mxu0 0
        %5114 = vmatmul.mubr.bf16.gmra.mrb[0].mxu0 %v4697
        %v5115 = vpop.f32.mrb[0].mxu0
        %v5116 = vadd.f32 %v4575, %v5115
        %v5117 = vpop.f32.mrb[0].mxu0
        %v5118 = vpop.f32.mrb[0].mxu0
        %v5119 = vadd.f32 %v4575, %v5118
        %v5120 = vpop.f32.mrb[0].mxu0
        %5121 = vmatprep.mubr.bf16.mxu0 0
        %5122 = vmatmul.mubr.bf16.gmra.mrb[0].mxu0 %v4700
        %v5123 = vpop.f32.mrb[0].mxu0
        %v5124 = vadd.f32 %v4575, %v5123
        %v5125 = vpop.f32.mrb[0].mxu0
        %v5126 = vpop.f32.mrb[0].mxu0
        %v5127 = vadd.f32 %v4575, %v5126
        %v5128 = vpop.f32.mrb[0].mxu0
        %5129 = vmatprep.mubr.bf16.mxu0 0
        %5130 = vmatmul.mubr.bf16.gmra.mrb[0].mxu0 %v4703
        %v5131 = vpop.f32.mrb[0].mxu0
        %v5132 = vadd.f32 %v4575, %v5131
        %v5133 = vpop.f32.mrb[0].mxu0
        %v5134 = vpop.f32.mrb[0].mxu0
        %v5135 = vadd.f32 %v4575, %v5134
        %v5136 = vpop.f32.mrb[0].mxu0
        %5137 = vmatprep.mubr.bf16.mxu0 0
        %5138 = vmatmul.mubr.bf16.gmra.mrb[0].mxu0 %v4706
        %v5139 = vpop.f32.mrb[0].mxu0
        %v5140 = vadd.f32 %v4575, %v5139
        %v5141 = vpop.f32.mrb[0].mxu0
        %v5142 = vpop.f32.mrb[0].mxu0
        %v5143 = vadd.f32 %v4575, %v5142
        %v5144 = vpop.f32.mrb[0].mxu0
        %5145 = vmatprep.mubr.bf16.mxu0 0
        %5146 = vmatmul.mubr.bf16.gmra.mrb[0].mxu0 %v4709
        %v5147 = vpop.f32.mrb[0].mxu0
        %v5148 = vadd.f32 %v4575, %v5147
        %v5149 = vpop.f32.mrb[0].mxu0
        %v5150 = vpop.f32.mrb[0].mxu0
        %v5151 = vadd.f32 %v4575, %v5150
        %v5152 = vpop.f32.mrb[0].mxu0
        %5153 = vmatprep.mubr.bf16.mxu0 0
        %5154 = vmatmul.mubr.bf16.gmra.mrb[0].mxu0 %v4712
        %v5155 = vpop.f32.mrb[0].mxu0
        %v5156 = vadd.f32 %v4575, %v5155
        %v5157 = vpop.f32.mrb[0].mxu0
        %v5158 = vpop.f32.mrb[0].mxu0
        %v5159 = vadd.f32 %v4575, %v5158
        %v5160 = vpop.f32.mrb[0].mxu0
        %5161 = vmatprep.mubr.bf16.mxu0 0
        %5162 = vmatmul.mubr.bf16.gmra.mrb[0].mxu0 %v4715
        %v5163 = vpop.f32.mrb[0].mxu0
        %v5164 = vadd.f32 %v4575, %v5163
        %v5165 = vpop.f32.mrb[0].mxu0
        %v5166 = vpop.f32.mrb[0].mxu0
        %v5167 = vadd.f32 %v4575, %v5166
        %v5168 = vpop.f32.mrb[0].mxu0
        %5169 = vmatprep.mubr.bf16.mxu0 0
        %5170 = vmatmul.mubr.bf16.gmra.mrb[0].mxu0 %v4718
        %v5171 = vpop.f32.mrb[0].mxu0
        %v5172 = vadd.f32 %v4575, %v5171
        %v5173 = vpop.f32.mrb[0].mxu0
        %v5174 = vpop.f32.mrb[0].mxu0
        %v5175 = vadd.f32 %v4575, %v5174
        %v5176 = vpop.f32.mrb[0].mxu0
        %5177 = vmatprep.mubr.bf16.mxu0 0
        %5178 = vmatmul.mubr.bf16.gmra.mrb[0].mxu0 %v4721
        %v5179 = vpop.f32.mrb[0].mxu0
        %v5180 = vadd.f32 %v4575, %v5179
        %v5181 = vpop.f32.mrb[0].mxu0
        %v5182 = vpop.f32.mrb[0].mxu0
        %v5183 = vadd.f32 %v4575, %v5182
        %v5184 = vpop.f32.mrb[0].mxu0
        %5185 = vmatprep.mubr.bf16.mxu0 0
        %5186 = vmatmul.mubr.bf16.gmra.mrb[0].mxu0 %v4724
        %v5187 = vpop.f32.mrb[0].mxu0
        %v5188 = vadd.f32 %v4575, %v5187
        %v5189 = vpop.f32.mrb[0].mxu0
        %v5190 = vpop.f32.mrb[0].mxu0
        %v5191 = vadd.f32 %v4575, %v5190
        %v5192 = vpop.f32.mrb[0].mxu0
        %5193 = vmatprep.mubr.bf16.mxu0 0
        %5194 = vmatmul.mubr.bf16.gmra.mrb[0].mxu0 %v4727
        %v5195 = vpop.f32.mrb[0].mxu0
        %v5196 = vadd.f32 %v4575, %v5195
        %v5197 = vpop.f32.mrb[0].mxu0
        %v5198 = vpop.f32.mrb[0].mxu0
        %v5199 = vadd.f32 %v4575, %v5198
        %v5200 = vpop.f32.mrb[0].mxu0
        %5201 = vmatprep.mubr.bf16.mxu0 0
        %5202 = vmatmul.mubr.bf16.gmra.mrb[0].mxu0 %v4730
        %v5203 = vpop.f32.mrb[0].mxu0
        %v5204 = vadd.f32 %v4575, %v5203
        %v5205 = vpop.f32.mrb[0].mxu0
        %v5206 = vpop.f32.mrb[0].mxu0
        %v5207 = vadd.f32 %v4575, %v5206
        %v5208 = vpop.f32.mrb[0].mxu0
        %5209 = vmatprep.mubr.bf16.mxu0 0
        %5210 = vmatmul.mubr.bf16.gmra.mrb[0].mxu0 %v4733
        %v5211 = vpop.f32.mrb[0].mxu0
        %v5212 = vadd.f32 %v4575, %v5211
        %v5213 = vpop.f32.mrb[0].mxu0
        %v5214 = vpop.f32.mrb[0].mxu0
        %v5215 = vadd.f32 %v4575, %v5214
        %v5216 = vpop.f32.mrb[0].mxu0
        %5217 = vmatprep.mubr.bf16.mxu0 0
        %5218 = vmatmul.mubr.bf16.gmra.mrb[0].mxu0 %v4736
        %v5219 = vpop.f32.mrb[0].mxu0
        %v5220 = vadd.f32 %v4575, %v5219
        %v5221 = vpop.f32.mrb[0].mxu0
        %v5222 = vpop.f32.mrb[0].mxu0
        %v5223 = vadd.f32 %v4575, %v5222
        %v5224 = vpop.f32.mrb[0].mxu0
        %5225 = vmatprep.mubr.bf16.mxu0 0
        %5226 = vmatmul.mubr.bf16.gmra.mrb[0].mxu0 %v4739
        %v5227 = vpop.f32.mrb[0].mxu0
        %v5228 = vadd.f32 %v4575, %v5227
        %v5229 = vpop.f32.mrb[0].mxu0
        %v5230 = vpop.f32.mrb[0].mxu0
        %v5231 = vadd.f32 %v4575, %v5230
        %v5232 = vpop.f32.mrb[0].mxu0
        %5233 = vmatprep.mubr.bf16.mxu0 0
        %5234 = vmatmul.mubr.bf16.gmra.mrb[0].mxu0 %v4742
        %v5235 = vpop.f32.mrb[0].mxu0
        %v5236 = vadd.f32 %v4575, %v5235
        %v5237 = vpop.f32.mrb[0].mxu0
        %v5238 = vpop.f32.mrb[0].mxu0
        %v5239 = vadd.f32 %v4575, %v5238
        %v5240 = vpop.f32.mrb[0].mxu0
        %5241 = vmatprep.mubr.bf16.mxu0 0
        %5242 = vmatmul.mubr.bf16.gmra.mrb[0].mxu0 %v4745
        %v5243 = vpop.f32.mrb[0].mxu0
        %v5244 = vadd.f32 %v4575, %v5243
        %v5245 = vpop.f32.mrb[0].mxu0
        %v5246 = vpop.f32.mrb[0].mxu0
        %v5247 = vadd.f32 %v4575, %v5246
        %v5248 = vpop.f32.mrb[0].mxu0
        %5249 = vmatprep.mubr.bf16.mxu0 0
        %5250 = vmatmul.mubr.bf16.gmra.mrb[0].mxu0 %v4748
        %v5251 = vpop.f32.mrb[0].mxu0
        %v5252 = vadd.f32 %v4575, %v5251
        %v5253 = vpop.f32.mrb[0].mxu0
        %v5254 = vpop.f32.mrb[0].mxu0
        %v5255 = vadd.f32 %v4575, %v5254
        %v5256 = vpop.f32.mrb[0].mxu0
        %5257 = vmatprep.mubr.bf16.mxu0 0
        %5258 = vmatmul.mubr.bf16.gmra.mrb[0].mxu0 %v4751
        %v5259 = vpop.f32.mrb[0].mxu0
        %v5260 = vadd.f32 %v4575, %v5259
        %v5261 = vpop.f32.mrb[0].mxu0
        %v5262 = vpop.f32.mrb[0].mxu0
        %v5263 = vadd.f32 %v4575, %v5262
        %v5264 = vpop.f32.mrb[0].mxu0
        %5265 = vmatprep.mubr.bf16.mxu0 0
        %5266 = vmatmul.mubr.bf16.gmra.mrb[0].mxu0 %v4754
        %v5267 = vpop.f32.mrb[0].mxu0
        %v5268 = vadd.f32 %v4575, %v5267
        %v5269 = vpop.f32.mrb[0].mxu0
        %v5270 = vpop.f32.mrb[0].mxu0
        %v5271 = vadd.f32 %v4575, %v5270
        %v5272 = vpop.f32.mrb[0].mxu0
        %5273 = vmatprep.mubr.bf16.mxu0 0
        %5274 = vmatmul.mubr.bf16.gmra.mrb[0].mxu0 %v4757
        %v5275 = vpop.f32.mrb[0].mxu0
        %v5276 = vadd.f32 %v4575, %v5275
        %v5277 = vpop.f32.mrb[0].mxu0
        %v5278 = vpop.f32.mrb[0].mxu0
        %v5279 = vadd.f32 %v4575, %v5278
        %v5280 = vpop.f32.mrb[0].mxu0
        %5281 = vmatprep.mubr.bf16.mxu0 0
        %5282 = vmatmul.mubr.bf16.gmra.mrb[0].mxu0 %v4760
        %v5283 = vpop.f32.mrb[0].mxu0
        %v5284 = vadd.f32 %v4575, %v5283
        %v5285 = vpop.f32.mrb[0].mxu0
        %v5286 = vpop.f32.mrb[0].mxu0
        %v5287 = vadd.f32 %v4575, %v5286
        %v5288 = vpop.f32.mrb[0].mxu0
        %5289 = vmatprep.mubr.bf16.mxu0 0
        %5290 = vmatmul.mubr.bf16.gmra.mrb[0].mxu0 %v4763
        %v5291 = vpop.f32.mrb[0].mxu0
        %v5292 = vadd.f32 %v4575, %v5291
        %v5293 = vpop.f32.mrb[0].mxu0
        %v5294 = vpop.f32.mrb[0].mxu0
        %v5295 = vadd.f32 %v4575, %v5294
        %v5296 = vpop.f32.mrb[0].mxu0
        %5297 = vmatprep.mubr.bf16.mxu0 0
        %5298 = vmatmul.mubr.bf16.gmra.mrb[0].mxu0 %v4766
        %v5299 = vpop.f32.mrb[0].mxu0
        %v5300 = vadd.f32 %v4575, %v5299
        %v5301 = vpop.f32.mrb[0].mxu0
        %v5302 = vpop.f32.mrb[0].mxu0
        %v5303 = vadd.f32 %v4575, %v5302
        %v5304 = vpop.f32.mrb[0].mxu0
        %5305 = vmatprep.mubr.bf16.mxu0 0
        %5306 = vmatmul.mubr.bf16.gmra.mrb[0].mxu0 %v4769
        %v5307 = vpop.f32.mrb[0].mxu0
        %v5308 = vadd.f32 %v4575, %v5307
        %v5309 = vpop.f32.mrb[0].mxu0
        %v5310 = vpop.f32.mrb[0].mxu0
        %v5311 = vadd.f32 %v4575, %v5310
        %v5312 = vpop.f32.mrb[0].mxu0
        %5313 = vmatprep.mubr.bf16.mxu0 0
        %5314 = vmatmul.mubr.bf16.gmra.mrb[0].mxu0 %v4772
        %v5315 = vpop.f32.mrb[0].mxu0
        %v5316 = vadd.f32 %v4575, %v5315
        %v5317 = vpop.f32.mrb[0].mxu0
        %v5318 = vpop.f32.mrb[0].mxu0
        %v5319 = vadd.f32 %v4575, %v5318
        %v5320 = vpop.f32.mrb[0].mxu0
        %5321 = vdwg.mxu0
        %vm5322 = vcmask 72704
        %5323 = vst.msk [vmem:[%s564] sm:$0xff] %vm5322, %v4812
        %5324 = vst.msk [vmem:[%s564 + $0x8] sm:$0xff] %vm5322, %v4815
        %5325 = vst.msk [vmem:[%s564 + $0x10] sm:$0xff] %vm5322, %v4820
        %5326 = vst.msk [vmem:[%s564 + $0x18] sm:$0xff] %vm5322, %v4823
        %5327 = vst.msk [vmem:[%s564 + $0x20] sm:$0xff] %vm5322, %v4828
        %5328 = vst.msk [vmem:[%s564 + $0x28] sm:$0xff] %vm5322, %v4831
        %5329 = vst.msk [vmem:[%s564 + $0x30] sm:$0xff] %vm5322, %v4836
        %5330 = vst.msk [vmem:[%s564 + $0x38] sm:$0xff] %vm5322, %v4839
        %5331 = vst.msk [vmem:[%s564 + $0x40] sm:$0xff] %vm5322, %v4844
        %5332 = vst.msk [vmem:[%s564 + $0x48] sm:$0xff] %vm5322, %v4847
        %5333 = vst.msk [vmem:[%s564 + $0x50] sm:$0xff] %vm5322, %v4852
        %5334 = vst.msk [vmem:[%s564 + $0x58] sm:$0xff] %vm5322, %v4855
        %5335 = vst.msk [vmem:[%s564 + $0x60] sm:$0xff] %vm5322, %v4860
        %5336 = vst.msk [vmem:[%s564 + $0x68] sm:$0xff] %vm5322, %v4863
        %5337 = vst.msk [vmem:[%s564 + $0x70] sm:$0xff] %vm5322, %v4868
        %5338 = vst.msk [vmem:[%s564 + $0x78] sm:$0xff] %vm5322, %v4871
        %5339 = vst.msk [vmem:[%s564 + $0x80] sm:$0xff] %vm5322, %v4876
        %5340 = vst.msk [vmem:[%s564 + $0x88] sm:$0xff] %vm5322, %v4879
        %5341 = vst.msk [vmem:[%s564 + $0x90] sm:$0xff] %vm5322, %v4884
        %5342 = vst.msk [vmem:[%s564 + $0x98] sm:$0xff] %vm5322, %v4887
        %5343 = vst.msk [vmem:[%s564 + $0xa0] sm:$0xff] %vm5322, %v4892
        %5344 = vst.msk [vmem:[%s564 + $0xa8] sm:$0xff] %vm5322, %v4895
        %5345 = vst.msk [vmem:[%s564 + $0xb0] sm:$0xff] %vm5322, %v4900
        %5346 = vst.msk [vmem:[%s564 + $0xb8] sm:$0xff] %vm5322, %v4903
        %5347 = vst.msk [vmem:[%s564 + $0xc0] sm:$0xff] %vm5322, %v4908
        %5348 = vst.msk [vmem:[%s564 + $0xc8] sm:$0xff] %vm5322, %v4911
        %5349 = vst.msk [vmem:[%s564 + $0xd0] sm:$0xff] %vm5322, %v4916
        %5350 = vst.msk [vmem:[%s564 + $0xd8] sm:$0xff] %vm5322, %v4919
        %5351 = vst.msk [vmem:[%s564 + $0xe0] sm:$0xff] %vm5322, %v4924
        %5352 = vst.msk [vmem:[%s564 + $0xe8] sm:$0xff] %vm5322, %v4927
        %5353 = vst.msk [vmem:[%s564 + $0xf0] sm:$0xff] %vm5322, %v4932
        %5354 = vst.msk [vmem:[%s564 + $0xf8] sm:$0xff] %vm5322, %v4935
        %5355 = vst.msk [vmem:[%s564 + $0x100] sm:$0xff] %vm5322, %v4940
        %5356 = vst.msk [vmem:[%s564 + $0x108] sm:$0xff] %vm5322, %v4943
        %5357 = vst.msk [vmem:[%s564 + $0x110] sm:$0xff] %vm5322, %v4948
        %5358 = vst.msk [vmem:[%s564 + $0x118] sm:$0xff] %vm5322, %v4951
        %5359 = vst.msk [vmem:[%s564 + $0x120] sm:$0xff] %vm5322, %v4956
        %5360 = vst.msk [vmem:[%s564 + $0x128] sm:$0xff] %vm5322, %v4959
        %5361 = vst.msk [vmem:[%s564 + $0x130] sm:$0xff] %vm5322, %v4964
        %5362 = vst.msk [vmem:[%s564 + $0x138] sm:$0xff] %vm5322, %v4967
        %5363 = vst.msk [vmem:[%s564 + $0x140] sm:$0xff] %vm5322, %v4972
        %5364 = vst.msk [vmem:[%s564 + $0x148] sm:$0xff] %vm5322, %v4975
        %5365 = vst.msk [vmem:[%s564 + $0x150] sm:$0xff] %vm5322, %v4980
        %5366 = vst.msk [vmem:[%s564 + $0x158] sm:$0xff] %vm5322, %v4983
        %5367 = vst.msk [vmem:[%s564 + $0x160] sm:$0xff] %vm5322, %v4988
        %5368 = vst.msk [vmem:[%s564 + $0x168] sm:$0xff] %vm5322, %v4991
        %5369 = vst.msk [vmem:[%s564 + $0x170] sm:$0xff] %vm5322, %v4996
        %5370 = vst.msk [vmem:[%s564 + $0x178] sm:$0xff] %vm5322, %v4999
        %5371 = vst.msk [vmem:[%s564 + $0x180] sm:$0xff] %vm5322, %v5004
        %5372 = vst.msk [vmem:[%s564 + $0x188] sm:$0xff] %vm5322, %v5007
        %5373 = vst.msk [vmem:[%s564 + $0x190] sm:$0xff] %vm5322, %v5012
        %5374 = vst.msk [vmem:[%s564 + $0x198] sm:$0xff] %vm5322, %v5015
        %5375 = vst.msk [vmem:[%s564 + $0x1a0] sm:$0xff] %vm5322, %v5020
        %5376 = vst.msk [vmem:[%s564 + $0x1a8] sm:$0xff] %vm5322, %v5023
        %5377 = vst.msk [vmem:[%s564 + $0x1b0] sm:$0xff] %vm5322, %v5028
        %5378 = vst.msk [vmem:[%s564 + $0x1b8] sm:$0xff] %vm5322, %v5031
        %5379 = vst.msk [vmem:[%s564 + $0x1c0] sm:$0xff] %vm5322, %v5036
        %5380 = vst.msk [vmem:[%s564 + $0x1c8] sm:$0xff] %vm5322, %v5039
        %5381 = vst.msk [vmem:[%s564 + $0x1d0] sm:$0xff] %vm5322, %v5044
        %5382 = vst.msk [vmem:[%s564 + $0x1d8] sm:$0xff] %vm5322, %v5047
        %5383 = vst.msk [vmem:[%s564 + $0x1e0] sm:$0xff] %vm5322, %v5052
        %5384 = vst.msk [vmem:[%s564 + $0x1e8] sm:$0xff] %vm5322, %v5055
        %5385 = vst.msk [vmem:[%s564 + $0x1f0] sm:$0xff] %vm5322, %v5060
        %5386 = vst.msk [vmem:[%s564 + $0x1f8] sm:$0xff] %vm5322, %v5063
        %5387 = vst.msk [vmem:[%s564 + $0x200] sm:$0xff] %vm5322, %v5068
        %5388 = vst.msk [vmem:[%s564 + $0x208] sm:$0xff] %vm5322, %v5071
        %5389 = vst.msk [vmem:[%s564 + $0x210] sm:$0xff] %vm5322, %v5076
        %5390 = vst.msk [vmem:[%s564 + $0x218] sm:$0xff] %vm5322, %v5079
        %5391 = vst.msk [vmem:[%s564 + $0x220] sm:$0xff] %vm5322, %v5084
        %5392 = vst.msk [vmem:[%s564 + $0x228] sm:$0xff] %vm5322, %v5087
        %5393 = vst.msk [vmem:[%s564 + $0x230] sm:$0xff] %vm5322, %v5092
        %5394 = vst.msk [vmem:[%s564 + $0x238] sm:$0xff] %vm5322, %v5095
        %5395 = vst.msk [vmem:[%s564 + $0x240] sm:$0xff] %vm5322, %v5100
        %5396 = vst.msk [vmem:[%s564 + $0x248] sm:$0xff] %vm5322, %v5103
        %5397 = vst.msk [vmem:[%s564 + $0x250] sm:$0xff] %vm5322, %v5108
        %5398 = vst.msk [vmem:[%s564 + $0x258] sm:$0xff] %vm5322, %v5111
        %5399 = vst.msk [vmem:[%s564 + $0x260] sm:$0xff] %vm5322, %v5116
        %5400 = vst.msk [vmem:[%s564 + $0x268] sm:$0xff] %vm5322, %v5119
        %5401 = vst.msk [vmem:[%s564 + $0x270] sm:$0xff] %vm5322, %v5124
        %5402 = vst.msk [vmem:[%s564 + $0x278] sm:$0xff] %vm5322, %v5127
        %5403 = vst.msk [vmem:[%s564 + $0x280] sm:$0xff] %vm5322, %v5132
        %5404 = vst.msk [vmem:[%s564 + $0x288] sm:$0xff] %vm5322, %v5135
        %5405 = vst.msk [vmem:[%s564 + $0x290] sm:$0xff] %vm5322, %v5140
        %5406 = vst.msk [vmem:[%s564 + $0x298] sm:$0xff] %vm5322, %v5143
        %5407 = vst.msk [vmem:[%s564 + $0x2a0] sm:$0xff] %vm5322, %v5148
        %5408 = vst.msk [vmem:[%s564 + $0x2a8] sm:$0xff] %vm5322, %v5151
        %5409 = vst.msk [vmem:[%s564 + $0x2b0] sm:$0xff] %vm5322, %v5156
        %5410 = vst.msk [vmem:[%s564 + $0x2b8] sm:$0xff] %vm5322, %v5159
        %5411 = vst.msk [vmem:[%s564 + $0x2c0] sm:$0xff] %vm5322, %v5164
        %5412 = vst.msk [vmem:[%s564 + $0x2c8] sm:$0xff] %vm5322, %v5167
        %5413 = vst.msk [vmem:[%s564 + $0x2d0] sm:$0xff] %vm5322, %v5172
        %5414 = vst.msk [vmem:[%s564 + $0x2d8] sm:$0xff] %vm5322, %v5175
        %5415 = vst.msk [vmem:[%s564 + $0x2e0] sm:$0xff] %vm5322, %v5180
        %5416 = vst.msk [vmem:[%s564 + $0x2e8] sm:$0xff] %vm5322, %v5183
        %5417 = vst.msk [vmem:[%s564 + $0x2f0] sm:$0xff] %vm5322, %v5188
        %5418 = vst.msk [vmem:[%s564 + $0x2f8] sm:$0xff] %vm5322, %v5191
        %5419 = vst.msk [vmem:[%s564 + $0x300] sm:$0xff] %vm5322, %v5196
        %5420 = vst.msk [vmem:[%s564 + $0x308] sm:$0xff] %vm5322, %v5199
        %5421 = vst.msk [vmem:[%s564 + $0x310] sm:$0xff] %vm5322, %v5204
        %5422 = vst.msk [vmem:[%s564 + $0x318] sm:$0xff] %vm5322, %v5207
        %5423 = vst.msk [vmem:[%s564 + $0x320] sm:$0xff] %vm5322, %v5212
        %5424 = vst.msk [vmem:[%s564 + $0x328] sm:$0xff] %vm5322, %v5215
        %5425 = vst.msk [vmem:[%s564 + $0x330] sm:$0xff] %vm5322, %v5220
        %5426 = vst.msk [vmem:[%s564 + $0x338] sm:$0xff] %vm5322, %v5223
        %5427 = vst.msk [vmem:[%s564 + $0x340] sm:$0xff] %vm5322, %v5228
        %5428 = vst.msk [vmem:[%s564 + $0x348] sm:$0xff] %vm5322, %v5231
        %5429 = vst.msk [vmem:[%s564 + $0x350] sm:$0xff] %vm5322, %v5236
        %5430 = vst.msk [vmem:[%s564 + $0x358] sm:$0xff] %vm5322, %v5239
        %5431 = vst.msk [vmem:[%s564 + $0x360] sm:$0xff] %vm5322, %v5244
        %5432 = vst.msk [vmem:[%s564 + $0x368] sm:$0xff] %vm5322, %v5247
        %5433 = vst.msk [vmem:[%s564 + $0x370] sm:$0xff] %vm5322, %v5252
        %5434 = vst.msk [vmem:[%s564 + $0x378] sm:$0xff] %vm5322, %v5255
        %5435 = vst.msk [vmem:[%s564 + $0x380] sm:$0xff] %vm5322, %v5260
        %5436 = vst.msk [vmem:[%s564 + $0x388] sm:$0xff] %vm5322, %v5263
        %5437 = vst.msk [vmem:[%s564 + $0x390] sm:$0xff] %vm5322, %v5268
        %5438 = vst.msk [vmem:[%s564 + $0x398] sm:$0xff] %vm5322, %v5271
        %5439 = vst.msk [vmem:[%s564 + $0x3a0] sm:$0xff] %vm5322, %v5276
        %5440 = vst.msk [vmem:[%s564 + $0x3a8] sm:$0xff] %vm5322, %v5279
        %5441 = vst.msk [vmem:[%s564 + $0x3b0] sm:$0xff] %vm5322, %v5284
        %5442 = vst.msk [vmem:[%s564 + $0x3b8] sm:$0xff] %vm5322, %v5287
        %5443 = vst.msk [vmem:[%s564 + $0x3c0] sm:$0xff] %vm5322, %v5292
        %5444 = vst.msk [vmem:[%s564 + $0x3c8] sm:$0xff] %vm5322, %v5295
        %5445 = vst.msk [vmem:[%s564 + $0x3d0] sm:$0xff] %vm5322, %v5300
        %5446 = vst.msk [vmem:[%s564 + $0x3d8] sm:$0xff] %vm5322, %v5303
        %5447 = vst.msk [vmem:[%s564 + $0x3e0] sm:$0xff] %vm5322, %v5308
        %5448 = vst.msk [vmem:[%s564 + $0x3e8] sm:$0xff] %vm5322, %v5311
        %5449 = vst.msk [vmem:[%s564 + $0x3f0] sm:$0xff] %vm5322, %v5316
        %5450 = vst.msk [vmem:[%s564 + $0x3f8] sm:$0xff] %vm5322, %v5319
        %s5451 = sand.u32 %s403, 1
        %s5452 = sand.u32 %s403, 1
        %s5453 = smul.addr %s5452, 1024
        %s5454 = scalar_lea.vmem [#allocation2], %s5453
        // Predicated region
        $region89: #{tpu_custom_call.1} parent=87 // pred_check
          %p5455 = pneg %p413
        $region90: #{tpu_custom_call.1} parent=87 // pred_check_branch
          %5457 = sbr.rel (%p5455) target = $region92
        $region91: #{tpu_custom_call.1} parent=87 // pred_region
          %s5458 = smul.u32 128, %s28
          %s5459 = ssub.s32 250, %s5458
          %p5460 = scmp.lt.s32.totalorder %s5459, 128
          %s5461 = scalar_select %p5460, %s5459, 128
          %s5462 = smul.u32 128, %s5461
          %p5463 = scmp.ne.s32.totalorder 0, %s5462
          %s5464 = smul.addr %s5458, 8
          %s5465 = scalar_lea.vmem %s17, %s5464
          // Predicated region
          $region93: #{tpu_custom_call.1} parent=91 // pred_check
            %p5466 = pneg %p5463
          $region94: #{tpu_custom_call.1} parent=91 // pred_check_branch
            %5468 = sbr.rel (%p5466) target = $region96
          $region95: #{tpu_custom_call.1} parent=91 // pred_region
            // Predicated region
            $region97: #{tpu_custom_call.1} parent=95 // pred_check
              _
            $region98: #{tpu_custom_call.1} parent=95 // pred_check_branch
              %5470 = sbr.rel (0) target = $region100
            $region99: #{tpu_custom_call.1} parent=95 // pred_region
              // Predicated region
              $region119: #{tpu_custom_call.1} parent=99 // pred_check
                _
              $region120: #{tpu_custom_call.1} parent=99 // pred_check_branch
                %5645 = sbr.rel (0) target = $region122
              $region121: #{tpu_custom_call.1} parent=99 // pred_region
                %s5646 = sshrl.u32 %s5461, 6
                // While loop
                $region123: #{tpu_custom_call.1} parent=121 // loop_pre_header
                  _
                $region124: #{tpu_custom_call.1} parent=121 // loop_header
                  %s5648 = sphi 0, %s5650
                  %p5649 = scmp.ge.s32.totalorder %s5648, %s5646
                  %s5653 = sphi 0, %s5786
                  %s5654 = sphi %s5454, %s5789
                  %s5655 = sphi %s5465, %s5790
                $region125: #{tpu_custom_call.1} parent=121 // loop_header_branch
                  %5652 = sbr.rel (%p5649) target = $region129
                $region126: #{tpu_custom_call.1} parent=121 // loop_body
                  %v5656 = vld [vmem:[%s5654] sm:$0xff]
                  %5657 = vst [vmem:[%s5655] sm:$0xff] %v5656
                  %v5658 = vld [vmem:[%s5654 + $0x8] sm:$0xff]
                  %5659 = vst [vmem:[%s5655 + $0x8] sm:$0xff] %v5658
                  %v5660 = vld [vmem:[%s5654 + $0x10] sm:$0xff]
                  %5661 = vst [vmem:[%s5655 + $0x10] sm:$0xff] %v5660
                  %v5662 = vld [vmem:[%s5654 + $0x18] sm:$0xff]
                  %5663 = vst [vmem:[%s5655 + $0x18] sm:$0xff] %v5662
                  %v5664 = vld [vmem:[%s5654 + $0x20] sm:$0xff]
                  %5665 = vst [vmem:[%s5655 + $0x20] sm:$0xff] %v5664
                  %v5666 = vld [vmem:[%s5654 + $0x28] sm:$0xff]
                  %5667 = vst [vmem:[%s5655 + $0x28] sm:$0xff] %v5666
                  %v5668 = vld [vmem:[%s5654 + $0x30] sm:$0xff]
                  %5669 = vst [vmem:[%s5655 + $0x30] sm:$0xff] %v5668
                  %v5670 = vld [vmem:[%s5654 + $0x38] sm:$0xff]
                  %5671 = vst [vmem:[%s5655 + $0x38] sm:$0xff] %v5670
                  %v5672 = vld [vmem:[%s5654 + $0x40] sm:$0xff]
                  %5673 = vst [vmem:[%s5655 + $0x40] sm:$0xff] %v5672
                  %v5674 = vld [vmem:[%s5654 + $0x48] sm:$0xff]
                  %5675 = vst [vmem:[%s5655 + $0x48] sm:$0xff] %v5674
                  %v5676 = vld [vmem:[%s5654 + $0x50] sm:$0xff]
                  %5677 = vst [vmem:[%s5655 + $0x50] sm:$0xff] %v5676
                  %v5678 = vld [vmem:[%s5654 + $0x58] sm:$0xff]
                  %5679 = vst [vmem:[%s5655 + $0x58] sm:$0xff] %v5678
                  %v5680 = vld [vmem:[%s5654 + $0x60] sm:$0xff]
                  %5681 = vst [vmem:[%s5655 + $0x60] sm:$0xff] %v5680
                  %v5682 = vld [vmem:[%s5654 + $0x68] sm:$0xff]
                  %5683 = vst [vmem:[%s5655 + $0x68] sm:$0xff] %v5682
                  %v5684 = vld [vmem:[%s5654 + $0x70] sm:$0xff]
                  %5685 = vst [vmem:[%s5655 + $0x70] sm:$0xff] %v5684
                  %v5686 = vld [vmem:[%s5654 + $0x78] sm:$0xff]
                  %5687 = vst [vmem:[%s5655 + $0x78] sm:$0xff] %v5686
                  %v5688 = vld [vmem:[%s5654 + $0x80] sm:$0xff]
                  %5689 = vst [vmem:[%s5655 + $0x80] sm:$0xff] %v5688
                  %v5690 = vld [vmem:[%s5654 + $0x88] sm:$0xff]
                  %5691 = vst [vmem:[%s5655 + $0x88] sm:$0xff] %v5690
                  %v5692 = vld [vmem:[%s5654 + $0x90] sm:$0xff]
                  %5693 = vst [vmem:[%s5655 + $0x90] sm:$0xff] %v5692
                  %v5694 = vld [vmem:[%s5654 + $0x98] sm:$0xff]
                  %5695 = vst [vmem:[%s5655 + $0x98] sm:$0xff] %v5694
                  %v5696 = vld [vmem:[%s5654 + $0xa0] sm:$0xff]
                  %5697 = vst [vmem:[%s5655 + $0xa0] sm:$0xff] %v5696
                  %v5698 = vld [vmem:[%s5654 + $0xa8] sm:$0xff]
                  %5699 = vst [vmem:[%s5655 + $0xa8] sm:$0xff] %v5698
                  %v5700 = vld [vmem:[%s5654 + $0xb0] sm:$0xff]
                  %5701 = vst [vmem:[%s5655 + $0xb0] sm:$0xff] %v5700
                  %v5702 = vld [vmem:[%s5654 + $0xb8] sm:$0xff]
                  %5703 = vst [vmem:[%s5655 + $0xb8] sm:$0xff] %v5702
                  %v5704 = vld [vmem:[%s5654 + $0xc0] sm:$0xff]
                  %5705 = vst [vmem:[%s5655 + $0xc0] sm:$0xff] %v5704
                  %v5706 = vld [vmem:[%s5654 + $0xc8] sm:$0xff]
                  %5707 = vst [vmem:[%s5655 + $0xc8] sm:$0xff] %v5706
                  %v5708 = vld [vmem:[%s5654 + $0xd0] sm:$0xff]
                  %5709 = vst [vmem:[%s5655 + $0xd0] sm:$0xff] %v5708
                  %v5710 = vld [vmem:[%s5654 + $0xd8] sm:$0xff]
                  %5711 = vst [vmem:[%s5655 + $0xd8] sm:$0xff] %v5710
                  %v5712 = vld [vmem:[%s5654 + $0xe0] sm:$0xff]
                  %5713 = vst [vmem:[%s5655 + $0xe0] sm:$0xff] %v5712
                  %v5714 = vld [vmem:[%s5654 + $0xe8] sm:$0xff]
                  %5715 = vst [vmem:[%s5655 + $0xe8] sm:$0xff] %v5714
                  %v5716 = vld [vmem:[%s5654 + $0xf0] sm:$0xff]
                  %5717 = vst [vmem:[%s5655 + $0xf0] sm:$0xff] %v5716
                  %v5718 = vld [vmem:[%s5654 + $0xf8] sm:$0xff]
                  %5719 = vst [vmem:[%s5655 + $0xf8] sm:$0xff] %v5718
                  %v5720 = vld [vmem:[%s5654 + $0x100] sm:$0xff]
                  %5721 = vst [vmem:[%s5655 + $0x100] sm:$0xff] %v5720
                  %v5722 = vld [vmem:[%s5654 + $0x108] sm:$0xff]
                  %5723 = vst [vmem:[%s5655 + $0x108] sm:$0xff] %v5722
                  %v5724 = vld [vmem:[%s5654 + $0x110] sm:$0xff]
                  %5725 = vst [vmem:[%s5655 + $0x110] sm:$0xff] %v5724
                  %v5726 = vld [vmem:[%s5654 + $0x118] sm:$0xff]
                  %5727 = vst [vmem:[%s5655 + $0x118] sm:$0xff] %v5726
                  %v5728 = vld [vmem:[%s5654 + $0x120] sm:$0xff]
                  %5729 = vst [vmem:[%s5655 + $0x120] sm:$0xff] %v5728
                  %v5730 = vld [vmem:[%s5654 + $0x128] sm:$0xff]
                  %5731 = vst [vmem:[%s5655 + $0x128] sm:$0xff] %v5730
                  %v5732 = vld [vmem:[%s5654 + $0x130] sm:$0xff]
                  %5733 = vst [vmem:[%s5655 + $0x130] sm:$0xff] %v5732
                  %v5734 = vld [vmem:[%s5654 + $0x138] sm:$0xff]
                  %5735 = vst [vmem:[%s5655 + $0x138] sm:$0xff] %v5734
                  %v5736 = vld [vmem:[%s5654 + $0x140] sm:$0xff]
                  %5737 = vst [vmem:[%s5655 + $0x140] sm:$0xff] %v5736
                  %v5738 = vld [vmem:[%s5654 + $0x148] sm:$0xff]
                  %5739 = vst [vmem:[%s5655 + $0x148] sm:$0xff] %v5738
                  %v5740 = vld [vmem:[%s5654 + $0x150] sm:$0xff]
                  %5741 = vst [vmem:[%s5655 + $0x150] sm:$0xff] %v5740
                  %v5742 = vld [vmem:[%s5654 + $0x158] sm:$0xff]
                  %5743 = vst [vmem:[%s5655 + $0x158] sm:$0xff] %v5742
                  %v5744 = vld [vmem:[%s5654 + $0x160] sm:$0xff]
                  %5745 = vst [vmem:[%s5655 + $0x160] sm:$0xff] %v5744
                  %v5746 = vld [vmem:[%s5654 + $0x168] sm:$0xff]
                  %5747 = vst [vmem:[%s5655 + $0x168] sm:$0xff] %v5746
                  %v5748 = vld [vmem:[%s5654 + $0x170] sm:$0xff]
                  %5749 = vst [vmem:[%s5655 + $0x170] sm:$0xff] %v5748
                  %v5750 = vld [vmem:[%s5654 + $0x178] sm:$0xff]
                  %5751 = vst [vmem:[%s5655 + $0x178] sm:$0xff] %v5750
                  %v5752 = vld [vmem:[%s5654 + $0x180] sm:$0xff]
                  %5753 = vst [vmem:[%s5655 + $0x180] sm:$0xff] %v5752
                  %v5754 = vld [vmem:[%s5654 + $0x188] sm:$0xff]
                  %5755 = vst [vmem:[%s5655 + $0x188] sm:$0xff] %v5754
                  %v5756 = vld [vmem:[%s5654 + $0x190] sm:$0xff]
                  %5757 = vst [vmem:[%s5655 + $0x190] sm:$0xff] %v5756
                  %v5758 = vld [vmem:[%s5654 + $0x198] sm:$0xff]
                  %5759 = vst [vmem:[%s5655 + $0x198] sm:$0xff] %v5758
                  %v5760 = vld [vmem:[%s5654 + $0x1a0] sm:$0xff]
                  %5761 = vst [vmem:[%s5655 + $0x1a0] sm:$0xff] %v5760
                  %v5762 = vld [vmem:[%s5654 + $0x1a8] sm:$0xff]
                  %5763 = vst [vmem:[%s5655 + $0x1a8] sm:$0xff] %v5762
                  %v5764 = vld [vmem:[%s5654 + $0x1b0] sm:$0xff]
                  %5765 = vst [vmem:[%s5655 + $0x1b0] sm:$0xff] %v5764
                  %v5766 = vld [vmem:[%s5654 + $0x1b8] sm:$0xff]
                  %5767 = vst [vmem:[%s5655 + $0x1b8] sm:$0xff] %v5766
                  %v5768 = vld [vmem:[%s5654 + $0x1c0] sm:$0xff]
                  %5769 = vst [vmem:[%s5655 + $0x1c0] sm:$0xff] %v5768
                  %v5770 = vld [vmem:[%s5654 + $0x1c8] sm:$0xff]
                  %5771 = vst [vmem:[%s5655 + $0x1c8] sm:$0xff] %v5770
                  %v5772 = vld [vmem:[%s5654 + $0x1d0] sm:$0xff]
                  %5773 = vst [vmem:[%s5655 + $0x1d0] sm:$0xff] %v5772
                  %v5774 = vld [vmem:[%s5654 + $0x1d8] sm:$0xff]
                  %5775 = vst [vmem:[%s5655 + $0x1d8] sm:$0xff] %v5774
                  %v5776 = vld [vmem:[%s5654 + $0x1e0] sm:$0xff]
                  %5777 = vst [vmem:[%s5655 + $0x1e0] sm:$0xff] %v5776
                  %v5778 = vld [vmem:[%s5654 + $0x1e8] sm:$0xff]
                  %5779 = vst [vmem:[%s5655 + $0x1e8] sm:$0xff] %v5778
                  %v5780 = vld [vmem:[%s5654 + $0x1f0] sm:$0xff]
                  %5781 = vst [vmem:[%s5655 + $0x1f0] sm:$0xff] %v5780
                  %v5782 = vld [vmem:[%s5654 + $0x1f8] sm:$0xff]
                  %5783 = vst [vmem:[%s5655 + $0x1f8] sm:$0xff] %v5782
                  %s5784 = sadd.s32 1, %s5653
                  %p5785 = scmp.ge.s32.totalorder %s5784, %s5646
                  %s5786 = scalar_select %p5785, 0, %s5784
                  %s5787 = smul.u32 %s5786, 512
                  %s5788 = smul.u32 %s5786, 512
                  %s5789 = scalar_lea.vmem %s5454, %s5787 [#allocation2]
                  %s5790 = scalar_lea.vmem %s5465, %s5788
                $region127: #{tpu_custom_call.1} parent=121 // loop_footer
                  %s5650 = sadd.s32 %s5648, 1
                $region128: #{tpu_custom_call.1} parent=121 // loop_footer_branch
                  %5647 = sbr.rel target = $region124
                $region129: #{tpu_custom_call.1} parent=121 // loop_exit
                  _
                %s5791 = sshrl.u32 %s5461, 6
                %s5792 = sand.u32 %s5461, 63
                %s5793 = smul.u32 %s5791, 64
                %s5794 = smul.u32 8, %s5793
                %s5795 = scalar_lea.vmem %s5454, %s5794 [#allocation2]
                %s5796 = smul.u32 8, %s5793
                %s5797 = scalar_lea.vmem %s5465, %s5796
                // While loop
                $region130: #{tpu_custom_call.1} parent=121 // loop_pre_header
                  _
                $region131: #{tpu_custom_call.1} parent=121 // loop_header
                  %s5799 = sphi 0, %s5801
                  %p5800 = scmp.ge.s32.totalorder %s5799, %s5792
                  %s5804 = sphi 0, %s5811
                  %s5805 = sphi %s5795, %s5814
                  %s5806 = sphi %s5797, %s5815
                $region132: #{tpu_custom_call.1} parent=121 // loop_header_branch
                  %5803 = sbr.rel (%p5800) target = $region136
                $region133: #{tpu_custom_call.1} parent=121 // loop_body
                  %v5807 = vld [vmem:[%s5805] sm:$0xff]
                  %5808 = vst [vmem:[%s5806] sm:$0xff] %v5807
                  %s5809 = sadd.s32 1, %s5804
                  %p5810 = scmp.ge.s32.totalorder %s5809, %s5792
                  %s5811 = scalar_select %p5810, 0, %s5809
                  %s5812 = smul.u32 %s5811, 8
                  %s5813 = smul.u32 %s5811, 8
                  %s5814 = scalar_lea.vmem %s5795, %s5812 [#allocation2]
                  %s5815 = scalar_lea.vmem %s5797, %s5813
                $region134: #{tpu_custom_call.1} parent=121 // loop_footer
                  %s5801 = sadd.s32 %s5799, 1
                $region135: #{tpu_custom_call.1} parent=121 // loop_footer_branch
                  %5798 = sbr.rel target = $region131
                $region136: #{tpu_custom_call.1} parent=121 // loop_exit
                  _
              $region122: #{tpu_custom_call.1} parent=99 // pred_fallthru
                _
              // Predicated region
              $region137: #{tpu_custom_call.1} parent=99 // pred_check
                _
              $region138: #{tpu_custom_call.1} parent=99 // pred_check_branch
                %5817 = sbr.rel target = $region140
              $region139: #{tpu_custom_call.1} parent=99 // pred_region
                _
              $region140: #{tpu_custom_call.1} parent=99 // pred_fallthru
                _
            $region100: #{tpu_custom_call.1} parent=95 // pred_fallthru
              _
            // Predicated region
            $region101: #{tpu_custom_call.1} parent=95 // pred_check
              _
            $region102: #{tpu_custom_call.1} parent=95 // pred_check_branch
              %5472 = sbr.rel target = $region104
            $region103: #{tpu_custom_call.1} parent=95 // pred_region
              %s5474 = sshrl.u32 %s5461, 6
              // While loop
              $region105: #{tpu_custom_call.1} parent=103 // loop_pre_header
                _
              $region106: #{tpu_custom_call.1} parent=103 // loop_header
                %s5476 = sphi 0, %s5478
                %p5477 = scmp.ge.s32.totalorder %s5476, %s5474
                %s5481 = sphi 0, %s5614
                %s5482 = sphi %s5454, %s5617
                %s5483 = sphi %s5465, %s5618
              $region107: #{tpu_custom_call.1} parent=103 // loop_header_branch
                %5480 = sbr.rel (%p5477) target = $region111
              $region108: #{tpu_custom_call.1} parent=103 // loop_body
                %v5484 = vld [vmem:[%s5482] sm:$0xff]
                %5485 = vst [vmem:[%s5483] sm:$0xff] %v5484
                %v5486 = vld [vmem:[%s5482 + $0x8] sm:$0xff]
                %5487 = vst [vmem:[%s5483 + $0x8] sm:$0xff] %v5486
                %v5488 = vld [vmem:[%s5482 + $0x10] sm:$0xff]
                %5489 = vst [vmem:[%s5483 + $0x10] sm:$0xff] %v5488
                %v5490 = vld [vmem:[%s5482 + $0x18] sm:$0xff]
                %5491 = vst [vmem:[%s5483 + $0x18] sm:$0xff] %v5490
                %v5492 = vld [vmem:[%s5482 + $0x20] sm:$0xff]
                %5493 = vst [vmem:[%s5483 + $0x20] sm:$0xff] %v5492
                %v5494 = vld [vmem:[%s5482 + $0x28] sm:$0xff]
                %5495 = vst [vmem:[%s5483 + $0x28] sm:$0xff] %v5494
                %v5496 = vld [vmem:[%s5482 + $0x30] sm:$0xff]
                %5497 = vst [vmem:[%s5483 + $0x30] sm:$0xff] %v5496
                %v5498 = vld [vmem:[%s5482 + $0x38] sm:$0xff]
                %5499 = vst [vmem:[%s5483 + $0x38] sm:$0xff] %v5498
                %v5500 = vld [vmem:[%s5482 + $0x40] sm:$0xff]
                %5501 = vst [vmem:[%s5483 + $0x40] sm:$0xff] %v5500
                %v5502 = vld [vmem:[%s5482 + $0x48] sm:$0xff]
                %5503 = vst [vmem:[%s5483 + $0x48] sm:$0xff] %v5502
                %v5504 = vld [vmem:[%s5482 + $0x50] sm:$0xff]
                %5505 = vst [vmem:[%s5483 + $0x50] sm:$0xff] %v5504
                %v5506 = vld [vmem:[%s5482 + $0x58] sm:$0xff]
                %5507 = vst [vmem:[%s5483 + $0x58] sm:$0xff] %v5506
                %v5508 = vld [vmem:[%s5482 + $0x60] sm:$0xff]
                %5509 = vst [vmem:[%s5483 + $0x60] sm:$0xff] %v5508
                %v5510 = vld [vmem:[%s5482 + $0x68] sm:$0xff]
                %5511 = vst [vmem:[%s5483 + $0x68] sm:$0xff] %v5510
                %v5512 = vld [vmem:[%s5482 + $0x70] sm:$0xff]
                %5513 = vst [vmem:[%s5483 + $0x70] sm:$0xff] %v5512
                %v5514 = vld [vmem:[%s5482 + $0x78] sm:$0xff]
                %5515 = vst [vmem:[%s5483 + $0x78] sm:$0xff] %v5514
                %v5516 = vld [vmem:[%s5482 + $0x80] sm:$0xff]
                %5517 = vst [vmem:[%s5483 + $0x80] sm:$0xff] %v5516
                %v5518 = vld [vmem:[%s5482 + $0x88] sm:$0xff]
                %5519 = vst [vmem:[%s5483 + $0x88] sm:$0xff] %v5518
                %v5520 = vld [vmem:[%s5482 + $0x90] sm:$0xff]
                %5521 = vst [vmem:[%s5483 + $0x90] sm:$0xff] %v5520
                %v5522 = vld [vmem:[%s5482 + $0x98] sm:$0xff]
                %5523 = vst [vmem:[%s5483 + $0x98] sm:$0xff] %v5522
                %v5524 = vld [vmem:[%s5482 + $0xa0] sm:$0xff]
                %5525 = vst [vmem:[%s5483 + $0xa0] sm:$0xff] %v5524
                %v5526 = vld [vmem:[%s5482 + $0xa8] sm:$0xff]
                %5527 = vst [vmem:[%s5483 + $0xa8] sm:$0xff] %v5526
                %v5528 = vld [vmem:[%s5482 + $0xb0] sm:$0xff]
                %5529 = vst [vmem:[%s5483 + $0xb0] sm:$0xff] %v5528
                %v5530 = vld [vmem:[%s5482 + $0xb8] sm:$0xff]
                %5531 = vst [vmem:[%s5483 + $0xb8] sm:$0xff] %v5530
                %v5532 = vld [vmem:[%s5482 + $0xc0] sm:$0xff]
                %5533 = vst [vmem:[%s5483 + $0xc0] sm:$0xff] %v5532
                %v5534 = vld [vmem:[%s5482 + $0xc8] sm:$0xff]
                %5535 = vst [vmem:[%s5483 + $0xc8] sm:$0xff] %v5534
                %v5536 = vld [vmem:[%s5482 + $0xd0] sm:$0xff]
                %5537 = vst [vmem:[%s5483 + $0xd0] sm:$0xff] %v5536
                %v5538 = vld [vmem:[%s5482 + $0xd8] sm:$0xff]
                %5539 = vst [vmem:[%s5483 + $0xd8] sm:$0xff] %v5538
                %v5540 = vld [vmem:[%s5482 + $0xe0] sm:$0xff]
                %5541 = vst [vmem:[%s5483 + $0xe0] sm:$0xff] %v5540
                %v5542 = vld [vmem:[%s5482 + $0xe8] sm:$0xff]
                %5543 = vst [vmem:[%s5483 + $0xe8] sm:$0xff] %v5542
                %v5544 = vld [vmem:[%s5482 + $0xf0] sm:$0xff]
                %5545 = vst [vmem:[%s5483 + $0xf0] sm:$0xff] %v5544
                %v5546 = vld [vmem:[%s5482 + $0xf8] sm:$0xff]
                %5547 = vst [vmem:[%s5483 + $0xf8] sm:$0xff] %v5546
                %v5548 = vld [vmem:[%s5482 + $0x100] sm:$0xff]
                %5549 = vst [vmem:[%s5483 + $0x100] sm:$0xff] %v5548
                %v5550 = vld [vmem:[%s5482 + $0x108] sm:$0xff]
                %5551 = vst [vmem:[%s5483 + $0x108] sm:$0xff] %v5550
                %v5552 = vld [vmem:[%s5482 + $0x110] sm:$0xff]
                %5553 = vst [vmem:[%s5483 + $0x110] sm:$0xff] %v5552
                %v5554 = vld [vmem:[%s5482 + $0x118] sm:$0xff]
                %5555 = vst [vmem:[%s5483 + $0x118] sm:$0xff] %v5554
                %v5556 = vld [vmem:[%s5482 + $0x120] sm:$0xff]
                %5557 = vst [vmem:[%s5483 + $0x120] sm:$0xff] %v5556
                %v5558 = vld [vmem:[%s5482 + $0x128] sm:$0xff]
                %5559 = vst [vmem:[%s5483 + $0x128] sm:$0xff] %v5558
                %v5560 = vld [vmem:[%s5482 + $0x130] sm:$0xff]
                %5561 = vst [vmem:[%s5483 + $0x130] sm:$0xff] %v5560
                %v5562 = vld [vmem:[%s5482 + $0x138] sm:$0xff]
                %5563 = vst [vmem:[%s5483 + $0x138] sm:$0xff] %v5562
                %v5564 = vld [vmem:[%s5482 + $0x140] sm:$0xff]
                %5565 = vst [vmem:[%s5483 + $0x140] sm:$0xff] %v5564
                %v5566 = vld [vmem:[%s5482 + $0x148] sm:$0xff]
                %5567 = vst [vmem:[%s5483 + $0x148] sm:$0xff] %v5566
                %v5568 = vld [vmem:[%s5482 + $0x150] sm:$0xff]
                %5569 = vst [vmem:[%s5483 + $0x150] sm:$0xff] %v5568
                %v5570 = vld [vmem:[%s5482 + $0x158] sm:$0xff]
                %5571 = vst [vmem:[%s5483 + $0x158] sm:$0xff] %v5570
                %v5572 = vld [vmem:[%s5482 + $0x160] sm:$0xff]
                %5573 = vst [vmem:[%s5483 + $0x160] sm:$0xff] %v5572
                %v5574 = vld [vmem:[%s5482 + $0x168] sm:$0xff]
                %5575 = vst [vmem:[%s5483 + $0x168] sm:$0xff] %v5574
                %v5576 = vld [vmem:[%s5482 + $0x170] sm:$0xff]
                %5577 = vst [vmem:[%s5483 + $0x170] sm:$0xff] %v5576
                %v5578 = vld [vmem:[%s5482 + $0x178] sm:$0xff]
                %5579 = vst [vmem:[%s5483 + $0x178] sm:$0xff] %v5578
                %v5580 = vld [vmem:[%s5482 + $0x180] sm:$0xff]
                %5581 = vst [vmem:[%s5483 + $0x180] sm:$0xff] %v5580
                %v5582 = vld [vmem:[%s5482 + $0x188] sm:$0xff]
                %5583 = vst [vmem:[%s5483 + $0x188] sm:$0xff] %v5582
                %v5584 = vld [vmem:[%s5482 + $0x190] sm:$0xff]
                %5585 = vst [vmem:[%s5483 + $0x190] sm:$0xff] %v5584
                %v5586 = vld [vmem:[%s5482 + $0x198] sm:$0xff]
                %5587 = vst [vmem:[%s5483 + $0x198] sm:$0xff] %v5586
                %v5588 = vld [vmem:[%s5482 + $0x1a0] sm:$0xff]
                %5589 = vst [vmem:[%s5483 + $0x1a0] sm:$0xff] %v5588
                %v5590 = vld [vmem:[%s5482 + $0x1a8] sm:$0xff]
                %5591 = vst [vmem:[%s5483 + $0x1a8] sm:$0xff] %v5590
                %v5592 = vld [vmem:[%s5482 + $0x1b0] sm:$0xff]
                %5593 = vst [vmem:[%s5483 + $0x1b0] sm:$0xff] %v5592
                %v5594 = vld [vmem:[%s5482 + $0x1b8] sm:$0xff]
                %5595 = vst [vmem:[%s5483 + $0x1b8] sm:$0xff] %v5594
                %v5596 = vld [vmem:[%s5482 + $0x1c0] sm:$0xff]
                %5597 = vst [vmem:[%s5483 + $0x1c0] sm:$0xff] %v5596
                %v5598 = vld [vmem:[%s5482 + $0x1c8] sm:$0xff]
                %5599 = vst [vmem:[%s5483 + $0x1c8] sm:$0xff] %v5598
                %v5600 = vld [vmem:[%s5482 + $0x1d0] sm:$0xff]
                %5601 = vst [vmem:[%s5483 + $0x1d0] sm:$0xff] %v5600
                %v5602 = vld [vmem:[%s5482 + $0x1d8] sm:$0xff]
                %5603 = vst [vmem:[%s5483 + $0x1d8] sm:$0xff] %v5602
                %v5604 = vld [vmem:[%s5482 + $0x1e0] sm:$0xff]
                %5605 = vst [vmem:[%s5483 + $0x1e0] sm:$0xff] %v5604
                %v5606 = vld [vmem:[%s5482 + $0x1e8] sm:$0xff]
                %5607 = vst [vmem:[%s5483 + $0x1e8] sm:$0xff] %v5606
                %v5608 = vld [vmem:[%s5482 + $0x1f0] sm:$0xff]
                %5609 = vst [vmem:[%s5483 + $0x1f0] sm:$0xff] %v5608
                %v5610 = vld [vmem:[%s5482 + $0x1f8] sm:$0xff]
                %5611 = vst [vmem:[%s5483 + $0x1f8] sm:$0xff] %v5610
                %s5612 = sadd.s32 1, %s5481
                %p5613 = scmp.ge.s32.totalorder %s5612, %s5474
                %s5614 = scalar_select %p5613, 0, %s5612
                %s5615 = smul.u32 %s5614, 512
                %s5616 = smul.u32 %s5614, 512
                %s5617 = scalar_lea.vmem %s5454, %s5615 [#allocation2]
                %s5618 = scalar_lea.vmem %s5465, %s5616
              $region109: #{tpu_custom_call.1} parent=103 // loop_footer
                %s5478 = sadd.s32 %s5476, 1
              $region110: #{tpu_custom_call.1} parent=103 // loop_footer_branch
                %5475 = sbr.rel target = $region106
              $region111: #{tpu_custom_call.1} parent=103 // loop_exit
                _
              %s5619 = sshrl.u32 %s5461, 6
              %s5620 = sand.u32 %s5461, 63
              %s5621 = smul.u32 %s5619, 64
              %s5622 = smul.u32 8, %s5621
              %s5623 = scalar_lea.vmem %s5454, %s5622 [#allocation2]
              %s5624 = smul.u32 8, %s5621
              %s5625 = scalar_lea.vmem %s5465, %s5624
              // While loop
              $region112: #{tpu_custom_call.1} parent=103 // loop_pre_header
                _
              $region113: #{tpu_custom_call.1} parent=103 // loop_header
                %s5627 = sphi 0, %s5629
                %p5628 = scmp.ge.s32.totalorder %s5627, %s5620
                %s5632 = sphi 0, %s5639
                %s5633 = sphi %s5623, %s5642
                %s5634 = sphi %s5625, %s5643
              $region114: #{tpu_custom_call.1} parent=103 // loop_header_branch
                %5631 = sbr.rel (%p5628) target = $region118
              $region115: #{tpu_custom_call.1} parent=103 // loop_body
                %v5635 = vld [vmem:[%s5633] sm:$0xff]
                %5636 = vst [vmem:[%s5634] sm:$0xff] %v5635
                %s5637 = sadd.s32 1, %s5632
                %p5638 = scmp.ge.s32.totalorder %s5637, %s5620
                %s5639 = scalar_select %p5638, 0, %s5637
                %s5640 = smul.u32 %s5639, 8
                %s5641 = smul.u32 %s5639, 8
                %s5642 = scalar_lea.vmem %s5623, %s5640 [#allocation2]
                %s5643 = scalar_lea.vmem %s5625, %s5641
              $region116: #{tpu_custom_call.1} parent=103 // loop_footer
                %s5629 = sadd.s32 %s5627, 1
              $region117: #{tpu_custom_call.1} parent=103 // loop_footer_branch
                %5626 = sbr.rel target = $region113
              $region118: #{tpu_custom_call.1} parent=103 // loop_exit
                _
            $region104: #{tpu_custom_call.1} parent=95 // pred_fallthru
              _
          $region96: #{tpu_custom_call.1} parent=91 // pred_fallthru
            _
          %5818 = vnop
        $region92: #{tpu_custom_call.1} parent=87 // pred_fallthru
          _
      $region88: #{tpu_custom_call.1} parent=5 // pred_fallthru
        _
      %p5819 = scmp.le.s32.totalorder 2, %s23
      // Predicated region
      $region141: #{tpu_custom_call.1} parent=5 // pred_check
        %p5820 = pneg %p5819
      $region142: #{tpu_custom_call.1} parent=5 // pred_check_branch
        %5822 = sbr.rel (%p5820) target = $region144
      $region143: #{tpu_custom_call.1} parent=5 // pred_region
        %s5823 = ssub.s32 %s23, 2
        // Predicated region
        $region145: #{tpu_custom_call.1} parent=143 // pred_check
          %p5824 = pneg %p419
        $region146: #{tpu_custom_call.1} parent=143 // pred_check_branch
          %5826 = sbr.rel (%p5824) target = $region148
        $region147: #{tpu_custom_call.1} parent=143 // pred_region
          %s5827 = sand.u32 %s404, 1
          %s5828 = sand.u32 %s404, 1
          %s5829 = smul.addr %s5828, 1024
          %s5830 = scalar_lea.vmem [#allocation2], %s5829
        $region148: #{tpu_custom_call.1} parent=143 // pred_fallthru
          _
      $region144: #{tpu_custom_call.1} parent=5 // pred_fallthru
        _
    $region6: #{tpu_custom_call.1} parent=1 // loop_footer
      %s27 = sadd.s32 1, %s23
    $region7: #{tpu_custom_call.1} parent=1 // loop_footer_branch
      %22 = sbr.rel target = $region3
    $region8: #{tpu_custom_call.1} parent=1 // loop_exit
      _

// kernel: tpu_custom_call.1
$region0: #{tpu_custom_call.1}
  #allocation0 [shape = 'u32[]', space=smem, size = 0x4, offset = 0x4, fixed_abs, tag = 'smem constant byte address 0x4 - core index']
  #allocation1 [shape = 'u32[144,128]{1,0:T(1,128)}', space=vmem, size = 0x12000, scoped, tag = 'internal scratch']
  %s0 = inlined_call_operand.vmem [shape: f32[3,2000], index: 0, kind: input, shape index: {}]
  %s1 = inlined_call_operand.vmem [shape: f32[1,2000], index: 1, kind: input, shape index: {}]
  %s2 = inlined_call_operand.vmem [shape: f32[32,3], index: 2, kind: input, shape index: {}]
  %s3 = inlined_call_operand.vmem [shape: f32[32,1], index: 3, kind: input, shape index: {}]
  %s4 = inlined_call_operand.vmem [shape: f32[32,1], index: 4, kind: input, shape index: {}]
  %s5 = inlined_call_operand.vmem [shape: bf16[32,32], index: 5, kind: input, shape index: {}]
  %s6 = inlined_call_operand.vmem [shape: f32[32,1], index: 6, kind: input, shape index: {}]
  %s7 = inlined_call_operand.vmem [shape: bf16[32,32], index: 7, kind: input, shape index: {}]
  %s8 = inlined_call_operand.vmem [shape: f32[32,1], index: 8, kind: input, shape index: {}]
  %s9 = inlined_call_operand.vmem [shape: bf16[28,32], index: 9, kind: input, shape index: {}]
  %s10 = inlined_call_operand.vmem [shape: f32[28,1], index: 10, kind: input, shape index: {}]
  %s11 = inlined_call_operand.vmem [shape: bf16[32,28], index: 11, kind: input, shape index: {}]
  %s12 = inlined_call_operand.vmem [shape: f32[32,3], index: 12, kind: input, shape index: {}]
  %s13 = inlined_call_operand.vmem [shape: f32[32,1], index: 13, kind: input, shape index: {}]
  %s14 = inlined_call_operand.vmem [shape: f32[32,1], index: 14, kind: input, shape index: {}]
  %s15 = inlined_call_operand.vmem [shape: bf16[9,32], index: 15, kind: input, shape index: {}]
  %s16 = inlined_call_operand.vmem [shape: f32[9,1], index: 16, kind: input, shape index: {}]
  %s17 = inlined_call_operand.hbm [shape: f32[9,2000], index: 17, kind: output, shape index: {}]
  %s18 = sld [smem:[#allocation0]]
  $region101: #{tpu_custom_call.1} parent=0
    _
  %s20 = ssub.s32 1, %s18
  %s21 = scalar_select 0, %s20, %s18
  $region1: #{tpu_custom_call.1} parent=0
    #allocation2 [shape = 'u8[131072]{0}', space=vmem, size = 0x20000, scoped, tag = 'output window, operand 0']
    #allocation3 [shape = 's32[2]{0}', space=sflag, size = 0x8, scoped, tag = 'scoped memory for tpu_custom_call.1']
    %22 = vsyncpa [#allocation3], 0
    %s23 = scalar_lea.sflag [#allocation3], 1
    %24 = vsyncpa %s23, 0
    loop: start=0, step=1, limit=4
    $region2: #{tpu_custom_call.1} parent=1 // loop_pre_header
      _
    $region3: #{tpu_custom_call.1} parent=1 // loop_header
      %s26 = sphi 0, %s30
      %p27 = scmp.ge.s32.totalorder %s26, 4
      %s36 = sphi 0, %s38
      %s39 = sphi 0, %s36
      %s40 = sphi 0, %s39
      %s56 = sphi 0, %s40
      %s62 = sphi 0, %s64
      %s65 = sphi 0, %s62
      %s66 = sphi 0, %s65
      %s82 = sphi 0, %s66
      %s86 = sphi 0, %s86
      %s88 = sphi 0, %s86
      %s89 = sphi 0, %s88
      %s103 = sphi 0, %s89
      %s107 = sphi 0, %s107
      %s109 = sphi 0, %s107
      %s110 = sphi 0, %s109
      %s124 = sphi 0, %s110
      %s128 = sphi 0, %s128
      %s130 = sphi 0, %s128
      %s131 = sphi 0, %s130
      %s145 = sphi 0, %s131
      %s149 = sphi 0, %s149
      %s151 = sphi 0, %s149
      %s152 = sphi 0, %s151
      %s166 = sphi 0, %s152
      %s170 = sphi 0, %s170
      %s172 = sphi 0, %s170
      %s173 = sphi 0, %s172
      %s187 = sphi 0, %s173
      %s191 = sphi 0, %s191
      %s193 = sphi 0, %s191
      %s194 = sphi 0, %s193
      %s208 = sphi 0, %s194
      %s212 = sphi 0, %s212
      %s214 = sphi 0, %s212
      %s215 = sphi 0, %s214
      %s229 = sphi 0, %s215
      %s233 = sphi 0, %s233
      %s235 = sphi 0, %s233
      %s236 = sphi 0, %s235
      %s250 = sphi 0, %s236
      %s254 = sphi 0, %s254
      %s256 = sphi 0, %s254
      %s257 = sphi 0, %s256
      %s271 = sphi 0, %s257
      %s275 = sphi 0, %s275
      %s277 = sphi 0, %s275
      %s278 = sphi 0, %s277
      %s292 = sphi 0, %s278
      %s296 = sphi 0, %s296
      %s298 = sphi 0, %s296
      %s299 = sphi 0, %s298
      %s313 = sphi 0, %s299
      %s317 = sphi 0, %s317
      %s319 = sphi 0, %s317
      %s320 = sphi 0, %s319
      %s334 = sphi 0, %s320
      %s338 = sphi 0, %s338
      %s340 = sphi 0, %s338
      %s341 = sphi 0, %s340
      %s355 = sphi 0, %s341
      %s359 = sphi 0, %s359
      %s361 = sphi 0, %s359
      %s362 = sphi 0, %s361
      %s376 = sphi 0, %s362
      %s380 = sphi 0, %s380
      %s382 = sphi 0, %s380
      %s383 = sphi 0, %s382
      %s397 = sphi 0, %s383
      %s403 = sphi 0, %s405
      %s406 = sphi 0, %s403
      %s407 = sphi 0, %s406
      %s423 = sphi 0, %s407
    $region4: #{tpu_custom_call.1} parent=1 // loop_header_branch
      %29 = sbr.rel (%p27) target = $region8
    $region5: #{tpu_custom_call.1} parent=1 // loop_body
      %s31 = ssub.s32 %s26, 1
      %s32 = ssub.s32 %s26, 2
      %s33 = sadd.s32 %s26, 1
      %s34 = ssub.s32 %s26, %s33
      %p35 = scmp.eq.s32.totalorder %s34, 0
      %s37 = sadd.s32 %s36, 1
      %s38 = scalar_select %p35, %s36, %s37
      %p41 = pneg %p35
      %p42 = scmp.eq.s32.totalorder %s26, 1
      %p43 = por %p41, %p42
      %p44 = scmp.ne.s32.totalorder %s36, %s39
      %p45 = scmp.eq.s32.totalorder %s26, 0
      %p46 = por %p44, %p45
      %p47 = scmp.ne.s32.totalorder %s36, %s39
      %p48 = scmp.eq.s32.totalorder %s31, 1
      %p49 = por %p47, %p48
      %p50 = scmp.ne.s32.totalorder %s39, %s40
      %p51 = scmp.eq.s32.totalorder %s31, 0
      %p52 = por %p50, %p51
      %p53 = scmp.ne.s32.totalorder %s39, %s40
      %p54 = scmp.eq.s32.totalorder %s32, 1
      %p55 = por %p53, %p54
      %p57 = scmp.ne.s32.totalorder %s40, %s56
      %p58 = scmp.eq.s32.totalorder %s32, 0
      %p59 = por %p57, %p58
      %s60 = ssub.s32 %s26, %s33
      %p61 = scmp.eq.s32.totalorder %s60, 0
      %s63 = sadd.s32 %s62, 1
      %s64 = scalar_select %p61, %s62, %s63
      %p67 = pneg %p61
      %p68 = scmp.eq.s32.totalorder %s26, 1
      %p69 = por %p67, %p68
      %p70 = scmp.ne.s32.totalorder %s62, %s65
      %p71 = scmp.eq.s32.totalorder %s26, 0
      %p72 = por %p70, %p71
      %p73 = scmp.ne.s32.totalorder %s62, %s65
      %p74 = scmp.eq.s32.totalorder %s31, 1
      %p75 = por %p73, %p74
      %p76 = scmp.ne.s32.totalorder %s65, %s66
      %p77 = scmp.eq.s32.totalorder %s31, 0
      %p78 = por %p76, %p77
      %p79 = scmp.ne.s32.totalorder %s65, %s66
      %p80 = scmp.eq.s32.totalorder %s32, 1
      %p81 = por %p79, %p80
      %p83 = scmp.ne.s32.totalorder %s66, %s82
      %p84 = scmp.eq.s32.totalorder %s32, 0
      %p85 = por %p83, %p84
      %s87 = sadd.s32 %s86, 1
      %p90 = scmp.eq.s32.totalorder %s26, 1
      %p91 = scmp.ne.s32.totalorder %s86, %s88
      %p92 = scmp.eq.s32.totalorder %s26, 0
      %p93 = por %p91, %p92
      %p94 = scmp.ne.s32.totalorder %s86, %s88
      %p95 = scmp.eq.s32.totalorder %s31, 1
      %p96 = por %p94, %p95
      %p97 = scmp.ne.s32.totalorder %s88, %s89
      %p98 = scmp.eq.s32.totalorder %s31, 0
      %p99 = por %p97, %p98
      %p100 = scmp.ne.s32.totalorder %s88, %s89
      %p101 = scmp.eq.s32.totalorder %s32, 1
      %p102 = por %p100, %p101
      %p104 = scmp.ne.s32.totalorder %s89, %s103
      %p105 = scmp.eq.s32.totalorder %s32, 0
      %p106 = por %p104, %p105
      %s108 = sadd.s32 %s107, 1
      %p111 = scmp.eq.s32.totalorder %s26, 1
      %p112 = scmp.ne.s32.totalorder %s107, %s109
      %p113 = scmp.eq.s32.totalorder %s26, 0
      %p114 = por %p112, %p113
      %p115 = scmp.ne.s32.totalorder %s107, %s109
      %p116 = scmp.eq.s32.totalorder %s31, 1
      %p117 = por %p115, %p116
      %p118 = scmp.ne.s32.totalorder %s109, %s110
      %p119 = scmp.eq.s32.totalorder %s31, 0
      %p120 = por %p118, %p119
      %p121 = scmp.ne.s32.totalorder %s109, %s110
      %p122 = scmp.eq.s32.totalorder %s32, 1
      %p123 = por %p121, %p122
      %p125 = scmp.ne.s32.totalorder %s110, %s124
      %p126 = scmp.eq.s32.totalorder %s32, 0
      %p127 = por %p125, %p126
      %s129 = sadd.s32 %s128, 1
      %p132 = scmp.eq.s32.totalorder %s26, 1
      %p133 = scmp.ne.s32.totalorder %s128, %s130
      %p134 = scmp.eq.s32.totalorder %s26, 0
      %p135 = por %p133, %p134
      %p136 = scmp.ne.s32.totalorder %s128, %s130
      %p137 = scmp.eq.s32.totalorder %s31, 1
      %p138 = por %p136, %p137
      %p139 = scmp.ne.s32.totalorder %s130, %s131
      %p140 = scmp.eq.s32.totalorder %s31, 0
      %p141 = por %p139, %p140
      %p142 = scmp.ne.s32.totalorder %s130, %s131
      %p143 = scmp.eq.s32.totalorder %s32, 1
      %p144 = por %p142, %p143
      %p146 = scmp.ne.s32.totalorder %s131, %s145
      %p147 = scmp.eq.s32.totalorder %s32, 0
      %p148 = por %p146, %p147
      %s150 = sadd.s32 %s149, 1
      %p153 = scmp.eq.s32.totalorder %s26, 1
      %p154 = scmp.ne.s32.totalorder %s149, %s151
      %p155 = scmp.eq.s32.totalorder %s26, 0
      %p156 = por %p154, %p155
      %p157 = scmp.ne.s32.totalorder %s149, %s151
      %p158 = scmp.eq.s32.totalorder %s31, 1
      %p159 = por %p157, %p158
      %p160 = scmp.ne.s32.totalorder %s151, %s152
      %p161 = scmp.eq.s32.totalorder %s31, 0
      %p162 = por %p160, %p161
      %p163 = scmp.ne.s32.totalorder %s151, %s152
      %p164 = scmp.eq.s32.totalorder %s32, 1
      %p165 = por %p163, %p164
      %p167 = scmp.ne.s32.totalorder %s152, %s166
      %p168 = scmp.eq.s32.totalorder %s32, 0
      %p169 = por %p167, %p168
      %s171 = sadd.s32 %s170, 1
      %p174 = scmp.eq.s32.totalorder %s26, 1
      %p175 = scmp.ne.s32.totalorder %s170, %s172
      %p176 = scmp.eq.s32.totalorder %s26, 0
      %p177 = por %p175, %p176
      %p178 = scmp.ne.s32.totalorder %s170, %s172
      %p179 = scmp.eq.s32.totalorder %s31, 1
      %p180 = por %p178, %p179
      %p181 = scmp.ne.s32.totalorder %s172, %s173
      %p182 = scmp.eq.s32.totalorder %s31, 0
      %p183 = por %p181, %p182
      %p184 = scmp.ne.s32.totalorder %s172, %s173
      %p185 = scmp.eq.s32.totalorder %s32, 1
      %p186 = por %p184, %p185
      %p188 = scmp.ne.s32.totalorder %s173, %s187
      %p189 = scmp.eq.s32.totalorder %s32, 0
      %p190 = por %p188, %p189
      %s192 = sadd.s32 %s191, 1
      %p195 = scmp.eq.s32.totalorder %s26, 1
      %p196 = scmp.ne.s32.totalorder %s191, %s193
      %p197 = scmp.eq.s32.totalorder %s26, 0
      %p198 = por %p196, %p197
      %p199 = scmp.ne.s32.totalorder %s191, %s193
      %p200 = scmp.eq.s32.totalorder %s31, 1
      %p201 = por %p199, %p200
      %p202 = scmp.ne.s32.totalorder %s193, %s194
      %p203 = scmp.eq.s32.totalorder %s31, 0
      %p204 = por %p202, %p203
      %p205 = scmp.ne.s32.totalorder %s193, %s194
      %p206 = scmp.eq.s32.totalorder %s32, 1
      %p207 = por %p205, %p206
      %p209 = scmp.ne.s32.totalorder %s194, %s208
      %p210 = scmp.eq.s32.totalorder %s32, 0
      %p211 = por %p209, %p210
      %s213 = sadd.s32 %s212, 1
      %p216 = scmp.eq.s32.totalorder %s26, 1
      %p217 = scmp.ne.s32.totalorder %s212, %s214
      %p218 = scmp.eq.s32.totalorder %s26, 0
      %p219 = por %p217, %p218
      %p220 = scmp.ne.s32.totalorder %s212, %s214
      %p221 = scmp.eq.s32.totalorder %s31, 1
      %p222 = por %p220, %p221
      %p223 = scmp.ne.s32.totalorder %s214, %s215
      %p224 = scmp.eq.s32.totalorder %s31, 0
      %p225 = por %p223, %p224
      %p226 = scmp.ne.s32.totalorder %s214, %s215
      %p227 = scmp.eq.s32.totalorder %s32, 1
      %p228 = por %p226, %p227
      %p230 = scmp.ne.s32.totalorder %s215, %s229
      %p231 = scmp.eq.s32.totalorder %s32, 0
      %p232 = por %p230, %p231
      %s234 = sadd.s32 %s233, 1
      %p237 = scmp.eq.s32.totalorder %s26, 1
      %p238 = scmp.ne.s32.totalorder %s233, %s235
      %p239 = scmp.eq.s32.totalorder %s26, 0
      %p240 = por %p238, %p239
      %p241 = scmp.ne.s32.totalorder %s233, %s235
      %p242 = scmp.eq.s32.totalorder %s31, 1
      %p243 = por %p241, %p242
      %p244 = scmp.ne.s32.totalorder %s235, %s236
      %p245 = scmp.eq.s32.totalorder %s31, 0
      %p246 = por %p244, %p245
      %p247 = scmp.ne.s32.totalorder %s235, %s236
      %p248 = scmp.eq.s32.totalorder %s32, 1
      %p249 = por %p247, %p248
      %p251 = scmp.ne.s32.totalorder %s236, %s250
      %p252 = scmp.eq.s32.totalorder %s32, 0
      %p253 = por %p251, %p252
      %s255 = sadd.s32 %s254, 1
      %p258 = scmp.eq.s32.totalorder %s26, 1
      %p259 = scmp.ne.s32.totalorder %s254, %s256
      %p260 = scmp.eq.s32.totalorder %s26, 0
      %p261 = por %p259, %p260
      %p262 = scmp.ne.s32.totalorder %s254, %s256
      %p263 = scmp.eq.s32.totalorder %s31, 1
      %p264 = por %p262, %p263
      %p265 = scmp.ne.s32.totalorder %s256, %s257
      %p266 = scmp.eq.s32.totalorder %s31, 0
      %p267 = por %p265, %p266
      %p268 = scmp.ne.s32.totalorder %s256, %s257
      %p269 = scmp.eq.s32.totalorder %s32, 1
      %p270 = por %p268, %p269
      %p272 = scmp.ne.s32.totalorder %s257, %s271
      %p273 = scmp.eq.s32.totalorder %s32, 0
      %p274 = por %p272, %p273
      %s276 = sadd.s32 %s275, 1
      %p279 = scmp.eq.s32.totalorder %s26, 1
      %p280 = scmp.ne.s32.totalorder %s275, %s277
      %p281 = scmp.eq.s32.totalorder %s26, 0
      %p282 = por %p280, %p281
      %p283 = scmp.ne.s32.totalorder %s275, %s277
      %p284 = scmp.eq.s32.totalorder %s31, 1
      %p285 = por %p283, %p284
      %p286 = scmp.ne.s32.totalorder %s277, %s278
      %p287 = scmp.eq.s32.totalorder %s31, 0
      %p288 = por %p286, %p287
      %p289 = scmp.ne.s32.totalorder %s277, %s278
      %p290 = scmp.eq.s32.totalorder %s32, 1
      %p291 = por %p289, %p290
      %p293 = scmp.ne.s32.totalorder %s278, %s292
      %p294 = scmp.eq.s32.totalorder %s32, 0
      %p295 = por %p293, %p294
      %s297 = sadd.s32 %s296, 1
      %p300 = scmp.eq.s32.totalorder %s26, 1
      %p301 = scmp.ne.s32.totalorder %s296, %s298
      %p302 = scmp.eq.s32.totalorder %s26, 0
      %p303 = por %p301, %p302
      %p304 = scmp.ne.s32.totalorder %s296, %s298
      %p305 = scmp.eq.s32.totalorder %s31, 1
      %p306 = por %p304, %p305
      %p307 = scmp.ne.s32.totalorder %s298, %s299
      %p308 = scmp.eq.s32.totalorder %s31, 0
      %p309 = por %p307, %p308
      %p310 = scmp.ne.s32.totalorder %s298, %s299
      %p311 = scmp.eq.s32.totalorder %s32, 1
      %p312 = por %p310, %p311
      %p314 = scmp.ne.s32.totalorder %s299, %s313
      %p315 = scmp.eq.s32.totalorder %s32, 0
      %p316 = por %p314, %p315
      %s318 = sadd.s32 %s317, 1
      %p321 = scmp.eq.s32.totalorder %s26, 1
      %p322 = scmp.ne.s32.totalorder %s317, %s319
      %p323 = scmp.eq.s32.totalorder %s26, 0
      %p324 = por %p322, %p323
      %p325 = scmp.ne.s32.totalorder %s317, %s319
      %p326 = scmp.eq.s32.totalorder %s31, 1
      %p327 = por %p325, %p326
      %p328 = scmp.ne.s32.totalorder %s319, %s320
      %p329 = scmp.eq.s32.totalorder %s31, 0
      %p330 = por %p328, %p329
      %p331 = scmp.ne.s32.totalorder %s319, %s320
      %p332 = scmp.eq.s32.totalorder %s32, 1
      %p333 = por %p331, %p332
      %p335 = scmp.ne.s32.totalorder %s320, %s334
      %p336 = scmp.eq.s32.totalorder %s32, 0
      %p337 = por %p335, %p336
      %s339 = sadd.s32 %s338, 1
      %p342 = scmp.eq.s32.totalorder %s26, 1
      %p343 = scmp.ne.s32.totalorder %s338, %s340
      %p344 = scmp.eq.s32.totalorder %s26, 0
      %p345 = por %p343, %p344
      %p346 = scmp.ne.s32.totalorder %s338, %s340
      %p347 = scmp.eq.s32.totalorder %s31, 1
      %p348 = por %p346, %p347
      %p349 = scmp.ne.s32.totalorder %s340, %s341
      %p350 = scmp.eq.s32.totalorder %s31, 0
      %p351 = por %p349, %p350
      %p352 = scmp.ne.s32.totalorder %s340, %s341
      %p353 = scmp.eq.s32.totalorder %s32, 1
      %p354 = por %p352, %p353
      %p356 = scmp.ne.s32.totalorder %s341, %s355
      %p357 = scmp.eq.s32.totalorder %s32, 0
      %p358 = por %p356, %p357
      %s360 = sadd.s32 %s359, 1
      %p363 = scmp.eq.s32.totalorder %s26, 1
      %p364 = scmp.ne.s32.totalorder %s359, %s361
      %p365 = scmp.eq.s32.totalorder %s26, 0
      %p366 = por %p364, %p365
      %p367 = scmp.ne.s32.totalorder %s359, %s361
      %p368 = scmp.eq.s32.totalorder %s31, 1
      %p369 = por %p367, %p368
      %p370 = scmp.ne.s32.totalorder %s361, %s362
      %p371 = scmp.eq.s32.totalorder %s31, 0
      %p372 = por %p370, %p371
      %p373 = scmp.ne.s32.totalorder %s361, %s362
      %p374 = scmp.eq.s32.totalorder %s32, 1
      %p375 = por %p373, %p374
      %p377 = scmp.ne.s32.totalorder %s362, %s376
      %p378 = scmp.eq.s32.totalorder %s32, 0
      %p379 = por %p377, %p378
      %s381 = sadd.s32 %s380, 1
      %p384 = scmp.eq.s32.totalorder %s26, 1
      %p385 = scmp.ne.s32.totalorder %s380, %s382
      %p386 = scmp.eq.s32.totalorder %s26, 0
      %p387 = por %p385, %p386
      %p388 = scmp.ne.s32.totalorder %s380, %s382
      %p389 = scmp.eq.s32.totalorder %s31, 1
      %p390 = por %p388, %p389
      %p391 = scmp.ne.s32.totalorder %s382, %s383
      %p392 = scmp.eq.s32.totalorder %s31, 0
      %p393 = por %p391, %p392
      %p394 = scmp.ne.s32.totalorder %s382, %s383
      %p395 = scmp.eq.s32.totalorder %s32, 1
      %p396 = por %p394, %p395
      %p398 = scmp.ne.s32.totalorder %s383, %s397
      %p399 = scmp.eq.s32.totalorder %s32, 0
      %p400 = por %p398, %p399
      %s401 = ssub.s32 %s26, %s33
      %p402 = scmp.eq.s32.totalorder %s401, 0
      %s404 = sadd.s32 %s403, 1
      %s405 = scalar_select %p402, %s403, %s404
      %p408 = pneg %p402
      %p409 = scmp.eq.s32.totalorder %s26, 1
      %p410 = por %p408, %p409
      %p411 = scmp.ne.s32.totalorder %s403, %s406
      %p412 = scmp.eq.s32.totalorder %s26, 0
      %p413 = por %p411, %p412
      %p414 = scmp.ne.s32.totalorder %s403, %s406
      %p415 = scmp.eq.s32.totalorder %s31, 1
      %p416 = por %p414, %p415
      %p417 = scmp.ne.s32.totalorder %s406, %s407
      %p418 = scmp.eq.s32.totalorder %s31, 0
      %p419 = por %p417, %p418
      %p420 = scmp.ne.s32.totalorder %s406, %s407
      %p421 = scmp.eq.s32.totalorder %s32, 1
      %p422 = por %p420, %p421
      %p424 = scmp.ne.s32.totalorder %s407, %s423
      %p425 = scmp.eq.s32.totalorder %s32, 0
      %p426 = por %p424, %p425
      %p427 = scmp.le.s32.totalorder 1, %s26
      %p428 = scmp.lt.s32.totalorder %s26, 3
      %p429 = pnand %p427, %p428
      %p430 = pneg %p429
      // Predicated region
      $region9: #{tpu_custom_call.1} parent=5 // pred_check
        _
      $region10: #{tpu_custom_call.1} parent=5 // pred_check_branch
        %432 = sbr.rel (%p429) target = $region12
      $region11: #{tpu_custom_call.1} parent=5 // pred_region
        %s433 = ssub.s32 %s26, 1
        // Predicated region
        $region13: #{tpu_custom_call.1} parent=11 // pred_check
          %p434 = pneg %p99
        $region14: #{tpu_custom_call.1} parent=11 // pred_check_branch
          %436 = sbr.rel (%p434) target = $region16
        $region15: #{tpu_custom_call.1} parent=11 // pred_region
          _
        $region16: #{tpu_custom_call.1} parent=11 // pred_fallthru
          _
        // Predicated region
        $region17: #{tpu_custom_call.1} parent=11 // pred_check
          %p437 = pneg %p120
        $region18: #{tpu_custom_call.1} parent=11 // pred_check_branch
          %439 = sbr.rel (%p437) target = $region20
        $region19: #{tpu_custom_call.1} parent=11 // pred_region
          _
        $region20: #{tpu_custom_call.1} parent=11 // pred_fallthru
          _
        // Predicated region
        $region21: #{tpu_custom_call.1} parent=11 // pred_check
          %p440 = pneg %p141
        $region22: #{tpu_custom_call.1} parent=11 // pred_check_branch
          %442 = sbr.rel (%p440) target = $region24
        $region23: #{tpu_custom_call.1} parent=11 // pred_region
          _
        $region24: #{tpu_custom_call.1} parent=11 // pred_fallthru
          _
        // Predicated region
        $region25: #{tpu_custom_call.1} parent=11 // pred_check
          %p443 = pneg %p162
        $region26: #{tpu_custom_call.1} parent=11 // pred_check_branch
          %445 = sbr.rel (%p443) target = $region28
        $region27: #{tpu_custom_call.1} parent=11 // pred_region
          _
        $region28: #{tpu_custom_call.1} parent=11 // pred_fallthru
          _
        // Predicated region
        $region29: #{tpu_custom_call.1} parent=11 // pred_check
          %p446 = pneg %p183
        $region30: #{tpu_custom_call.1} parent=11 // pred_check_branch
          %448 = sbr.rel (%p446) target = $region32
        $region31: #{tpu_custom_call.1} parent=11 // pred_region
          _
        $region32: #{tpu_custom_call.1} parent=11 // pred_fallthru
          _
        // Predicated region
        $region33: #{tpu_custom_call.1} parent=11 // pred_check
          %p449 = pneg %p204
        $region34: #{tpu_custom_call.1} parent=11 // pred_check_branch
          %451 = sbr.rel (%p449) target = $region36
        $region35: #{tpu_custom_call.1} parent=11 // pred_region
          _
        $region36: #{tpu_custom_call.1} parent=11 // pred_fallthru
          _
        // Predicated region
        $region37: #{tpu_custom_call.1} parent=11 // pred_check
          %p452 = pneg %p225
        $region38: #{tpu_custom_call.1} parent=11 // pred_check_branch
          %454 = sbr.rel (%p452) target = $region40
        $region39: #{tpu_custom_call.1} parent=11 // pred_region
          _
        $region40: #{tpu_custom_call.1} parent=11 // pred_fallthru
          _
        // Predicated region
        $region41: #{tpu_custom_call.1} parent=11 // pred_check
          %p455 = pneg %p246
        $region42: #{tpu_custom_call.1} parent=11 // pred_check_branch
          %457 = sbr.rel (%p455) target = $region44
        $region43: #{tpu_custom_call.1} parent=11 // pred_region
          _
        $region44: #{tpu_custom_call.1} parent=11 // pred_fallthru
          _
        // Predicated region
        $region45: #{tpu_custom_call.1} parent=11 // pred_check
          %p458 = pneg %p267
        $region46: #{tpu_custom_call.1} parent=11 // pred_check_branch
          %460 = sbr.rel (%p458) target = $region48
        $region47: #{tpu_custom_call.1} parent=11 // pred_region
          _
        $region48: #{tpu_custom_call.1} parent=11 // pred_fallthru
          _
        // Predicated region
        $region49: #{tpu_custom_call.1} parent=11 // pred_check
          %p461 = pneg %p288
        $region50: #{tpu_custom_call.1} parent=11 // pred_check_branch
          %463 = sbr.rel (%p461) target = $region52
        $region51: #{tpu_custom_call.1} parent=11 // pred_region
          _
        $region52: #{tpu_custom_call.1} parent=11 // pred_fallthru
          _
        // Predicated region
        $region53: #{tpu_custom_call.1} parent=11 // pred_check
          %p464 = pneg %p309
        $region54: #{tpu_custom_call.1} parent=11 // pred_check_branch
          %466 = sbr.rel (%p464) target = $region56
        $region55: #{tpu_custom_call.1} parent=11 // pred_region
          _
        $region56: #{tpu_custom_call.1} parent=11 // pred_fallthru
          _
        // Predicated region
        $region57: #{tpu_custom_call.1} parent=11 // pred_check
          %p467 = pneg %p330
        $region58: #{tpu_custom_call.1} parent=11 // pred_check_branch
          %469 = sbr.rel (%p467) target = $region60
        $region59: #{tpu_custom_call.1} parent=11 // pred_region
          _
        $region60: #{tpu_custom_call.1} parent=11 // pred_fallthru
          _
        // Predicated region
        $region61: #{tpu_custom_call.1} parent=11 // pred_check
          %p470 = pneg %p351
        $region62: #{tpu_custom_call.1} parent=11 // pred_check_branch
          %472 = sbr.rel (%p470) target = $region64
        $region63: #{tpu_custom_call.1} parent=11 // pred_region
          _
        $region64: #{tpu_custom_call.1} parent=11 // pred_fallthru
          _
        // Predicated region
        $region65: #{tpu_custom_call.1} parent=11 // pred_check
          %p473 = pneg %p372
        $region66: #{tpu_custom_call.1} parent=11 // pred_check_branch
          %475 = sbr.rel (%p473) target = $region68
        $region67: #{tpu_custom_call.1} parent=11 // pred_region
          _
        $region68: #{tpu_custom_call.1} parent=11 // pred_fallthru
          _
        // Predicated region
        $region69: #{tpu_custom_call.1} parent=11 // pred_check
          %p476 = pneg %p393
        $region70: #{tpu_custom_call.1} parent=11 // pred_check_branch
          %478 = sbr.rel (%p476) target = $region72
        $region71: #{tpu_custom_call.1} parent=11 // pred_region
          _
        $region72: #{tpu_custom_call.1} parent=11 // pred_fallthru
          _
      $region12: #{tpu_custom_call.1} parent=5 // pred_fallthru
        _
      %p479 = scmp.lt.s32.totalorder %s26, 2
      // Predicated region
      $region73: #{tpu_custom_call.1} parent=5 // pred_check
        %p480 = pneg %p479
      $region74: #{tpu_custom_call.1} parent=5 // pred_check_branch
        %482 = sbr.rel (%p480) target = $region76
      $region75: #{tpu_custom_call.1} parent=5 // pred_region
        // Predicated region
        $region77: #{tpu_custom_call.1} parent=75 // pred_check
          %p483 = pneg %p46
        $region78: #{tpu_custom_call.1} parent=75 // pred_check_branch
          %485 = sbr.rel (%p483) target = $region80
        $region79: #{tpu_custom_call.1} parent=75 // pred_region
          %s486 = smul.u32 8, %s26
          %p487 = scmp.lt.s32.totalorder %s486, 15
          %s488 = scalar_select %p487, %s486, 15
          %s489 = smul.addr %s488, 4
          %s490 = scalar_lea.vmem %s0, %s489
          %s491 = smul.u32 8, %s26
        $region80: #{tpu_custom_call.1} parent=75 // pred_fallthru
          _
        // Predicated region
        $region81: #{tpu_custom_call.1} parent=75 // pred_check
          %p492 = pneg %p72
        $region82: #{tpu_custom_call.1} parent=75 // pred_check_branch
          %494 = sbr.rel (%p492) target = $region84
        $region83: #{tpu_custom_call.1} parent=75 // pred_region
          %s495 = smul.u32 8, %s26
          %p496 = scmp.lt.s32.totalorder %s495, 15
          %s497 = scalar_select %p496, %s495, 15
          %s498 = scalar_lea.vmem %s1, %s497
          %s499 = smul.u32 8, %s26
        $region84: #{tpu_custom_call.1} parent=75 // pred_fallthru
          _
      $region76: #{tpu_custom_call.1} parent=5 // pred_fallthru
        _
      %p500 = scmp.le.s32.totalorder 1, %s26
      %p501 = scmp.lt.s32.totalorder %s26, 3
      %p502 = pnand %p500, %p501
      %p503 = pneg %p502
      // Predicated region
      $region85: #{tpu_custom_call.1} parent=5 // pred_check
        _
      $region86: #{tpu_custom_call.1} parent=5 // pred_check_branch
        %505 = sbr.rel (%p502) target = $region88
      $region87: #{tpu_custom_call.1} parent=5 // pred_region
        %s506 = ssub.s32 %s26, 1
        %s507 = smul.u32 8, %s31
        %p508 = scmp.lt.s32.totalorder %s507, 15
        %s509 = scalar_select %p508, %s507, 15
        %s510 = smul.addr %s509, 4
        %s511 = scalar_lea.vmem %s0, %s510
        %p512 = pneg %p52
        %p513 = pneg %p49
        %s514 = smul.u32 8, %s31
        %p515 = scmp.lt.s32.totalorder %s514, 15
        %s516 = scalar_select %p515, %s514, 15
        %s517 = scalar_lea.vmem %s1, %s516
        %p518 = pneg %p78
        %p519 = pneg %p75
        %p520 = pneg %p99
        %p521 = pneg %p96
        %p522 = pneg %p120
        %p523 = pneg %p117
        %p524 = pneg %p141
        %p525 = pneg %p138
        %p526 = pneg %p162
        %p527 = pneg %p159
        %p528 = pneg %p183
        %p529 = pneg %p180
        %p530 = pneg %p204
        %p531 = pneg %p201
        %p532 = pneg %p225
        %p533 = pneg %p222
        %p534 = pneg %p246
        %p535 = pneg %p243
        %p536 = pneg %p267
        %p537 = pneg %p264
        %p538 = pneg %p288
        %p539 = pneg %p285
        %p540 = pneg %p309
        %p541 = pneg %p306
        %p542 = pneg %p330
        %p543 = pneg %p327
        %p544 = pneg %p351
        %p545 = pneg %p348
        %p546 = pneg %p372
        %p547 = pneg %p369
        %p548 = pneg %p393
        %p549 = pneg %p390
        %p550 = pneg %p419
        %p551 = pneg %p416
        %s552 = sand.u32 %s406, 1
        %s553 = scalar_lea.sflag [#allocation3], %s552
        %s554 = sand.u32 %s406, 1
        %s555 = smul.addr %s554, 128
        %s556 = scalar_lea.vmem [#allocation2], %s555
        %s557 = smul.u32 8, %s31
        %p558 = scmp.lt.s32.totalorder %s557, 15
        %s559 = scalar_select %p558, %s557, 15
        %s560 = smul.addr %s559, 4
        %s561 = scalar_lea.vmem %s0, %s560
        %s562 = smul.u32 8, %s31
        %s563 = smul.u32 8, %s31
        %p564 = scmp.lt.s32.totalorder %s563, 15
        %s565 = scalar_select %p564, %s563, 15
        %s566 = scalar_lea.vmem %s1, %s565
        %s567 = smul.u32 8, %s31
        %s568 = smul.u32 8, %s31
        %v574 = vld [vmem:[%s566] sm:$0xff]
        %v575 = vld [vmem:[%s561] sm:$0x77]
        %v576 = vld [vmem:[%s561 + $0x8] sm:$0x77]
        %v577 = vld [vmem:[%s561 + $0x10] sm:$0x77]
        %v578 = vld [vmem:[%s561 + $0x18] sm:$0x77]
        %v579 = vld [vmem:[%s2] sm:$0xff]
        %v580 = vld [vmem:[%s2 + $0x8] sm:$0xff]
        %v581 = vld [vmem:[%s2 + $0x10] sm:$0xff]
        %v582 = vld [vmem:[%s2 + $0x18] sm:$0xff]
        %v583 = vld [vmem:[%s3] sm:$0xff]
        %v584 = vld [vmem:[%s3 + $0x8] sm:$0xff]
        %v585 = vld [vmem:[%s3 + $0x10] sm:$0xff]
        %v586 = vld [vmem:[%s3 + $0x18] sm:$0xff]
        %588 = vset.pattern.permute.xlu0 0
        %589 = vperm.xlu0 %588, %v583
        %v590 = vpop.permute.xlu0 %589
        %593 = vset.pattern.permute.xlu0 0
        %594 = vperm.xlu0 %593, %v584
        %v595 = vpop.permute.xlu0 %594
        %598 = vset.pattern.permute.xlu0 0
        %599 = vperm.xlu0 %598, %v585
        %v600 = vpop.permute.xlu0 %599
        %603 = vset.pattern.permute.xlu0 0
        %604 = vperm.xlu0 %603, %v586
        %v605 = vpop.permute.xlu0 %604
        %v608 = vlaneseq
        %v609 = vshrl.u32 %v608, 7
        %v610 = vsub.s32 0, %v609
        %v611 = vrot.slane %v574, %v610
        %v612 = vlaneseq
        %v613 = vshrl.u32 %v612, 7
        %v614 = vsub.s32 1, %v613
        %v615 = vrot.slane %v574, %v614
        %v616 = vlaneseq
        %v617 = vshrl.u32 %v616, 7
        %v618 = vsub.s32 2, %v617
        %v619 = vrot.slane %v574, %v618
        %v620 = vlaneseq
        %v621 = vshrl.u32 %v620, 7
        %v622 = vsub.s32 3, %v621
        %v623 = vrot.slane %v574, %v622
        %v624 = vlaneseq
        %v625 = vshrl.u32 %v624, 7
        %v626 = vsub.s32 4, %v625
        %v627 = vrot.slane %v574, %v626
        %v628 = vlaneseq
        %v629 = vshrl.u32 %v628, 7
        %v630 = vsub.s32 5, %v629
        %v631 = vrot.slane %v574, %v630
        %v632 = vlaneseq
        %v633 = vshrl.u32 %v632, 7
        %v634 = vsub.s32 6, %v633
        %v635 = vrot.slane %v574, %v634
        %v636 = vlaneseq
        %v637 = vshrl.u32 %v636, 7
        %v638 = vsub.s32 7, %v637
        %v639 = vrot.slane %v574, %v638
        %v648 = vmul.f32 %v590, %v611
        %v649 = vmul.f32 %v590, %v615
        %v650 = vmul.f32 %v590, %v619
        %v651 = vmul.f32 %v590, %v623
        %v652 = vmul.f32 %v590, %v627
        %v653 = vmul.f32 %v590, %v631
        %v654 = vmul.f32 %v590, %v635
        %v655 = vmul.f32 %v590, %v639
        %v656 = vmul.f32 %v595, %v611
        %v657 = vmul.f32 %v595, %v615
        %v658 = vmul.f32 %v595, %v619
        %v659 = vmul.f32 %v595, %v623
        %v660 = vmul.f32 %v595, %v627
        %v661 = vmul.f32 %v595, %v631
        %v662 = vmul.f32 %v595, %v635
        %v663 = vmul.f32 %v595, %v639
        %v664 = vmul.f32 %v600, %v611
        %v665 = vmul.f32 %v600, %v615
        %v666 = vmul.f32 %v600, %v619
        %v667 = vmul.f32 %v600, %v623
        %v668 = vmul.f32 %v600, %v627
        %v669 = vmul.f32 %v600, %v631
        %v670 = vmul.f32 %v600, %v635
        %v671 = vmul.f32 %v600, %v639
        %v672 = vmul.f32 %v605, %v611
        %v673 = vmul.f32 %v605, %v615
        %v674 = vmul.f32 %v605, %v619
        %v675 = vmul.f32 %v605, %v623
        %v676 = vmul.f32 %v605, %v627
        %v677 = vmul.f32 %v605, %v631
        %v678 = vmul.f32 %v605, %v635
        %v679 = vmul.f32 %v605, %v639
        %v684 = vcombine.high %v575, %v575
        %v685 = vcombine.high %v576, %v576
        %v686 = vcombine.high %v577, %v577
        %v687 = vcombine.high %v578, %v578
        %vm688 = vcmask 23552
        %v690 = vsel %vm688, %v579, 0
        %v693 = vsel %vm688, %v580, 0
        %v696 = vsel %vm688, %v581, 0
        %v699 = vsel %vm688, %v582, 0
        %vm701 = vcmask 1042432
        %v702 = vsel %vm701, %v575, 0
        %v704 = vsel %vm701, %v684, 0
        %v706 = vsel %vm701, %v576, 0
        %v708 = vsel %vm701, %v685, 0
        %v710 = vsel %vm701, %v577, 0
        %v712 = vsel %vm701, %v686, 0
        %v714 = vsel %vm701, %v578, 0
        %v716 = vsel %vm701, %v687, 0
        %718 = vmatprep.subr.mxu0 %v704
        %719 = vmatpush1.msra.mxu0 %v702
        %720 = vmatprep.subr.mxu0 0.0
        %721 = vmatpush1.msra.mxu0 0.0
        %722 = vmatprep.subr.mxu0 0.0
        %723 = vmatpush1.msra.mxu0 0.0
        %724 = vmatprep.subr.mxu0 0.0
        %725 = vmatpush1.msra.mxu0 0.0
        %726 = vmatprep.subr.mxu0 0.0
        %727 = vmatpush1.msra.mxu0 0.0
        %728 = vmatprep.subr.mxu0 0.0
        %729 = vmatpush1.msra.mxu0 0.0
        %730 = vmatprep.subr.mxu0 0.0
        %731 = vmatpush1.msra.mxu0 0.0
        %732 = vmatprep.subr.mxu0 0.0
        %733 = vmatpush1.msra.mxu0 0.0
        %734 = vmatprep.subr.mxu0 0.0
        %735 = vmatpush1.msra.mxu0 0.0
        %736 = vmatprep.subr.mxu0 0.0
        %737 = vmatpush1.msra.mxu0 0.0
        %738 = vmatprep.subr.mxu0 0.0
        %739 = vmatpush1.msra.mxu0 0.0
        %740 = vmatprep.subr.mxu0 0.0
        %741 = vmatpush1.msra.mxu0 0.0
        %742 = vmatprep.subr.mxu0 0.0
        %743 = vmatpush1.msra.mxu0 0.0
        %744 = vmatprep.subr.mxu0 0.0
        %745 = vmatpush1.msra.mxu0 0.0
        %746 = vmatprep.subr.mxu0 0.0
        %747 = vmatpush1.msra.mxu0 0.0
        %748 = vmatprep.subr.mxu0 0.0
        %749 = vmatpush1.msra.mxu0 0.0
        %750 = vmatprep.subr.mxu0 0.0
        %751 = vmatpush1.msra.mxu0 0.0
        %752 = vmatprep.subr.mxu0 0.0
        %753 = vmatpush1.msra.mxu0 0.0
        %754 = vmatprep.subr.mxu0 0.0
        %755 = vmatpush1.msra.mxu0 0.0
        %756 = vmatprep.subr.mxu0 0.0
        %757 = vmatpush1.msra.mxu0 0.0
        %758 = vmatprep.subr.mxu0 0.0
        %759 = vmatpush1.msra.mxu0 0.0
        %760 = vmatprep.subr.mxu0 0.0
        %761 = vmatpush1.msra.mxu0 0.0
        %762 = vmatprep.subr.mxu0 0.0
        %763 = vmatpush1.msra.mxu0 0.0
        %764 = vmatprep.subr.mxu0 0.0
        %765 = vmatpush1.msra.mxu0 0.0
        %766 = vmatprep.subr.mxu0 0.0
        %767 = vmatpush1.msra.mxu0 0.0
        %768 = vmatprep.subr.mxu0 0.0
        %769 = vmatpush1.msra.mxu0 0.0
        %770 = vmatprep.subr.mxu0 0.0
        %771 = vmatpush1.msra.mxu0 0.0
        %772 = vmatprep.subr.mxu0 0.0
        %773 = vmatpush1.msra.mxu0 0.0
        %774 = vmatprep.subr.mxu0 0.0
        %775 = vmatpush1.msra.mxu0 0.0
        %776 = vmatprep.subr.mxu0 0.0
        %777 = vmatpush1.msra.mxu0 0.0
        %778 = vmatprep.subr.mxu0 0.0
        %779 = vmatpush1.msra.mxu0 0.0
        %780 = vmatprep.subr.mxu0 0.0
        %781 = vmatpush1.msra.mxu0 0.0
        %782 = vmatprep.mubr.f32.mxu0 0.0
        %783 = vmatmul.mubr.f32.gmra.mrb[0].mxu0 %v690
        %v784 = vpop.f32.mrb[0].mxu0
        %v785 = vadd.f32 %v648, %v784
        %v786 = vpop.f32.mrb[0].mxu0
        %v787 = vadd.f32 %v649, %v786
        %788 = vmatprep.mubr.f32.mxu0 0.0
        %789 = vmatmul.mubr.f32.gmra.mrb[0].mxu0 %v693
        %v790 = vpop.f32.mrb[0].mxu0
        %v791 = vadd.f32 %v656, %v790
        %v792 = vpop.f32.mrb[0].mxu0
        %v793 = vadd.f32 %v657, %v792
        %794 = vmatprep.mubr.f32.mxu0 0.0
        %795 = vmatmul.mubr.f32.gmra.mrb[0].mxu0 %v696
        %v796 = vpop.f32.mrb[0].mxu0
        %v797 = vadd.f32 %v664, %v796
        %v798 = vpop.f32.mrb[0].mxu0
        %v799 = vadd.f32 %v665, %v798
        %800 = vmatprep.mubr.f32.mxu0 0.0
        %801 = vmatmul.mubr.f32.gmra.mrb[0].mxu0 %v699
        %v802 = vpop.f32.mrb[0].mxu0
        %v803 = vadd.f32 %v672, %v802
        %v804 = vpop.f32.mrb[0].mxu0
        %v805 = vadd.f32 %v673, %v804
        %806 = vdwg.mxu0
        %807 = vmatprep.subr.mxu0 %v708
        %808 = vmatpush1.msra.mxu0 %v706
        %809 = vmatprep.subr.mxu0 0.0
        %810 = vmatpush1.msra.mxu0 0.0
        %811 = vmatprep.subr.mxu0 0.0
        %812 = vmatpush1.msra.mxu0 0.0
        %813 = vmatprep.subr.mxu0 0.0
        %814 = vmatpush1.msra.mxu0 0.0
        %815 = vmatprep.subr.mxu0 0.0
        %816 = vmatpush1.msra.mxu0 0.0
        %817 = vmatprep.subr.mxu0 0.0
        %818 = vmatpush1.msra.mxu0 0.0
        %819 = vmatprep.subr.mxu0 0.0
        %820 = vmatpush1.msra.mxu0 0.0
        %821 = vmatprep.subr.mxu0 0.0
        %822 = vmatpush1.msra.mxu0 0.0
        %823 = vmatprep.subr.mxu0 0.0
        %824 = vmatpush1.msra.mxu0 0.0
        %825 = vmatprep.subr.mxu0 0.0
        %826 = vmatpush1.msra.mxu0 0.0
        %827 = vmatprep.subr.mxu0 0.0
        %828 = vmatpush1.msra.mxu0 0.0
        %829 = vmatprep.subr.mxu0 0.0
        %830 = vmatpush1.msra.mxu0 0.0
        %831 = vmatprep.subr.mxu0 0.0
        %832 = vmatpush1.msra.mxu0 0.0
        %833 = vmatprep.subr.mxu0 0.0
        %834 = vmatpush1.msra.mxu0 0.0
        %835 = vmatprep.subr.mxu0 0.0
        %836 = vmatpush1.msra.mxu0 0.0
        %837 = vmatprep.subr.mxu0 0.0
        %838 = vmatpush1.msra.mxu0 0.0
        %839 = vmatprep.subr.mxu0 0.0
        %840 = vmatpush1.msra.mxu0 0.0
        %841 = vmatprep.subr.mxu0 0.0
        %842 = vmatpush1.msra.mxu0 0.0
        %843 = vmatprep.subr.mxu0 0.0
        %844 = vmatpush1.msra.mxu0 0.0
        %845 = vmatprep.subr.mxu0 0.0
        %846 = vmatpush1.msra.mxu0 0.0
        %847 = vmatprep.subr.mxu0 0.0
        %848 = vmatpush1.msra.mxu0 0.0
        %849 = vmatprep.subr.mxu0 0.0
        %850 = vmatpush1.msra.mxu0 0.0
        %851 = vmatprep.subr.mxu0 0.0
        %852 = vmatpush1.msra.mxu0 0.0
        %853 = vmatprep.subr.mxu0 0.0
        %854 = vmatpush1.msra.mxu0 0.0
        %855 = vmatprep.subr.mxu0 0.0
        %856 = vmatpush1.msra.mxu0 0.0
        %857 = vmatprep.subr.mxu0 0.0
        %858 = vmatpush1.msra.mxu0 0.0
        %859 = vmatprep.subr.mxu0 0.0
        %860 = vmatpush1.msra.mxu0 0.0
        %861 = vmatprep.subr.mxu0 0.0
        %862 = vmatpush1.msra.mxu0 0.0
        %863 = vmatprep.subr.mxu0 0.0
        %864 = vmatpush1.msra.mxu0 0.0
        %865 = vmatprep.subr.mxu0 0.0
        %866 = vmatpush1.msra.mxu0 0.0
        %867 = vmatprep.subr.mxu0 0.0
        %868 = vmatpush1.msra.mxu0 0.0
        %869 = vmatprep.subr.mxu0 0.0
        %870 = vmatpush1.msra.mxu0 0.0
        %871 = vmatprep.mubr.f32.mxu0 0.0
        %872 = vmatmul.mubr.f32.gmra.mrb[0].mxu0 %v690
        %v873 = vpop.f32.mrb[0].mxu0
        %v874 = vadd.f32 %v650, %v873
        %v875 = vpop.f32.mrb[0].mxu0
        %v876 = vadd.f32 %v651, %v875
        %877 = vmatprep.mubr.f32.mxu0 0.0
        %878 = vmatmul.mubr.f32.gmra.mrb[0].mxu0 %v693
        %v879 = vpop.f32.mrb[0].mxu0
        %v880 = vadd.f32 %v658, %v879
        %v881 = vpop.f32.mrb[0].mxu0
        %v882 = vadd.f32 %v659, %v881
        %883 = vmatprep.mubr.f32.mxu0 0.0
        %884 = vmatmul.mubr.f32.gmra.mrb[0].mxu0 %v696
        %v885 = vpop.f32.mrb[0].mxu0
        %v886 = vadd.f32 %v666, %v885
        %v887 = vpop.f32.mrb[0].mxu0
        %v888 = vadd.f32 %v667, %v887
        %889 = vmatprep.mubr.f32.mxu0 0.0
        %890 = vmatmul.mubr.f32.gmra.mrb[0].mxu0 %v699
        %v891 = vpop.f32.mrb[0].mxu0
        %v892 = vadd.f32 %v674, %v891
        %v893 = vpop.f32.mrb[0].mxu0
        %v894 = vadd.f32 %v675, %v893
        %895 = vdwg.mxu0
        %896 = vmatprep.subr.mxu0 %v712
        %897 = vmatpush1.msra.mxu0 %v710
        %898 = vmatprep.subr.mxu0 0.0
        %899 = vmatpush1.msra.mxu0 0.0
        %900 = vmatprep.subr.mxu0 0.0
        %901 = vmatpush1.msra.mxu0 0.0
        %902 = vmatprep.subr.mxu0 0.0
        %903 = vmatpush1.msra.mxu0 0.0
        %904 = vmatprep.subr.mxu0 0.0
        %905 = vmatpush1.msra.mxu0 0.0
        %906 = vmatprep.subr.mxu0 0.0
        %907 = vmatpush1.msra.mxu0 0.0
        %908 = vmatprep.subr.mxu0 0.0
        %909 = vmatpush1.msra.mxu0 0.0
        %910 = vmatprep.subr.mxu0 0.0
        %911 = vmatpush1.msra.mxu0 0.0
        %912 = vmatprep.subr.mxu0 0.0
        %913 = vmatpush1.msra.mxu0 0.0
        %914 = vmatprep.subr.mxu0 0.0
        %915 = vmatpush1.msra.mxu0 0.0
        %916 = vmatprep.subr.mxu0 0.0
        %917 = vmatpush1.msra.mxu0 0.0
        %918 = vmatprep.subr.mxu0 0.0
        %919 = vmatpush1.msra.mxu0 0.0
        %920 = vmatprep.subr.mxu0 0.0
        %921 = vmatpush1.msra.mxu0 0.0
        %922 = vmatprep.subr.mxu0 0.0
        %923 = vmatpush1.msra.mxu0 0.0
        %924 = vmatprep.subr.mxu0 0.0
        %925 = vmatpush1.msra.mxu0 0.0
        %926 = vmatprep.subr.mxu0 0.0
        %927 = vmatpush1.msra.mxu0 0.0
        %928 = vmatprep.subr.mxu0 0.0
        %929 = vmatpush1.msra.mxu0 0.0
        %930 = vmatprep.subr.mxu0 0.0
        %931 = vmatpush1.msra.mxu0 0.0
        %932 = vmatprep.subr.mxu0 0.0
        %933 = vmatpush1.msra.mxu0 0.0
        %934 = vmatprep.subr.mxu0 0.0
        %935 = vmatpush1.msra.mxu0 0.0
        %936 = vmatprep.subr.mxu0 0.0
        %937 = vmatpush1.msra.mxu0 0.0
        %938 = vmatprep.subr.mxu0 0.0
        %939 = vmatpush1.msra.mxu0 0.0
        %940 = vmatprep.subr.mxu0 0.0
        %941 = vmatpush1.msra.mxu0 0.0
        %942 = vmatprep.subr.mxu0 0.0
        %943 = vmatpush1.msra.mxu0 0.0
        %944 = vmatprep.subr.mxu0 0.0
        %945 = vmatpush1.msra.mxu0 0.0
        %946 = vmatprep.subr.mxu0 0.0
        %947 = vmatpush1.msra.mxu0 0.0
        %948 = vmatprep.subr.mxu0 0.0
        %949 = vmatpush1.msra.mxu0 0.0
        %950 = vmatprep.subr.mxu0 0.0
        %951 = vmatpush1.msra.mxu0 0.0
        %952 = vmatprep.subr.mxu0 0.0
        %953 = vmatpush1.msra.mxu0 0.0
        %954 = vmatprep.subr.mxu0 0.0
        %955 = vmatpush1.msra.mxu0 0.0
        %956 = vmatprep.subr.mxu0 0.0
        %957 = vmatpush1.msra.mxu0 0.0
        %958 = vmatprep.subr.mxu0 0.0
        %959 = vmatpush1.msra.mxu0 0.0
        %960 = vmatprep.mubr.f32.mxu0 0.0
        %961 = vmatmul.mubr.f32.gmra.mrb[0].mxu0 %v690
        %v962 = vpop.f32.mrb[0].mxu0
        %v963 = vadd.f32 %v652, %v962
        %v964 = vpop.f32.mrb[0].mxu0
        %v965 = vadd.f32 %v653, %v964
        %966 = vmatprep.mubr.f32.mxu0 0.0
        %967 = vmatmul.mubr.f32.gmra.mrb[0].mxu0 %v693
        %v968 = vpop.f32.mrb[0].mxu0
        %v969 = vadd.f32 %v660, %v968
        %v970 = vpop.f32.mrb[0].mxu0
        %v971 = vadd.f32 %v661, %v970
        %972 = vmatprep.mubr.f32.mxu0 0.0
        %973 = vmatmul.mubr.f32.gmra.mrb[0].mxu0 %v696
        %v974 = vpop.f32.mrb[0].mxu0
        %v975 = vadd.f32 %v668, %v974
        %v976 = vpop.f32.mrb[0].mxu0
        %v977 = vadd.f32 %v669, %v976
        %978 = vmatprep.mubr.f32.mxu0 0.0
        %979 = vmatmul.mubr.f32.gmra.mrb[0].mxu0 %v699
        %v980 = vpop.f32.mrb[0].mxu0
        %v981 = vadd.f32 %v676, %v980
        %v982 = vpop.f32.mrb[0].mxu0
        %v983 = vadd.f32 %v677, %v982
        %984 = vdwg.mxu0
        %985 = vmatprep.subr.mxu0 %v716
        %986 = vmatpush1.msra.mxu0 %v714
        %987 = vmatprep.subr.mxu0 0.0
        %988 = vmatpush1.msra.mxu0 0.0
        %989 = vmatprep.subr.mxu0 0.0
        %990 = vmatpush1.msra.mxu0 0.0
        %991 = vmatprep.subr.mxu0 0.0
        %992 = vmatpush1.msra.mxu0 0.0
        %993 = vmatprep.subr.mxu0 0.0
        %994 = vmatpush1.msra.mxu0 0.0
        %995 = vmatprep.subr.mxu0 0.0
        %996 = vmatpush1.msra.mxu0 0.0
        %997 = vmatprep.subr.mxu0 0.0
        %998 = vmatpush1.msra.mxu0 0.0
        %999 = vmatprep.subr.mxu0 0.0
        %1000 = vmatpush1.msra.mxu0 0.0
        %1001 = vmatprep.subr.mxu0 0.0
        %1002 = vmatpush1.msra.mxu0 0.0
        %1003 = vmatprep.subr.mxu0 0.0
        %1004 = vmatpush1.msra.mxu0 0.0
        %1005 = vmatprep.subr.mxu0 0.0
        %1006 = vmatpush1.msra.mxu0 0.0
        %1007 = vmatprep.subr.mxu0 0.0
        %1008 = vmatpush1.msra.mxu0 0.0
        %1009 = vmatprep.subr.mxu0 0.0
        %1010 = vmatpush1.msra.mxu0 0.0
        %1011 = vmatprep.subr.mxu0 0.0
        %1012 = vmatpush1.msra.mxu0 0.0
        %1013 = vmatprep.subr.mxu0 0.0
        %1014 = vmatpush1.msra.mxu0 0.0
        %1015 = vmatprep.subr.mxu0 0.0
        %1016 = vmatpush1.msra.mxu0 0.0
        %1017 = vmatprep.subr.mxu0 0.0
        %1018 = vmatpush1.msra.mxu0 0.0
        %1019 = vmatprep.subr.mxu0 0.0
        %1020 = vmatpush1.msra.mxu0 0.0
        %1021 = vmatprep.subr.mxu0 0.0
        %1022 = vmatpush1.msra.mxu0 0.0
        %1023 = vmatprep.subr.mxu0 0.0
        %1024 = vmatpush1.msra.mxu0 0.0
        %1025 = vmatprep.subr.mxu0 0.0
        %1026 = vmatpush1.msra.mxu0 0.0
        %1027 = vmatprep.subr.mxu0 0.0
        %1028 = vmatpush1.msra.mxu0 0.0
        %1029 = vmatprep.subr.mxu0 0.0
        %1030 = vmatpush1.msra.mxu0 0.0
        %1031 = vmatprep.subr.mxu0 0.0
        %1032 = vmatpush1.msra.mxu0 0.0
        %1033 = vmatprep.subr.mxu0 0.0
        %1034 = vmatpush1.msra.mxu0 0.0
        %1035 = vmatprep.subr.mxu0 0.0
        %1036 = vmatpush1.msra.mxu0 0.0
        %1037 = vmatprep.subr.mxu0 0.0
        %1038 = vmatpush1.msra.mxu0 0.0
        %1039 = vmatprep.subr.mxu0 0.0
        %1040 = vmatpush1.msra.mxu0 0.0
        %1041 = vmatprep.subr.mxu0 0.0
        %1042 = vmatpush1.msra.mxu0 0.0
        %1043 = vmatprep.subr.mxu0 0.0
        %1044 = vmatpush1.msra.mxu0 0.0
        %1045 = vmatprep.subr.mxu0 0.0
        %1046 = vmatpush1.msra.mxu0 0.0
        %1047 = vmatprep.subr.mxu0 0.0
        %1048 = vmatpush1.msra.mxu0 0.0
        %1049 = vmatprep.mubr.f32.mxu0 0.0
        %1050 = vmatmul.mubr.f32.gmra.mrb[0].mxu0 %v690
        %v1051 = vpop.f32.mrb[0].mxu0
        %v1052 = vadd.f32 %v654, %v1051
        %v1053 = vpop.f32.mrb[0].mxu0
        %v1054 = vadd.f32 %v655, %v1053
        %1055 = vmatprep.mubr.f32.mxu0 0.0
        %1056 = vmatmul.mubr.f32.gmra.mrb[0].mxu0 %v693
        %v1057 = vpop.f32.mrb[0].mxu0
        %v1058 = vadd.f32 %v662, %v1057
        %v1059 = vpop.f32.mrb[0].mxu0
        %v1060 = vadd.f32 %v663, %v1059
        %1061 = vmatprep.mubr.f32.mxu0 0.0
        %1062 = vmatmul.mubr.f32.gmra.mrb[0].mxu0 %v696
        %v1063 = vpop.f32.mrb[0].mxu0
        %v1064 = vadd.f32 %v670, %v1063
        %v1065 = vpop.f32.mrb[0].mxu0
        %v1066 = vadd.f32 %v671, %v1065
        %1067 = vmatprep.mubr.f32.mxu0 0.0
        %1068 = vmatmul.mubr.f32.gmra.mrb[0].mxu0 %v699
        %v1069 = vpop.f32.mrb[0].mxu0
        %v1070 = vadd.f32 %v678, %v1069
        %v1071 = vpop.f32.mrb[0].mxu0
        %v1072 = vadd.f32 %v679, %v1071
        %1073 = vdwg.mxu0
        %v1074 = vld [vmem:[%s4] sm:$0xff]
        %v1075 = vld [vmem:[%s4 + $0x8] sm:$0xff]
        %v1076 = vld [vmem:[%s4 + $0x10] sm:$0xff]
        %v1077 = vld [vmem:[%s4 + $0x18] sm:$0xff]
        %1079 = vset.pattern.permute.xlu0 0
        %1080 = vperm.xlu0 %1079, %v1074
        %v1081 = vpop.permute.xlu0 %1080
        %1084 = vset.pattern.permute.xlu0 0
        %1085 = vperm.xlu0 %1084, %v1075
        %v1086 = vpop.permute.xlu0 %1085
        %1089 = vset.pattern.permute.xlu0 0
        %1090 = vperm.xlu0 %1089, %v1076
        %v1091 = vpop.permute.xlu0 %1090
        %1094 = vset.pattern.permute.xlu0 0
        %1095 = vperm.xlu0 %1094, %v1077
        %v1096 = vpop.permute.xlu0 %1095
        %v1098 = vadd.f32 %v785, %v1081
        %v1099 = vadd.f32 %v787, %v1081
        %v1100 = vadd.f32 %v874, %v1081
        %v1101 = vadd.f32 %v876, %v1081
        %v1102 = vadd.f32 %v963, %v1081
        %v1103 = vadd.f32 %v965, %v1081
        %v1104 = vadd.f32 %v1052, %v1081
        %v1105 = vadd.f32 %v1054, %v1081
        %v1106 = vadd.f32 %v791, %v1086
        %v1107 = vadd.f32 %v793, %v1086
        %v1108 = vadd.f32 %v880, %v1086
        %v1109 = vadd.f32 %v882, %v1086
        %v1110 = vadd.f32 %v969, %v1086
        %v1111 = vadd.f32 %v971, %v1086
        %v1112 = vadd.f32 %v1058, %v1086
        %v1113 = vadd.f32 %v1060, %v1086
        %v1114 = vadd.f32 %v797, %v1091
        %v1115 = vadd.f32 %v799, %v1091
        %v1116 = vadd.f32 %v886, %v1091
        %v1117 = vadd.f32 %v888, %v1091
        %v1118 = vadd.f32 %v975, %v1091
        %v1119 = vadd.f32 %v977, %v1091
        %v1120 = vadd.f32 %v1064, %v1091
        %v1121 = vadd.f32 %v1066, %v1091
        %v1122 = vadd.f32 %v803, %v1096
        %v1123 = vadd.f32 %v805, %v1096
        %v1124 = vadd.f32 %v892, %v1096
        %v1125 = vadd.f32 %v894, %v1096
        %v1126 = vadd.f32 %v981, %v1096
        %v1127 = vadd.f32 %v983, %v1096
        %v1128 = vadd.f32 %v1070, %v1096
        %v1129 = vadd.f32 %v1072, %v1096
        %v1130 = vpack.c.bf16 %v1106, %v1098
        %v1131 = vpack.c.bf16 %v1107, %v1099
        %v1132 = vpack.c.bf16 %v1108, %v1100
        %v1133 = vpack.c.bf16 %v1109, %v1101
        %v1134 = vpack.c.bf16 %v1110, %v1102
        %v1135 = vpack.c.bf16 %v1111, %v1103
        %v1136 = vpack.c.bf16 %v1112, %v1104
        %v1137 = vpack.c.bf16 %v1113, %v1105
        %v1138 = vpack.c.bf16 %v1122, %v1114
        %v1139 = vpack.c.bf16 %v1123, %v1115
        %v1140 = vpack.c.bf16 %v1124, %v1116
        %v1141 = vpack.c.bf16 %v1125, %v1117
        %v1142 = vpack.c.bf16 %v1126, %v1118
        %v1143 = vpack.c.bf16 %v1127, %v1119
        %v1144 = vpack.c.bf16 %v1128, %v1120
        %v1145 = vpack.c.bf16 %v1129, %v1121
        %v1146 = vmul.bf16 %v1130, 1120420552
        %v1147 = vmul.bf16 %v1131, 1120420552
        %v1148 = vmul.bf16 %v1132, 1120420552
        %v1149 = vmul.bf16 %v1133, 1120420552
        %v1150 = vmul.bf16 %v1134, 1120420552
        %v1151 = vmul.bf16 %v1135, 1120420552
        %v1152 = vmul.bf16 %v1136, 1120420552
        %v1153 = vmul.bf16 %v1137, 1120420552
        %v1154 = vmul.bf16 %v1138, 1120420552
        %v1155 = vmul.bf16 %v1139, 1120420552
        %v1156 = vmul.bf16 %v1140, 1120420552
        %v1157 = vmul.bf16 %v1141, 1120420552
        %v1158 = vmul.bf16 %v1142, 1120420552
        %v1159 = vmul.bf16 %v1143, 1120420552
        %v1160 = vmul.bf16 %v1144, 1120420552
        %v1161 = vmul.bf16 %v1145, 1120420552
        %v1162 = vmin.bf16 %v1146, 1101021600
        %v1163 = vmin.bf16 %v1147, 1101021600
        %v1164 = vmin.bf16 %v1148, 1101021600
        %v1165 = vmin.bf16 %v1149, 1101021600
        %v1166 = vmin.bf16 %v1150, 1101021600
        %v1167 = vmin.bf16 %v1151, 1101021600
        %v1168 = vmin.bf16 %v1152, 1101021600
        %v1169 = vmin.bf16 %v1153, 1101021600
        %v1170 = vmin.bf16 %v1154, 1101021600
        %v1171 = vmin.bf16 %v1155, 1101021600
        %v1172 = vmin.bf16 %v1156, 1101021600
        %v1173 = vmin.bf16 %v1157, 1101021600
        %v1174 = vmin.bf16 %v1158, 1101021600
        %v1175 = vmin.bf16 %v1159, 1101021600
        %v1176 = vmin.bf16 %v1160, 1101021600
        %v1177 = vmin.bf16 %v1161, 1101021600
        %v1179 = vmul.bf16 %v1162, 1069105081
        %v1180 = vpow.bf16.pop %v1179
        %v1182 = vmul.bf16 %v1163, 1069105081
        %v1183 = vpow.bf16.pop %v1182
        %v1185 = vmul.bf16 %v1164, 1069105081
        %v1186 = vpow.bf16.pop %v1185
        %v1188 = vmul.bf16 %v1165, 1069105081
        %v1189 = vpow.bf16.pop %v1188
        %v1191 = vmul.bf16 %v1166, 1069105081
        %v1192 = vpow.bf16.pop %v1191
        %v1194 = vmul.bf16 %v1167, 1069105081
        %v1195 = vpow.bf16.pop %v1194
        %v1197 = vmul.bf16 %v1168, 1069105081
        %v1198 = vpow.bf16.pop %v1197
        %v1200 = vmul.bf16 %v1169, 1069105081
        %v1201 = vpow.bf16.pop %v1200
        %v1203 = vmul.bf16 %v1170, 1069105081
        %v1204 = vpow.bf16.pop %v1203
        %v1206 = vmul.bf16 %v1171, 1069105081
        %v1207 = vpow.bf16.pop %v1206
        %v1209 = vmul.bf16 %v1172, 1069105081
        %v1210 = vpow.bf16.pop %v1209
        %v1212 = vmul.bf16 %v1173, 1069105081
        %v1213 = vpow.bf16.pop %v1212
        %v1215 = vmul.bf16 %v1174, 1069105081
        %v1216 = vpow.bf16.pop %v1215
        %v1218 = vmul.bf16 %v1175, 1069105081
        %v1219 = vpow.bf16.pop %v1218
        %v1221 = vmul.bf16 %v1176, 1069105081
        %v1222 = vpow.bf16.pop %v1221
        %v1224 = vmul.bf16 %v1177, 1069105081
        %v1225 = vpow.bf16.pop %v1224
        %v1226 = vadd.bf16 %v1180, 1065369472
        %v1227 = vadd.bf16 %v1183, 1065369472
        %v1228 = vadd.bf16 %v1186, 1065369472
        %v1229 = vadd.bf16 %v1189, 1065369472
        %v1230 = vadd.bf16 %v1192, 1065369472
        %v1231 = vadd.bf16 %v1195, 1065369472
        %v1232 = vadd.bf16 %v1198, 1065369472
        %v1233 = vadd.bf16 %v1201, 1065369472
        %v1234 = vadd.bf16 %v1204, 1065369472
        %v1235 = vadd.bf16 %v1207, 1065369472
        %v1236 = vadd.bf16 %v1210, 1065369472
        %v1237 = vadd.bf16 %v1213, 1065369472
        %v1238 = vadd.bf16 %v1216, 1065369472
        %v1239 = vadd.bf16 %v1219, 1065369472
        %v1240 = vadd.bf16 %v1222, 1065369472
        %v1241 = vadd.bf16 %v1225, 1065369472
        %v1242 = vlog2.bf16.pop %v1226
        %v1244 = vmul.bf16 %v1242, 1060192049
        %v1245 = vlog2.bf16.pop %v1227
        %v1247 = vmul.bf16 %v1245, 1060192049
        %v1248 = vlog2.bf16.pop %v1228
        %v1250 = vmul.bf16 %v1248, 1060192049
        %v1251 = vlog2.bf16.pop %v1229
        %v1253 = vmul.bf16 %v1251, 1060192049
        %v1254 = vlog2.bf16.pop %v1230
        %v1256 = vmul.bf16 %v1254, 1060192049
        %v1257 = vlog2.bf16.pop %v1231
        %v1259 = vmul.bf16 %v1257, 1060192049
        %v1260 = vlog2.bf16.pop %v1232
        %v1262 = vmul.bf16 %v1260, 1060192049
        %v1263 = vlog2.bf16.pop %v1233
        %v1265 = vmul.bf16 %v1263, 1060192049
        %v1266 = vlog2.bf16.pop %v1234
        %v1268 = vmul.bf16 %v1266, 1060192049
        %v1269 = vlog2.bf16.pop %v1235
        %v1271 = vmul.bf16 %v1269, 1060192049
        %v1272 = vlog2.bf16.pop %v1236
        %v1274 = vmul.bf16 %v1272, 1060192049
        %v1275 = vlog2.bf16.pop %v1237
        %v1277 = vmul.bf16 %v1275, 1060192049
        %v1278 = vlog2.bf16.pop %v1238
        %v1280 = vmul.bf16 %v1278, 1060192049
        %v1281 = vlog2.bf16.pop %v1239
        %v1283 = vmul.bf16 %v1281, 1060192049
        %v1284 = vlog2.bf16.pop %v1240
        %v1286 = vmul.bf16 %v1284, 1060192049
        %v1287 = vlog2.bf16.pop %v1241
        %v1289 = vmul.bf16 %v1287, 1060192049
        %v1290 = vmul.bf16 %v1244, 1009007652
        %v1291 = vmul.bf16 %v1247, 1009007652
        %v1292 = vmul.bf16 %v1250, 1009007652
        %v1293 = vmul.bf16 %v1253, 1009007652
        %v1294 = vmul.bf16 %v1256, 1009007652
        %v1295 = vmul.bf16 %v1259, 1009007652
        %v1296 = vmul.bf16 %v1262, 1009007652
        %v1297 = vmul.bf16 %v1265, 1009007652
        %v1298 = vmul.bf16 %v1268, 1009007652
        %v1299 = vmul.bf16 %v1271, 1009007652
        %v1300 = vmul.bf16 %v1274, 1009007652
        %v1301 = vmul.bf16 %v1277, 1009007652
        %v1302 = vmul.bf16 %v1280, 1009007652
        %v1303 = vmul.bf16 %v1283, 1009007652
        %v1304 = vmul.bf16 %v1286, 1009007652
        %v1305 = vmul.bf16 %v1289, 1009007652
        %vm1306 = vcmp.gt.bf16.partialorder %v1146, 1101021600
        %vm1307 = vcmp.gt.bf16.partialorder %v1147, 1101021600
        %vm1308 = vcmp.gt.bf16.partialorder %v1148, 1101021600
        %vm1309 = vcmp.gt.bf16.partialorder %v1149, 1101021600
        %vm1310 = vcmp.gt.bf16.partialorder %v1150, 1101021600
        %vm1311 = vcmp.gt.bf16.partialorder %v1151, 1101021600
        %vm1312 = vcmp.gt.bf16.partialorder %v1152, 1101021600
        %vm1313 = vcmp.gt.bf16.partialorder %v1153, 1101021600
        %vm1314 = vcmp.gt.bf16.partialorder %v1154, 1101021600
        %vm1315 = vcmp.gt.bf16.partialorder %v1155, 1101021600
        %vm1316 = vcmp.gt.bf16.partialorder %v1156, 1101021600
        %vm1317 = vcmp.gt.bf16.partialorder %v1157, 1101021600
        %vm1318 = vcmp.gt.bf16.partialorder %v1158, 1101021600
        %vm1319 = vcmp.gt.bf16.partialorder %v1159, 1101021600
        %vm1320 = vcmp.gt.bf16.partialorder %v1160, 1101021600
        %vm1321 = vcmp.gt.bf16.partialorder %v1161, 1101021600
        %v1322 = vsel %vm1306, %v1130, %v1290
        %v1323 = vsel %vm1307, %v1131, %v1291
        %v1324 = vsel %vm1308, %v1132, %v1292
        %v1325 = vsel %vm1309, %v1133, %v1293
        %v1326 = vsel %vm1310, %v1134, %v1294
        %v1327 = vsel %vm1311, %v1135, %v1295
        %v1328 = vsel %vm1312, %v1136, %v1296
        %v1329 = vsel %vm1313, %v1137, %v1297
        %v1330 = vsel %vm1314, %v1138, %v1298
        %v1331 = vsel %vm1315, %v1139, %v1299
        %v1332 = vsel %vm1316, %v1140, %v1300
        %v1333 = vsel %vm1317, %v1141, %v1301
        %v1334 = vsel %vm1318, %v1142, %v1302
        %v1335 = vsel %vm1319, %v1143, %v1303
        %v1336 = vsel %vm1320, %v1144, %v1304
        %v1337 = vsel %vm1321, %v1145, %v1305
        %v1338 = vld [vmem:[%s5] sm:$0xf]
        %v1339 = vld [vmem:[%s5 + $0x4] sm:$0xf]
        %v1340 = vld [vmem:[%s5 + $0x8] sm:$0xf]
        %v1341 = vld [vmem:[%s5 + $0xc] sm:$0xf]
        %v1342 = vld [vmem:[%s6] sm:$0xff]
        %v1343 = vld [vmem:[%s6 + $0x8] sm:$0xff]
        %v1344 = vld [vmem:[%s6 + $0x10] sm:$0xff]
        %v1345 = vld [vmem:[%s6 + $0x18] sm:$0xff]
        %1347 = vset.pattern.permute.xlu0 0
        %1348 = vperm.xlu0 %1347, %v1342
        %v1349 = vpop.permute.xlu0 %1348
        %1352 = vset.pattern.permute.xlu0 0
        %1353 = vperm.xlu0 %1352, %v1343
        %v1354 = vpop.permute.xlu0 %1353
        %1357 = vset.pattern.permute.xlu0 0
        %1358 = vperm.xlu0 %1357, %v1344
        %v1359 = vpop.permute.xlu0 %1358
        %1362 = vset.pattern.permute.xlu0 0
        %1363 = vperm.xlu0 %1362, %v1345
        %v1364 = vpop.permute.xlu0 %1363
        %v1370 = vunpack.c.l.b16 %v1338
        %v1371 = vunpack.c.l.b16 %v1339
        %v1372 = vunpack.c.l.b16 %v1340
        %v1373 = vunpack.c.l.b16 %v1341
        %v1374 = vpack.c.b16 %v1371, %v1370
        %v1375 = vpack.c.b16 %v1373, %v1372
        %vm1376 = vcmask 261120
        %v1378 = vsel %vm1376, %v1374, 0
        %v1381 = vsel %vm1376, %v1375, 0
        %1383 = vmatprep.subr.bf16.mxu0 %v1323
        %1384 = vmatpush1.bf16.msra.mxu0 %v1322
        %1385 = vmatprep.subr.bf16.mxu0 %v1331
        %1386 = vmatpush1.bf16.msra.mxu0 %v1330
        %1387 = vmatprep.subr.bf16.mxu0 0
        %1388 = vmatpush1.bf16.msra.mxu0 0
        %1389 = vmatprep.subr.bf16.mxu0 0
        %1390 = vmatpush1.bf16.msra.mxu0 0
        %1391 = vmatprep.subr.bf16.mxu0 0
        %1392 = vmatpush1.bf16.msra.mxu0 0
        %1393 = vmatprep.subr.bf16.mxu0 0
        %1394 = vmatpush1.bf16.msra.mxu0 0
        %1395 = vmatprep.subr.bf16.mxu0 0
        %1396 = vmatpush1.bf16.msra.mxu0 0
        %1397 = vmatprep.subr.bf16.mxu0 0
        %1398 = vmatpush1.bf16.msra.mxu0 0
        %1399 = vmatprep.subr.bf16.mxu0 0
        %1400 = vmatpush1.bf16.msra.mxu0 0
        %1401 = vmatprep.subr.bf16.mxu0 0
        %1402 = vmatpush1.bf16.msra.mxu0 0
        %1403 = vmatprep.subr.bf16.mxu0 0
        %1404 = vmatpush1.bf16.msra.mxu0 0
        %1405 = vmatprep.subr.bf16.mxu0 0
        %1406 = vmatpush1.bf16.msra.mxu0 0
        %1407 = vmatprep.subr.bf16.mxu0 0
        %1408 = vmatpush1.bf16.msra.mxu0 0
        %1409 = vmatprep.subr.bf16.mxu0 0
        %1410 = vmatpush1.bf16.msra.mxu0 0
        %1411 = vmatprep.subr.bf16.mxu0 0
        %1412 = vmatpush1.bf16.msra.mxu0 0
        %1413 = vmatprep.subr.bf16.mxu0 0
        %1414 = vmatpush1.bf16.msra.mxu0 0
        %1415 = vmatprep.mubr.bf16.mxu0 0
        %1416 = vmatmul.mubr.bf16.gmra.mrb[0].mxu0 %v1378
        %v1417 = vpop.f32.mrb[0].mxu0
        %v1418 = vadd.f32 %v1349, %v1417
        %v1419 = vpop.f32.mrb[0].mxu0
        %v1420 = vadd.f32 %v1349, %v1419
        %v1421 = vpop.f32.mrb[0].mxu0
        %v1422 = vadd.f32 %v1354, %v1421
        %v1423 = vpop.f32.mrb[0].mxu0
        %v1424 = vadd.f32 %v1354, %v1423
        %1425 = vmatprep.mubr.bf16.mxu0 0
        %1426 = vmatmul.mubr.bf16.gmra.mrb[0].mxu0 %v1381
        %v1427 = vpop.f32.mrb[0].mxu0
        %v1428 = vadd.f32 %v1359, %v1427
        %v1429 = vpop.f32.mrb[0].mxu0
        %v1430 = vadd.f32 %v1359, %v1429
        %v1431 = vpop.f32.mrb[0].mxu0
        %v1432 = vadd.f32 %v1364, %v1431
        %v1433 = vpop.f32.mrb[0].mxu0
        %v1434 = vadd.f32 %v1364, %v1433
        %1435 = vdwg.mxu0
        %1436 = vmatprep.subr.bf16.mxu0 %v1325
        %1437 = vmatpush1.bf16.msra.mxu0 %v1324
        %1438 = vmatprep.subr.bf16.mxu0 %v1333
        %1439 = vmatpush1.bf16.msra.mxu0 %v1332
        %1440 = vmatprep.subr.bf16.mxu0 0
        %1441 = vmatpush1.bf16.msra.mxu0 0
        %1442 = vmatprep.subr.bf16.mxu0 0
        %1443 = vmatpush1.bf16.msra.mxu0 0
        %1444 = vmatprep.subr.bf16.mxu0 0
        %1445 = vmatpush1.bf16.msra.mxu0 0
        %1446 = vmatprep.subr.bf16.mxu0 0
        %1447 = vmatpush1.bf16.msra.mxu0 0
        %1448 = vmatprep.subr.bf16.mxu0 0
        %1449 = vmatpush1.bf16.msra.mxu0 0
        %1450 = vmatprep.subr.bf16.mxu0 0
        %1451 = vmatpush1.bf16.msra.mxu0 0
        %1452 = vmatprep.subr.bf16.mxu0 0
        %1453 = vmatpush1.bf16.msra.mxu0 0
        %1454 = vmatprep.subr.bf16.mxu0 0
        %1455 = vmatpush1.bf16.msra.mxu0 0
        %1456 = vmatprep.subr.bf16.mxu0 0
        %1457 = vmatpush1.bf16.msra.mxu0 0
        %1458 = vmatprep.subr.bf16.mxu0 0
        %1459 = vmatpush1.bf16.msra.mxu0 0
        %1460 = vmatprep.subr.bf16.mxu0 0
        %1461 = vmatpush1.bf16.msra.mxu0 0
        %1462 = vmatprep.subr.bf16.mxu0 0
        %1463 = vmatpush1.bf16.msra.mxu0 0
        %1464 = vmatprep.subr.bf16.mxu0 0
        %1465 = vmatpush1.bf16.msra.mxu0 0
        %1466 = vmatprep.subr.bf16.mxu0 0
        %1467 = vmatpush1.bf16.msra.mxu0 0
        %1468 = vmatprep.mubr.bf16.mxu0 0
        %1469 = vmatmul.mubr.bf16.gmra.mrb[0].mxu0 %v1378
        %v1470 = vpop.f32.mrb[0].mxu0
        %v1471 = vadd.f32 %v1349, %v1470
        %v1472 = vpop.f32.mrb[0].mxu0
        %v1473 = vadd.f32 %v1349, %v1472
        %v1474 = vpop.f32.mrb[0].mxu0
        %v1475 = vadd.f32 %v1354, %v1474
        %v1476 = vpop.f32.mrb[0].mxu0
        %v1477 = vadd.f32 %v1354, %v1476
        %1478 = vmatprep.mubr.bf16.mxu0 0
        %1479 = vmatmul.mubr.bf16.gmra.mrb[0].mxu0 %v1381
        %v1480 = vpop.f32.mrb[0].mxu0
        %v1481 = vadd.f32 %v1359, %v1480
        %v1482 = vpop.f32.mrb[0].mxu0
        %v1483 = vadd.f32 %v1359, %v1482
        %v1484 = vpop.f32.mrb[0].mxu0
        %v1485 = vadd.f32 %v1364, %v1484
        %v1486 = vpop.f32.mrb[0].mxu0
        %v1487 = vadd.f32 %v1364, %v1486
        %1488 = vdwg.mxu0
        %1489 = vmatprep.subr.bf16.mxu0 %v1327
        %1490 = vmatpush1.bf16.msra.mxu0 %v1326
        %1491 = vmatprep.subr.bf16.mxu0 %v1335
        %1492 = vmatpush1.bf16.msra.mxu0 %v1334
        %1493 = vmatprep.subr.bf16.mxu0 0
        %1494 = vmatpush1.bf16.msra.mxu0 0
        %1495 = vmatprep.subr.bf16.mxu0 0
        %1496 = vmatpush1.bf16.msra.mxu0 0
        %1497 = vmatprep.subr.bf16.mxu0 0
        %1498 = vmatpush1.bf16.msra.mxu0 0
        %1499 = vmatprep.subr.bf16.mxu0 0
        %1500 = vmatpush1.bf16.msra.mxu0 0
        %1501 = vmatprep.subr.bf16.mxu0 0
        %1502 = vmatpush1.bf16.msra.mxu0 0
        %1503 = vmatprep.subr.bf16.mxu0 0
        %1504 = vmatpush1.bf16.msra.mxu0 0
        %1505 = vmatprep.subr.bf16.mxu0 0
        %1506 = vmatpush1.bf16.msra.mxu0 0
        %1507 = vmatprep.subr.bf16.mxu0 0
        %1508 = vmatpush1.bf16.msra.mxu0 0
        %1509 = vmatprep.subr.bf16.mxu0 0
        %1510 = vmatpush1.bf16.msra.mxu0 0
        %1511 = vmatprep.subr.bf16.mxu0 0
        %1512 = vmatpush1.bf16.msra.mxu0 0
        %1513 = vmatprep.subr.bf16.mxu0 0
        %1514 = vmatpush1.bf16.msra.mxu0 0
        %1515 = vmatprep.subr.bf16.mxu0 0
        %1516 = vmatpush1.bf16.msra.mxu0 0
        %1517 = vmatprep.subr.bf16.mxu0 0
        %1518 = vmatpush1.bf16.msra.mxu0 0
        %1519 = vmatprep.subr.bf16.mxu0 0
        %1520 = vmatpush1.bf16.msra.mxu0 0
        %1521 = vmatprep.mubr.bf16.mxu0 0
        %1522 = vmatmul.mubr.bf16.gmra.mrb[0].mxu0 %v1378
        %v1523 = vpop.f32.mrb[0].mxu0
        %v1524 = vadd.f32 %v1349, %v1523
        %v1525 = vpop.f32.mrb[0].mxu0
        %v1526 = vadd.f32 %v1349, %v1525
        %v1527 = vpop.f32.mrb[0].mxu0
        %v1528 = vadd.f32 %v1354, %v1527
        %v1529 = vpop.f32.mrb[0].mxu0
        %v1530 = vadd.f32 %v1354, %v1529
        %1531 = vmatprep.mubr.bf16.mxu0 0
        %1532 = vmatmul.mubr.bf16.gmra.mrb[0].mxu0 %v1381
        %v1533 = vpop.f32.mrb[0].mxu0
        %v1534 = vadd.f32 %v1359, %v1533
        %v1535 = vpop.f32.mrb[0].mxu0
        %v1536 = vadd.f32 %v1359, %v1535
        %v1537 = vpop.f32.mrb[0].mxu0
        %v1538 = vadd.f32 %v1364, %v1537
        %v1539 = vpop.f32.mrb[0].mxu0
        %v1540 = vadd.f32 %v1364, %v1539
        %1541 = vdwg.mxu0
        %1542 = vmatprep.subr.bf16.mxu0 %v1329
        %1543 = vmatpush1.bf16.msra.mxu0 %v1328
        %1544 = vmatprep.subr.bf16.mxu0 %v1337
        %1545 = vmatpush1.bf16.msra.mxu0 %v1336
        %1546 = vmatprep.subr.bf16.mxu0 0
        %1547 = vmatpush1.bf16.msra.mxu0 0
        %1548 = vmatprep.subr.bf16.mxu0 0
        %1549 = vmatpush1.bf16.msra.mxu0 0
        %1550 = vmatprep.subr.bf16.mxu0 0
        %1551 = vmatpush1.bf16.msra.mxu0 0
        %1552 = vmatprep.subr.bf16.mxu0 0
        %1553 = vmatpush1.bf16.msra.mxu0 0
        %1554 = vmatprep.subr.bf16.mxu0 0
        %1555 = vmatpush1.bf16.msra.mxu0 0
        %1556 = vmatprep.subr.bf16.mxu0 0
        %1557 = vmatpush1.bf16.msra.mxu0 0
        %1558 = vmatprep.subr.bf16.mxu0 0
        %1559 = vmatpush1.bf16.msra.mxu0 0
        %1560 = vmatprep.subr.bf16.mxu0 0
        %1561 = vmatpush1.bf16.msra.mxu0 0
        %1562 = vmatprep.subr.bf16.mxu0 0
        %1563 = vmatpush1.bf16.msra.mxu0 0
        %1564 = vmatprep.subr.bf16.mxu0 0
        %1565 = vmatpush1.bf16.msra.mxu0 0
        %1566 = vmatprep.subr.bf16.mxu0 0
        %1567 = vmatpush1.bf16.msra.mxu0 0
        %1568 = vmatprep.subr.bf16.mxu0 0
        %1569 = vmatpush1.bf16.msra.mxu0 0
        %1570 = vmatprep.subr.bf16.mxu0 0
        %1571 = vmatpush1.bf16.msra.mxu0 0
        %1572 = vmatprep.subr.bf16.mxu0 0
        %1573 = vmatpush1.bf16.msra.mxu0 0
        %1574 = vmatprep.mubr.bf16.mxu0 0
        %1575 = vmatmul.mubr.bf16.gmra.mrb[0].mxu0 %v1378
        %v1576 = vpop.f32.mrb[0].mxu0
        %v1577 = vadd.f32 %v1349, %v1576
        %v1578 = vpop.f32.mrb[0].mxu0
        %v1579 = vadd.f32 %v1349, %v1578
        %v1580 = vpop.f32.mrb[0].mxu0
        %v1581 = vadd.f32 %v1354, %v1580
        %v1582 = vpop.f32.mrb[0].mxu0
        %v1583 = vadd.f32 %v1354, %v1582
        %1584 = vmatprep.mubr.bf16.mxu0 0
        %1585 = vmatmul.mubr.bf16.gmra.mrb[0].mxu0 %v1381
        %v1586 = vpop.f32.mrb[0].mxu0
        %v1587 = vadd.f32 %v1359, %v1586
        %v1588 = vpop.f32.mrb[0].mxu0
        %v1589 = vadd.f32 %v1359, %v1588
        %v1590 = vpop.f32.mrb[0].mxu0
        %v1591 = vadd.f32 %v1364, %v1590
        %v1592 = vpop.f32.mrb[0].mxu0
        %v1593 = vadd.f32 %v1364, %v1592
        %1594 = vdwg.mxu0
        %v1595 = vpack.c.bf16 %v1422, %v1418
        %v1596 = vpack.c.bf16 %v1424, %v1420
        %v1597 = vpack.c.bf16 %v1475, %v1471
        %v1598 = vpack.c.bf16 %v1477, %v1473
        %v1599 = vpack.c.bf16 %v1528, %v1524
        %v1600 = vpack.c.bf16 %v1530, %v1526
        %v1601 = vpack.c.bf16 %v1581, %v1577
        %v1602 = vpack.c.bf16 %v1583, %v1579
        %v1603 = vpack.c.bf16 %v1432, %v1428
        %v1604 = vpack.c.bf16 %v1434, %v1430
        %v1605 = vpack.c.bf16 %v1485, %v1481
        %v1606 = vpack.c.bf16 %v1487, %v1483
        %v1607 = vpack.c.bf16 %v1538, %v1534
        %v1608 = vpack.c.bf16 %v1540, %v1536
        %v1609 = vpack.c.bf16 %v1591, %v1587
        %v1610 = vpack.c.bf16 %v1593, %v1589
        %v1611 = vmul.bf16 %v1595, 1120420552
        %v1612 = vmul.bf16 %v1596, 1120420552
        %v1613 = vmul.bf16 %v1597, 1120420552
        %v1614 = vmul.bf16 %v1598, 1120420552
        %v1615 = vmul.bf16 %v1599, 1120420552
        %v1616 = vmul.bf16 %v1600, 1120420552
        %v1617 = vmul.bf16 %v1601, 1120420552
        %v1618 = vmul.bf16 %v1602, 1120420552
        %v1619 = vmul.bf16 %v1603, 1120420552
        %v1620 = vmul.bf16 %v1604, 1120420552
        %v1621 = vmul.bf16 %v1605, 1120420552
        %v1622 = vmul.bf16 %v1606, 1120420552
        %v1623 = vmul.bf16 %v1607, 1120420552
        %v1624 = vmul.bf16 %v1608, 1120420552
        %v1625 = vmul.bf16 %v1609, 1120420552
        %v1626 = vmul.bf16 %v1610, 1120420552
        %v1627 = vmin.bf16 %v1611, 1101021600
        %v1628 = vmin.bf16 %v1612, 1101021600
        %v1629 = vmin.bf16 %v1613, 1101021600
        %v1630 = vmin.bf16 %v1614, 1101021600
        %v1631 = vmin.bf16 %v1615, 1101021600
        %v1632 = vmin.bf16 %v1616, 1101021600
        %v1633 = vmin.bf16 %v1617, 1101021600
        %v1634 = vmin.bf16 %v1618, 1101021600
        %v1635 = vmin.bf16 %v1619, 1101021600
        %v1636 = vmin.bf16 %v1620, 1101021600
        %v1637 = vmin.bf16 %v1621, 1101021600
        %v1638 = vmin.bf16 %v1622, 1101021600
        %v1639 = vmin.bf16 %v1623, 1101021600
        %v1640 = vmin.bf16 %v1624, 1101021600
        %v1641 = vmin.bf16 %v1625, 1101021600
        %v1642 = vmin.bf16 %v1626, 1101021600
        %v1644 = vmul.bf16 %v1627, 1069105081
        %v1645 = vpow.bf16.pop %v1644
        %v1647 = vmul.bf16 %v1628, 1069105081
        %v1648 = vpow.bf16.pop %v1647
        %v1650 = vmul.bf16 %v1629, 1069105081
        %v1651 = vpow.bf16.pop %v1650
        %v1653 = vmul.bf16 %v1630, 1069105081
        %v1654 = vpow.bf16.pop %v1653
        %v1656 = vmul.bf16 %v1631, 1069105081
        %v1657 = vpow.bf16.pop %v1656
        %v1659 = vmul.bf16 %v1632, 1069105081
        %v1660 = vpow.bf16.pop %v1659
        %v1662 = vmul.bf16 %v1633, 1069105081
        %v1663 = vpow.bf16.pop %v1662
        %v1665 = vmul.bf16 %v1634, 1069105081
        %v1666 = vpow.bf16.pop %v1665
        %v1668 = vmul.bf16 %v1635, 1069105081
        %v1669 = vpow.bf16.pop %v1668
        %v1671 = vmul.bf16 %v1636, 1069105081
        %v1672 = vpow.bf16.pop %v1671
        %v1674 = vmul.bf16 %v1637, 1069105081
        %v1675 = vpow.bf16.pop %v1674
        %v1677 = vmul.bf16 %v1638, 1069105081
        %v1678 = vpow.bf16.pop %v1677
        %v1680 = vmul.bf16 %v1639, 1069105081
        %v1681 = vpow.bf16.pop %v1680
        %v1683 = vmul.bf16 %v1640, 1069105081
        %v1684 = vpow.bf16.pop %v1683
        %v1686 = vmul.bf16 %v1641, 1069105081
        %v1687 = vpow.bf16.pop %v1686
        %v1689 = vmul.bf16 %v1642, 1069105081
        %v1690 = vpow.bf16.pop %v1689
        %v1691 = vadd.bf16 %v1645, 1065369472
        %v1692 = vadd.bf16 %v1648, 1065369472
        %v1693 = vadd.bf16 %v1651, 1065369472
        %v1694 = vadd.bf16 %v1654, 1065369472
        %v1695 = vadd.bf16 %v1657, 1065369472
        %v1696 = vadd.bf16 %v1660, 1065369472
        %v1697 = vadd.bf16 %v1663, 1065369472
        %v1698 = vadd.bf16 %v1666, 1065369472
        %v1699 = vadd.bf16 %v1669, 1065369472
        %v1700 = vadd.bf16 %v1672, 1065369472
        %v1701 = vadd.bf16 %v1675, 1065369472
        %v1702 = vadd.bf16 %v1678, 1065369472
        %v1703 = vadd.bf16 %v1681, 1065369472
        %v1704 = vadd.bf16 %v1684, 1065369472
        %v1705 = vadd.bf16 %v1687, 1065369472
        %v1706 = vadd.bf16 %v1690, 1065369472
        %v1707 = vlog2.bf16.pop %v1691
        %v1709 = vmul.bf16 %v1707, 1060192049
        %v1710 = vlog2.bf16.pop %v1692
        %v1712 = vmul.bf16 %v1710, 1060192049
        %v1713 = vlog2.bf16.pop %v1693
        %v1715 = vmul.bf16 %v1713, 1060192049
        %v1716 = vlog2.bf16.pop %v1694
        %v1718 = vmul.bf16 %v1716, 1060192049
        %v1719 = vlog2.bf16.pop %v1695
        %v1721 = vmul.bf16 %v1719, 1060192049
        %v1722 = vlog2.bf16.pop %v1696
        %v1724 = vmul.bf16 %v1722, 1060192049
        %v1725 = vlog2.bf16.pop %v1697
        %v1727 = vmul.bf16 %v1725, 1060192049
        %v1728 = vlog2.bf16.pop %v1698
        %v1730 = vmul.bf16 %v1728, 1060192049
        %v1731 = vlog2.bf16.pop %v1699
        %v1733 = vmul.bf16 %v1731, 1060192049
        %v1734 = vlog2.bf16.pop %v1700
        %v1736 = vmul.bf16 %v1734, 1060192049
        %v1737 = vlog2.bf16.pop %v1701
        %v1739 = vmul.bf16 %v1737, 1060192049
        %v1740 = vlog2.bf16.pop %v1702
        %v1742 = vmul.bf16 %v1740, 1060192049
        %v1743 = vlog2.bf16.pop %v1703
        %v1745 = vmul.bf16 %v1743, 1060192049
        %v1746 = vlog2.bf16.pop %v1704
        %v1748 = vmul.bf16 %v1746, 1060192049
        %v1749 = vlog2.bf16.pop %v1705
        %v1751 = vmul.bf16 %v1749, 1060192049
        %v1752 = vlog2.bf16.pop %v1706
        %v1754 = vmul.bf16 %v1752, 1060192049
        %v1755 = vmul.bf16 %v1709, 1009007652
        %v1756 = vmul.bf16 %v1712, 1009007652
        %v1757 = vmul.bf16 %v1715, 1009007652
        %v1758 = vmul.bf16 %v1718, 1009007652
        %v1759 = vmul.bf16 %v1721, 1009007652
        %v1760 = vmul.bf16 %v1724, 1009007652
        %v1761 = vmul.bf16 %v1727, 1009007652
        %v1762 = vmul.bf16 %v1730, 1009007652
        %v1763 = vmul.bf16 %v1733, 1009007652
        %v1764 = vmul.bf16 %v1736, 1009007652
        %v1765 = vmul.bf16 %v1739, 1009007652
        %v1766 = vmul.bf16 %v1742, 1009007652
        %v1767 = vmul.bf16 %v1745, 1009007652
        %v1768 = vmul.bf16 %v1748, 1009007652
        %v1769 = vmul.bf16 %v1751, 1009007652
        %v1770 = vmul.bf16 %v1754, 1009007652
        %vm1771 = vcmp.gt.bf16.partialorder %v1611, 1101021600
        %vm1772 = vcmp.gt.bf16.partialorder %v1612, 1101021600
        %vm1773 = vcmp.gt.bf16.partialorder %v1613, 1101021600
        %vm1774 = vcmp.gt.bf16.partialorder %v1614, 1101021600
        %vm1775 = vcmp.gt.bf16.partialorder %v1615, 1101021600
        %vm1776 = vcmp.gt.bf16.partialorder %v1616, 1101021600
        %vm1777 = vcmp.gt.bf16.partialorder %v1617, 1101021600
        %vm1778 = vcmp.gt.bf16.partialorder %v1618, 1101021600
        %vm1779 = vcmp.gt.bf16.partialorder %v1619, 1101021600
        %vm1780 = vcmp.gt.bf16.partialorder %v1620, 1101021600
        %vm1781 = vcmp.gt.bf16.partialorder %v1621, 1101021600
        %vm1782 = vcmp.gt.bf16.partialorder %v1622, 1101021600
        %vm1783 = vcmp.gt.bf16.partialorder %v1623, 1101021600
        %vm1784 = vcmp.gt.bf16.partialorder %v1624, 1101021600
        %vm1785 = vcmp.gt.bf16.partialorder %v1625, 1101021600
        %vm1786 = vcmp.gt.bf16.partialorder %v1626, 1101021600
        %v1787 = vsel %vm1771, %v1595, %v1755
        %v1788 = vsel %vm1772, %v1596, %v1756
        %v1789 = vsel %vm1773, %v1597, %v1757
        %v1790 = vsel %vm1774, %v1598, %v1758
        %v1791 = vsel %vm1775, %v1599, %v1759
        %v1792 = vsel %vm1776, %v1600, %v1760
        %v1793 = vsel %vm1777, %v1601, %v1761
        %v1794 = vsel %vm1778, %v1602, %v1762
        %v1795 = vsel %vm1779, %v1603, %v1763
        %v1796 = vsel %vm1780, %v1604, %v1764
        %v1797 = vsel %vm1781, %v1605, %v1765
        %v1798 = vsel %vm1782, %v1606, %v1766
        %v1799 = vsel %vm1783, %v1607, %v1767
        %v1800 = vsel %vm1784, %v1608, %v1768
        %v1801 = vsel %vm1785, %v1609, %v1769
        %v1802 = vsel %vm1786, %v1610, %v1770
        %v1803 = vld [vmem:[%s7] sm:$0xf]
        %v1804 = vld [vmem:[%s7 + $0x4] sm:$0xf]
        %v1805 = vld [vmem:[%s7 + $0x8] sm:$0xf]
        %v1806 = vld [vmem:[%s7 + $0xc] sm:$0xf]
        %v1807 = vld [vmem:[%s8] sm:$0xff]
        %v1808 = vld [vmem:[%s8 + $0x8] sm:$0xff]
        %v1809 = vld [vmem:[%s8 + $0x10] sm:$0xff]
        %v1810 = vld [vmem:[%s8 + $0x18] sm:$0xff]
        %1812 = vset.pattern.permute.xlu0 0
        %1813 = vperm.xlu0 %1812, %v1807
        %v1814 = vpop.permute.xlu0 %1813
        %1817 = vset.pattern.permute.xlu0 0
        %1818 = vperm.xlu0 %1817, %v1808
        %v1819 = vpop.permute.xlu0 %1818
        %1822 = vset.pattern.permute.xlu0 0
        %1823 = vperm.xlu0 %1822, %v1809
        %v1824 = vpop.permute.xlu0 %1823
        %1827 = vset.pattern.permute.xlu0 0
        %1828 = vperm.xlu0 %1827, %v1810
        %v1829 = vpop.permute.xlu0 %1828
        %v1835 = vunpack.c.l.b16 %v1803
        %v1836 = vunpack.c.l.b16 %v1804
        %v1837 = vunpack.c.l.b16 %v1805
        %v1838 = vunpack.c.l.b16 %v1806
        %v1839 = vpack.c.b16 %v1836, %v1835
        %v1840 = vpack.c.b16 %v1838, %v1837
        %v1842 = vsel %vm1376, %v1839, 0
        %v1845 = vsel %vm1376, %v1840, 0
        %1847 = vmatprep.subr.bf16.mxu0 %v1788
        %1848 = vmatpush1.bf16.msra.mxu0 %v1787
        %1849 = vmatprep.subr.bf16.mxu0 %v1796
        %1850 = vmatpush1.bf16.msra.mxu0 %v1795
        %1851 = vmatprep.subr.bf16.mxu0 0
        %1852 = vmatpush1.bf16.msra.mxu0 0
        %1853 = vmatprep.subr.bf16.mxu0 0
        %1854 = vmatpush1.bf16.msra.mxu0 0
        %1855 = vmatprep.subr.bf16.mxu0 0
        %1856 = vmatpush1.bf16.msra.mxu0 0
        %1857 = vmatprep.subr.bf16.mxu0 0
        %1858 = vmatpush1.bf16.msra.mxu0 0
        %1859 = vmatprep.subr.bf16.mxu0 0
        %1860 = vmatpush1.bf16.msra.mxu0 0
        %1861 = vmatprep.subr.bf16.mxu0 0
        %1862 = vmatpush1.bf16.msra.mxu0 0
        %1863 = vmatprep.subr.bf16.mxu0 0
        %1864 = vmatpush1.bf16.msra.mxu0 0
        %1865 = vmatprep.subr.bf16.mxu0 0
        %1866 = vmatpush1.bf16.msra.mxu0 0
        %1867 = vmatprep.subr.bf16.mxu0 0
        %1868 = vmatpush1.bf16.msra.mxu0 0
        %1869 = vmatprep.subr.bf16.mxu0 0
        %1870 = vmatpush1.bf16.msra.mxu0 0
        %1871 = vmatprep.subr.bf16.mxu0 0
        %1872 = vmatpush1.bf16.msra.mxu0 0
        %1873 = vmatprep.subr.bf16.mxu0 0
        %1874 = vmatpush1.bf16.msra.mxu0 0
        %1875 = vmatprep.subr.bf16.mxu0 0
        %1876 = vmatpush1.bf16.msra.mxu0 0
        %1877 = vmatprep.subr.bf16.mxu0 0
        %1878 = vmatpush1.bf16.msra.mxu0 0
        %1879 = vmatprep.mubr.bf16.mxu0 0
        %1880 = vmatmul.mubr.bf16.gmra.mrb[0].mxu0 %v1842
        %v1881 = vpop.f32.mrb[0].mxu0
        %v1882 = vadd.f32 %v1814, %v1881
        %v1883 = vpop.f32.mrb[0].mxu0
        %v1884 = vadd.f32 %v1814, %v1883
        %v1885 = vpop.f32.mrb[0].mxu0
        %v1886 = vadd.f32 %v1819, %v1885
        %v1887 = vpop.f32.mrb[0].mxu0
        %v1888 = vadd.f32 %v1819, %v1887
        %1889 = vmatprep.mubr.bf16.mxu0 0
        %1890 = vmatmul.mubr.bf16.gmra.mrb[0].mxu0 %v1845
        %v1891 = vpop.f32.mrb[0].mxu0
        %v1892 = vadd.f32 %v1824, %v1891
        %v1893 = vpop.f32.mrb[0].mxu0
        %v1894 = vadd.f32 %v1824, %v1893
        %v1895 = vpop.f32.mrb[0].mxu0
        %v1896 = vadd.f32 %v1829, %v1895
        %v1897 = vpop.f32.mrb[0].mxu0
        %v1898 = vadd.f32 %v1829, %v1897
        %1899 = vdwg.mxu0
        %1900 = vmatprep.subr.bf16.mxu0 %v1790
        %1901 = vmatpush1.bf16.msra.mxu0 %v1789
        %1902 = vmatprep.subr.bf16.mxu0 %v1798
        %1903 = vmatpush1.bf16.msra.mxu0 %v1797
        %1904 = vmatprep.subr.bf16.mxu0 0
        %1905 = vmatpush1.bf16.msra.mxu0 0
        %1906 = vmatprep.subr.bf16.mxu0 0
        %1907 = vmatpush1.bf16.msra.mxu0 0
        %1908 = vmatprep.subr.bf16.mxu0 0
        %1909 = vmatpush1.bf16.msra.mxu0 0
        %1910 = vmatprep.subr.bf16.mxu0 0
        %1911 = vmatpush1.bf16.msra.mxu0 0
        %1912 = vmatprep.subr.bf16.mxu0 0
        %1913 = vmatpush1.bf16.msra.mxu0 0
        %1914 = vmatprep.subr.bf16.mxu0 0
        %1915 = vmatpush1.bf16.msra.mxu0 0
        %1916 = vmatprep.subr.bf16.mxu0 0
        %1917 = vmatpush1.bf16.msra.mxu0 0
        %1918 = vmatprep.subr.bf16.mxu0 0
        %1919 = vmatpush1.bf16.msra.mxu0 0
        %1920 = vmatprep.subr.bf16.mxu0 0
        %1921 = vmatpush1.bf16.msra.mxu0 0
        %1922 = vmatprep.subr.bf16.mxu0 0
        %1923 = vmatpush1.bf16.msra.mxu0 0
        %1924 = vmatprep.subr.bf16.mxu0 0
        %1925 = vmatpush1.bf16.msra.mxu0 0
        %1926 = vmatprep.subr.bf16.mxu0 0
        %1927 = vmatpush1.bf16.msra.mxu0 0
        %1928 = vmatprep.subr.bf16.mxu0 0
        %1929 = vmatpush1.bf16.msra.mxu0 0
        %1930 = vmatprep.subr.bf16.mxu0 0
        %1931 = vmatpush1.bf16.msra.mxu0 0
        %1932 = vmatprep.mubr.bf16.mxu0 0
        %1933 = vmatmul.mubr.bf16.gmra.mrb[0].mxu0 %v1842
        %v1934 = vpop.f32.mrb[0].mxu0
        %v1935 = vadd.f32 %v1814, %v1934
        %v1936 = vpop.f32.mrb[0].mxu0
        %v1937 = vadd.f32 %v1814, %v1936
        %v1938 = vpop.f32.mrb[0].mxu0
        %v1939 = vadd.f32 %v1819, %v1938
        %v1940 = vpop.f32.mrb[0].mxu0
        %v1941 = vadd.f32 %v1819, %v1940
        %1942 = vmatprep.mubr.bf16.mxu0 0
        %1943 = vmatmul.mubr.bf16.gmra.mrb[0].mxu0 %v1845
        %v1944 = vpop.f32.mrb[0].mxu0
        %v1945 = vadd.f32 %v1824, %v1944
        %v1946 = vpop.f32.mrb[0].mxu0
        %v1947 = vadd.f32 %v1824, %v1946
        %v1948 = vpop.f32.mrb[0].mxu0
        %v1949 = vadd.f32 %v1829, %v1948
        %v1950 = vpop.f32.mrb[0].mxu0
        %v1951 = vadd.f32 %v1829, %v1950
        %1952 = vdwg.mxu0
        %1953 = vmatprep.subr.bf16.mxu0 %v1792
        %1954 = vmatpush1.bf16.msra.mxu0 %v1791
        %1955 = vmatprep.subr.bf16.mxu0 %v1800
        %1956 = vmatpush1.bf16.msra.mxu0 %v1799
        %1957 = vmatprep.subr.bf16.mxu0 0
        %1958 = vmatpush1.bf16.msra.mxu0 0
        %1959 = vmatprep.subr.bf16.mxu0 0
        %1960 = vmatpush1.bf16.msra.mxu0 0
        %1961 = vmatprep.subr.bf16.mxu0 0
        %1962 = vmatpush1.bf16.msra.mxu0 0
        %1963 = vmatprep.subr.bf16.mxu0 0
        %1964 = vmatpush1.bf16.msra.mxu0 0
        %1965 = vmatprep.subr.bf16.mxu0 0
        %1966 = vmatpush1.bf16.msra.mxu0 0
        %1967 = vmatprep.subr.bf16.mxu0 0
        %1968 = vmatpush1.bf16.msra.mxu0 0
        %1969 = vmatprep.subr.bf16.mxu0 0
        %1970 = vmatpush1.bf16.msra.mxu0 0
        %1971 = vmatprep.subr.bf16.mxu0 0
        %1972 = vmatpush1.bf16.msra.mxu0 0
        %1973 = vmatprep.subr.bf16.mxu0 0
        %1974 = vmatpush1.bf16.msra.mxu0 0
        %1975 = vmatprep.subr.bf16.mxu0 0
        %1976 = vmatpush1.bf16.msra.mxu0 0
        %1977 = vmatprep.subr.bf16.mxu0 0
        %1978 = vmatpush1.bf16.msra.mxu0 0
        %1979 = vmatprep.subr.bf16.mxu0 0
        %1980 = vmatpush1.bf16.msra.mxu0 0
        %1981 = vmatprep.subr.bf16.mxu0 0
        %1982 = vmatpush1.bf16.msra.mxu0 0
        %1983 = vmatprep.subr.bf16.mxu0 0
        %1984 = vmatpush1.bf16.msra.mxu0 0
        %1985 = vmatprep.mubr.bf16.mxu0 0
        %1986 = vmatmul.mubr.bf16.gmra.mrb[0].mxu0 %v1842
        %v1987 = vpop.f32.mrb[0].mxu0
        %v1988 = vadd.f32 %v1814, %v1987
        %v1989 = vpop.f32.mrb[0].mxu0
        %v1990 = vadd.f32 %v1814, %v1989
        %v1991 = vpop.f32.mrb[0].mxu0
        %v1992 = vadd.f32 %v1819, %v1991
        %v1993 = vpop.f32.mrb[0].mxu0
        %v1994 = vadd.f32 %v1819, %v1993
        %1995 = vmatprep.mubr.bf16.mxu0 0
        %1996 = vmatmul.mubr.bf16.gmra.mrb[0].mxu0 %v1845
        %v1997 = vpop.f32.mrb[0].mxu0
        %v1998 = vadd.f32 %v1824, %v1997
        %v1999 = vpop.f32.mrb[0].mxu0
        %v2000 = vadd.f32 %v1824, %v1999
        %v2001 = vpop.f32.mrb[0].mxu0
        %v2002 = vadd.f32 %v1829, %v2001
        %v2003 = vpop.f32.mrb[0].mxu0
        %v2004 = vadd.f32 %v1829, %v2003
        %2005 = vdwg.mxu0
        %2006 = vmatprep.subr.bf16.mxu0 %v1794
        %2007 = vmatpush1.bf16.msra.mxu0 %v1793
        %2008 = vmatprep.subr.bf16.mxu0 %v1802
        %2009 = vmatpush1.bf16.msra.mxu0 %v1801
        %2010 = vmatprep.subr.bf16.mxu0 0
        %2011 = vmatpush1.bf16.msra.mxu0 0
        %2012 = vmatprep.subr.bf16.mxu0 0
        %2013 = vmatpush1.bf16.msra.mxu0 0
        %2014 = vmatprep.subr.bf16.mxu0 0
        %2015 = vmatpush1.bf16.msra.mxu0 0
        %2016 = vmatprep.subr.bf16.mxu0 0
        %2017 = vmatpush1.bf16.msra.mxu0 0
        %2018 = vmatprep.subr.bf16.mxu0 0
        %2019 = vmatpush1.bf16.msra.mxu0 0
        %2020 = vmatprep.subr.bf16.mxu0 0
        %2021 = vmatpush1.bf16.msra.mxu0 0
        %2022 = vmatprep.subr.bf16.mxu0 0
        %2023 = vmatpush1.bf16.msra.mxu0 0
        %2024 = vmatprep.subr.bf16.mxu0 0
        %2025 = vmatpush1.bf16.msra.mxu0 0
        %2026 = vmatprep.subr.bf16.mxu0 0
        %2027 = vmatpush1.bf16.msra.mxu0 0
        %2028 = vmatprep.subr.bf16.mxu0 0
        %2029 = vmatpush1.bf16.msra.mxu0 0
        %2030 = vmatprep.subr.bf16.mxu0 0
        %2031 = vmatpush1.bf16.msra.mxu0 0
        %2032 = vmatprep.subr.bf16.mxu0 0
        %2033 = vmatpush1.bf16.msra.mxu0 0
        %2034 = vmatprep.subr.bf16.mxu0 0
        %2035 = vmatpush1.bf16.msra.mxu0 0
        %2036 = vmatprep.subr.bf16.mxu0 0
        %2037 = vmatpush1.bf16.msra.mxu0 0
        %2038 = vmatprep.mubr.bf16.mxu0 0
        %2039 = vmatmul.mubr.bf16.gmra.mrb[0].mxu0 %v1842
        %v2040 = vpop.f32.mrb[0].mxu0
        %v2041 = vadd.f32 %v1814, %v2040
        %v2042 = vpop.f32.mrb[0].mxu0
        %v2043 = vadd.f32 %v1814, %v2042
        %v2044 = vpop.f32.mrb[0].mxu0
        %v2045 = vadd.f32 %v1819, %v2044
        %v2046 = vpop.f32.mrb[0].mxu0
        %v2047 = vadd.f32 %v1819, %v2046
        %2048 = vmatprep.mubr.bf16.mxu0 0
        %2049 = vmatmul.mubr.bf16.gmra.mrb[0].mxu0 %v1845
        %v2050 = vpop.f32.mrb[0].mxu0
        %v2051 = vadd.f32 %v1824, %v2050
        %v2052 = vpop.f32.mrb[0].mxu0
        %v2053 = vadd.f32 %v1824, %v2052
        %v2054 = vpop.f32.mrb[0].mxu0
        %v2055 = vadd.f32 %v1829, %v2054
        %v2056 = vpop.f32.mrb[0].mxu0
        %v2057 = vadd.f32 %v1829, %v2056
        %2058 = vdwg.mxu0
        %v2059 = vpack.c.bf16 %v1886, %v1882
        %v2060 = vpack.c.bf16 %v1888, %v1884
        %v2061 = vpack.c.bf16 %v1939, %v1935
        %v2062 = vpack.c.bf16 %v1941, %v1937
        %v2063 = vpack.c.bf16 %v1992, %v1988
        %v2064 = vpack.c.bf16 %v1994, %v1990
        %v2065 = vpack.c.bf16 %v2045, %v2041
        %v2066 = vpack.c.bf16 %v2047, %v2043
        %v2067 = vpack.c.bf16 %v1896, %v1892
        %v2068 = vpack.c.bf16 %v1898, %v1894
        %v2069 = vpack.c.bf16 %v1949, %v1945
        %v2070 = vpack.c.bf16 %v1951, %v1947
        %v2071 = vpack.c.bf16 %v2002, %v1998
        %v2072 = vpack.c.bf16 %v2004, %v2000
        %v2073 = vpack.c.bf16 %v2055, %v2051
        %v2074 = vpack.c.bf16 %v2057, %v2053
        %v2075 = vmul.bf16 %v2059, 1120420552
        %v2076 = vmul.bf16 %v2060, 1120420552
        %v2077 = vmul.bf16 %v2061, 1120420552
        %v2078 = vmul.bf16 %v2062, 1120420552
        %v2079 = vmul.bf16 %v2063, 1120420552
        %v2080 = vmul.bf16 %v2064, 1120420552
        %v2081 = vmul.bf16 %v2065, 1120420552
        %v2082 = vmul.bf16 %v2066, 1120420552
        %v2083 = vmul.bf16 %v2067, 1120420552
        %v2084 = vmul.bf16 %v2068, 1120420552
        %v2085 = vmul.bf16 %v2069, 1120420552
        %v2086 = vmul.bf16 %v2070, 1120420552
        %v2087 = vmul.bf16 %v2071, 1120420552
        %v2088 = vmul.bf16 %v2072, 1120420552
        %v2089 = vmul.bf16 %v2073, 1120420552
        %v2090 = vmul.bf16 %v2074, 1120420552
        %v2091 = vmin.bf16 %v2075, 1101021600
        %v2092 = vmin.bf16 %v2076, 1101021600
        %v2093 = vmin.bf16 %v2077, 1101021600
        %v2094 = vmin.bf16 %v2078, 1101021600
        %v2095 = vmin.bf16 %v2079, 1101021600
        %v2096 = vmin.bf16 %v2080, 1101021600
        %v2097 = vmin.bf16 %v2081, 1101021600
        %v2098 = vmin.bf16 %v2082, 1101021600
        %v2099 = vmin.bf16 %v2083, 1101021600
        %v2100 = vmin.bf16 %v2084, 1101021600
        %v2101 = vmin.bf16 %v2085, 1101021600
        %v2102 = vmin.bf16 %v2086, 1101021600
        %v2103 = vmin.bf16 %v2087, 1101021600
        %v2104 = vmin.bf16 %v2088, 1101021600
        %v2105 = vmin.bf16 %v2089, 1101021600
        %v2106 = vmin.bf16 %v2090, 1101021600
        %v2108 = vmul.bf16 %v2091, 1069105081
        %v2109 = vpow.bf16.pop %v2108
        %v2111 = vmul.bf16 %v2092, 1069105081
        %v2112 = vpow.bf16.pop %v2111
        %v2114 = vmul.bf16 %v2093, 1069105081
        %v2115 = vpow.bf16.pop %v2114
        %v2117 = vmul.bf16 %v2094, 1069105081
        %v2118 = vpow.bf16.pop %v2117
        %v2120 = vmul.bf16 %v2095, 1069105081
        %v2121 = vpow.bf16.pop %v2120
        %v2123 = vmul.bf16 %v2096, 1069105081
        %v2124 = vpow.bf16.pop %v2123
        %v2126 = vmul.bf16 %v2097, 1069105081
        %v2127 = vpow.bf16.pop %v2126
        %v2129 = vmul.bf16 %v2098, 1069105081
        %v2130 = vpow.bf16.pop %v2129
        %v2132 = vmul.bf16 %v2099, 1069105081
        %v2133 = vpow.bf16.pop %v2132
        %v2135 = vmul.bf16 %v2100, 1069105081
        %v2136 = vpow.bf16.pop %v2135
        %v2138 = vmul.bf16 %v2101, 1069105081
        %v2139 = vpow.bf16.pop %v2138
        %v2141 = vmul.bf16 %v2102, 1069105081
        %v2142 = vpow.bf16.pop %v2141
        %v2144 = vmul.bf16 %v2103, 1069105081
        %v2145 = vpow.bf16.pop %v2144
        %v2147 = vmul.bf16 %v2104, 1069105081
        %v2148 = vpow.bf16.pop %v2147
        %v2150 = vmul.bf16 %v2105, 1069105081
        %v2151 = vpow.bf16.pop %v2150
        %v2153 = vmul.bf16 %v2106, 1069105081
        %v2154 = vpow.bf16.pop %v2153
        %v2155 = vadd.bf16 %v2109, 1065369472
        %v2156 = vadd.bf16 %v2112, 1065369472
        %v2157 = vadd.bf16 %v2115, 1065369472
        %v2158 = vadd.bf16 %v2118, 1065369472
        %v2159 = vadd.bf16 %v2121, 1065369472
        %v2160 = vadd.bf16 %v2124, 1065369472
        %v2161 = vadd.bf16 %v2127, 1065369472
        %v2162 = vadd.bf16 %v2130, 1065369472
        %v2163 = vadd.bf16 %v2133, 1065369472
        %v2164 = vadd.bf16 %v2136, 1065369472
        %v2165 = vadd.bf16 %v2139, 1065369472
        %v2166 = vadd.bf16 %v2142, 1065369472
        %v2167 = vadd.bf16 %v2145, 1065369472
        %v2168 = vadd.bf16 %v2148, 1065369472
        %v2169 = vadd.bf16 %v2151, 1065369472
        %v2170 = vadd.bf16 %v2154, 1065369472
        %v2171 = vlog2.bf16.pop %v2155
        %v2173 = vmul.bf16 %v2171, 1060192049
        %v2174 = vlog2.bf16.pop %v2156
        %v2176 = vmul.bf16 %v2174, 1060192049
        %v2177 = vlog2.bf16.pop %v2157
        %v2179 = vmul.bf16 %v2177, 1060192049
        %v2180 = vlog2.bf16.pop %v2158
        %v2182 = vmul.bf16 %v2180, 1060192049
        %v2183 = vlog2.bf16.pop %v2159
        %v2185 = vmul.bf16 %v2183, 1060192049
        %v2186 = vlog2.bf16.pop %v2160
        %v2188 = vmul.bf16 %v2186, 1060192049
        %v2189 = vlog2.bf16.pop %v2161
        %v2191 = vmul.bf16 %v2189, 1060192049
        %v2192 = vlog2.bf16.pop %v2162
        %v2194 = vmul.bf16 %v2192, 1060192049
        %v2195 = vlog2.bf16.pop %v2163
        %v2197 = vmul.bf16 %v2195, 1060192049
        %v2198 = vlog2.bf16.pop %v2164
        %v2200 = vmul.bf16 %v2198, 1060192049
        %v2201 = vlog2.bf16.pop %v2165
        %v2203 = vmul.bf16 %v2201, 1060192049
        %v2204 = vlog2.bf16.pop %v2166
        %v2206 = vmul.bf16 %v2204, 1060192049
        %v2207 = vlog2.bf16.pop %v2167
        %v2209 = vmul.bf16 %v2207, 1060192049
        %v2210 = vlog2.bf16.pop %v2168
        %v2212 = vmul.bf16 %v2210, 1060192049
        %v2213 = vlog2.bf16.pop %v2169
        %v2215 = vmul.bf16 %v2213, 1060192049
        %v2216 = vlog2.bf16.pop %v2170
        %v2218 = vmul.bf16 %v2216, 1060192049
        %v2219 = vmul.bf16 %v2173, 1009007652
        %v2220 = vmul.bf16 %v2176, 1009007652
        %v2221 = vmul.bf16 %v2179, 1009007652
        %v2222 = vmul.bf16 %v2182, 1009007652
        %v2223 = vmul.bf16 %v2185, 1009007652
        %v2224 = vmul.bf16 %v2188, 1009007652
        %v2225 = vmul.bf16 %v2191, 1009007652
        %v2226 = vmul.bf16 %v2194, 1009007652
        %v2227 = vmul.bf16 %v2197, 1009007652
        %v2228 = vmul.bf16 %v2200, 1009007652
        %v2229 = vmul.bf16 %v2203, 1009007652
        %v2230 = vmul.bf16 %v2206, 1009007652
        %v2231 = vmul.bf16 %v2209, 1009007652
        %v2232 = vmul.bf16 %v2212, 1009007652
        %v2233 = vmul.bf16 %v2215, 1009007652
        %v2234 = vmul.bf16 %v2218, 1009007652
        %vm2235 = vcmp.gt.bf16.partialorder %v2075, 1101021600
        %vm2236 = vcmp.gt.bf16.partialorder %v2076, 1101021600
        %vm2237 = vcmp.gt.bf16.partialorder %v2077, 1101021600
        %vm2238 = vcmp.gt.bf16.partialorder %v2078, 1101021600
        %vm2239 = vcmp.gt.bf16.partialorder %v2079, 1101021600
        %vm2240 = vcmp.gt.bf16.partialorder %v2080, 1101021600
        %vm2241 = vcmp.gt.bf16.partialorder %v2081, 1101021600
        %vm2242 = vcmp.gt.bf16.partialorder %v2082, 1101021600
        %vm2243 = vcmp.gt.bf16.partialorder %v2083, 1101021600
        %vm2244 = vcmp.gt.bf16.partialorder %v2084, 1101021600
        %vm2245 = vcmp.gt.bf16.partialorder %v2085, 1101021600
        %vm2246 = vcmp.gt.bf16.partialorder %v2086, 1101021600
        %vm2247 = vcmp.gt.bf16.partialorder %v2087, 1101021600
        %vm2248 = vcmp.gt.bf16.partialorder %v2088, 1101021600
        %vm2249 = vcmp.gt.bf16.partialorder %v2089, 1101021600
        %vm2250 = vcmp.gt.bf16.partialorder %v2090, 1101021600
        %v2251 = vsel %vm2235, %v2059, %v2219
        %v2252 = vsel %vm2236, %v2060, %v2220
        %v2253 = vsel %vm2237, %v2061, %v2221
        %v2254 = vsel %vm2238, %v2062, %v2222
        %v2255 = vsel %vm2239, %v2063, %v2223
        %v2256 = vsel %vm2240, %v2064, %v2224
        %v2257 = vsel %vm2241, %v2065, %v2225
        %v2258 = vsel %vm2242, %v2066, %v2226
        %v2259 = vsel %vm2243, %v2067, %v2227
        %v2260 = vsel %vm2244, %v2068, %v2228
        %v2261 = vsel %vm2245, %v2069, %v2229
        %v2262 = vsel %vm2246, %v2070, %v2230
        %v2263 = vsel %vm2247, %v2071, %v2231
        %v2264 = vsel %vm2248, %v2072, %v2232
        %v2265 = vsel %vm2249, %v2073, %v2233
        %v2266 = vsel %vm2250, %v2074, %v2234
        %v2267 = vld [vmem:[%s9] sm:$0xf]
        %v2268 = vld [vmem:[%s9 + $0x4] sm:$0xf]
        %v2269 = vld [vmem:[%s9 + $0x8] sm:$0xf]
        %v2270 = vld [vmem:[%s9 + $0xc] sm:$0x3]
        %v2271 = vld [vmem:[%s10] sm:$0xff]
        %v2272 = vld [vmem:[%s10 + $0x8] sm:$0xff]
        %v2273 = vld [vmem:[%s10 + $0x10] sm:$0xff]
        %v2274 = vld [vmem:[%s10 + $0x18] sm:$0xf]
        %2276 = vset.pattern.permute.xlu0 0
        %2277 = vperm.xlu0 %2276, %v2271
        %v2278 = vpop.permute.xlu0 %2277
        %2281 = vset.pattern.permute.xlu0 0
        %2282 = vperm.xlu0 %2281, %v2272
        %v2283 = vpop.permute.xlu0 %2282
        %2286 = vset.pattern.permute.xlu0 0
        %2287 = vperm.xlu0 %2286, %v2273
        %v2288 = vpop.permute.xlu0 %2287
        %2291 = vset.pattern.permute.xlu0 0
        %2292 = vperm.xlu0 %2291, %v2274
        %v2293 = vpop.permute.xlu0 %2292
        %v2299 = vunpack.c.l.b16 %v2267
        %v2300 = vunpack.c.l.b16 %v2268
        %v2301 = vunpack.c.l.b16 %v2269
        %v2302 = vunpack.c.l.b16 %v2270
        %v2303 = vpack.c.b16 %v2300, %v2299
        %v2304 = vpack.c.b16 %v2302, %v2301
        %v2306 = vsel %vm1376, %v2303, 0
        %v2309 = vsel %vm1376, %v2304, 0
        %2311 = vmatprep.subr.bf16.mxu0 %v2252
        %2312 = vmatpush1.bf16.msra.mxu0 %v2251
        %2313 = vmatprep.subr.bf16.mxu0 %v2260
        %2314 = vmatpush1.bf16.msra.mxu0 %v2259
        %2315 = vmatprep.subr.bf16.mxu0 0
        %2316 = vmatpush1.bf16.msra.mxu0 0
        %2317 = vmatprep.subr.bf16.mxu0 0
        %2318 = vmatpush1.bf16.msra.mxu0 0
        %2319 = vmatprep.subr.bf16.mxu0 0
        %2320 = vmatpush1.bf16.msra.mxu0 0
        %2321 = vmatprep.subr.bf16.mxu0 0
        %2322 = vmatpush1.bf16.msra.mxu0 0
        %2323 = vmatprep.subr.bf16.mxu0 0
        %2324 = vmatpush1.bf16.msra.mxu0 0
        %2325 = vmatprep.subr.bf16.mxu0 0
        %2326 = vmatpush1.bf16.msra.mxu0 0
        %2327 = vmatprep.subr.bf16.mxu0 0
        %2328 = vmatpush1.bf16.msra.mxu0 0
        %2329 = vmatprep.subr.bf16.mxu0 0
        %2330 = vmatpush1.bf16.msra.mxu0 0
        %2331 = vmatprep.subr.bf16.mxu0 0
        %2332 = vmatpush1.bf16.msra.mxu0 0
        %2333 = vmatprep.subr.bf16.mxu0 0
        %2334 = vmatpush1.bf16.msra.mxu0 0
        %2335 = vmatprep.subr.bf16.mxu0 0
        %2336 = vmatpush1.bf16.msra.mxu0 0
        %2337 = vmatprep.subr.bf16.mxu0 0
        %2338 = vmatpush1.bf16.msra.mxu0 0
        %2339 = vmatprep.subr.bf16.mxu0 0
        %2340 = vmatpush1.bf16.msra.mxu0 0
        %2341 = vmatprep.subr.bf16.mxu0 0
        %2342 = vmatpush1.bf16.msra.mxu0 0
        %2343 = vmatprep.mubr.bf16.mxu0 0
        %2344 = vmatmul.mubr.bf16.gmra.mrb[0].mxu0 %v2306
        %v2345 = vpop.f32.mrb[0].mxu0
        %v2346 = vadd.f32 %v2278, %v2345
        %v2347 = vpop.f32.mrb[0].mxu0
        %v2348 = vadd.f32 %v2278, %v2347
        %v2349 = vpop.f32.mrb[0].mxu0
        %v2350 = vadd.f32 %v2283, %v2349
        %v2351 = vpop.f32.mrb[0].mxu0
        %v2352 = vadd.f32 %v2283, %v2351
        %2353 = vmatprep.mubr.bf16.mxu0 0
        %2354 = vmatmul.mubr.bf16.gmra.mrb[0].mxu0 %v2309
        %v2355 = vpop.f32.mrb[0].mxu0
        %v2356 = vadd.f32 %v2288, %v2355
        %v2357 = vpop.f32.mrb[0].mxu0
        %v2358 = vadd.f32 %v2288, %v2357
        %v2359 = vpop.f32.mrb[0].mxu0
        %v2360 = vadd.f32 %v2293, %v2359
        %v2361 = vpop.f32.mrb[0].mxu0
        %v2362 = vadd.f32 %v2293, %v2361
        %2363 = vdwg.mxu0
        %2364 = vmatprep.subr.bf16.mxu0 %v2254
        %2365 = vmatpush1.bf16.msra.mxu0 %v2253
        %2366 = vmatprep.subr.bf16.mxu0 %v2262
        %2367 = vmatpush1.bf16.msra.mxu0 %v2261
        %2368 = vmatprep.subr.bf16.mxu0 0
        %2369 = vmatpush1.bf16.msra.mxu0 0
        %2370 = vmatprep.subr.bf16.mxu0 0
        %2371 = vmatpush1.bf16.msra.mxu0 0
        %2372 = vmatprep.subr.bf16.mxu0 0
        %2373 = vmatpush1.bf16.msra.mxu0 0
        %2374 = vmatprep.subr.bf16.mxu0 0
        %2375 = vmatpush1.bf16.msra.mxu0 0
        %2376 = vmatprep.subr.bf16.mxu0 0
        %2377 = vmatpush1.bf16.msra.mxu0 0
        %2378 = vmatprep.subr.bf16.mxu0 0
        %2379 = vmatpush1.bf16.msra.mxu0 0
        %2380 = vmatprep.subr.bf16.mxu0 0
        %2381 = vmatpush1.bf16.msra.mxu0 0
        %2382 = vmatprep.subr.bf16.mxu0 0
        %2383 = vmatpush1.bf16.msra.mxu0 0
        %2384 = vmatprep.subr.bf16.mxu0 0
        %2385 = vmatpush1.bf16.msra.mxu0 0
        %2386 = vmatprep.subr.bf16.mxu0 0
        %2387 = vmatpush1.bf16.msra.mxu0 0
        %2388 = vmatprep.subr.bf16.mxu0 0
        %2389 = vmatpush1.bf16.msra.mxu0 0
        %2390 = vmatprep.subr.bf16.mxu0 0
        %2391 = vmatpush1.bf16.msra.mxu0 0
        %2392 = vmatprep.subr.bf16.mxu0 0
        %2393 = vmatpush1.bf16.msra.mxu0 0
        %2394 = vmatprep.subr.bf16.mxu0 0
        %2395 = vmatpush1.bf16.msra.mxu0 0
        %2396 = vmatprep.mubr.bf16.mxu0 0
        %2397 = vmatmul.mubr.bf16.gmra.mrb[0].mxu0 %v2306
        %v2398 = vpop.f32.mrb[0].mxu0
        %v2399 = vadd.f32 %v2278, %v2398
        %v2400 = vpop.f32.mrb[0].mxu0
        %v2401 = vadd.f32 %v2278, %v2400
        %v2402 = vpop.f32.mrb[0].mxu0
        %v2403 = vadd.f32 %v2283, %v2402
        %v2404 = vpop.f32.mrb[0].mxu0
        %v2405 = vadd.f32 %v2283, %v2404
        %2406 = vmatprep.mubr.bf16.mxu0 0
        %2407 = vmatmul.mubr.bf16.gmra.mrb[0].mxu0 %v2309
        %v2408 = vpop.f32.mrb[0].mxu0
        %v2409 = vadd.f32 %v2288, %v2408
        %v2410 = vpop.f32.mrb[0].mxu0
        %v2411 = vadd.f32 %v2288, %v2410
        %v2412 = vpop.f32.mrb[0].mxu0
        %v2413 = vadd.f32 %v2293, %v2412
        %v2414 = vpop.f32.mrb[0].mxu0
        %v2415 = vadd.f32 %v2293, %v2414
        %2416 = vdwg.mxu0
        %2417 = vmatprep.subr.bf16.mxu0 %v2256
        %2418 = vmatpush1.bf16.msra.mxu0 %v2255
        %2419 = vmatprep.subr.bf16.mxu0 %v2264
        %2420 = vmatpush1.bf16.msra.mxu0 %v2263
        %2421 = vmatprep.subr.bf16.mxu0 0
        %2422 = vmatpush1.bf16.msra.mxu0 0
        %2423 = vmatprep.subr.bf16.mxu0 0
        %2424 = vmatpush1.bf16.msra.mxu0 0
        %2425 = vmatprep.subr.bf16.mxu0 0
        %2426 = vmatpush1.bf16.msra.mxu0 0
        %2427 = vmatprep.subr.bf16.mxu0 0
        %2428 = vmatpush1.bf16.msra.mxu0 0
        %2429 = vmatprep.subr.bf16.mxu0 0
        %2430 = vmatpush1.bf16.msra.mxu0 0
        %2431 = vmatprep.subr.bf16.mxu0 0
        %2432 = vmatpush1.bf16.msra.mxu0 0
        %2433 = vmatprep.subr.bf16.mxu0 0
        %2434 = vmatpush1.bf16.msra.mxu0 0
        %2435 = vmatprep.subr.bf16.mxu0 0
        %2436 = vmatpush1.bf16.msra.mxu0 0
        %2437 = vmatprep.subr.bf16.mxu0 0
        %2438 = vmatpush1.bf16.msra.mxu0 0
        %2439 = vmatprep.subr.bf16.mxu0 0
        %2440 = vmatpush1.bf16.msra.mxu0 0
        %2441 = vmatprep.subr.bf16.mxu0 0
        %2442 = vmatpush1.bf16.msra.mxu0 0
        %2443 = vmatprep.subr.bf16.mxu0 0
        %2444 = vmatpush1.bf16.msra.mxu0 0
        %2445 = vmatprep.subr.bf16.mxu0 0
        %2446 = vmatpush1.bf16.msra.mxu0 0
        %2447 = vmatprep.subr.bf16.mxu0 0
        %2448 = vmatpush1.bf16.msra.mxu0 0
        %2449 = vmatprep.mubr.bf16.mxu0 0
        %2450 = vmatmul.mubr.bf16.gmra.mrb[0].mxu0 %v2306
        %v2451 = vpop.f32.mrb[0].mxu0
        %v2452 = vadd.f32 %v2278, %v2451
        %v2453 = vpop.f32.mrb[0].mxu0
        %v2454 = vadd.f32 %v2278, %v2453
        %v2455 = vpop.f32.mrb[0].mxu0
        %v2456 = vadd.f32 %v2283, %v2455
        %v2457 = vpop.f32.mrb[0].mxu0
        %v2458 = vadd.f32 %v2283, %v2457
        %2459 = vmatprep.mubr.bf16.mxu0 0
        %2460 = vmatmul.mubr.bf16.gmra.mrb[0].mxu0 %v2309
        %v2461 = vpop.f32.mrb[0].mxu0
        %v2462 = vadd.f32 %v2288, %v2461
        %v2463 = vpop.f32.mrb[0].mxu0
        %v2464 = vadd.f32 %v2288, %v2463
        %v2465 = vpop.f32.mrb[0].mxu0
        %v2466 = vadd.f32 %v2293, %v2465
        %v2467 = vpop.f32.mrb[0].mxu0
        %v2468 = vadd.f32 %v2293, %v2467
        %2469 = vdwg.mxu0
        %2470 = vmatprep.subr.bf16.mxu0 %v2258
        %2471 = vmatpush1.bf16.msra.mxu0 %v2257
        %2472 = vmatprep.subr.bf16.mxu0 %v2266
        %2473 = vmatpush1.bf16.msra.mxu0 %v2265
        %2474 = vmatprep.subr.bf16.mxu0 0
        %2475 = vmatpush1.bf16.msra.mxu0 0
        %2476 = vmatprep.subr.bf16.mxu0 0
        %2477 = vmatpush1.bf16.msra.mxu0 0
        %2478 = vmatprep.subr.bf16.mxu0 0
        %2479 = vmatpush1.bf16.msra.mxu0 0
        %2480 = vmatprep.subr.bf16.mxu0 0
        %2481 = vmatpush1.bf16.msra.mxu0 0
        %2482 = vmatprep.subr.bf16.mxu0 0
        %2483 = vmatpush1.bf16.msra.mxu0 0
        %2484 = vmatprep.subr.bf16.mxu0 0
        %2485 = vmatpush1.bf16.msra.mxu0 0
        %2486 = vmatprep.subr.bf16.mxu0 0
        %2487 = vmatpush1.bf16.msra.mxu0 0
        %2488 = vmatprep.subr.bf16.mxu0 0
        %2489 = vmatpush1.bf16.msra.mxu0 0
        %2490 = vmatprep.subr.bf16.mxu0 0
        %2491 = vmatpush1.bf16.msra.mxu0 0
        %2492 = vmatprep.subr.bf16.mxu0 0
        %2493 = vmatpush1.bf16.msra.mxu0 0
        %2494 = vmatprep.subr.bf16.mxu0 0
        %2495 = vmatpush1.bf16.msra.mxu0 0
        %2496 = vmatprep.subr.bf16.mxu0 0
        %2497 = vmatpush1.bf16.msra.mxu0 0
        %2498 = vmatprep.subr.bf16.mxu0 0
        %2499 = vmatpush1.bf16.msra.mxu0 0
        %2500 = vmatprep.subr.bf16.mxu0 0
        %2501 = vmatpush1.bf16.msra.mxu0 0
        %2502 = vmatprep.mubr.bf16.mxu0 0
        %2503 = vmatmul.mubr.bf16.gmra.mrb[0].mxu0 %v2306
        %v2504 = vpop.f32.mrb[0].mxu0
        %v2505 = vadd.f32 %v2278, %v2504
        %v2506 = vpop.f32.mrb[0].mxu0
        %v2507 = vadd.f32 %v2278, %v2506
        %v2508 = vpop.f32.mrb[0].mxu0
        %v2509 = vadd.f32 %v2283, %v2508
        %v2510 = vpop.f32.mrb[0].mxu0
        %v2511 = vadd.f32 %v2283, %v2510
        %2512 = vmatprep.mubr.bf16.mxu0 0
        %2513 = vmatmul.mubr.bf16.gmra.mrb[0].mxu0 %v2309
        %v2514 = vpop.f32.mrb[0].mxu0
        %v2515 = vadd.f32 %v2288, %v2514
        %v2516 = vpop.f32.mrb[0].mxu0
        %v2517 = vadd.f32 %v2288, %v2516
        %v2518 = vpop.f32.mrb[0].mxu0
        %v2519 = vadd.f32 %v2293, %v2518
        %v2520 = vpop.f32.mrb[0].mxu0
        %v2521 = vadd.f32 %v2293, %v2520
        %2522 = vdwg.mxu0
        %v2523 = vpack.c.bf16 %v2350, %v2346
        %v2524 = vpack.c.bf16 %v2352, %v2348
        %v2525 = vpack.c.bf16 %v2403, %v2399
        %v2526 = vpack.c.bf16 %v2405, %v2401
        %v2527 = vpack.c.bf16 %v2456, %v2452
        %v2528 = vpack.c.bf16 %v2458, %v2454
        %v2529 = vpack.c.bf16 %v2509, %v2505
        %v2530 = vpack.c.bf16 %v2511, %v2507
        %v2531 = vpack.c.bf16 %v2360, %v2356
        %v2532 = vpack.c.bf16 %v2362, %v2358
        %v2533 = vpack.c.bf16 %v2413, %v2409
        %v2534 = vpack.c.bf16 %v2415, %v2411
        %v2535 = vpack.c.bf16 %v2466, %v2462
        %v2536 = vpack.c.bf16 %v2468, %v2464
        %v2537 = vpack.c.bf16 %v2519, %v2515
        %v2538 = vpack.c.bf16 %v2521, %v2517
        %v2539 = vmul.bf16 %v2523, 1120420552
        %v2540 = vmul.bf16 %v2524, 1120420552
        %v2541 = vmul.bf16 %v2525, 1120420552
        %v2542 = vmul.bf16 %v2526, 1120420552
        %v2543 = vmul.bf16 %v2527, 1120420552
        %v2544 = vmul.bf16 %v2528, 1120420552
        %v2545 = vmul.bf16 %v2529, 1120420552
        %v2546 = vmul.bf16 %v2530, 1120420552
        %v2547 = vmul.bf16 %v2531, 1120420552
        %v2548 = vmul.bf16 %v2532, 1120420552
        %v2549 = vmul.bf16 %v2533, 1120420552
        %v2550 = vmul.bf16 %v2534, 1120420552
        %v2551 = vmul.bf16 %v2535, 1120420552
        %v2552 = vmul.bf16 %v2536, 1120420552
        %v2553 = vmul.bf16 %v2537, 1120420552
        %v2554 = vmul.bf16 %v2538, 1120420552
        %v2555 = vmin.bf16 %v2539, 1101021600
        %v2556 = vmin.bf16 %v2540, 1101021600
        %v2557 = vmin.bf16 %v2541, 1101021600
        %v2558 = vmin.bf16 %v2542, 1101021600
        %v2559 = vmin.bf16 %v2543, 1101021600
        %v2560 = vmin.bf16 %v2544, 1101021600
        %v2561 = vmin.bf16 %v2545, 1101021600
        %v2562 = vmin.bf16 %v2546, 1101021600
        %v2563 = vmin.bf16 %v2547, 1101021600
        %v2564 = vmin.bf16 %v2548, 1101021600
        %v2565 = vmin.bf16 %v2549, 1101021600
        %v2566 = vmin.bf16 %v2550, 1101021600
        %v2567 = vmin.bf16 %v2551, 1101021600
        %v2568 = vmin.bf16 %v2552, 1101021600
        %v2569 = vmin.bf16 %v2553, 1101021600
        %v2570 = vmin.bf16 %v2554, 1101021600
        %v2572 = vmul.bf16 %v2555, 1069105081
        %v2573 = vpow.bf16.pop %v2572
        %v2575 = vmul.bf16 %v2556, 1069105081
        %v2576 = vpow.bf16.pop %v2575
        %v2578 = vmul.bf16 %v2557, 1069105081
        %v2579 = vpow.bf16.pop %v2578
        %v2581 = vmul.bf16 %v2558, 1069105081
        %v2582 = vpow.bf16.pop %v2581
        %v2584 = vmul.bf16 %v2559, 1069105081
        %v2585 = vpow.bf16.pop %v2584
        %v2587 = vmul.bf16 %v2560, 1069105081
        %v2588 = vpow.bf16.pop %v2587
        %v2590 = vmul.bf16 %v2561, 1069105081
        %v2591 = vpow.bf16.pop %v2590
        %v2593 = vmul.bf16 %v2562, 1069105081
        %v2594 = vpow.bf16.pop %v2593
        %v2596 = vmul.bf16 %v2563, 1069105081
        %v2597 = vpow.bf16.pop %v2596
        %v2599 = vmul.bf16 %v2564, 1069105081
        %v2600 = vpow.bf16.pop %v2599
        %v2602 = vmul.bf16 %v2565, 1069105081
        %v2603 = vpow.bf16.pop %v2602
        %v2605 = vmul.bf16 %v2566, 1069105081
        %v2606 = vpow.bf16.pop %v2605
        %v2608 = vmul.bf16 %v2567, 1069105081
        %v2609 = vpow.bf16.pop %v2608
        %v2611 = vmul.bf16 %v2568, 1069105081
        %v2612 = vpow.bf16.pop %v2611
        %v2614 = vmul.bf16 %v2569, 1069105081
        %v2615 = vpow.bf16.pop %v2614
        %v2617 = vmul.bf16 %v2570, 1069105081
        %v2618 = vpow.bf16.pop %v2617
        %v2619 = vadd.bf16 %v2573, 1065369472
        %v2620 = vadd.bf16 %v2576, 1065369472
        %v2621 = vadd.bf16 %v2579, 1065369472
        %v2622 = vadd.bf16 %v2582, 1065369472
        %v2623 = vadd.bf16 %v2585, 1065369472
        %v2624 = vadd.bf16 %v2588, 1065369472
        %v2625 = vadd.bf16 %v2591, 1065369472
        %v2626 = vadd.bf16 %v2594, 1065369472
        %v2627 = vadd.bf16 %v2597, 1065369472
        %v2628 = vadd.bf16 %v2600, 1065369472
        %v2629 = vadd.bf16 %v2603, 1065369472
        %v2630 = vadd.bf16 %v2606, 1065369472
        %v2631 = vadd.bf16 %v2609, 1065369472
        %v2632 = vadd.bf16 %v2612, 1065369472
        %v2633 = vadd.bf16 %v2615, 1065369472
        %v2634 = vadd.bf16 %v2618, 1065369472
        %v2635 = vlog2.bf16.pop %v2619
        %v2637 = vmul.bf16 %v2635, 1060192049
        %v2638 = vlog2.bf16.pop %v2620
        %v2640 = vmul.bf16 %v2638, 1060192049
        %v2641 = vlog2.bf16.pop %v2621
        %v2643 = vmul.bf16 %v2641, 1060192049
        %v2644 = vlog2.bf16.pop %v2622
        %v2646 = vmul.bf16 %v2644, 1060192049
        %v2647 = vlog2.bf16.pop %v2623
        %v2649 = vmul.bf16 %v2647, 1060192049
        %v2650 = vlog2.bf16.pop %v2624
        %v2652 = vmul.bf16 %v2650, 1060192049
        %v2653 = vlog2.bf16.pop %v2625
        %v2655 = vmul.bf16 %v2653, 1060192049
        %v2656 = vlog2.bf16.pop %v2626
        %v2658 = vmul.bf16 %v2656, 1060192049
        %v2659 = vlog2.bf16.pop %v2627
        %v2661 = vmul.bf16 %v2659, 1060192049
        %v2662 = vlog2.bf16.pop %v2628
        %v2664 = vmul.bf16 %v2662, 1060192049
        %v2665 = vlog2.bf16.pop %v2629
        %v2667 = vmul.bf16 %v2665, 1060192049
        %v2668 = vlog2.bf16.pop %v2630
        %v2670 = vmul.bf16 %v2668, 1060192049
        %v2671 = vlog2.bf16.pop %v2631
        %v2673 = vmul.bf16 %v2671, 1060192049
        %v2674 = vlog2.bf16.pop %v2632
        %v2676 = vmul.bf16 %v2674, 1060192049
        %v2677 = vlog2.bf16.pop %v2633
        %v2679 = vmul.bf16 %v2677, 1060192049
        %v2680 = vlog2.bf16.pop %v2634
        %v2682 = vmul.bf16 %v2680, 1060192049
        %v2683 = vmul.bf16 %v2637, 1009007652
        %v2684 = vmul.bf16 %v2640, 1009007652
        %v2685 = vmul.bf16 %v2643, 1009007652
        %v2686 = vmul.bf16 %v2646, 1009007652
        %v2687 = vmul.bf16 %v2649, 1009007652
        %v2688 = vmul.bf16 %v2652, 1009007652
        %v2689 = vmul.bf16 %v2655, 1009007652
        %v2690 = vmul.bf16 %v2658, 1009007652
        %v2691 = vmul.bf16 %v2661, 1009007652
        %v2692 = vmul.bf16 %v2664, 1009007652
        %v2693 = vmul.bf16 %v2667, 1009007652
        %v2694 = vmul.bf16 %v2670, 1009007652
        %v2695 = vmul.bf16 %v2673, 1009007652
        %v2696 = vmul.bf16 %v2676, 1009007652
        %v2697 = vmul.bf16 %v2679, 1009007652
        %v2698 = vmul.bf16 %v2682, 1009007652
        %vm2699 = vcmp.gt.bf16.partialorder %v2539, 1101021600
        %vm2700 = vcmp.gt.bf16.partialorder %v2540, 1101021600
        %vm2701 = vcmp.gt.bf16.partialorder %v2541, 1101021600
        %vm2702 = vcmp.gt.bf16.partialorder %v2542, 1101021600
        %vm2703 = vcmp.gt.bf16.partialorder %v2543, 1101021600
        %vm2704 = vcmp.gt.bf16.partialorder %v2544, 1101021600
        %vm2705 = vcmp.gt.bf16.partialorder %v2545, 1101021600
        %vm2706 = vcmp.gt.bf16.partialorder %v2546, 1101021600
        %vm2707 = vcmp.gt.bf16.partialorder %v2547, 1101021600
        %vm2708 = vcmp.gt.bf16.partialorder %v2548, 1101021600
        %vm2709 = vcmp.gt.bf16.partialorder %v2549, 1101021600
        %vm2710 = vcmp.gt.bf16.partialorder %v2550, 1101021600
        %vm2711 = vcmp.gt.bf16.partialorder %v2551, 1101021600
        %vm2712 = vcmp.gt.bf16.partialorder %v2552, 1101021600
        %vm2713 = vcmp.gt.bf16.partialorder %v2553, 1101021600
        %vm2714 = vcmp.gt.bf16.partialorder %v2554, 1101021600
        %v2715 = vsel %vm2699, %v2523, %v2683
        %v2716 = vsel %vm2700, %v2524, %v2684
        %v2717 = vsel %vm2701, %v2525, %v2685
        %v2718 = vsel %vm2702, %v2526, %v2686
        %v2719 = vsel %vm2703, %v2527, %v2687
        %v2720 = vsel %vm2704, %v2528, %v2688
        %v2721 = vsel %vm2705, %v2529, %v2689
        %v2722 = vsel %vm2706, %v2530, %v2690
        %v2723 = vsel %vm2707, %v2531, %v2691
        %v2724 = vsel %vm2708, %v2532, %v2692
        %v2725 = vsel %vm2709, %v2533, %v2693
        %v2726 = vsel %vm2710, %v2534, %v2694
        %v2727 = vsel %vm2711, %v2535, %v2695
        %v2728 = vsel %vm2712, %v2536, %v2696
        %v2729 = vsel %vm2713, %v2537, %v2697
        %v2730 = vsel %vm2714, %v2538, %v2698
        %v2731 = vld [vmem:[%s11] sm:$0xf]
        %v2732 = vld [vmem:[%s11 + $0x4] sm:$0xf]
        %v2733 = vld [vmem:[%s11 + $0x8] sm:$0xf]
        %v2734 = vld [vmem:[%s11 + $0xc] sm:$0xf]
        %v2735 = vld [vmem:[%s12] sm:$0xff]
        %v2736 = vld [vmem:[%s12 + $0x8] sm:$0xff]
        %v2737 = vld [vmem:[%s12 + $0x10] sm:$0xff]
        %v2738 = vld [vmem:[%s12 + $0x18] sm:$0xff]
        %v2740 = vsel %vm688, %v2735, 0
        %v2743 = vsel %vm688, %v2736, 0
        %v2746 = vsel %vm688, %v2737, 0
        %v2749 = vsel %vm688, %v2738, 0
        %2751 = vmatprep.subr.mxu0 %v704
        %2752 = vmatpush1.msra.mxu0 %v702
        %2753 = vmatprep.subr.mxu0 0.0
        %2754 = vmatpush1.msra.mxu0 0.0
        %2755 = vmatprep.subr.mxu0 0.0
        %2756 = vmatpush1.msra.mxu0 0.0
        %2757 = vmatprep.subr.mxu0 0.0
        %2758 = vmatpush1.msra.mxu0 0.0
        %2759 = vmatprep.subr.mxu0 0.0
        %2760 = vmatpush1.msra.mxu0 0.0
        %2761 = vmatprep.subr.mxu0 0.0
        %2762 = vmatpush1.msra.mxu0 0.0
        %2763 = vmatprep.subr.mxu0 0.0
        %2764 = vmatpush1.msra.mxu0 0.0
        %2765 = vmatprep.subr.mxu0 0.0
        %2766 = vmatpush1.msra.mxu0 0.0
        %2767 = vmatprep.subr.mxu0 0.0
        %2768 = vmatpush1.msra.mxu0 0.0
        %2769 = vmatprep.subr.mxu0 0.0
        %2770 = vmatpush1.msra.mxu0 0.0
        %2771 = vmatprep.subr.mxu0 0.0
        %2772 = vmatpush1.msra.mxu0 0.0
        %2773 = vmatprep.subr.mxu0 0.0
        %2774 = vmatpush1.msra.mxu0 0.0
        %2775 = vmatprep.subr.mxu0 0.0
        %2776 = vmatpush1.msra.mxu0 0.0
        %2777 = vmatprep.subr.mxu0 0.0
        %2778 = vmatpush1.msra.mxu0 0.0
        %2779 = vmatprep.subr.mxu0 0.0
        %2780 = vmatpush1.msra.mxu0 0.0
        %2781 = vmatprep.subr.mxu0 0.0
        %2782 = vmatpush1.msra.mxu0 0.0
        %2783 = vmatprep.subr.mxu0 0.0
        %2784 = vmatpush1.msra.mxu0 0.0
        %2785 = vmatprep.subr.mxu0 0.0
        %2786 = vmatpush1.msra.mxu0 0.0
        %2787 = vmatprep.subr.mxu0 0.0
        %2788 = vmatpush1.msra.mxu0 0.0
        %2789 = vmatprep.subr.mxu0 0.0
        %2790 = vmatpush1.msra.mxu0 0.0
        %2791 = vmatprep.subr.mxu0 0.0
        %2792 = vmatpush1.msra.mxu0 0.0
        %2793 = vmatprep.subr.mxu0 0.0
        %2794 = vmatpush1.msra.mxu0 0.0
        %2795 = vmatprep.subr.mxu0 0.0
        %2796 = vmatpush1.msra.mxu0 0.0
        %2797 = vmatprep.subr.mxu0 0.0
        %2798 = vmatpush1.msra.mxu0 0.0
        %2799 = vmatprep.subr.mxu0 0.0
        %2800 = vmatpush1.msra.mxu0 0.0
        %2801 = vmatprep.subr.mxu0 0.0
        %2802 = vmatpush1.msra.mxu0 0.0
        %2803 = vmatprep.subr.mxu0 0.0
        %2804 = vmatpush1.msra.mxu0 0.0
        %2805 = vmatprep.subr.mxu0 0.0
        %2806 = vmatpush1.msra.mxu0 0.0
        %2807 = vmatprep.subr.mxu0 0.0
        %2808 = vmatpush1.msra.mxu0 0.0
        %2809 = vmatprep.subr.mxu0 0.0
        %2810 = vmatpush1.msra.mxu0 0.0
        %2811 = vmatprep.subr.mxu0 0.0
        %2812 = vmatpush1.msra.mxu0 0.0
        %2813 = vmatprep.subr.mxu0 0.0
        %2814 = vmatpush1.msra.mxu0 0.0
        %2815 = vmatprep.mubr.f32.mxu0 0.0
        %2816 = vmatmul.mubr.f32.gmra.mrb[0].mxu0 %v2740
        %v2817 = vpop.f32.mrb[0].mxu0
        %v2818 = vadd.f32 0.0, %v2817
        %v2819 = vpop.f32.mrb[0].mxu0
        %v2820 = vadd.f32 0.0, %v2819
        %2821 = vmatprep.mubr.f32.mxu0 0.0
        %2822 = vmatmul.mubr.f32.gmra.mrb[0].mxu0 %v2743
        %v2823 = vpop.f32.mrb[0].mxu0
        %v2824 = vadd.f32 0.0, %v2823
        %v2825 = vpop.f32.mrb[0].mxu0
        %v2826 = vadd.f32 0.0, %v2825
        %2827 = vmatprep.mubr.f32.mxu0 0.0
        %2828 = vmatmul.mubr.f32.gmra.mrb[0].mxu0 %v2746
        %v2829 = vpop.f32.mrb[0].mxu0
        %v2830 = vadd.f32 0.0, %v2829
        %v2831 = vpop.f32.mrb[0].mxu0
        %v2832 = vadd.f32 0.0, %v2831
        %2833 = vmatprep.mubr.f32.mxu0 0.0
        %2834 = vmatmul.mubr.f32.gmra.mrb[0].mxu0 %v2749
        %v2835 = vpop.f32.mrb[0].mxu0
        %v2836 = vadd.f32 0.0, %v2835
        %v2837 = vpop.f32.mrb[0].mxu0
        %v2838 = vadd.f32 0.0, %v2837
        %2839 = vdwg.mxu0
        %2840 = vmatprep.subr.mxu0 %v708
        %2841 = vmatpush1.msra.mxu0 %v706
        %2842 = vmatprep.subr.mxu0 0.0
        %2843 = vmatpush1.msra.mxu0 0.0
        %2844 = vmatprep.subr.mxu0 0.0
        %2845 = vmatpush1.msra.mxu0 0.0
        %2846 = vmatprep.subr.mxu0 0.0
        %2847 = vmatpush1.msra.mxu0 0.0
        %2848 = vmatprep.subr.mxu0 0.0
        %2849 = vmatpush1.msra.mxu0 0.0
        %2850 = vmatprep.subr.mxu0 0.0
        %2851 = vmatpush1.msra.mxu0 0.0
        %2852 = vmatprep.subr.mxu0 0.0
        %2853 = vmatpush1.msra.mxu0 0.0
        %2854 = vmatprep.subr.mxu0 0.0
        %2855 = vmatpush1.msra.mxu0 0.0
        %2856 = vmatprep.subr.mxu0 0.0
        %2857 = vmatpush1.msra.mxu0 0.0
        %2858 = vmatprep.subr.mxu0 0.0
        %2859 = vmatpush1.msra.mxu0 0.0
        %2860 = vmatprep.subr.mxu0 0.0
        %2861 = vmatpush1.msra.mxu0 0.0
        %2862 = vmatprep.subr.mxu0 0.0
        %2863 = vmatpush1.msra.mxu0 0.0
        %2864 = vmatprep.subr.mxu0 0.0
        %2865 = vmatpush1.msra.mxu0 0.0
        %2866 = vmatprep.subr.mxu0 0.0
        %2867 = vmatpush1.msra.mxu0 0.0
        %2868 = vmatprep.subr.mxu0 0.0
        %2869 = vmatpush1.msra.mxu0 0.0
        %2870 = vmatprep.subr.mxu0 0.0
        %2871 = vmatpush1.msra.mxu0 0.0
        %2872 = vmatprep.subr.mxu0 0.0
        %2873 = vmatpush1.msra.mxu0 0.0
        %2874 = vmatprep.subr.mxu0 0.0
        %2875 = vmatpush1.msra.mxu0 0.0
        %2876 = vmatprep.subr.mxu0 0.0
        %2877 = vmatpush1.msra.mxu0 0.0
        %2878 = vmatprep.subr.mxu0 0.0
        %2879 = vmatpush1.msra.mxu0 0.0
        %2880 = vmatprep.subr.mxu0 0.0
        %2881 = vmatpush1.msra.mxu0 0.0
        %2882 = vmatprep.subr.mxu0 0.0
        %2883 = vmatpush1.msra.mxu0 0.0
        %2884 = vmatprep.subr.mxu0 0.0
        %2885 = vmatpush1.msra.mxu0 0.0
        %2886 = vmatprep.subr.mxu0 0.0
        %2887 = vmatpush1.msra.mxu0 0.0
        %2888 = vmatprep.subr.mxu0 0.0
        %2889 = vmatpush1.msra.mxu0 0.0
        %2890 = vmatprep.subr.mxu0 0.0
        %2891 = vmatpush1.msra.mxu0 0.0
        %2892 = vmatprep.subr.mxu0 0.0
        %2893 = vmatpush1.msra.mxu0 0.0
        %2894 = vmatprep.subr.mxu0 0.0
        %2895 = vmatpush1.msra.mxu0 0.0
        %2896 = vmatprep.subr.mxu0 0.0
        %2897 = vmatpush1.msra.mxu0 0.0
        %2898 = vmatprep.subr.mxu0 0.0
        %2899 = vmatpush1.msra.mxu0 0.0
        %2900 = vmatprep.subr.mxu0 0.0
        %2901 = vmatpush1.msra.mxu0 0.0
        %2902 = vmatprep.subr.mxu0 0.0
        %2903 = vmatpush1.msra.mxu0 0.0
        %2904 = vmatprep.mubr.f32.mxu0 0.0
        %2905 = vmatmul.mubr.f32.gmra.mrb[0].mxu0 %v2740
        %v2906 = vpop.f32.mrb[0].mxu0
        %v2907 = vadd.f32 0.0, %v2906
        %v2908 = vpop.f32.mrb[0].mxu0
        %v2909 = vadd.f32 0.0, %v2908
        %2910 = vmatprep.mubr.f32.mxu0 0.0
        %2911 = vmatmul.mubr.f32.gmra.mrb[0].mxu0 %v2743
        %v2912 = vpop.f32.mrb[0].mxu0
        %v2913 = vadd.f32 0.0, %v2912
        %v2914 = vpop.f32.mrb[0].mxu0
        %v2915 = vadd.f32 0.0, %v2914
        %2916 = vmatprep.mubr.f32.mxu0 0.0
        %2917 = vmatmul.mubr.f32.gmra.mrb[0].mxu0 %v2746
        %v2918 = vpop.f32.mrb[0].mxu0
        %v2919 = vadd.f32 0.0, %v2918
        %v2920 = vpop.f32.mrb[0].mxu0
        %v2921 = vadd.f32 0.0, %v2920
        %2922 = vmatprep.mubr.f32.mxu0 0.0
        %2923 = vmatmul.mubr.f32.gmra.mrb[0].mxu0 %v2749
        %v2924 = vpop.f32.mrb[0].mxu0
        %v2925 = vadd.f32 0.0, %v2924
        %v2926 = vpop.f32.mrb[0].mxu0
        %v2927 = vadd.f32 0.0, %v2926
        %2928 = vdwg.mxu0
        %2929 = vmatprep.subr.mxu0 %v712
        %2930 = vmatpush1.msra.mxu0 %v710
        %2931 = vmatprep.subr.mxu0 0.0
        %2932 = vmatpush1.msra.mxu0 0.0
        %2933 = vmatprep.subr.mxu0 0.0
        %2934 = vmatpush1.msra.mxu0 0.0
        %2935 = vmatprep.subr.mxu0 0.0
        %2936 = vmatpush1.msra.mxu0 0.0
        %2937 = vmatprep.subr.mxu0 0.0
        %2938 = vmatpush1.msra.mxu0 0.0
        %2939 = vmatprep.subr.mxu0 0.0
        %2940 = vmatpush1.msra.mxu0 0.0
        %2941 = vmatprep.subr.mxu0 0.0
        %2942 = vmatpush1.msra.mxu0 0.0
        %2943 = vmatprep.subr.mxu0 0.0
        %2944 = vmatpush1.msra.mxu0 0.0
        %2945 = vmatprep.subr.mxu0 0.0
        %2946 = vmatpush1.msra.mxu0 0.0
        %2947 = vmatprep.subr.mxu0 0.0
        %2948 = vmatpush1.msra.mxu0 0.0
        %2949 = vmatprep.subr.mxu0 0.0
        %2950 = vmatpush1.msra.mxu0 0.0
        %2951 = vmatprep.subr.mxu0 0.0
        %2952 = vmatpush1.msra.mxu0 0.0
        %2953 = vmatprep.subr.mxu0 0.0
        %2954 = vmatpush1.msra.mxu0 0.0
        %2955 = vmatprep.subr.mxu0 0.0
        %2956 = vmatpush1.msra.mxu0 0.0
        %2957 = vmatprep.subr.mxu0 0.0
        %2958 = vmatpush1.msra.mxu0 0.0
        %2959 = vmatprep.subr.mxu0 0.0
        %2960 = vmatpush1.msra.mxu0 0.0
        %2961 = vmatprep.subr.mxu0 0.0
        %2962 = vmatpush1.msra.mxu0 0.0
        %2963 = vmatprep.subr.mxu0 0.0
        %2964 = vmatpush1.msra.mxu0 0.0
        %2965 = vmatprep.subr.mxu0 0.0
        %2966 = vmatpush1.msra.mxu0 0.0
        %2967 = vmatprep.subr.mxu0 0.0
        %2968 = vmatpush1.msra.mxu0 0.0
        %2969 = vmatprep.subr.mxu0 0.0
        %2970 = vmatpush1.msra.mxu0 0.0
        %2971 = vmatprep.subr.mxu0 0.0
        %2972 = vmatpush1.msra.mxu0 0.0
        %2973 = vmatprep.subr.mxu0 0.0
        %2974 = vmatpush1.msra.mxu0 0.0
        %2975 = vmatprep.subr.mxu0 0.0
        %2976 = vmatpush1.msra.mxu0 0.0
        %2977 = vmatprep.subr.mxu0 0.0
        %2978 = vmatpush1.msra.mxu0 0.0
        %2979 = vmatprep.subr.mxu0 0.0
        %2980 = vmatpush1.msra.mxu0 0.0
        %2981 = vmatprep.subr.mxu0 0.0
        %2982 = vmatpush1.msra.mxu0 0.0
        %2983 = vmatprep.subr.mxu0 0.0
        %2984 = vmatpush1.msra.mxu0 0.0
        %2985 = vmatprep.subr.mxu0 0.0
        %2986 = vmatpush1.msra.mxu0 0.0
        %2987 = vmatprep.subr.mxu0 0.0
        %2988 = vmatpush1.msra.mxu0 0.0
        %2989 = vmatprep.subr.mxu0 0.0
        %2990 = vmatpush1.msra.mxu0 0.0
        %2991 = vmatprep.subr.mxu0 0.0
        %2992 = vmatpush1.msra.mxu0 0.0
        %2993 = vmatprep.mubr.f32.mxu0 0.0
        %2994 = vmatmul.mubr.f32.gmra.mrb[0].mxu0 %v2740
        %v2995 = vpop.f32.mrb[0].mxu0
        %v2996 = vadd.f32 0.0, %v2995
        %v2997 = vpop.f32.mrb[0].mxu0
        %v2998 = vadd.f32 0.0, %v2997
        %2999 = vmatprep.mubr.f32.mxu0 0.0
        %3000 = vmatmul.mubr.f32.gmra.mrb[0].mxu0 %v2743
        %v3001 = vpop.f32.mrb[0].mxu0
        %v3002 = vadd.f32 0.0, %v3001
        %v3003 = vpop.f32.mrb[0].mxu0
        %v3004 = vadd.f32 0.0, %v3003
        %3005 = vmatprep.mubr.f32.mxu0 0.0
        %3006 = vmatmul.mubr.f32.gmra.mrb[0].mxu0 %v2746
        %v3007 = vpop.f32.mrb[0].mxu0
        %v3008 = vadd.f32 0.0, %v3007
        %v3009 = vpop.f32.mrb[0].mxu0
        %v3010 = vadd.f32 0.0, %v3009
        %3011 = vmatprep.mubr.f32.mxu0 0.0
        %3012 = vmatmul.mubr.f32.gmra.mrb[0].mxu0 %v2749
        %v3013 = vpop.f32.mrb[0].mxu0
        %v3014 = vadd.f32 0.0, %v3013
        %v3015 = vpop.f32.mrb[0].mxu0
        %v3016 = vadd.f32 0.0, %v3015
        %3017 = vdwg.mxu0
        %3018 = vmatprep.subr.mxu0 %v716
        %3019 = vmatpush1.msra.mxu0 %v714
        %3020 = vmatprep.subr.mxu0 0.0
        %3021 = vmatpush1.msra.mxu0 0.0
        %3022 = vmatprep.subr.mxu0 0.0
        %3023 = vmatpush1.msra.mxu0 0.0
        %3024 = vmatprep.subr.mxu0 0.0
        %3025 = vmatpush1.msra.mxu0 0.0
        %3026 = vmatprep.subr.mxu0 0.0
        %3027 = vmatpush1.msra.mxu0 0.0
        %3028 = vmatprep.subr.mxu0 0.0
        %3029 = vmatpush1.msra.mxu0 0.0
        %3030 = vmatprep.subr.mxu0 0.0
        %3031 = vmatpush1.msra.mxu0 0.0
        %3032 = vmatprep.subr.mxu0 0.0
        %3033 = vmatpush1.msra.mxu0 0.0
        %3034 = vmatprep.subr.mxu0 0.0
        %3035 = vmatpush1.msra.mxu0 0.0
        %3036 = vmatprep.subr.mxu0 0.0
        %3037 = vmatpush1.msra.mxu0 0.0
        %3038 = vmatprep.subr.mxu0 0.0
        %3039 = vmatpush1.msra.mxu0 0.0
        %3040 = vmatprep.subr.mxu0 0.0
        %3041 = vmatpush1.msra.mxu0 0.0
        %3042 = vmatprep.subr.mxu0 0.0
        %3043 = vmatpush1.msra.mxu0 0.0
        %3044 = vmatprep.subr.mxu0 0.0
        %3045 = vmatpush1.msra.mxu0 0.0
        %3046 = vmatprep.subr.mxu0 0.0
        %3047 = vmatpush1.msra.mxu0 0.0
        %3048 = vmatprep.subr.mxu0 0.0
        %3049 = vmatpush1.msra.mxu0 0.0
        %3050 = vmatprep.subr.mxu0 0.0
        %3051 = vmatpush1.msra.mxu0 0.0
        %3052 = vmatprep.subr.mxu0 0.0
        %3053 = vmatpush1.msra.mxu0 0.0
        %3054 = vmatprep.subr.mxu0 0.0
        %3055 = vmatpush1.msra.mxu0 0.0
        %3056 = vmatprep.subr.mxu0 0.0
        %3057 = vmatpush1.msra.mxu0 0.0
        %3058 = vmatprep.subr.mxu0 0.0
        %3059 = vmatpush1.msra.mxu0 0.0
        %3060 = vmatprep.subr.mxu0 0.0
        %3061 = vmatpush1.msra.mxu0 0.0
        %3062 = vmatprep.subr.mxu0 0.0
        %3063 = vmatpush1.msra.mxu0 0.0
        %3064 = vmatprep.subr.mxu0 0.0
        %3065 = vmatpush1.msra.mxu0 0.0
        %3066 = vmatprep.subr.mxu0 0.0
        %3067 = vmatpush1.msra.mxu0 0.0
        %3068 = vmatprep.subr.mxu0 0.0
        %3069 = vmatpush1.msra.mxu0 0.0
        %3070 = vmatprep.subr.mxu0 0.0
        %3071 = vmatpush1.msra.mxu0 0.0
        %3072 = vmatprep.subr.mxu0 0.0
        %3073 = vmatpush1.msra.mxu0 0.0
        %3074 = vmatprep.subr.mxu0 0.0
        %3075 = vmatpush1.msra.mxu0 0.0
        %3076 = vmatprep.subr.mxu0 0.0
        %3077 = vmatpush1.msra.mxu0 0.0
        %3078 = vmatprep.subr.mxu0 0.0
        %3079 = vmatpush1.msra.mxu0 0.0
        %3080 = vmatprep.subr.mxu0 0.0
        %3081 = vmatpush1.msra.mxu0 0.0
        %3082 = vmatprep.mubr.f32.mxu0 0.0
        %3083 = vmatmul.mubr.f32.gmra.mrb[0].mxu0 %v2740
        %v3084 = vpop.f32.mrb[0].mxu0
        %v3085 = vadd.f32 0.0, %v3084
        %v3086 = vpop.f32.mrb[0].mxu0
        %v3087 = vadd.f32 0.0, %v3086
        %3088 = vmatprep.mubr.f32.mxu0 0.0
        %3089 = vmatmul.mubr.f32.gmra.mrb[0].mxu0 %v2743
        %v3090 = vpop.f32.mrb[0].mxu0
        %v3091 = vadd.f32 0.0, %v3090
        %v3092 = vpop.f32.mrb[0].mxu0
        %v3093 = vadd.f32 0.0, %v3092
        %3094 = vmatprep.mubr.f32.mxu0 0.0
        %3095 = vmatmul.mubr.f32.gmra.mrb[0].mxu0 %v2746
        %v3096 = vpop.f32.mrb[0].mxu0
        %v3097 = vadd.f32 0.0, %v3096
        %v3098 = vpop.f32.mrb[0].mxu0
        %v3099 = vadd.f32 0.0, %v3098
        %3100 = vmatprep.mubr.f32.mxu0 0.0
        %3101 = vmatmul.mubr.f32.gmra.mrb[0].mxu0 %v2749
        %v3102 = vpop.f32.mrb[0].mxu0
        %v3103 = vadd.f32 0.0, %v3102
        %v3104 = vpop.f32.mrb[0].mxu0
        %v3105 = vadd.f32 0.0, %v3104
        %3106 = vdwg.mxu0
        %v3111 = vunpack.c.l.b16 %v2731
        %v3112 = vunpack.c.l.b16 %v2732
        %v3113 = vunpack.c.l.b16 %v2733
        %v3114 = vunpack.c.l.b16 %v2734
        %v3115 = vpack.c.b16 %v3112, %v3111
        %v3116 = vpack.c.b16 %v3114, %v3113
        %vm3117 = vcmask 228352
        %v3119 = vsel %vm3117, %v3115, 0
        %v3122 = vsel %vm3117, %v3116, 0
        %vm3124 = vcmask 1045504
        %v3126 = vsel %vm3124, %v2723, 0
        %v3129 = vsel %vm3124, %v2724, 0
        %v3132 = vsel %vm3124, %v2725, 0
        %v3135 = vsel %vm3124, %v2726, 0
        %v3138 = vsel %vm3124, %v2727, 0
        %v3141 = vsel %vm3124, %v2728, 0
        %v3144 = vsel %vm3124, %v2729, 0
        %v3147 = vsel %vm3124, %v2730, 0
        %3149 = vmatprep.subr.bf16.mxu0 %v2716
        %3150 = vmatpush1.bf16.msra.mxu0 %v2715
        %3151 = vmatprep.subr.bf16.mxu0 %v3129
        %3152 = vmatpush1.bf16.msra.mxu0 %v3126
        %3153 = vmatprep.subr.bf16.mxu0 0
        %3154 = vmatpush1.bf16.msra.mxu0 0
        %3155 = vmatprep.subr.bf16.mxu0 0
        %3156 = vmatpush1.bf16.msra.mxu0 0
        %3157 = vmatprep.subr.bf16.mxu0 0
        %3158 = vmatpush1.bf16.msra.mxu0 0
        %3159 = vmatprep.subr.bf16.mxu0 0
        %3160 = vmatpush1.bf16.msra.mxu0 0
        %3161 = vmatprep.subr.bf16.mxu0 0
        %3162 = vmatpush1.bf16.msra.mxu0 0
        %3163 = vmatprep.subr.bf16.mxu0 0
        %3164 = vmatpush1.bf16.msra.mxu0 0
        %3165 = vmatprep.subr.bf16.mxu0 0
        %3166 = vmatpush1.bf16.msra.mxu0 0
        %3167 = vmatprep.subr.bf16.mxu0 0
        %3168 = vmatpush1.bf16.msra.mxu0 0
        %3169 = vmatprep.subr.bf16.mxu0 0
        %3170 = vmatpush1.bf16.msra.mxu0 0
        %3171 = vmatprep.subr.bf16.mxu0 0
        %3172 = vmatpush1.bf16.msra.mxu0 0
        %3173 = vmatprep.subr.bf16.mxu0 0
        %3174 = vmatpush1.bf16.msra.mxu0 0
        %3175 = vmatprep.subr.bf16.mxu0 0
        %3176 = vmatpush1.bf16.msra.mxu0 0
        %3177 = vmatprep.subr.bf16.mxu0 0
        %3178 = vmatpush1.bf16.msra.mxu0 0
        %3179 = vmatprep.subr.bf16.mxu0 0
        %3180 = vmatpush1.bf16.msra.mxu0 0
        %3181 = vmatprep.mubr.bf16.mxu0 0
        %3182 = vmatmul.mubr.bf16.gmra.mrb[0].mxu0 %v3119
        %v3183 = vpop.f32.mrb[0].mxu0
        %v3184 = vadd.f32 %v2818, %v3183
        %v3185 = vpop.f32.mrb[0].mxu0
        %v3186 = vadd.f32 %v2820, %v3185
        %v3187 = vpop.f32.mrb[0].mxu0
        %v3188 = vadd.f32 %v2824, %v3187
        %v3189 = vpop.f32.mrb[0].mxu0
        %v3190 = vadd.f32 %v2826, %v3189
        %3191 = vmatprep.mubr.bf16.mxu0 0
        %3192 = vmatmul.mubr.bf16.gmra.mrb[0].mxu0 %v3122
        %v3193 = vpop.f32.mrb[0].mxu0
        %v3194 = vadd.f32 %v2830, %v3193
        %v3195 = vpop.f32.mrb[0].mxu0
        %v3196 = vadd.f32 %v2832, %v3195
        %v3197 = vpop.f32.mrb[0].mxu0
        %v3198 = vadd.f32 %v2836, %v3197
        %v3199 = vpop.f32.mrb[0].mxu0
        %v3200 = vadd.f32 %v2838, %v3199
        %3201 = vdwg.mxu0
        %3202 = vmatprep.subr.bf16.mxu0 %v2718
        %3203 = vmatpush1.bf16.msra.mxu0 %v2717
        %3204 = vmatprep.subr.bf16.mxu0 %v3135
        %3205 = vmatpush1.bf16.msra.mxu0 %v3132
        %3206 = vmatprep.subr.bf16.mxu0 0
        %3207 = vmatpush1.bf16.msra.mxu0 0
        %3208 = vmatprep.subr.bf16.mxu0 0
        %3209 = vmatpush1.bf16.msra.mxu0 0
        %3210 = vmatprep.subr.bf16.mxu0 0
        %3211 = vmatpush1.bf16.msra.mxu0 0
        %3212 = vmatprep.subr.bf16.mxu0 0
        %3213 = vmatpush1.bf16.msra.mxu0 0
        %3214 = vmatprep.subr.bf16.mxu0 0
        %3215 = vmatpush1.bf16.msra.mxu0 0
        %3216 = vmatprep.subr.bf16.mxu0 0
        %3217 = vmatpush1.bf16.msra.mxu0 0
        %3218 = vmatprep.subr.bf16.mxu0 0
        %3219 = vmatpush1.bf16.msra.mxu0 0
        %3220 = vmatprep.subr.bf16.mxu0 0
        %3221 = vmatpush1.bf16.msra.mxu0 0
        %3222 = vmatprep.subr.bf16.mxu0 0
        %3223 = vmatpush1.bf16.msra.mxu0 0
        %3224 = vmatprep.subr.bf16.mxu0 0
        %3225 = vmatpush1.bf16.msra.mxu0 0
        %3226 = vmatprep.subr.bf16.mxu0 0
        %3227 = vmatpush1.bf16.msra.mxu0 0
        %3228 = vmatprep.subr.bf16.mxu0 0
        %3229 = vmatpush1.bf16.msra.mxu0 0
        %3230 = vmatprep.subr.bf16.mxu0 0
        %3231 = vmatpush1.bf16.msra.mxu0 0
        %3232 = vmatprep.subr.bf16.mxu0 0
        %3233 = vmatpush1.bf16.msra.mxu0 0
        %3234 = vmatprep.mubr.bf16.mxu0 0
        %3235 = vmatmul.mubr.bf16.gmra.mrb[0].mxu0 %v3119
        %v3236 = vpop.f32.mrb[0].mxu0
        %v3237 = vadd.f32 %v2907, %v3236
        %v3238 = vpop.f32.mrb[0].mxu0
        %v3239 = vadd.f32 %v2909, %v3238
        %v3240 = vpop.f32.mrb[0].mxu0
        %v3241 = vadd.f32 %v2913, %v3240
        %v3242 = vpop.f32.mrb[0].mxu0
        %v3243 = vadd.f32 %v2915, %v3242
        %3244 = vmatprep.mubr.bf16.mxu0 0
        %3245 = vmatmul.mubr.bf16.gmra.mrb[0].mxu0 %v3122
        %v3246 = vpop.f32.mrb[0].mxu0
        %v3247 = vadd.f32 %v2919, %v3246
        %v3248 = vpop.f32.mrb[0].mxu0
        %v3249 = vadd.f32 %v2921, %v3248
        %v3250 = vpop.f32.mrb[0].mxu0
        %v3251 = vadd.f32 %v2925, %v3250
        %v3252 = vpop.f32.mrb[0].mxu0
        %v3253 = vadd.f32 %v2927, %v3252
        %3254 = vdwg.mxu0
        %3255 = vmatprep.subr.bf16.mxu0 %v2720
        %3256 = vmatpush1.bf16.msra.mxu0 %v2719
        %3257 = vmatprep.subr.bf16.mxu0 %v3141
        %3258 = vmatpush1.bf16.msra.mxu0 %v3138
        %3259 = vmatprep.subr.bf16.mxu0 0
        %3260 = vmatpush1.bf16.msra.mxu0 0
        %3261 = vmatprep.subr.bf16.mxu0 0
        %3262 = vmatpush1.bf16.msra.mxu0 0
        %3263 = vmatprep.subr.bf16.mxu0 0
        %3264 = vmatpush1.bf16.msra.mxu0 0
        %3265 = vmatprep.subr.bf16.mxu0 0
        %3266 = vmatpush1.bf16.msra.mxu0 0
        %3267 = vmatprep.subr.bf16.mxu0 0
        %3268 = vmatpush1.bf16.msra.mxu0 0
        %3269 = vmatprep.subr.bf16.mxu0 0
        %3270 = vmatpush1.bf16.msra.mxu0 0
        %3271 = vmatprep.subr.bf16.mxu0 0
        %3272 = vmatpush1.bf16.msra.mxu0 0
        %3273 = vmatprep.subr.bf16.mxu0 0
        %3274 = vmatpush1.bf16.msra.mxu0 0
        %3275 = vmatprep.subr.bf16.mxu0 0
        %3276 = vmatpush1.bf16.msra.mxu0 0
        %3277 = vmatprep.subr.bf16.mxu0 0
        %3278 = vmatpush1.bf16.msra.mxu0 0
        %3279 = vmatprep.subr.bf16.mxu0 0
        %3280 = vmatpush1.bf16.msra.mxu0 0
        %3281 = vmatprep.subr.bf16.mxu0 0
        %3282 = vmatpush1.bf16.msra.mxu0 0
        %3283 = vmatprep.subr.bf16.mxu0 0
        %3284 = vmatpush1.bf16.msra.mxu0 0
        %3285 = vmatprep.subr.bf16.mxu0 0
        %3286 = vmatpush1.bf16.msra.mxu0 0
        %3287 = vmatprep.mubr.bf16.mxu0 0
        %3288 = vmatmul.mubr.bf16.gmra.mrb[0].mxu0 %v3119
        %v3289 = vpop.f32.mrb[0].mxu0
        %v3290 = vadd.f32 %v2996, %v3289
        %v3291 = vpop.f32.mrb[0].mxu0
        %v3292 = vadd.f32 %v2998, %v3291
        %v3293 = vpop.f32.mrb[0].mxu0
        %v3294 = vadd.f32 %v3002, %v3293
        %v3295 = vpop.f32.mrb[0].mxu0
        %v3296 = vadd.f32 %v3004, %v3295
        %3297 = vmatprep.mubr.bf16.mxu0 0
        %3298 = vmatmul.mubr.bf16.gmra.mrb[0].mxu0 %v3122
        %v3299 = vpop.f32.mrb[0].mxu0
        %v3300 = vadd.f32 %v3008, %v3299
        %v3301 = vpop.f32.mrb[0].mxu0
        %v3302 = vadd.f32 %v3010, %v3301
        %v3303 = vpop.f32.mrb[0].mxu0
        %v3304 = vadd.f32 %v3014, %v3303
        %v3305 = vpop.f32.mrb[0].mxu0
        %v3306 = vadd.f32 %v3016, %v3305
        %3307 = vdwg.mxu0
        %3308 = vmatprep.subr.bf16.mxu0 %v2722
        %3309 = vmatpush1.bf16.msra.mxu0 %v2721
        %3310 = vmatprep.subr.bf16.mxu0 %v3147
        %3311 = vmatpush1.bf16.msra.mxu0 %v3144
        %3312 = vmatprep.subr.bf16.mxu0 0
        %3313 = vmatpush1.bf16.msra.mxu0 0
        %3314 = vmatprep.subr.bf16.mxu0 0
        %3315 = vmatpush1.bf16.msra.mxu0 0
        %3316 = vmatprep.subr.bf16.mxu0 0
        %3317 = vmatpush1.bf16.msra.mxu0 0
        %3318 = vmatprep.subr.bf16.mxu0 0
        %3319 = vmatpush1.bf16.msra.mxu0 0
        %3320 = vmatprep.subr.bf16.mxu0 0
        %3321 = vmatpush1.bf16.msra.mxu0 0
        %3322 = vmatprep.subr.bf16.mxu0 0
        %3323 = vmatpush1.bf16.msra.mxu0 0
        %3324 = vmatprep.subr.bf16.mxu0 0
        %3325 = vmatpush1.bf16.msra.mxu0 0
        %3326 = vmatprep.subr.bf16.mxu0 0
        %3327 = vmatpush1.bf16.msra.mxu0 0
        %3328 = vmatprep.subr.bf16.mxu0 0
        %3329 = vmatpush1.bf16.msra.mxu0 0
        %3330 = vmatprep.subr.bf16.mxu0 0
        %3331 = vmatpush1.bf16.msra.mxu0 0
        %3332 = vmatprep.subr.bf16.mxu0 0
        %3333 = vmatpush1.bf16.msra.mxu0 0
        %3334 = vmatprep.subr.bf16.mxu0 0
        %3335 = vmatpush1.bf16.msra.mxu0 0
        %3336 = vmatprep.subr.bf16.mxu0 0
        %3337 = vmatpush1.bf16.msra.mxu0 0
        %3338 = vmatprep.subr.bf16.mxu0 0
        %3339 = vmatpush1.bf16.msra.mxu0 0
        %3340 = vmatprep.mubr.bf16.mxu0 0
        %3341 = vmatmul.mubr.bf16.gmra.mrb[0].mxu0 %v3119
        %v3342 = vpop.f32.mrb[0].mxu0
        %v3343 = vadd.f32 %v3085, %v3342
        %v3344 = vpop.f32.mrb[0].mxu0
        %v3345 = vadd.f32 %v3087, %v3344
        %v3346 = vpop.f32.mrb[0].mxu0
        %v3347 = vadd.f32 %v3091, %v3346
        %v3348 = vpop.f32.mrb[0].mxu0
        %v3349 = vadd.f32 %v3093, %v3348
        %3350 = vmatprep.mubr.bf16.mxu0 0
        %3351 = vmatmul.mubr.bf16.gmra.mrb[0].mxu0 %v3122
        %v3352 = vpop.f32.mrb[0].mxu0
        %v3353 = vadd.f32 %v3097, %v3352
        %v3354 = vpop.f32.mrb[0].mxu0
        %v3355 = vadd.f32 %v3099, %v3354
        %v3356 = vpop.f32.mrb[0].mxu0
        %v3357 = vadd.f32 %v3103, %v3356
        %v3358 = vpop.f32.mrb[0].mxu0
        %v3359 = vadd.f32 %v3105, %v3358
        %3360 = vdwg.mxu0
        %v3361 = vld [vmem:[%s13] sm:$0xff]
        %v3362 = vld [vmem:[%s13 + $0x8] sm:$0xff]
        %v3363 = vld [vmem:[%s13 + $0x10] sm:$0xff]
        %v3364 = vld [vmem:[%s13 + $0x18] sm:$0xff]
        %3366 = vset.pattern.permute.xlu0 0
        %3367 = vperm.xlu0 %3366, %v3361
        %v3368 = vpop.permute.xlu0 %3367
        %3371 = vset.pattern.permute.xlu0 0
        %3372 = vperm.xlu0 %3371, %v3362
        %v3373 = vpop.permute.xlu0 %3372
        %3376 = vset.pattern.permute.xlu0 0
        %3377 = vperm.xlu0 %3376, %v3363
        %v3378 = vpop.permute.xlu0 %3377
        %3381 = vset.pattern.permute.xlu0 0
        %3382 = vperm.xlu0 %3381, %v3364
        %v3383 = vpop.permute.xlu0 %3382
        %v3385 = vmul.f32 %v3368, %v611
        %v3386 = vmul.f32 %v3368, %v615
        %v3387 = vmul.f32 %v3368, %v619
        %v3388 = vmul.f32 %v3368, %v623
        %v3389 = vmul.f32 %v3368, %v627
        %v3390 = vmul.f32 %v3368, %v631
        %v3391 = vmul.f32 %v3368, %v635
        %v3392 = vmul.f32 %v3368, %v639
        %v3393 = vmul.f32 %v3373, %v611
        %v3394 = vmul.f32 %v3373, %v615
        %v3395 = vmul.f32 %v3373, %v619
        %v3396 = vmul.f32 %v3373, %v623
        %v3397 = vmul.f32 %v3373, %v627
        %v3398 = vmul.f32 %v3373, %v631
        %v3399 = vmul.f32 %v3373, %v635
        %v3400 = vmul.f32 %v3373, %v639
        %v3401 = vmul.f32 %v3378, %v611
        %v3402 = vmul.f32 %v3378, %v615
        %v3403 = vmul.f32 %v3378, %v619
        %v3404 = vmul.f32 %v3378, %v623
        %v3405 = vmul.f32 %v3378, %v627
        %v3406 = vmul.f32 %v3378, %v631
        %v3407 = vmul.f32 %v3378, %v635
        %v3408 = vmul.f32 %v3378, %v639
        %v3409 = vmul.f32 %v3383, %v611
        %v3410 = vmul.f32 %v3383, %v615
        %v3411 = vmul.f32 %v3383, %v619
        %v3412 = vmul.f32 %v3383, %v623
        %v3413 = vmul.f32 %v3383, %v627
        %v3414 = vmul.f32 %v3383, %v631
        %v3415 = vmul.f32 %v3383, %v635
        %v3416 = vmul.f32 %v3383, %v639
        %v3417 = vadd.f32 %v3184, %v3385
        %v3418 = vadd.f32 %v3186, %v3386
        %v3419 = vadd.f32 %v3237, %v3387
        %v3420 = vadd.f32 %v3239, %v3388
        %v3421 = vadd.f32 %v3290, %v3389
        %v3422 = vadd.f32 %v3292, %v3390
        %v3423 = vadd.f32 %v3343, %v3391
        %v3424 = vadd.f32 %v3345, %v3392
        %v3425 = vadd.f32 %v3188, %v3393
        %v3426 = vadd.f32 %v3190, %v3394
        %v3427 = vadd.f32 %v3241, %v3395
        %v3428 = vadd.f32 %v3243, %v3396
        %v3429 = vadd.f32 %v3294, %v3397
        %v3430 = vadd.f32 %v3296, %v3398
        %v3431 = vadd.f32 %v3347, %v3399
        %v3432 = vadd.f32 %v3349, %v3400
        %v3433 = vadd.f32 %v3194, %v3401
        %v3434 = vadd.f32 %v3196, %v3402
        %v3435 = vadd.f32 %v3247, %v3403
        %v3436 = vadd.f32 %v3249, %v3404
        %v3437 = vadd.f32 %v3300, %v3405
        %v3438 = vadd.f32 %v3302, %v3406
        %v3439 = vadd.f32 %v3353, %v3407
        %v3440 = vadd.f32 %v3355, %v3408
        %v3441 = vadd.f32 %v3198, %v3409
        %v3442 = vadd.f32 %v3200, %v3410
        %v3443 = vadd.f32 %v3251, %v3411
        %v3444 = vadd.f32 %v3253, %v3412
        %v3445 = vadd.f32 %v3304, %v3413
        %v3446 = vadd.f32 %v3306, %v3414
        %v3447 = vadd.f32 %v3357, %v3415
        %v3448 = vadd.f32 %v3359, %v3416
        %v3449 = vld [vmem:[%s14] sm:$0xff]
        %v3450 = vld [vmem:[%s14 + $0x8] sm:$0xff]
        %v3451 = vld [vmem:[%s14 + $0x10] sm:$0xff]
        %v3452 = vld [vmem:[%s14 + $0x18] sm:$0xff]
        %3454 = vset.pattern.permute.xlu0 0
        %3455 = vperm.xlu0 %3454, %v3449
        %v3456 = vpop.permute.xlu0 %3455
        %3459 = vset.pattern.permute.xlu0 0
        %3460 = vperm.xlu0 %3459, %v3450
        %v3461 = vpop.permute.xlu0 %3460
        %3464 = vset.pattern.permute.xlu0 0
        %3465 = vperm.xlu0 %3464, %v3451
        %v3466 = vpop.permute.xlu0 %3465
        %3469 = vset.pattern.permute.xlu0 0
        %3470 = vperm.xlu0 %3469, %v3452
        %v3471 = vpop.permute.xlu0 %3470
        %v3473 = vadd.f32 %v3417, %v3456
        %v3474 = vadd.f32 %v3418, %v3456
        %v3475 = vadd.f32 %v3419, %v3456
        %v3476 = vadd.f32 %v3420, %v3456
        %v3477 = vadd.f32 %v3421, %v3456
        %v3478 = vadd.f32 %v3422, %v3456
        %v3479 = vadd.f32 %v3423, %v3456
        %v3480 = vadd.f32 %v3424, %v3456
        %v3481 = vadd.f32 %v3425, %v3461
        %v3482 = vadd.f32 %v3426, %v3461
        %v3483 = vadd.f32 %v3427, %v3461
        %v3484 = vadd.f32 %v3428, %v3461
        %v3485 = vadd.f32 %v3429, %v3461
        %v3486 = vadd.f32 %v3430, %v3461
        %v3487 = vadd.f32 %v3431, %v3461
        %v3488 = vadd.f32 %v3432, %v3461
        %v3489 = vadd.f32 %v3433, %v3466
        %v3490 = vadd.f32 %v3434, %v3466
        %v3491 = vadd.f32 %v3435, %v3466
        %v3492 = vadd.f32 %v3436, %v3466
        %v3493 = vadd.f32 %v3437, %v3466
        %v3494 = vadd.f32 %v3438, %v3466
        %v3495 = vadd.f32 %v3439, %v3466
        %v3496 = vadd.f32 %v3440, %v3466
        %v3497 = vadd.f32 %v3441, %v3471
        %v3498 = vadd.f32 %v3442, %v3471
        %v3499 = vadd.f32 %v3443, %v3471
        %v3500 = vadd.f32 %v3444, %v3471
        %v3501 = vadd.f32 %v3445, %v3471
        %v3502 = vadd.f32 %v3446, %v3471
        %v3503 = vadd.f32 %v3447, %v3471
        %v3504 = vadd.f32 %v3448, %v3471
        %v3505 = vpack.c.bf16 %v3481, %v3473
        %v3506 = vpack.c.bf16 %v3482, %v3474
        %v3507 = vpack.c.bf16 %v3483, %v3475
        %v3508 = vpack.c.bf16 %v3484, %v3476
        %v3509 = vpack.c.bf16 %v3485, %v3477
        %v3510 = vpack.c.bf16 %v3486, %v3478
        %v3511 = vpack.c.bf16 %v3487, %v3479
        %v3512 = vpack.c.bf16 %v3488, %v3480
        %v3513 = vpack.c.bf16 %v3497, %v3489
        %v3514 = vpack.c.bf16 %v3498, %v3490
        %v3515 = vpack.c.bf16 %v3499, %v3491
        %v3516 = vpack.c.bf16 %v3500, %v3492
        %v3517 = vpack.c.bf16 %v3501, %v3493
        %v3518 = vpack.c.bf16 %v3502, %v3494
        %v3519 = vpack.c.bf16 %v3503, %v3495
        %v3520 = vpack.c.bf16 %v3504, %v3496
        %v3521 = vmul.bf16 %v3505, 1120420552
        %v3522 = vmul.bf16 %v3506, 1120420552
        %v3523 = vmul.bf16 %v3507, 1120420552
        %v3524 = vmul.bf16 %v3508, 1120420552
        %v3525 = vmul.bf16 %v3509, 1120420552
        %v3526 = vmul.bf16 %v3510, 1120420552
        %v3527 = vmul.bf16 %v3511, 1120420552
        %v3528 = vmul.bf16 %v3512, 1120420552
        %v3529 = vmul.bf16 %v3513, 1120420552
        %v3530 = vmul.bf16 %v3514, 1120420552
        %v3531 = vmul.bf16 %v3515, 1120420552
        %v3532 = vmul.bf16 %v3516, 1120420552
        %v3533 = vmul.bf16 %v3517, 1120420552
        %v3534 = vmul.bf16 %v3518, 1120420552
        %v3535 = vmul.bf16 %v3519, 1120420552
        %v3536 = vmul.bf16 %v3520, 1120420552
        %v3537 = vmin.bf16 %v3521, 1101021600
        %v3538 = vmin.bf16 %v3522, 1101021600
        %v3539 = vmin.bf16 %v3523, 1101021600
        %v3540 = vmin.bf16 %v3524, 1101021600
        %v3541 = vmin.bf16 %v3525, 1101021600
        %v3542 = vmin.bf16 %v3526, 1101021600
        %v3543 = vmin.bf16 %v3527, 1101021600
        %v3544 = vmin.bf16 %v3528, 1101021600
        %v3545 = vmin.bf16 %v3529, 1101021600
        %v3546 = vmin.bf16 %v3530, 1101021600
        %v3547 = vmin.bf16 %v3531, 1101021600
        %v3548 = vmin.bf16 %v3532, 1101021600
        %v3549 = vmin.bf16 %v3533, 1101021600
        %v3550 = vmin.bf16 %v3534, 1101021600
        %v3551 = vmin.bf16 %v3535, 1101021600
        %v3552 = vmin.bf16 %v3536, 1101021600
        %v3554 = vmul.bf16 %v3537, 1069105081
        %v3555 = vpow.bf16.pop %v3554
        %v3557 = vmul.bf16 %v3538, 1069105081
        %v3558 = vpow.bf16.pop %v3557
        %v3560 = vmul.bf16 %v3539, 1069105081
        %v3561 = vpow.bf16.pop %v3560
        %v3563 = vmul.bf16 %v3540, 1069105081
        %v3564 = vpow.bf16.pop %v3563
        %v3566 = vmul.bf16 %v3541, 1069105081
        %v3567 = vpow.bf16.pop %v3566
        %v3569 = vmul.bf16 %v3542, 1069105081
        %v3570 = vpow.bf16.pop %v3569
        %v3572 = vmul.bf16 %v3543, 1069105081
        %v3573 = vpow.bf16.pop %v3572
        %v3575 = vmul.bf16 %v3544, 1069105081
        %v3576 = vpow.bf16.pop %v3575
        %v3578 = vmul.bf16 %v3545, 1069105081
        %v3579 = vpow.bf16.pop %v3578
        %v3581 = vmul.bf16 %v3546, 1069105081
        %v3582 = vpow.bf16.pop %v3581
        %v3584 = vmul.bf16 %v3547, 1069105081
        %v3585 = vpow.bf16.pop %v3584
        %v3587 = vmul.bf16 %v3548, 1069105081
        %v3588 = vpow.bf16.pop %v3587
        %v3590 = vmul.bf16 %v3549, 1069105081
        %v3591 = vpow.bf16.pop %v3590
        %v3593 = vmul.bf16 %v3550, 1069105081
        %v3594 = vpow.bf16.pop %v3593
        %v3596 = vmul.bf16 %v3551, 1069105081
        %v3597 = vpow.bf16.pop %v3596
        %v3599 = vmul.bf16 %v3552, 1069105081
        %v3600 = vpow.bf16.pop %v3599
        %v3601 = vadd.bf16 %v3555, 1065369472
        %v3602 = vadd.bf16 %v3558, 1065369472
        %v3603 = vadd.bf16 %v3561, 1065369472
        %v3604 = vadd.bf16 %v3564, 1065369472
        %v3605 = vadd.bf16 %v3567, 1065369472
        %v3606 = vadd.bf16 %v3570, 1065369472
        %v3607 = vadd.bf16 %v3573, 1065369472
        %v3608 = vadd.bf16 %v3576, 1065369472
        %v3609 = vadd.bf16 %v3579, 1065369472
        %v3610 = vadd.bf16 %v3582, 1065369472
        %v3611 = vadd.bf16 %v3585, 1065369472
        %v3612 = vadd.bf16 %v3588, 1065369472
        %v3613 = vadd.bf16 %v3591, 1065369472
        %v3614 = vadd.bf16 %v3594, 1065369472
        %v3615 = vadd.bf16 %v3597, 1065369472
        %v3616 = vadd.bf16 %v3600, 1065369472
        %v3617 = vlog2.bf16.pop %v3601
        %v3619 = vmul.bf16 %v3617, 1060192049
        %v3620 = vlog2.bf16.pop %v3602
        %v3622 = vmul.bf16 %v3620, 1060192049
        %v3623 = vlog2.bf16.pop %v3603
        %v3625 = vmul.bf16 %v3623, 1060192049
        %v3626 = vlog2.bf16.pop %v3604
        %v3628 = vmul.bf16 %v3626, 1060192049
        %v3629 = vlog2.bf16.pop %v3605
        %v3631 = vmul.bf16 %v3629, 1060192049
        %v3632 = vlog2.bf16.pop %v3606
        %v3634 = vmul.bf16 %v3632, 1060192049
        %v3635 = vlog2.bf16.pop %v3607
        %v3637 = vmul.bf16 %v3635, 1060192049
        %v3638 = vlog2.bf16.pop %v3608
        %v3640 = vmul.bf16 %v3638, 1060192049
        %v3641 = vlog2.bf16.pop %v3609
        %v3643 = vmul.bf16 %v3641, 1060192049
        %v3644 = vlog2.bf16.pop %v3610
        %v3646 = vmul.bf16 %v3644, 1060192049
        %v3647 = vlog2.bf16.pop %v3611
        %v3649 = vmul.bf16 %v3647, 1060192049
        %v3650 = vlog2.bf16.pop %v3612
        %v3652 = vmul.bf16 %v3650, 1060192049
        %v3653 = vlog2.bf16.pop %v3613
        %v3655 = vmul.bf16 %v3653, 1060192049
        %v3656 = vlog2.bf16.pop %v3614
        %v3658 = vmul.bf16 %v3656, 1060192049
        %v3659 = vlog2.bf16.pop %v3615
        %v3661 = vmul.bf16 %v3659, 1060192049
        %v3662 = vlog2.bf16.pop %v3616
        %v3664 = vmul.bf16 %v3662, 1060192049
        %v3665 = vmul.bf16 %v3619, 1009007652
        %v3666 = vmul.bf16 %v3622, 1009007652
        %v3667 = vmul.bf16 %v3625, 1009007652
        %v3668 = vmul.bf16 %v3628, 1009007652
        %v3669 = vmul.bf16 %v3631, 1009007652
        %v3670 = vmul.bf16 %v3634, 1009007652
        %v3671 = vmul.bf16 %v3637, 1009007652
        %v3672 = vmul.bf16 %v3640, 1009007652
        %v3673 = vmul.bf16 %v3643, 1009007652
        %v3674 = vmul.bf16 %v3646, 1009007652
        %v3675 = vmul.bf16 %v3649, 1009007652
        %v3676 = vmul.bf16 %v3652, 1009007652
        %v3677 = vmul.bf16 %v3655, 1009007652
        %v3678 = vmul.bf16 %v3658, 1009007652
        %v3679 = vmul.bf16 %v3661, 1009007652
        %v3680 = vmul.bf16 %v3664, 1009007652
        %vm3681 = vcmp.gt.bf16.partialorder %v3521, 1101021600
        %vm3682 = vcmp.gt.bf16.partialorder %v3522, 1101021600
        %vm3683 = vcmp.gt.bf16.partialorder %v3523, 1101021600
        %vm3684 = vcmp.gt.bf16.partialorder %v3524, 1101021600
        %vm3685 = vcmp.gt.bf16.partialorder %v3525, 1101021600
        %vm3686 = vcmp.gt.bf16.partialorder %v3526, 1101021600
        %vm3687 = vcmp.gt.bf16.partialorder %v3527, 1101021600
        %vm3688 = vcmp.gt.bf16.partialorder %v3528, 1101021600
        %vm3689 = vcmp.gt.bf16.partialorder %v3529, 1101021600
        %vm3690 = vcmp.gt.bf16.partialorder %v3530, 1101021600
        %vm3691 = vcmp.gt.bf16.partialorder %v3531, 1101021600
        %vm3692 = vcmp.gt.bf16.partialorder %v3532, 1101021600
        %vm3693 = vcmp.gt.bf16.partialorder %v3533, 1101021600
        %vm3694 = vcmp.gt.bf16.partialorder %v3534, 1101021600
        %vm3695 = vcmp.gt.bf16.partialorder %v3535, 1101021600
        %vm3696 = vcmp.gt.bf16.partialorder %v3536, 1101021600
        %v3697 = vsel %vm3681, %v3505, %v3665
        %v3698 = vsel %vm3682, %v3506, %v3666
        %v3699 = vsel %vm3683, %v3507, %v3667
        %v3700 = vsel %vm3684, %v3508, %v3668
        %v3701 = vsel %vm3685, %v3509, %v3669
        %v3702 = vsel %vm3686, %v3510, %v3670
        %v3703 = vsel %vm3687, %v3511, %v3671
        %v3704 = vsel %vm3688, %v3512, %v3672
        %v3705 = vsel %vm3689, %v3513, %v3673
        %v3706 = vsel %vm3690, %v3514, %v3674
        %v3707 = vsel %vm3691, %v3515, %v3675
        %v3708 = vsel %vm3692, %v3516, %v3676
        %v3709 = vsel %vm3693, %v3517, %v3677
        %v3710 = vsel %vm3694, %v3518, %v3678
        %v3711 = vsel %vm3695, %v3519, %v3679
        %v3712 = vsel %vm3696, %v3520, %v3680
        %v3713 = vld [vmem:[%s15] sm:$0xf]
        %v3714 = vld [vmem:[%s15 + $0x4] sm:$0x1]
        %v3715 = vld [vmem:[%s16] sm:$0xff]
        %v3716 = vld [vmem:[%s16 + $0x8] sm:$0x1]
        %3718 = vset.pattern.permute.xlu0 0
        %3719 = vperm.xlu0 %3718, %v3715
        %v3720 = vpop.permute.xlu0 %3719
        %3723 = vset.pattern.permute.xlu0 0
        %3724 = vperm.xlu0 %3723, %v3716
        %v3725 = vpop.permute.xlu0 %3724
        %v3729 = vunpack.c.l.b16 %v3713
        %v3730 = vunpack.c.l.b16 %v3714
        %v3731 = vpack.c.b16 %v3730, %v3729
        %v3733 = vsel %vm1376, %v3731, 0
        %3735 = vmatprep.subr.bf16.mxu0 %v3698
        %3736 = vmatpush1.bf16.msra.mxu0 %v3697
        %3737 = vmatprep.subr.bf16.mxu0 %v3706
        %3738 = vmatpush1.bf16.msra.mxu0 %v3705
        %3739 = vmatprep.subr.bf16.mxu0 0
        %3740 = vmatpush1.bf16.msra.mxu0 0
        %3741 = vmatprep.subr.bf16.mxu0 0
        %3742 = vmatpush1.bf16.msra.mxu0 0
        %3743 = vmatprep.subr.bf16.mxu0 0
        %3744 = vmatpush1.bf16.msra.mxu0 0
        %3745 = vmatprep.subr.bf16.mxu0 0
        %3746 = vmatpush1.bf16.msra.mxu0 0
        %3747 = vmatprep.subr.bf16.mxu0 0
        %3748 = vmatpush1.bf16.msra.mxu0 0
        %3749 = vmatprep.subr.bf16.mxu0 0
        %3750 = vmatpush1.bf16.msra.mxu0 0
        %3751 = vmatprep.subr.bf16.mxu0 0
        %3752 = vmatpush1.bf16.msra.mxu0 0
        %3753 = vmatprep.subr.bf16.mxu0 0
        %3754 = vmatpush1.bf16.msra.mxu0 0
        %3755 = vmatprep.subr.bf16.mxu0 0
        %3756 = vmatpush1.bf16.msra.mxu0 0
        %3757 = vmatprep.subr.bf16.mxu0 0
        %3758 = vmatpush1.bf16.msra.mxu0 0
        %3759 = vmatprep.subr.bf16.mxu0 0
        %3760 = vmatpush1.bf16.msra.mxu0 0
        %3761 = vmatprep.subr.bf16.mxu0 0
        %3762 = vmatpush1.bf16.msra.mxu0 0
        %3763 = vmatprep.subr.bf16.mxu0 0
        %3764 = vmatpush1.bf16.msra.mxu0 0
        %3765 = vmatprep.subr.bf16.mxu0 0
        %3766 = vmatpush1.bf16.msra.mxu0 0
        %3767 = vmatprep.mubr.bf16.mxu0 0
        %3768 = vmatmul.mubr.bf16.gmra.mrb[0].mxu0 %v3733
        %v3769 = vpop.f32.mrb[0].mxu0
        %v3770 = vadd.f32 %v3720, %v3769
        %v3771 = vpop.f32.mrb[0].mxu0
        %v3772 = vadd.f32 %v3720, %v3771
        %v3773 = vpop.f32.mrb[0].mxu0
        %v3774 = vadd.f32 %v3725, %v3773
        %v3775 = vpop.f32.mrb[0].mxu0
        %v3776 = vadd.f32 %v3725, %v3775
        %3777 = vdwg.mxu0
        %3778 = vmatprep.subr.bf16.mxu0 %v3700
        %3779 = vmatpush1.bf16.msra.mxu0 %v3699
        %3780 = vmatprep.subr.bf16.mxu0 %v3708
        %3781 = vmatpush1.bf16.msra.mxu0 %v3707
        %3782 = vmatprep.subr.bf16.mxu0 0
        %3783 = vmatpush1.bf16.msra.mxu0 0
        %3784 = vmatprep.subr.bf16.mxu0 0
        %3785 = vmatpush1.bf16.msra.mxu0 0
        %3786 = vmatprep.subr.bf16.mxu0 0
        %3787 = vmatpush1.bf16.msra.mxu0 0
        %3788 = vmatprep.subr.bf16.mxu0 0
        %3789 = vmatpush1.bf16.msra.mxu0 0
        %3790 = vmatprep.subr.bf16.mxu0 0
        %3791 = vmatpush1.bf16.msra.mxu0 0
        %3792 = vmatprep.subr.bf16.mxu0 0
        %3793 = vmatpush1.bf16.msra.mxu0 0
        %3794 = vmatprep.subr.bf16.mxu0 0
        %3795 = vmatpush1.bf16.msra.mxu0 0
        %3796 = vmatprep.subr.bf16.mxu0 0
        %3797 = vmatpush1.bf16.msra.mxu0 0
        %3798 = vmatprep.subr.bf16.mxu0 0
        %3799 = vmatpush1.bf16.msra.mxu0 0
        %3800 = vmatprep.subr.bf16.mxu0 0
        %3801 = vmatpush1.bf16.msra.mxu0 0
        %3802 = vmatprep.subr.bf16.mxu0 0
        %3803 = vmatpush1.bf16.msra.mxu0 0
        %3804 = vmatprep.subr.bf16.mxu0 0
        %3805 = vmatpush1.bf16.msra.mxu0 0
        %3806 = vmatprep.subr.bf16.mxu0 0
        %3807 = vmatpush1.bf16.msra.mxu0 0
        %3808 = vmatprep.subr.bf16.mxu0 0
        %3809 = vmatpush1.bf16.msra.mxu0 0
        %3810 = vmatprep.mubr.bf16.mxu0 0
        %3811 = vmatmul.mubr.bf16.gmra.mrb[0].mxu0 %v3733
        %v3812 = vpop.f32.mrb[0].mxu0
        %v3813 = vadd.f32 %v3720, %v3812
        %v3814 = vpop.f32.mrb[0].mxu0
        %v3815 = vadd.f32 %v3720, %v3814
        %v3816 = vpop.f32.mrb[0].mxu0
        %v3817 = vadd.f32 %v3725, %v3816
        %v3818 = vpop.f32.mrb[0].mxu0
        %v3819 = vadd.f32 %v3725, %v3818
        %3820 = vdwg.mxu0
        %3821 = vmatprep.subr.bf16.mxu0 %v3702
        %3822 = vmatpush1.bf16.msra.mxu0 %v3701
        %3823 = vmatprep.subr.bf16.mxu0 %v3710
        %3824 = vmatpush1.bf16.msra.mxu0 %v3709
        %3825 = vmatprep.subr.bf16.mxu0 0
        %3826 = vmatpush1.bf16.msra.mxu0 0
        %3827 = vmatprep.subr.bf16.mxu0 0
        %3828 = vmatpush1.bf16.msra.mxu0 0
        %3829 = vmatprep.subr.bf16.mxu0 0
        %3830 = vmatpush1.bf16.msra.mxu0 0
        %3831 = vmatprep.subr.bf16.mxu0 0
        %3832 = vmatpush1.bf16.msra.mxu0 0
        %3833 = vmatprep.subr.bf16.mxu0 0
        %3834 = vmatpush1.bf16.msra.mxu0 0
        %3835 = vmatprep.subr.bf16.mxu0 0
        %3836 = vmatpush1.bf16.msra.mxu0 0
        %3837 = vmatprep.subr.bf16.mxu0 0
        %3838 = vmatpush1.bf16.msra.mxu0 0
        %3839 = vmatprep.subr.bf16.mxu0 0
        %3840 = vmatpush1.bf16.msra.mxu0 0
        %3841 = vmatprep.subr.bf16.mxu0 0
        %3842 = vmatpush1.bf16.msra.mxu0 0
        %3843 = vmatprep.subr.bf16.mxu0 0
        %3844 = vmatpush1.bf16.msra.mxu0 0
        %3845 = vmatprep.subr.bf16.mxu0 0
        %3846 = vmatpush1.bf16.msra.mxu0 0
        %3847 = vmatprep.subr.bf16.mxu0 0
        %3848 = vmatpush1.bf16.msra.mxu0 0
        %3849 = vmatprep.subr.bf16.mxu0 0
        %3850 = vmatpush1.bf16.msra.mxu0 0
        %3851 = vmatprep.subr.bf16.mxu0 0
        %3852 = vmatpush1.bf16.msra.mxu0 0
        %3853 = vmatprep.mubr.bf16.mxu0 0
        %3854 = vmatmul.mubr.bf16.gmra.mrb[0].mxu0 %v3733
        %v3855 = vpop.f32.mrb[0].mxu0
        %v3856 = vadd.f32 %v3720, %v3855
        %v3857 = vpop.f32.mrb[0].mxu0
        %v3858 = vadd.f32 %v3720, %v3857
        %v3859 = vpop.f32.mrb[0].mxu0
        %v3860 = vadd.f32 %v3725, %v3859
        %v3861 = vpop.f32.mrb[0].mxu0
        %v3862 = vadd.f32 %v3725, %v3861
        %3863 = vdwg.mxu0
        %3864 = vmatprep.subr.bf16.mxu0 %v3704
        %3865 = vmatpush1.bf16.msra.mxu0 %v3703
        %3866 = vmatprep.subr.bf16.mxu0 %v3712
        %3867 = vmatpush1.bf16.msra.mxu0 %v3711
        %3868 = vmatprep.subr.bf16.mxu0 0
        %3869 = vmatpush1.bf16.msra.mxu0 0
        %3870 = vmatprep.subr.bf16.mxu0 0
        %3871 = vmatpush1.bf16.msra.mxu0 0
        %3872 = vmatprep.subr.bf16.mxu0 0
        %3873 = vmatpush1.bf16.msra.mxu0 0
        %3874 = vmatprep.subr.bf16.mxu0 0
        %3875 = vmatpush1.bf16.msra.mxu0 0
        %3876 = vmatprep.subr.bf16.mxu0 0
        %3877 = vmatpush1.bf16.msra.mxu0 0
        %3878 = vmatprep.subr.bf16.mxu0 0
        %3879 = vmatpush1.bf16.msra.mxu0 0
        %3880 = vmatprep.subr.bf16.mxu0 0
        %3881 = vmatpush1.bf16.msra.mxu0 0
        %3882 = vmatprep.subr.bf16.mxu0 0
        %3883 = vmatpush1.bf16.msra.mxu0 0
        %3884 = vmatprep.subr.bf16.mxu0 0
        %3885 = vmatpush1.bf16.msra.mxu0 0
        %3886 = vmatprep.subr.bf16.mxu0 0
        %3887 = vmatpush1.bf16.msra.mxu0 0
        %3888 = vmatprep.subr.bf16.mxu0 0
        %3889 = vmatpush1.bf16.msra.mxu0 0
        %3890 = vmatprep.subr.bf16.mxu0 0
        %3891 = vmatpush1.bf16.msra.mxu0 0
        %3892 = vmatprep.subr.bf16.mxu0 0
        %3893 = vmatpush1.bf16.msra.mxu0 0
        %3894 = vmatprep.subr.bf16.mxu0 0
        %3895 = vmatpush1.bf16.msra.mxu0 0
        %3896 = vmatprep.mubr.bf16.mxu0 0
        %3897 = vmatmul.mubr.bf16.gmra.mrb[0].mxu0 %v3733
        %v3898 = vpop.f32.mrb[0].mxu0
        %v3899 = vadd.f32 %v3720, %v3898
        %v3900 = vpop.f32.mrb[0].mxu0
        %v3901 = vadd.f32 %v3720, %v3900
        %v3902 = vpop.f32.mrb[0].mxu0
        %v3903 = vadd.f32 %v3725, %v3902
        %v3904 = vpop.f32.mrb[0].mxu0
        %v3905 = vadd.f32 %v3725, %v3904
        %3906 = vdwg.mxu0
        %3907 = vst [vmem:[%s556] sm:$0xff] %v3770
        %3908 = vst [vmem:[%s556 + $0x8] sm:$0xff] %v3772
        %3909 = vst [vmem:[%s556 + $0x10] sm:$0xff] %v3813
        %3910 = vst [vmem:[%s556 + $0x18] sm:$0xff] %v3815
        %3911 = vst [vmem:[%s556 + $0x20] sm:$0xff] %v3856
        %3912 = vst [vmem:[%s556 + $0x28] sm:$0xff] %v3858
        %3913 = vst [vmem:[%s556 + $0x30] sm:$0xff] %v3899
        %3914 = vst [vmem:[%s556 + $0x38] sm:$0xff] %v3901
        %3915 = vst [vmem:[%s556 + $0x40] sm:$0x1] %v3774
        %3916 = vst [vmem:[%s556 + $0x48] sm:$0x1] %v3776
        %3917 = vst [vmem:[%s556 + $0x50] sm:$0x1] %v3817
        %3918 = vst [vmem:[%s556 + $0x58] sm:$0x1] %v3819
        %3919 = vst [vmem:[%s556 + $0x60] sm:$0x1] %v3860
        %3920 = vst [vmem:[%s556 + $0x68] sm:$0x1] %v3862
        %3921 = vst [vmem:[%s556 + $0x70] sm:$0x1] %v3903
        %3922 = vst [vmem:[%s556 + $0x78] sm:$0x1] %v3905
        %s3923 = sand.u32 %s406, 1
        %s3924 = scalar_lea.sflag [#allocation3], %s3923
        %s3925 = sand.u32 %s406, 1
        %s3926 = smul.addr %s3925, 128
        %s3927 = scalar_lea.vmem [#allocation2], %s3926
        // Predicated region
        $region89: #{tpu_custom_call.1} parent=87 // pred_check
          %p3928 = pneg %p416
        $region90: #{tpu_custom_call.1} parent=87 // pred_check_branch
          %3930 = sbr.rel (%p3928) target = $region92
        $region91: #{tpu_custom_call.1} parent=87 // pred_region
          %s3931 = smul.u32 8, %s31
          %s3933 = ssub.s32 2048, 2048
          %3934 = vsyncadd %s3924, %s3933
          %s3935 = smul.addr %s3931, 128
          %s3936 = scalar_lea.hbm %s17, %s3935
          %s3937 = sshll.u32 %s3927, 4
          %s3938 = int_to_ptr.vmem [resolvable:$true] %s3937
          %3943 = dma.vmem_to_hbm [thread:$0]  %s3938, 2048, %s3936, %s3924, 1024, 2048, 64
        $region92: #{tpu_custom_call.1} parent=87 // pred_fallthru
          _
      $region88: #{tpu_custom_call.1} parent=5 // pred_fallthru
        _
      %p3944 = scmp.le.s32.totalorder 2, %s26
      // Predicated region
      $region93: #{tpu_custom_call.1} parent=5 // pred_check
        %p3945 = pneg %p3944
      $region94: #{tpu_custom_call.1} parent=5 // pred_check_branch
        %3947 = sbr.rel (%p3945) target = $region96
      $region95: #{tpu_custom_call.1} parent=5 // pred_region
        %s3948 = ssub.s32 %s26, 2
        // Predicated region
        $region97: #{tpu_custom_call.1} parent=95 // pred_check
          %p3949 = pneg %p422
        $region98: #{tpu_custom_call.1} parent=95 // pred_check_branch
          %3951 = sbr.rel (%p3949) target = $region100
        $region99: #{tpu_custom_call.1} parent=95 // pred_region
          %s3952 = sand.u32 %s407, 1
          %s3953 = scalar_lea.sflag [#allocation3], %s3952
          %s3954 = sand.u32 %s407, 1
          %s3955 = smul.addr %s3954, 128
          %s3956 = scalar_lea.vmem [#allocation2], %s3955
          %3957 = dma.done %s3953, 2048
        $region100: #{tpu_custom_call.1} parent=95 // pred_fallthru
          _
      $region96: #{tpu_custom_call.1} parent=5 // pred_fallthru
        _
    $region6: #{tpu_custom_call.1} parent=1 // loop_footer
      %s30 = sadd.s32 1, %s26
    $region7: #{tpu_custom_call.1} parent=1 // loop_footer_branch
      %25 = sbr.rel target = $region3
    $region8: #{tpu_custom_call.1} parent=1 // loop_exit
      _
    %3958 = vsyncpa [#allocation3], 1
    %s3959 = scalar_lea.sflag [#allocation3], 1
    %3960 = vsyncpa %s3959, 1

</llo_original>
